<compile_context>
chip_gen: v7x
topology: tpu7x:2x2x1
jax: 0.10.0
libtpu: 0.0.40
codegen_flags: <defaults>
</compile_context>

<pallas_src>
import jax
import jax.numpy as jnp
from jax import lax
from jax.experimental import pallas as pl
from jax.experimental.pallas import tpu as pltpu

EPS = 1e-5                     # torch BatchNorm default eps
BF16 = jnp.bfloat16


def _hw_config():
    """(row-tile target, vmem_limit_bytes) chosen per TPU generation."""
    vmem_cap = 64 * 1024 * 1024
    try:
        info = pltpu.get_tpu_info()
        vmem_cap = int(getattr(info, "vmem_capacity_bytes", vmem_cap))
    except Exception:
        pass
    if vmem_cap >= 100 * 1024 * 1024:          # v5e / v6e: 128 MiB VMEM
        return 2048, 96 * 1024 * 1024
    return 1024, 48 * 1024 * 1024              # v7x: 64 MiB VMEM per TensorCore


_TR_TARGET, _VMEM_LIMIT = _hw_config()


# ----------------------------------------------------------------------------- kernel helpers

def _emit_stats(h, sum_ref, sq_ref):
    """Per-tile partial per-channel sum / sum-of-squares of the (f32) pre-BN output.
    The row reduction runs as a ones-row matmul on the MXU with f32 accumulation,
    keeping the VALU slot free for the element-wise prologue."""
    ones = jnp.ones((8, h.shape[0]), jnp.float32)
    s8 = jnp.dot(ones, h, preferred_element_type=jnp.float32)        # (8, C), rows identical
    q8 = jnp.dot(ones, h * h, preferred_element_type=jnp.float32)
    sum_ref[...] = s8[0:1][None]                                     # (1, 1, C)
    sq_ref[...] = q8[0:1][None]


def _mask_rows(a, tile, n_valid, masked):
    """Zero padded tail rows so they contribute nothing to matmuls, BN stats or pools."""
    if not masked:
        return a
    row = pl.program_id(0) * tile + lax.broadcasted_iota(jnp.int32, (tile, 1), 0)
    return jnp.where(row < n_valid, a, 0.0)


# ----------------------------------------------------------------------------- kernels

def _make_conv12_kernel(tile, n_valid, masked):
    """conv1 (2->64, VPU FMAs, fused) -> bn1+relu -> conv2 (64->128, MXU) -> bn2 partials."""
    def kernel(x_ref, w1_ref, s1_ref, t1_ref, w2_ref, h_ref, sum_ref, sq_ref):
        x = x_ref[...]                                               # (tile, 2)  f32
        w1 = w1_ref[...]                                             # (2, 64)    f32
        h1 = x[:, 0:1] * w1[0:1, :] + x[:, 1:2] * w1[1:2, :]         # conv1 (bias absorbed by bn1)
        a1 = jnp.maximum(h1 * s1_ref[...] + t1_ref[...], 0.0)        # bn1+relu folded to one FMA
        a1 = _mask_rows(a1, tile, n_valid, masked)
        h2 = jnp.dot(a1.astype(BF16), w2_ref[...],
                     preferred_element_type=jnp.float32)             # conv2 (bias absorbed by bn2)
        h_ref[...] = h2.astype(h_ref.dtype)                          # bf16 activation to HBM
        _emit_stats(h2, sum_ref, sq_ref)                             # bn2 partials on f32 h2
    return kernel


def _make_conv3_pool_kernel(tile, n_valid, masked):
    """bn2+relu -> conv3 (128->1024, sign(gamma3) pre-folded into w3) -> bn3 partials
    -> MaxPool1d(8).  The (tile, 1024) conv3 activation never leaves VMEM."""
    def kernel(x_ref, s_ref, t_ref, w_ref, pool_ref, sum_ref, sq_ref):
        a = jnp.maximum(x_ref[...].astype(jnp.float32) * s_ref[...] + t_ref[...], 0.0)
        a = _mask_rows(a, tile, n_valid, masked)
        h = jnp.dot(a.astype(BF16), w_ref[...],
                    preferred_element_type=jnp.float32)              # (tile, 1024) f32, sign-folded
        _emit_stats(h, sum_ref, sq_ref)                              # bn3 partials (signed space)
        hg = h.reshape(tile // 8, 8, h.shape[1])                     # whole-vreg groups of 8 rows
        pool_ref[...] = jnp.max(hg, axis=1).astype(pool_ref.dtype)   # (tile//8, 1024) bf16
    return kernel


def _fc1_kernel(x_ref, w_ref, h_ref, sum_ref, sq_ref):
    """fc1 (1024->512): input already bn3+relu'd / permuted / zero-padded in XLA."""
    h = jnp.dot(x_ref[...], w_ref[...], preferred_element_type=jnp.float32)
    h_ref[...] = h.astype(h_ref.dtype)                               # bf16 activation to HBM
    _emit_stats(h, sum_ref, sq_ref)                                  # bn4 partials


def _make_bn_relu_fc_kernel(tile, n_valid, masked):
    """bn4+relu (folded FMA) -> fc2 (512->256) -> bn5 partials."""
    def kernel(x_ref, s_ref, t_ref, w_ref, h_ref, sum_ref, sq_ref):
        a = jnp.maximum(x_ref[...].astype(jnp.float32) * s_ref[...] + t_ref[...], 0.0)
        a = _mask_rows(a, tile, n_valid, masked)
        h = jnp.dot(a.astype(BF16), w_ref[...], preferred_element_type=jnp.float32)
        h_ref[...] = h.astype(h_ref.dtype)
        _emit_stats(h, sum_ref, sq_ref)
    return kernel


# ----------------------------------------------------------------------------- call builder

def _tile_rows(rows, granule, target):
    """Pick a row tile.  Prefer an exact divisor of `rows` near `target`; otherwise pad
    `rows` up to a multiple of the target tile (padded rows are masked in-kernel).
    Never falls back to a single huge tile (VMEM OOM hazard)."""
    if rows <= target:
        return rows, rows
    t = max(granule, target - target % granule)
    lo = max(granule, t // 2)
    for cand in range(t, lo - 1, -granule):
        if rows % cand == 0:
            return cand, rows
    rows_pad = ((rows + t - 1) // t) * t
    return t, rows_pad


def _layer_call(kernel, *, rows, tile, in_cols, out_cols, out_dtype,
                out_rows=None, out_tile=None, const_shapes=()):
    """Row-tiled pallas_call: activation tile + VMEM-resident constants in;
    activation tile + per-tile partial BN stats out."""
    grid_n = rows // tile
    out_rows = rows if out_rows is None else out_rows
    out_tile = tile if out_tile is None else out_tile

    in_specs = [pl.BlockSpec((tile, in_cols), lambda i: (i, 0))]
    in_specs += [pl.BlockSpec(s, lambda i: (0, 0)) for s in const_shapes]
    out_specs = [
        pl.BlockSpec((out_tile, out_cols), lambda i: (i, 0)),
        pl.BlockSpec((1, 1, out_cols), lambda i: (i, 0, 0)),
        pl.BlockSpec((1, 1, out_cols), lambda i: (i, 0, 0)),
    ]
    out_shape = [
        jax.ShapeDtypeStruct((out_rows, out_cols), out_dtype),
        jax.ShapeDtypeStruct((grid_n, 1, out_cols), jnp.float32),
        jax.ShapeDtypeStruct((grid_n, 1, out_cols), jnp.float32),
    ]
    return pl.pallas_call(
        kernel,
        grid=(grid_n,),
        in_specs=in_specs,
        out_specs=out_specs,
        out_shape=out_shape,
        compiler_params=pltpu.CompilerParams(
            dimension_semantics=("parallel",),
            vmem_limit_bytes=_VMEM_LIMIT),
    )


# ----------------------------------------------------------------------------- BN stat folding (XLA glue)

def _fold_bn(sum_p, sq_p, gamma, beta, count):
    """Reduce per-tile partial stats and fold training-mode BN into one (scale, shift) FMA.
    NOTE: var = E[x^2]-E[x]^2 in f32 can cancel for |mean| >> std; acceptable here since
    the stored activations are bf16-rounded anyway (same error order)."""
    s = jnp.sum(sum_p, axis=0)                          # (1, C)
    q = jnp.sum(sq_p, axis=0)                           # (1, C)
    mean = s / count
    var = jnp.maximum(q / count - mean * mean, 0.0)     # biased var (torch training mode)
    scale = gamma * lax.rsqrt(var + EPS)
    shift = beta - mean * scale
    return scale, shift


def _fold_bn_signed(sum_p, sq_p, gamma, beta, count):
    """bn3 fold when the kernel accumulated stats of sign(gamma)-folded h (h_s = h*sgn):
    sums flip sign, sum-of-squares is unchanged.  Returns (|scale|, shift) such that
    relu(|scale| * maxpool(h_s) + shift) == maxpool(relu(scale*h + shift))  exactly."""
    s = jnp.sum(sum_p, axis=0)
    q = jnp.sum(sq_p, axis=0)
    mean_s = s / count                                  # sign-folded mean
    var = jnp.maximum(q / count - mean_s * mean_s, 0.0)
    inv = lax.rsqrt(var + EPS)
    abs_scale = jnp.abs(gamma) * inv
    shift = beta - mean_s * abs_scale                   # == beta - mean * (gamma*inv)
    return abs_scale, shift


def _bn1_from_input(x_rows, w1t, gamma, beta, count):
    """bn1 batch stats in closed form: conv1 output (bias dropped) is affine in x, so its
    per-channel sum / sum-of-squares follow from five input moments (tiny XLA reductions)."""
    sx = jnp.sum(x_rows, axis=0, keepdims=True)                  # (1, 2)
    sxx = jnp.sum(x_rows * x_rows, axis=0, keepdims=True)        # (1, 2)
    sxy = jnp.sum(x_rows[:, 0] * x_rows[:, 1])                   # scalar
    w0, w1 = w1t[0:1, :], w1t[1:2, :]                            # (1, 64) each
    s = sx[:, 0:1] * w0 + sx[:, 1:2] * w1
    q = sxx[:, 0:1] * w0 * w0 + sxx[:, 1:2] * w1 * w1 + 2.0 * sxy * w0 * w1
    mean = s / count
    var = jnp.maximum(q / count - mean * mean, 0.0)
    scale = gamma * lax.rsqrt(var + EPS)
    shift = beta - mean * scale
    return scale, shift


# ----------------------------------------------------------------------------- forward

@jax.jit
def stn3d_forward(x, params):
    """x: (B, 2, N) float32 with N % 8 == 0.  Returns (B, 2, N) float32."""
    p = params
    B, c_in, N = x.shape
    if c_in != 2:
        raise ValueError("STN3d expects 2 input channels.")
    if N % 8 != 0:
        raise ValueError("N must be divisible by 8 (MaxPool1d(8) + residual add).")

    R = B * N                   # point rows through the conv stack
    P = N // 8                  # pooled length per batch element
    M = B * P                   # rows through the fc head

    TR, R_pad = _tile_rows(R, 8, _TR_TARGET)
    TM, M_pad = _tile_rows(M, 8, _TR_TARGET)
    conv_masked = R_pad != R
    fc_masked = M_pad != M

    # Weights: big matmul operands in bf16 (f32 accumulation), conv1 stays f32 (VPU).
    # Conv/Linear biases b1..b5 are dropped: bias followed by training-mode BN is a no-op.
    w2 = p["w2t"].astype(BF16)
    sgn3 = jnp.where(p["g3"] >= 0, 1.0, -1.0).astype(jnp.float32)    # (1, 1024)
    w3s = (p["w3t"] * sgn3).astype(BF16)                             # sign(gamma3) folded in
    w4 = p["w4t"].astype(BF16)
    w5 = p["w5t"].astype(BF16)

    # NCW -> rows x channels so every 1x1 conv is a plain matmul; one point per row.
    x_rows = jnp.transpose(x, (0, 2, 1)).reshape(R, c_in)
    sc1, sh1 = _bn1_from_input(x_rows, p["w1t"], p["g1"], p["be1"], R)
    xin = x_rows if R_pad == R else jnp.pad(x_rows, ((0, R_pad - R), (0, 0)))

    # ---- conv1 (fused) -> bn1+relu -> conv2 (64 -> 128) + bn2 partial stats (h2 in bf16)
    h2, s2, q2 = _layer_call(
        _make_conv12_kernel(TR, R, conv_masked),
        rows=R_pad, tile=TR, in_cols=c_in, out_cols=128, out_dtype=BF16,
        const_shapes=[(c_in, 64), (1, 64), (1, 64), (64, 128)],
    )(xin, p["w1t"], sc1, sh1, w2)
    sc2, sh2 = _fold_bn(s2, q2, p["g2"], p["be2"], R)

    # ---- bn2+relu -> conv3 (128 -> 1024) + bn3 stats + MaxPool1d(8) (pooled in bf16)
    pooled, s3, q3 = _layer_call(
        _make_conv3_pool_kernel(TR, R, conv_masked),
        rows=R_pad, tile=TR, in_cols=128, out_cols=1024, out_dtype=BF16,
        out_rows=R_pad // 8, out_tile=TR // 8,
        const_shapes=[(1, 128), (1, 128), (128, 1024)],
    )(h2, sc2, sh2, w3s)
    sc3_abs, sh3 = _fold_bn_signed(s3, q3, p["g3"], p["be3"], R)

    # bn3+relu on the sign-folded pooled maxima (exact, see _fold_bn_signed); cast to bf16
    # BEFORE PyTorch's memory-scrambling x.view(-1, 1024) permutation (XLA glue).
    a3 = jnp.maximum(pooled[:M].astype(jnp.float32) * sc3_abs + sh3, 0.0).astype(BF16)
    xf = a3.reshape(B, P, 1024).transpose(0, 2, 1).reshape(M, 1024)
    if M_pad != M:
        xf = jnp.pad(xf, ((0, M_pad - M), (0, 0)))

    # ---- fc1 (1024 -> 512) + bn4 partial stats (h4 in bf16)
    h4, s4, q4 = _layer_call(
        _fc1_kernel,
        rows=M_pad, tile=TM, in_cols=1024, out_cols=512, out_dtype=BF16,
        const_shapes=[(1024, 512)],
    )(xf, w4)
    sc4, sh4 = _fold_bn(s4, q4, p["g4"], p["be4"], M)

    # ---- bn4+relu -> fc2 (512 -> 256) + bn5 partial stats (h5 in f32, feeds the tail)
    h5, s5, q5 = _layer_call(
        _make_bn_relu_fc_kernel(TM, M, fc_masked),
        rows=M_pad, tile=TM, in_cols=512, out_cols=256, out_dtype=jnp.float32,
        const_shapes=[(1, 512), (1, 512), (512, 256)],
    )(h4, sc4, sh4, w5)
    sc5, sh5 = _fold_bn(s5, q5, p["g5"], p["be5"], M)

    # ---- tail in XLA: bn5+relu -> fc3 (256 -> 16) -> view(B, 2, N) -> residual add.
    # TODO(synk): fc3's (M, 16) output is lane-sparse (16/128 lanes) — no efficient
    # Pallas store layout, so the tiny tail stays in XLA.
    a5 = jnp.maximum(h5[:M] * sc5 + sh5, 0.0)
    out16 = a5 @ p["w6t"] + p["b6"]
    return x + out16.reshape(B, c_in, N)


# ----------------------------------------------------------------------------- params / demo

def make_params(key):
    """PyTorch-style uniform(+-1/sqrt(fan_in)) init; BN gamma/beta default 1/0.
    Conv/Linear weights stored pre-transposed as (Cin, Cout).  b1..b5 are kept for
    parity with the PyTorch module but unused: bias before training-mode BN is a no-op."""
    ks = jax.random.split(key, 12)

    def u(k, shape, fan_in):
        bound = 1.0 / float(fan_in) ** 0.5
        return jax.random.uniform(k, shape, jnp.float32, -bound, bound)

    return dict(
        w1t=u(ks[0], (2, 64), 2),        b1=u(ks[1], (1, 64), 2),
        w2t=u(ks[2], (64, 128), 64),     b2=u(ks[3], (1, 128), 64),
        w3t=u(ks[4], (128, 1024), 128),  b3=u(ks[5], (1, 1024), 128),
        w4t=u(ks[6], (1024, 512), 1024), b4=u(ks[7], (1, 512), 1024),
        w5t=u(ks[8], (512, 256), 512),   b5=u(ks[9], (1, 256), 512),
        w6t=u(ks[10], (256, 16), 256),   b6=u(ks[11], (1, 16), 256),
        g1=jnp.ones((1, 64), jnp.float32),   be1=jnp.zeros((1, 64), jnp.float32),
        g2=jnp.ones((1, 128), jnp.float32),  be2=jnp.zeros((1, 128), jnp.float32),
        g3=jnp.ones((1, 1024), jnp.float32), be3=jnp.zeros((1, 1024), jnp.float32),
        g4=jnp.ones((1, 512), jnp.float32),  be4=jnp.zeros((1, 512), jnp.float32),
        g5=jnp.ones((1, 256), jnp.float32),  be5=jnp.zeros((1, 256), jnp.float32),
    )


if __name__ == "__main__":
    key = jax.random.PRNGKey(0)
    pkey, xkey = jax.random.split(key)

    B, N = 2, 64                      # N must be divisible by 8
    params = make_params(pkey)
    x = jax.random.normal(xkey, (B, 2, N), jnp.float32)

    out = stn3d_forward(x, params)
    jax.block_until_ready(out)

    assert out.shape == (B, 2, N), out.shape
    assert out.dtype == jnp.float32
    assert bool(jnp.all(jnp.isfinite(out)))
    print("KERNEL_OK")
</pallas_src>

<mosaic_0001>
module attributes {stable_mosaic.version = 11 : i64} {
  func.func @kernel(%arg0: i32, %arg1: memref<128x2xf32, #tpu.memory_space<vmem>>, %arg2: memref<2x64xf32, #tpu.memory_space<vmem>>, %arg3: memref<1x64xf32, #tpu.memory_space<vmem>>, %arg4: memref<1x64xf32, #tpu.memory_space<vmem>>, %arg5: memref<64x128xbf16, #tpu.memory_space<vmem>>, %arg6: memref<128x128xbf16, #tpu.memory_space<vmem>>, %arg7: memref<1x1x128xf32, #tpu.memory_space<vmem>>, %arg8: memref<1x1x128xf32, #tpu.memory_space<vmem>>) attributes {dimension_semantics = [#tpu.dimension_semantics<parallel>], iteration_bounds = array<i64: 1>, scalar_prefetch = 0 : i64, scratch_operands = 0 : i64, tpu.core_type = #tpu.core_type<tc>, window_params = [{transform_indices = @transform_0, window_bounds = array<i64: 128, 2>}, {pipeline_mode = #tpu.pipeline_mode<synchronous>, transform_indices = @transform_1, window_bounds = array<i64: 2, 64>}, {pipeline_mode = #tpu.pipeline_mode<synchronous>, transform_indices = @transform_2, window_bounds = array<i64: 1, 64>}, {pipeline_mode = #tpu.pipeline_mode<synchronous>, transform_indices = @transform_3, window_bounds = array<i64: 1, 64>}, {pipeline_mode = #tpu.pipeline_mode<synchronous>, transform_indices = @transform_4, window_bounds = array<i64: 64, 128>}, {transform_indices = @transform_5, window_bounds = array<i64: 128, 128>}, {transform_indices = @transform_6, window_bounds = array<i64: 1, 1, 128>}, {transform_indices = @transform_7, window_bounds = array<i64: 1, 1, 128>}]} {
    %c0 = arith.constant 0 : index
    %c0_0 = arith.constant 0 : index
    %0 = vector.load %arg1[%c0, %c0_0] : memref<128x2xf32, #tpu.memory_space<vmem>>, vector<128x2xf32>
    %c0_1 = arith.constant 0 : index
    %c0_2 = arith.constant 0 : index
    %1 = vector.load %arg2[%c0_1, %c0_2] : memref<2x64xf32, #tpu.memory_space<vmem>>, vector<2x64xf32>
    %2 = vector.extract_strided_slice %0 {offsets = [0, 0], sizes = [128, 1], strides = [1, 1]} : vector<128x2xf32> to vector<128x1xf32>
    %3 = vector.extract_strided_slice %1 {offsets = [0, 0], sizes = [1, 64], strides = [1, 1]} : vector<2x64xf32> to vector<1x64xf32>
    %4 = vector.broadcast %2 : vector<128x1xf32> to vector<128x64xf32>
    %5 = vector.broadcast %3 : vector<1x64xf32> to vector<128x64xf32>
    %6 = arith.mulf %4, %5 : vector<128x64xf32>
    %7 = vector.extract_strided_slice %0 {offsets = [0, 1], sizes = [128, 1], strides = [1, 1]} : vector<128x2xf32> to vector<128x1xf32>
    %8 = vector.extract_strided_slice %1 {offsets = [1, 0], sizes = [1, 64], strides = [1, 1]} : vector<2x64xf32> to vector<1x64xf32>
    %9 = vector.broadcast %7 : vector<128x1xf32> to vector<128x64xf32>
    %10 = vector.broadcast %8 : vector<1x64xf32> to vector<128x64xf32>
    %11 = arith.mulf %9, %10 : vector<128x64xf32>
    %12 = arith.addf %6, %11 : vector<128x64xf32>
    %c0_3 = arith.constant 0 : index
    %c0_4 = arith.constant 0 : index
    %13 = vector.load %arg3[%c0_3, %c0_4] : memref<1x64xf32, #tpu.memory_space<vmem>>, vector<1x64xf32>
    %14 = vector.broadcast %13 : vector<1x64xf32> to vector<128x64xf32>
    %15 = arith.mulf %12, %14 : vector<128x64xf32>
    %c0_5 = arith.constant 0 : index
    %c0_6 = arith.constant 0 : index
    %16 = vector.load %arg4[%c0_5, %c0_6] : memref<1x64xf32, #tpu.memory_space<vmem>>, vector<1x64xf32>
    %17 = vector.broadcast %16 : vector<1x64xf32> to vector<128x64xf32>
    %18 = arith.addf %15, %17 : vector<128x64xf32>
    %cst = arith.constant 0.000000e+00 : f32
    %19 = vector.broadcast %cst : f32 to vector<128x64xf32>
    %20 = arith.maximumf %18, %19 : vector<128x64xf32>
    %21 = arith.truncf %20 : vector<128x64xf32> to vector<128x64xbf16>
    %c0_7 = arith.constant 0 : index
    %c0_8 = arith.constant 0 : index
    %22 = vector.load %arg5[%c0_7, %c0_8] : memref<64x128xbf16, #tpu.memory_space<vmem>>, vector<64x128xbf16>
    %cst_9 = arith.constant dense<0.000000e+00> : vector<128x128xf32>
    %23 = tpu.matmul %21, %22, %cst_9 {dimension_numbers = #tpu.dot_dimension_numbers<[1], [0], [0], [1], [0, 0, 1, 1], [], []>} : vector<128x64xbf16>, vector<64x128xbf16>, vector<128x128xf32> -> vector<128x128xf32>
    %24 = arith.truncf %23 : vector<128x128xf32> to vector<128x128xbf16>
    %c0_10 = arith.constant 0 : index
    %c0_11 = arith.constant 0 : index
    %25 = vector.load %arg6[%c0_10, %c0_11] : memref<128x128xbf16, #tpu.memory_space<vmem>>, vector<128x128xbf16>
    tpu.vector_store %arg6[%c0_10, %c0_11], %24 {strides = array<i32>} : memref<128x128xbf16, #tpu.memory_space<vmem>>, vector<128x128xbf16>,
    %cst_12 = arith.constant 1.000000e+00 : f32
    %26 = vector.broadcast %cst_12 : f32 to vector<8x128xf32>
    %cst_13 = arith.constant dense<0.000000e+00> : vector<8x128xf32>
    %27 = tpu.matmul %26, %23, %cst_13 {dimension_numbers = #tpu.dot_dimension_numbers<[1], [0], [0], [1], [0, 0, 1, 1], [], []>} : vector<8x128xf32>, vector<128x128xf32>, vector<8x128xf32> -> vector<8x128xf32>
    %28 = arith.mulf %23, %23 : vector<128x128xf32>
    %cst_14 = arith.constant dense<0.000000e+00> : vector<8x128xf32>
    %29 = tpu.matmul %26, %28, %cst_14 {dimension_numbers = #tpu.dot_dimension_numbers<[1], [0], [0], [1], [0, 0, 1, 1], [], []>} : vector<8x128xf32>, vector<128x128xf32>, vector<8x128xf32> -> vector<8x128xf32>
    %30 = vector.extract_strided_slice %27 {offsets = [0, 0], sizes = [1, 128], strides = [1, 1]} : vector<8x128xf32> to vector<1x128xf32>
    %31 = vector.shape_cast %30 : vector<1x128xf32> to vector<1x1x128xf32>
    %c0_15 = arith.constant 0 : index
    %c0_16 = arith.constant 0 : index
    %c0_17 = arith.constant 0 : index
    %32 = vector.load %arg7[%c0_15, %c0_16, %c0_17] : memref<1x1x128xf32, #tpu.memory_space<vmem>>, vector<1x1x128xf32>
    tpu.vector_store %arg7[%c0_15, %c0_16, %c0_17], %31 {strides = array<i32>} : memref<1x1x128xf32, #tpu.memory_space<vmem>>, vector<1x1x128xf32>,
    %33 = vector.extract_strided_slice %29 {offsets = [0, 0], sizes = [1, 128], strides = [1, 1]} : vector<8x128xf32> to vector<1x128xf32>
    %34 = vector.shape_cast %33 : vector<1x128xf32> to vector<1x1x128xf32>
    %c0_18 = arith.constant 0 : index
    %c0_19 = arith.constant 0 : index
    %c0_20 = arith.constant 0 : index
    %35 = vector.load %arg8[%c0_18, %c0_19, %c0_20] : memref<1x1x128xf32, #tpu.memory_space<vmem>>, vector<1x1x128xf32>
    tpu.vector_store %arg8[%c0_18, %c0_19, %c0_20], %34 {strides = array<i32>} : memref<1x1x128xf32, #tpu.memory_space<vmem>>, vector<1x1x128xf32>,
    return
  }
  func.func @transform_0(%arg0: i32) -> (i32, i32) {
    %c0_i32 = arith.constant 0 : i32
    %c0_i32_0 = arith.constant 0 : i32
    return %arg0, %c0_i32 : i32, i32
  }
  func.func @transform_1(%arg0: i32) -> (i32, i32) {
    %c0_i32 = arith.constant 0 : i32
    %c0_i32_0 = arith.constant 0 : i32
    %c0_i32_1 = arith.constant 0 : i32
    return %c0_i32, %c0_i32_0 : i32, i32
  }
  func.func @transform_2(%arg0: i32) -> (i32, i32) {
    %c0_i32 = arith.constant 0 : i32
    %c0_i32_0 = arith.constant 0 : i32
    %c0_i32_1 = arith.constant 0 : i32
    return %c0_i32, %c0_i32_0 : i32, i32
  }
  func.func @transform_3(%arg0: i32) -> (i32, i32) {
    %c0_i32 = arith.constant 0 : i32
    %c0_i32_0 = arith.constant 0 : i32
    %c0_i32_1 = arith.constant 0 : i32
    return %c0_i32, %c0_i32_0 : i32, i32
  }
  func.func @transform_4(%arg0: i32) -> (i32, i32) {
    %c0_i32 = arith.constant 0 : i32
    %c0_i32_0 = arith.constant 0 : i32
    %c0_i32_1 = arith.constant 0 : i32
    return %c0_i32, %c0_i32_0 : i32, i32
  }
  func.func @transform_5(%arg0: i32) -> (i32, i32) {
    %c0_i32 = arith.constant 0 : i32
    %c0_i32_0 = arith.constant 0 : i32
    return %arg0, %c0_i32 : i32, i32
  }
  func.func @transform_6(%arg0: i32) -> (i32, i32, i32) {
    %c0_i32 = arith.constant 0 : i32
    %c0_i32_0 = arith.constant 0 : i32
    %c0_i32_1 = arith.constant 0 : i32
    return %arg0, %c0_i32, %c0_i32_0 : i32, i32, i32
  }
  func.func @transform_7(%arg0: i32) -> (i32, i32, i32) {
    %c0_i32 = arith.constant 0 : i32
    %c0_i32_0 = arith.constant 0 : i32
    %c0_i32_1 = arith.constant 0 : i32
    return %arg0, %c0_i32, %c0_i32_0 : i32, i32, i32
  }
}

module attributes {stable_mosaic.version = 11 : i64} {
  func.func @kernel(%arg0: i32, %arg1: memref<128x128xbf16, #tpu.memory_space<vmem>>, %arg2: memref<1x128xf32, #tpu.memory_space<vmem>>, %arg3: memref<1x128xf32, #tpu.memory_space<vmem>>, %arg4: memref<128x1024xbf16, #tpu.memory_space<vmem>>, %arg5: memref<16x1024xbf16, #tpu.memory_space<vmem>>, %arg6: memref<1x1x1024xf32, #tpu.memory_space<vmem>>, %arg7: memref<1x1x1024xf32, #tpu.memory_space<vmem>>) attributes {dimension_semantics = [#tpu.dimension_semantics<parallel>], iteration_bounds = array<i64: 1>, scalar_prefetch = 0 : i64, scratch_operands = 0 : i64, tpu.core_type = #tpu.core_type<tc>, window_params = [{transform_indices = @transform_0, window_bounds = array<i64: 128, 128>}, {pipeline_mode = #tpu.pipeline_mode<synchronous>, transform_indices = @transform_1, window_bounds = array<i64: 1, 128>}, {pipeline_mode = #tpu.pipeline_mode<synchronous>, transform_indices = @transform_2, window_bounds = array<i64: 1, 128>}, {pipeline_mode = #tpu.pipeline_mode<synchronous>, transform_indices = @transform_3, window_bounds = array<i64: 128, 1024>}, {transform_indices = @transform_4, window_bounds = array<i64: 16, 1024>}, {transform_indices = @transform_5, window_bounds = array<i64: 1, 1, 1024>}, {transform_indices = @transform_6, window_bounds = array<i64: 1, 1, 1024>}]} {
    %c0 = arith.constant 0 : index
    %c0_0 = arith.constant 0 : index
    %0 = vector.load %arg1[%c0, %c0_0] : memref<128x128xbf16, #tpu.memory_space<vmem>>, vector<128x128xbf16>
    %1 = arith.extf %0 : vector<128x128xbf16> to vector<128x128xf32>
    %c0_1 = arith.constant 0 : index
    %c0_2 = arith.constant 0 : index
    %2 = vector.load %arg2[%c0_1, %c0_2] : memref<1x128xf32, #tpu.memory_space<vmem>>, vector<1x128xf32>
    %3 = vector.broadcast %2 : vector<1x128xf32> to vector<128x128xf32>
    %4 = arith.mulf %1, %3 : vector<128x128xf32>
    %c0_3 = arith.constant 0 : index
    %c0_4 = arith.constant 0 : index
    %5 = vector.load %arg3[%c0_3, %c0_4] : memref<1x128xf32, #tpu.memory_space<vmem>>, vector<1x128xf32>
    %6 = vector.broadcast %5 : vector<1x128xf32> to vector<128x128xf32>
    %7 = arith.addf %4, %6 : vector<128x128xf32>
    %cst = arith.constant 0.000000e+00 : f32
    %8 = vector.broadcast %cst : f32 to vector<128x128xf32>
    %9 = arith.maximumf %7, %8 : vector<128x128xf32>
    %10 = arith.truncf %9 : vector<128x128xf32> to vector<128x128xbf16>
    %c0_5 = arith.constant 0 : index
    %c0_6 = arith.constant 0 : index
    %11 = vector.load %arg4[%c0_5, %c0_6] : memref<128x1024xbf16, #tpu.memory_space<vmem>>, vector<128x1024xbf16>
    %cst_7 = arith.constant dense<0.000000e+00> : vector<128x1024xf32>
    %12 = tpu.matmul %10, %11, %cst_7 {dimension_numbers = #tpu.dot_dimension_numbers<[1], [0], [0], [1], [0, 0, 1, 1], [], []>} : vector<128x128xbf16>, vector<128x1024xbf16>, vector<128x1024xf32> -> vector<128x1024xf32>
    %cst_8 = arith.constant 1.000000e+00 : f32
    %13 = vector.broadcast %cst_8 : f32 to vector<8x128xf32>
    %cst_9 = arith.constant dense<0.000000e+00> : vector<8x1024xf32>
    %14 = tpu.matmul %13, %12, %cst_9 {dimension_numbers = #tpu.dot_dimension_numbers<[1], [0], [0], [1], [0, 0, 1, 1], [], []>} : vector<8x128xf32>, vector<128x1024xf32>, vector<8x1024xf32> -> vector<8x1024xf32>
    %15 = arith.mulf %12, %12 : vector<128x1024xf32>
    %cst_10 = arith.constant dense<0.000000e+00> : vector<8x1024xf32>
    %16 = tpu.matmul %13, %15, %cst_10 {dimension_numbers = #tpu.dot_dimension_numbers<[1], [0], [0], [1], [0, 0, 1, 1], [], []>} : vector<8x128xf32>, vector<128x1024xf32>, vector<8x1024xf32> -> vector<8x1024xf32>
    %17 = vector.extract_strided_slice %14 {offsets = [0, 0], sizes = [1, 1024], strides = [1, 1]} : vector<8x1024xf32> to vector<1x1024xf32>
    %18 = vector.shape_cast %17 : vector<1x1024xf32> to vector<1x1x1024xf32>
    %c0_11 = arith.constant 0 : index
    %c0_12 = arith.constant 0 : index
    %c0_13 = arith.constant 0 : index
    %19 = vector.load %arg6[%c0_11, %c0_12, %c0_13] : memref<1x1x1024xf32, #tpu.memory_space<vmem>>, vector<1x1x1024xf32>
    tpu.vector_store %arg6[%c0_11, %c0_12, %c0_13], %18 {strides = array<i32>} : memref<1x1x1024xf32, #tpu.memory_space<vmem>>, vector<1x1x1024xf32>,
    %20 = vector.extract_strided_slice %16 {offsets = [0, 0], sizes = [1, 1024], strides = [1, 1]} : vector<8x1024xf32> to vector<1x1024xf32>
    %21 = vector.shape_cast %20 : vector<1x1024xf32> to vector<1x1x1024xf32>
    %c0_14 = arith.constant 0 : index
    %c0_15 = arith.constant 0 : index
    %c0_16 = arith.constant 0 : index
    %22 = vector.load %arg7[%c0_14, %c0_15, %c0_16] : memref<1x1x1024xf32, #tpu.memory_space<vmem>>, vector<1x1x1024xf32>
    tpu.vector_store %arg7[%c0_14, %c0_15, %c0_16], %21 {strides = array<i32>} : memref<1x1x1024xf32, #tpu.memory_space<vmem>>, vector<1x1x1024xf32>,
    %23 = vector.shape_cast %12 : vector<128x1024xf32> to vector<16x8x1024xf32>
    %cst_17 = arith.constant dense<0xFF800000> : vector<16x1024xf32>
    %24 = vector.multi_reduction <maximumf>, %23, %cst_17 [1] : vector<16x8x1024xf32> to vector<16x1024xf32>
    %25 = arith.truncf %24 : vector<16x1024xf32> to vector<16x1024xbf16>
    %c0_18 = arith.constant 0 : index
    %c0_19 = arith.constant 0 : index
    %26 = vector.load %arg5[%c0_18, %c0_19] : memref<16x1024xbf16, #tpu.memory_space<vmem>>, vector<16x1024xbf16>
    tpu.vector_store %arg5[%c0_18, %c0_19], %25 {strides = array<i32>} : memref<16x1024xbf16, #tpu.memory_space<vmem>>, vector<16x1024xbf16>,
    return
  }
  func.func @transform_0(%arg0: i32) -> (i32, i32) {
    %c0_i32 = arith.constant 0 : i32
    %c0_i32_0 = arith.constant 0 : i32
    return %arg0, %c0_i32 : i32, i32
  }
  func.func @transform_1(%arg0: i32) -> (i32, i32) {
    %c0_i32 = arith.constant 0 : i32
    %c0_i32_0 = arith.constant 0 : i32
    %c0_i32_1 = arith.constant 0 : i32
    return %c0_i32, %c0_i32_0 : i32, i32
  }
  func.func @transform_2(%arg0: i32) -> (i32, i32) {
    %c0_i32 = arith.constant 0 : i32
    %c0_i32_0 = arith.constant 0 : i32
    %c0_i32_1 = arith.constant 0 : i32
    return %c0_i32, %c0_i32_0 : i32, i32
  }
  func.func @transform_3(%arg0: i32) -> (i32, i32) {
    %c0_i32 = arith.constant 0 : i32
    %c0_i32_0 = arith.constant 0 : i32
    %c0_i32_1 = arith.constant 0 : i32
    return %c0_i32, %c0_i32_0 : i32, i32
  }
  func.func @transform_4(%arg0: i32) -> (i32, i32) {
    %c0_i32 = arith.constant 0 : i32
    %c0_i32_0 = arith.constant 0 : i32
    return %arg0, %c0_i32 : i32, i32
  }
  func.func @transform_5(%arg0: i32) -> (i32, i32, i32) {
    %c0_i32 = arith.constant 0 : i32
    %c0_i32_0 = arith.constant 0 : i32
    %c0_i32_1 = arith.constant 0 : i32
    return %arg0, %c0_i32, %c0_i32_0 : i32, i32, i32
  }
  func.func @transform_6(%arg0: i32) -> (i32, i32, i32) {
    %c0_i32 = arith.constant 0 : i32
    %c0_i32_0 = arith.constant 0 : i32
    %c0_i32_1 = arith.constant 0 : i32
    return %arg0, %c0_i32, %c0_i32_0 : i32, i32, i32
  }
}

module attributes {stable_mosaic.version = 11 : i64} {
  func.func @_fc1_kernel(%arg0: i32, %arg1: memref<16x1024xbf16, #tpu.memory_space<vmem>>, %arg2: memref<1024x512xbf16, #tpu.memory_space<vmem>>, %arg3: memref<16x512xbf16, #tpu.memory_space<vmem>>, %arg4: memref<1x1x512xf32, #tpu.memory_space<vmem>>, %arg5: memref<1x1x512xf32, #tpu.memory_space<vmem>>) attributes {dimension_semantics = [#tpu.dimension_semantics<parallel>], iteration_bounds = array<i64: 1>, scalar_prefetch = 0 : i64, scratch_operands = 0 : i64, tpu.core_type = #tpu.core_type<tc>, window_params = [{transform_indices = @transform_0, window_bounds = array<i64: 16, 1024>}, {pipeline_mode = #tpu.pipeline_mode<synchronous>, transform_indices = @transform_1, window_bounds = array<i64: 1024, 512>}, {transform_indices = @transform_2, window_bounds = array<i64: 16, 512>}, {transform_indices = @transform_3, window_bounds = array<i64: 1, 1, 512>}, {transform_indices = @transform_4, window_bounds = array<i64: 1, 1, 512>}]} {
    %c0 = arith.constant 0 : index
    %c0_0 = arith.constant 0 : index
    %0 = vector.load %arg1[%c0, %c0_0] : memref<16x1024xbf16, #tpu.memory_space<vmem>>, vector<16x1024xbf16>
    %c0_1 = arith.constant 0 : index
    %c0_2 = arith.constant 0 : index
    %1 = vector.load %arg2[%c0_1, %c0_2] : memref<1024x512xbf16, #tpu.memory_space<vmem>>, vector<1024x512xbf16>
    %cst = arith.constant dense<0.000000e+00> : vector<16x512xf32>
    %2 = tpu.matmul %0, %1, %cst {dimension_numbers = #tpu.dot_dimension_numbers<[1], [0], [0], [1], [0, 0, 1, 1], [], []>} : vector<16x1024xbf16>, vector<1024x512xbf16>, vector<16x512xf32> -> vector<16x512xf32>
    %3 = arith.truncf %2 : vector<16x512xf32> to vector<16x512xbf16>
    %c0_3 = arith.constant 0 : index
    %c0_4 = arith.constant 0 : index
    %4 = vector.load %arg3[%c0_3, %c0_4] : memref<16x512xbf16, #tpu.memory_space<vmem>>, vector<16x512xbf16>
    tpu.vector_store %arg3[%c0_3, %c0_4], %3 {strides = array<i32>} : memref<16x512xbf16, #tpu.memory_space<vmem>>, vector<16x512xbf16>,
    %cst_5 = arith.constant 1.000000e+00 : f32
    %5 = vector.broadcast %cst_5 : f32 to vector<8x16xf32>
    %cst_6 = arith.constant dense<0.000000e+00> : vector<8x512xf32>
    %6 = tpu.matmul %5, %2, %cst_6 {dimension_numbers = #tpu.dot_dimension_numbers<[1], [0], [0], [1], [0, 0, 1, 1], [], []>} : vector<8x16xf32>, vector<16x512xf32>, vector<8x512xf32> -> vector<8x512xf32>
    %7 = arith.mulf %2, %2 : vector<16x512xf32>
    %cst_7 = arith.constant dense<0.000000e+00> : vector<8x512xf32>
    %8 = tpu.matmul %5, %7, %cst_7 {dimension_numbers = #tpu.dot_dimension_numbers<[1], [0], [0], [1], [0, 0, 1, 1], [], []>} : vector<8x16xf32>, vector<16x512xf32>, vector<8x512xf32> -> vector<8x512xf32>
    %9 = vector.extract_strided_slice %6 {offsets = [0, 0], sizes = [1, 512], strides = [1, 1]} : vector<8x512xf32> to vector<1x512xf32>
    %10 = vector.shape_cast %9 : vector<1x512xf32> to vector<1x1x512xf32>
    %c0_8 = arith.constant 0 : index
    %c0_9 = arith.constant 0 : index
    %c0_10 = arith.constant 0 : index
    %11 = vector.load %arg4[%c0_8, %c0_9, %c0_10] : memref<1x1x512xf32, #tpu.memory_space<vmem>>, vector<1x1x512xf32>
    tpu.vector_store %arg4[%c0_8, %c0_9, %c0_10], %10 {strides = array<i32>} : memref<1x1x512xf32, #tpu.memory_space<vmem>>, vector<1x1x512xf32>,
    %12 = vector.extract_strided_slice %8 {offsets = [0, 0], sizes = [1, 512], strides = [1, 1]} : vector<8x512xf32> to vector<1x512xf32>
    %13 = vector.shape_cast %12 : vector<1x512xf32> to vector<1x1x512xf32>
    %c0_11 = arith.constant 0 : index
    %c0_12 = arith.constant 0 : index
    %c0_13 = arith.constant 0 : index
    %14 = vector.load %arg5[%c0_11, %c0_12, %c0_13] : memref<1x1x512xf32, #tpu.memory_space<vmem>>, vector<1x1x512xf32>
    tpu.vector_store %arg5[%c0_11, %c0_12, %c0_13], %13 {strides = array<i32>} : memref<1x1x512xf32, #tpu.memory_space<vmem>>, vector<1x1x512xf32>,
    return
  }
  func.func @transform_0(%arg0: i32) -> (i32, i32) {
    %c0_i32 = arith.constant 0 : i32
    %c0_i32_0 = arith.constant 0 : i32
    return %arg0, %c0_i32 : i32, i32
  }
  func.func @transform_1(%arg0: i32) -> (i32, i32) {
    %c0_i32 = arith.constant 0 : i32
    %c0_i32_0 = arith.constant 0 : i32
    %c0_i32_1 = arith.constant 0 : i32
    return %c0_i32, %c0_i32_0 : i32, i32
  }
  func.func @transform_2(%arg0: i32) -> (i32, i32) {
    %c0_i32 = arith.constant 0 : i32
    %c0_i32_0 = arith.constant 0 : i32
    return %arg0, %c0_i32 : i32, i32
  }
  func.func @transform_3(%arg0: i32) -> (i32, i32, i32) {
    %c0_i32 = arith.constant 0 : i32
    %c0_i32_0 = arith.constant 0 : i32
    %c0_i32_1 = arith.constant 0 : i32
    return %arg0, %c0_i32, %c0_i32_0 : i32, i32, i32
  }
  func.func @transform_4(%arg0: i32) -> (i32, i32, i32) {
    %c0_i32 = arith.constant 0 : i32
    %c0_i32_0 = arith.constant 0 : i32
    %c0_i32_1 = arith.constant 0 : i32
    return %arg0, %c0_i32, %c0_i32_0 : i32, i32, i32
  }
}

module attributes {stable_mosaic.version = 11 : i64} {
  func.func @kernel(%arg0: i32, %arg1: memref<16x512xbf16, #tpu.memory_space<vmem>>, %arg2: memref<1x512xf32, #tpu.memory_space<vmem>>, %arg3: memref<1x512xf32, #tpu.memory_space<vmem>>, %arg4: memref<512x256xbf16, #tpu.memory_space<vmem>>, %arg5: memref<16x256xf32, #tpu.memory_space<vmem>>, %arg6: memref<1x1x256xf32, #tpu.memory_space<vmem>>, %arg7: memref<1x1x256xf32, #tpu.memory_space<vmem>>) attributes {dimension_semantics = [#tpu.dimension_semantics<parallel>], iteration_bounds = array<i64: 1>, scalar_prefetch = 0 : i64, scratch_operands = 0 : i64, tpu.core_type = #tpu.core_type<tc>, window_params = [{transform_indices = @transform_0, window_bounds = array<i64: 16, 512>}, {pipeline_mode = #tpu.pipeline_mode<synchronous>, transform_indices = @transform_1, window_bounds = array<i64: 1, 512>}, {pipeline_mode = #tpu.pipeline_mode<synchronous>, transform_indices = @transform_2, window_bounds = array<i64: 1, 512>}, {pipeline_mode = #tpu.pipeline_mode<synchronous>, transform_indices = @transform_3, window_bounds = array<i64: 512, 256>}, {transform_indices = @transform_4, window_bounds = array<i64: 16, 256>}, {transform_indices = @transform_5, window_bounds = array<i64: 1, 1, 256>}, {transform_indices = @transform_6, window_bounds = array<i64: 1, 1, 256>}]} {
    %c0 = arith.constant 0 : index
    %c0_0 = arith.constant 0 : index
    %0 = vector.load %arg1[%c0, %c0_0] : memref<16x512xbf16, #tpu.memory_space<vmem>>, vector<16x512xbf16>
    %1 = arith.extf %0 : vector<16x512xbf16> to vector<16x512xf32>
    %c0_1 = arith.constant 0 : index
    %c0_2 = arith.constant 0 : index
    %2 = vector.load %arg2[%c0_1, %c0_2] : memref<1x512xf32, #tpu.memory_space<vmem>>, vector<1x512xf32>
    %3 = vector.broadcast %2 : vector<1x512xf32> to vector<16x512xf32>
    %4 = arith.mulf %1, %3 : vector<16x512xf32>
    %c0_3 = arith.constant 0 : index
    %c0_4 = arith.constant 0 : index
    %5 = vector.load %arg3[%c0_3, %c0_4] : memref<1x512xf32, #tpu.memory_space<vmem>>, vector<1x512xf32>
    %6 = vector.broadcast %5 : vector<1x512xf32> to vector<16x512xf32>
    %7 = arith.addf %4, %6 : vector<16x512xf32>
    %cst = arith.constant 0.000000e+00 : f32
    %8 = vector.broadcast %cst : f32 to vector<16x512xf32>
    %9 = arith.maximumf %7, %8 : vector<16x512xf32>
    %10 = arith.truncf %9 : vector<16x512xf32> to vector<16x512xbf16>
    %c0_5 = arith.constant 0 : index
    %c0_6 = arith.constant 0 : index
    %11 = vector.load %arg4[%c0_5, %c0_6] : memref<512x256xbf16, #tpu.memory_space<vmem>>, vector<512x256xbf16>
    %cst_7 = arith.constant dense<0.000000e+00> : vector<16x256xf32>
    %12 = tpu.matmul %10, %11, %cst_7 {dimension_numbers = #tpu.dot_dimension_numbers<[1], [0], [0], [1], [0, 0, 1, 1], [], []>} : vector<16x512xbf16>, vector<512x256xbf16>, vector<16x256xf32> -> vector<16x256xf32>
    %c0_8 = arith.constant 0 : index
    %c0_9 = arith.constant 0 : index
    %13 = vector.load %arg5[%c0_8, %c0_9] : memref<16x256xf32, #tpu.memory_space<vmem>>, vector<16x256xf32>
    tpu.vector_store %arg5[%c0_8, %c0_9], %12 {strides = array<i32>} : memref<16x256xf32, #tpu.memory_space<vmem>>, vector<16x256xf32>,
    %cst_10 = arith.constant 1.000000e+00 : f32
    %14 = vector.broadcast %cst_10 : f32 to vector<8x16xf32>
    %cst_11 = arith.constant dense<0.000000e+00> : vector<8x256xf32>
    %15 = tpu.matmul %14, %12, %cst_11 {dimension_numbers = #tpu.dot_dimension_numbers<[1], [0], [0], [1], [0, 0, 1, 1], [], []>} : vector<8x16xf32>, vector<16x256xf32>, vector<8x256xf32> -> vector<8x256xf32>
    %16 = arith.mulf %12, %12 : vector<16x256xf32>
    %cst_12 = arith.constant dense<0.000000e+00> : vector<8x256xf32>
    %17 = tpu.matmul %14, %16, %cst_12 {dimension_numbers = #tpu.dot_dimension_numbers<[1], [0], [0], [1], [0, 0, 1, 1], [], []>} : vector<8x16xf32>, vector<16x256xf32>, vector<8x256xf32> -> vector<8x256xf32>
    %18 = vector.extract_strided_slice %15 {offsets = [0, 0], sizes = [1, 256], strides = [1, 1]} : vector<8x256xf32> to vector<1x256xf32>
    %19 = vector.shape_cast %18 : vector<1x256xf32> to vector<1x1x256xf32>
    %c0_13 = arith.constant 0 : index
    %c0_14 = arith.constant 0 : index
    %c0_15 = arith.constant 0 : index
    %20 = vector.load %arg6[%c0_13, %c0_14, %c0_15] : memref<1x1x256xf32, #tpu.memory_space<vmem>>, vector<1x1x256xf32>
    tpu.vector_store %arg6[%c0_13, %c0_14, %c0_15], %19 {strides = array<i32>} : memref<1x1x256xf32, #tpu.memory_space<vmem>>, vector<1x1x256xf32>,
    %21 = vector.extract_strided_slice %17 {offsets = [0, 0], sizes = [1, 256], strides = [1, 1]} : vector<8x256xf32> to vector<1x256xf32>
    %22 = vector.shape_cast %21 : vector<1x256xf32> to vector<1x1x256xf32>
    %c0_16 = arith.constant 0 : index
    %c0_17 = arith.constant 0 : index
    %c0_18 = arith.constant 0 : index
    %23 = vector.load %arg7[%c0_16, %c0_17, %c0_18] : memref<1x1x256xf32, #tpu.memory_space<vmem>>, vector<1x1x256xf32>
    tpu.vector_store %arg7[%c0_16, %c0_17, %c0_18], %22 {strides = array<i32>} : memref<1x1x256xf32, #tpu.memory_space<vmem>>, vector<1x1x256xf32>,
    return
  }
  func.func @transform_0(%arg0: i32) -> (i32, i32) {
    %c0_i32 = arith.constant 0 : i32
    %c0_i32_0 = arith.constant 0 : i32
    return %arg0, %c0_i32 : i32, i32
  }
  func.func @transform_1(%arg0: i32) -> (i32, i32) {
    %c0_i32 = arith.constant 0 : i32
    %c0_i32_0 = arith.constant 0 : i32
    %c0_i32_1 = arith.constant 0 : i32
    return %c0_i32, %c0_i32_0 : i32, i32
  }
  func.func @transform_2(%arg0: i32) -> (i32, i32) {
    %c0_i32 = arith.constant 0 : i32
    %c0_i32_0 = arith.constant 0 : i32
    %c0_i32_1 = arith.constant 0 : i32
    return %c0_i32, %c0_i32_0 : i32, i32
  }
  func.func @transform_3(%arg0: i32) -> (i32, i32) {
    %c0_i32 = arith.constant 0 : i32
    %c0_i32_0 = arith.constant 0 : i32
    %c0_i32_1 = arith.constant 0 : i32
    return %c0_i32, %c0_i32_0 : i32, i32
  }
  func.func @transform_4(%arg0: i32) -> (i32, i32) {
    %c0_i32 = arith.constant 0 : i32
    %c0_i32_0 = arith.constant 0 : i32
    return %arg0, %c0_i32 : i32, i32
  }
  func.func @transform_5(%arg0: i32) -> (i32, i32, i32) {
    %c0_i32 = arith.constant 0 : i32
    %c0_i32_0 = arith.constant 0 : i32
    %c0_i32_1 = arith.constant 0 : i32
    return %arg0, %c0_i32, %c0_i32_0 : i32, i32, i32
  }
  func.func @transform_6(%arg0: i32) -> (i32, i32, i32) {
    %c0_i32 = arith.constant 0 : i32
    %c0_i32_0 = arith.constant 0 : i32
    %c0_i32_1 = arith.constant 0 : i32
    return %arg0, %c0_i32, %c0_i32_0 : i32, i32, i32
  }
}

</mosaic_0001>

<llo_original>
// kernel: stn3d_forward.4
$region0: #{stn3d_forward.4}
  #allocation0 [shape = 'u32[]', space=smem, size = 0x4, offset = 0x4, fixed_abs, tag = 'smem constant byte address 0x4 - core index']
  #allocation1 [shape = 'u32[144,128]{1,0:T(1,128)}', space=vmem, size = 0x12000, scoped, tag = 'internal scratch']
  %s0 = inlined_call_operand.vmem [shape: f32[128,2], index: 0, kind: input, shape index: {}]
  %s1 = inlined_call_operand.hbm [shape: f32[2,64], index: 1, kind: input, shape index: {}]
  %s2 = inlined_call_operand.vmem [shape: f32[1,64], index: 2, kind: input, shape index: {}]
  %s3 = inlined_call_operand.vmem [shape: f32[1,64], index: 3, kind: input, shape index: {}]
  %s4 = inlined_call_operand.vmem [shape: bf16[64,128], index: 4, kind: input, shape index: {}]
  %s5 = inlined_call_operand.vmem [shape: bf16[128,128], index: 5, kind: output, shape index: {0}]
  %s6 = inlined_call_operand.vmem [shape: f32[1,1,128], index: 6, kind: output, shape index: {1}]
  %s7 = inlined_call_operand.vmem [shape: f32[1,1,128], index: 7, kind: output, shape index: {2}]
  %8 = xla_tuple %s5, %s6, %s7
  %s9 = sld [smem:[#allocation0]]
  $region50: #{stn3d_forward.4} parent=0
    _
  %s11 = ssub.s32 1, %s9
  %s12 = scalar_select 0, %s11, %s9
  $region1: #{stn3d_forward.4} parent=0
    #allocation2 [shape = 'u8[1024]{0}', space=vmem, size = 0x400, scoped, tag = 'input window, operand 1, single buffered']
    #allocation3 [shape = 's32[1]{0}', space=sflag, size = 0x4, scoped, tag = 'scoped memory for stn3d_forward.4']
    %13 = vsyncpa [#allocation3], 0
    // Predicated region
    $region2: #{stn3d_forward.4} parent=1 // pred_check
      _
    $region3: #{stn3d_forward.4} parent=1 // pred_check_branch
      %15 = sbr.rel (0) target = $region5
    $region4: #{stn3d_forward.4} parent=1 // pred_region
      _
    $region5: #{stn3d_forward.4} parent=1 // pred_fallthru
      _
    // Predicated region
    $region6: #{stn3d_forward.4} parent=1 // pred_check
      _
    $region7: #{stn3d_forward.4} parent=1 // pred_check_branch
      %17 = sbr.rel (0) target = $region9
    $region8: #{stn3d_forward.4} parent=1 // pred_region
      %s19 = ssub.s32 32, 32
      %20 = vsyncadd [#allocation3], %s19
      %s22 = sshll.u32 [#allocation2], 4
      %s23 = int_to_ptr.vmem [resolvable:$true] %s22
      %25 = dma.hbm_to_vmem [thread:$0]  %s1, 32, %s23, [#allocation3]
    $region9: #{stn3d_forward.4} parent=1 // pred_fallthru
      _
    // Predicated region
    $region10: #{stn3d_forward.4} parent=1 // pred_check
      _
    $region11: #{stn3d_forward.4} parent=1 // pred_check_branch
      %27 = sbr.rel (0) target = $region13
    $region12: #{stn3d_forward.4} parent=1 // pred_region
      _
    $region13: #{stn3d_forward.4} parent=1 // pred_fallthru
      _
    // Predicated region
    $region14: #{stn3d_forward.4} parent=1 // pred_check
      _
    $region15: #{stn3d_forward.4} parent=1 // pred_check_branch
      %29 = sbr.rel (0) target = $region17
    $region16: #{stn3d_forward.4} parent=1 // pred_region
      _
    $region17: #{stn3d_forward.4} parent=1 // pred_fallthru
      _
    // Predicated region
    $region18: #{stn3d_forward.4} parent=1 // pred_check
      _
    $region19: #{stn3d_forward.4} parent=1 // pred_check_branch
      %31 = sbr.rel (0) target = $region21
    $region20: #{stn3d_forward.4} parent=1 // pred_region
      _
    $region21: #{stn3d_forward.4} parent=1 // pred_fallthru
      _
    // Predicated region
    $region22: #{stn3d_forward.4} parent=1 // pred_check
      _
    $region23: #{stn3d_forward.4} parent=1 // pred_check_branch
      %33 = sbr.rel (0) target = $region25
    $region24: #{stn3d_forward.4} parent=1 // pred_region
      %34 = dma.done [#allocation3], 32
    $region25: #{stn3d_forward.4} parent=1 // pred_fallthru
      _
    %v36 = vld [vmem:[%s0] sm:$0xff]
    %v37 = vld [vmem:[%s0 + $0x8] sm:$0xff]
    %v38 = vld [vmem:[%s0 + $0x10] sm:$0xff]
    %v39 = vld [vmem:[%s0 + $0x18] sm:$0xff]
    %v40 = vld [vmem:[%s0 + $0x20] sm:$0xff]
    %v41 = vld [vmem:[%s0 + $0x28] sm:$0xff]
    %v42 = vld [vmem:[%s0 + $0x30] sm:$0xff]
    %v43 = vld [vmem:[%s0 + $0x38] sm:$0xff]
    %v44 = vld [vmem:[%s0 + $0x40] sm:$0xff]
    %v45 = vld [vmem:[%s0 + $0x48] sm:$0xff]
    %v46 = vld [vmem:[%s0 + $0x50] sm:$0xff]
    %v47 = vld [vmem:[%s0 + $0x58] sm:$0xff]
    %v48 = vld [vmem:[%s0 + $0x60] sm:$0xff]
    %v49 = vld [vmem:[%s0 + $0x68] sm:$0xff]
    %v50 = vld [vmem:[%s0 + $0x70] sm:$0xff]
    %v51 = vld [vmem:[%s0 + $0x78] sm:$0xff]
    %v52 = vld [vmem:[#allocation2] sm:$0x3]
    %54 = vset.pattern.permute.xlu0 0
    %55 = vperm.xlu0 %54, %v36
    %v56 = vpop.permute.xlu0 %55
    %59 = vset.pattern.permute.xlu0 0
    %60 = vperm.xlu0 %59, %v37
    %v61 = vpop.permute.xlu0 %60
    %64 = vset.pattern.permute.xlu0 0
    %65 = vperm.xlu0 %64, %v38
    %v66 = vpop.permute.xlu0 %65
    %69 = vset.pattern.permute.xlu0 0
    %70 = vperm.xlu0 %69, %v39
    %v71 = vpop.permute.xlu0 %70
    %74 = vset.pattern.permute.xlu0 0
    %75 = vperm.xlu0 %74, %v40
    %v76 = vpop.permute.xlu0 %75
    %79 = vset.pattern.permute.xlu0 0
    %80 = vperm.xlu0 %79, %v41
    %v81 = vpop.permute.xlu0 %80
    %84 = vset.pattern.permute.xlu0 0
    %85 = vperm.xlu0 %84, %v42
    %v86 = vpop.permute.xlu0 %85
    %89 = vset.pattern.permute.xlu0 0
    %90 = vperm.xlu0 %89, %v43
    %v91 = vpop.permute.xlu0 %90
    %94 = vset.pattern.permute.xlu0 0
    %95 = vperm.xlu0 %94, %v44
    %v96 = vpop.permute.xlu0 %95
    %99 = vset.pattern.permute.xlu0 0
    %100 = vperm.xlu0 %99, %v45
    %v101 = vpop.permute.xlu0 %100
    %104 = vset.pattern.permute.xlu0 0
    %105 = vperm.xlu0 %104, %v46
    %v106 = vpop.permute.xlu0 %105
    %109 = vset.pattern.permute.xlu0 0
    %110 = vperm.xlu0 %109, %v47
    %v111 = vpop.permute.xlu0 %110
    %114 = vset.pattern.permute.xlu0 0
    %115 = vperm.xlu0 %114, %v48
    %v116 = vpop.permute.xlu0 %115
    %119 = vset.pattern.permute.xlu0 0
    %120 = vperm.xlu0 %119, %v49
    %v121 = vpop.permute.xlu0 %120
    %124 = vset.pattern.permute.xlu0 0
    %125 = vperm.xlu0 %124, %v50
    %v126 = vpop.permute.xlu0 %125
    %129 = vset.pattern.permute.xlu0 0
    %130 = vperm.xlu0 %129, %v51
    %v131 = vpop.permute.xlu0 %130
    %v133 = vlaneseq
    %v134 = vshrl.u32 %v133, 7
    %v135 = vsub.s32 0, %v134
    %v136 = vrot.slane %v52, %v135
    %v137 = vmul.f32 %v56, %v136
    %v138 = vmul.f32 %v61, %v136
    %v139 = vmul.f32 %v66, %v136
    %v140 = vmul.f32 %v71, %v136
    %v141 = vmul.f32 %v76, %v136
    %v142 = vmul.f32 %v81, %v136
    %v143 = vmul.f32 %v86, %v136
    %v144 = vmul.f32 %v91, %v136
    %v145 = vmul.f32 %v96, %v136
    %v146 = vmul.f32 %v101, %v136
    %v147 = vmul.f32 %v106, %v136
    %v148 = vmul.f32 %v111, %v136
    %v149 = vmul.f32 %v116, %v136
    %v150 = vmul.f32 %v121, %v136
    %v151 = vmul.f32 %v126, %v136
    %v152 = vmul.f32 %v131, %v136
    %153 = vset.pattern.permute.xlu0 1
    %154 = vperm.xlu0 %153, %v36
    %v155 = vpop.permute.xlu0 %154
    %157 = vset.pattern.permute.xlu0 1
    %158 = vperm.xlu0 %157, %v37
    %v159 = vpop.permute.xlu0 %158
    %161 = vset.pattern.permute.xlu0 1
    %162 = vperm.xlu0 %161, %v38
    %v163 = vpop.permute.xlu0 %162
    %165 = vset.pattern.permute.xlu0 1
    %166 = vperm.xlu0 %165, %v39
    %v167 = vpop.permute.xlu0 %166
    %169 = vset.pattern.permute.xlu0 1
    %170 = vperm.xlu0 %169, %v40
    %v171 = vpop.permute.xlu0 %170
    %173 = vset.pattern.permute.xlu0 1
    %174 = vperm.xlu0 %173, %v41
    %v175 = vpop.permute.xlu0 %174
    %177 = vset.pattern.permute.xlu0 1
    %178 = vperm.xlu0 %177, %v42
    %v179 = vpop.permute.xlu0 %178
    %181 = vset.pattern.permute.xlu0 1
    %182 = vperm.xlu0 %181, %v43
    %v183 = vpop.permute.xlu0 %182
    %185 = vset.pattern.permute.xlu0 1
    %186 = vperm.xlu0 %185, %v44
    %v187 = vpop.permute.xlu0 %186
    %189 = vset.pattern.permute.xlu0 1
    %190 = vperm.xlu0 %189, %v45
    %v191 = vpop.permute.xlu0 %190
    %193 = vset.pattern.permute.xlu0 1
    %194 = vperm.xlu0 %193, %v46
    %v195 = vpop.permute.xlu0 %194
    %197 = vset.pattern.permute.xlu0 1
    %198 = vperm.xlu0 %197, %v47
    %v199 = vpop.permute.xlu0 %198
    %201 = vset.pattern.permute.xlu0 1
    %202 = vperm.xlu0 %201, %v48
    %v203 = vpop.permute.xlu0 %202
    %205 = vset.pattern.permute.xlu0 1
    %206 = vperm.xlu0 %205, %v49
    %v207 = vpop.permute.xlu0 %206
    %209 = vset.pattern.permute.xlu0 1
    %210 = vperm.xlu0 %209, %v50
    %v211 = vpop.permute.xlu0 %210
    %213 = vset.pattern.permute.xlu0 1
    %214 = vperm.xlu0 %213, %v51
    %v215 = vpop.permute.xlu0 %214
    %v217 = vlaneseq
    %v218 = vshrl.u32 %v217, 7
    %v219 = vsub.s32 1, %v218
    %v220 = vrot.slane %v52, %v219
    %v221 = vmul.f32 %v155, %v220
    %v222 = vmul.f32 %v159, %v220
    %v223 = vmul.f32 %v163, %v220
    %v224 = vmul.f32 %v167, %v220
    %v225 = vmul.f32 %v171, %v220
    %v226 = vmul.f32 %v175, %v220
    %v227 = vmul.f32 %v179, %v220
    %v228 = vmul.f32 %v183, %v220
    %v229 = vmul.f32 %v187, %v220
    %v230 = vmul.f32 %v191, %v220
    %v231 = vmul.f32 %v195, %v220
    %v232 = vmul.f32 %v199, %v220
    %v233 = vmul.f32 %v203, %v220
    %v234 = vmul.f32 %v207, %v220
    %v235 = vmul.f32 %v211, %v220
    %v236 = vmul.f32 %v215, %v220
    %v237 = vadd.f32 %v137, %v221
    %v238 = vadd.f32 %v138, %v222
    %v239 = vadd.f32 %v139, %v223
    %v240 = vadd.f32 %v140, %v224
    %v241 = vadd.f32 %v141, %v225
    %v242 = vadd.f32 %v142, %v226
    %v243 = vadd.f32 %v143, %v227
    %v244 = vadd.f32 %v144, %v228
    %v245 = vadd.f32 %v145, %v229
    %v246 = vadd.f32 %v146, %v230
    %v247 = vadd.f32 %v147, %v231
    %v248 = vadd.f32 %v148, %v232
    %v249 = vadd.f32 %v149, %v233
    %v250 = vadd.f32 %v150, %v234
    %v251 = vadd.f32 %v151, %v235
    %v252 = vadd.f32 %v152, %v236
    %v253 = vld [vmem:[%s2] sm:$0x1]
    %v255 = vlaneseq
    %v256 = vshrl.u32 %v255, 7
    %v257 = vsub.s32 0, %v256
    %v258 = vrot.slane %v253, %v257
    %v260 = vmul.f32 %v237, %v258
    %v261 = vmul.f32 %v238, %v258
    %v262 = vmul.f32 %v239, %v258
    %v263 = vmul.f32 %v240, %v258
    %v264 = vmul.f32 %v241, %v258
    %v265 = vmul.f32 %v242, %v258
    %v266 = vmul.f32 %v243, %v258
    %v267 = vmul.f32 %v244, %v258
    %v268 = vmul.f32 %v245, %v258
    %v269 = vmul.f32 %v246, %v258
    %v270 = vmul.f32 %v247, %v258
    %v271 = vmul.f32 %v248, %v258
    %v272 = vmul.f32 %v249, %v258
    %v273 = vmul.f32 %v250, %v258
    %v274 = vmul.f32 %v251, %v258
    %v275 = vmul.f32 %v252, %v258
    %v276 = vld [vmem:[%s3] sm:$0x1]
    %v278 = vlaneseq
    %v279 = vshrl.u32 %v278, 7
    %v280 = vsub.s32 0, %v279
    %v281 = vrot.slane %v276, %v280
    %v283 = vadd.f32 %v260, %v281
    %v284 = vadd.f32 %v261, %v281
    %v285 = vadd.f32 %v262, %v281
    %v286 = vadd.f32 %v263, %v281
    %v287 = vadd.f32 %v264, %v281
    %v288 = vadd.f32 %v265, %v281
    %v289 = vadd.f32 %v266, %v281
    %v290 = vadd.f32 %v267, %v281
    %v291 = vadd.f32 %v268, %v281
    %v292 = vadd.f32 %v269, %v281
    %v293 = vadd.f32 %v270, %v281
    %v294 = vadd.f32 %v271, %v281
    %v295 = vadd.f32 %v272, %v281
    %v296 = vadd.f32 %v273, %v281
    %v297 = vadd.f32 %v274, %v281
    %v298 = vadd.f32 %v275, %v281
    %v299 = vmax.f32 %v283, 0.0
    %v300 = vmax.f32 %v284, 0.0
    %v301 = vmax.f32 %v285, 0.0
    %v302 = vmax.f32 %v286, 0.0
    %v303 = vmax.f32 %v287, 0.0
    %v304 = vmax.f32 %v288, 0.0
    %v305 = vmax.f32 %v289, 0.0
    %v306 = vmax.f32 %v290, 0.0
    %v307 = vmax.f32 %v291, 0.0
    %v308 = vmax.f32 %v292, 0.0
    %v309 = vmax.f32 %v293, 0.0
    %v310 = vmax.f32 %v294, 0.0
    %v311 = vmax.f32 %v295, 0.0
    %v312 = vmax.f32 %v296, 0.0
    %v313 = vmax.f32 %v297, 0.0
    %v314 = vmax.f32 %v298, 0.0
    %v315 = vpack.c.bf16 %v300, %v299
    %v316 = vpack.c.bf16 %v302, %v301
    %v317 = vpack.c.bf16 %v304, %v303
    %v318 = vpack.c.bf16 %v306, %v305
    %v319 = vpack.c.bf16 %v308, %v307
    %v320 = vpack.c.bf16 %v310, %v309
    %v321 = vpack.c.bf16 %v312, %v311
    %v322 = vpack.c.bf16 %v314, %v313
    %v323 = vld [vmem:[%s4] sm:$0xf]
    %v324 = vld [vmem:[%s4 + $0x4] sm:$0xf]
    %v325 = vld [vmem:[%s4 + $0x8] sm:$0xf]
    %v326 = vld [vmem:[%s4 + $0xc] sm:$0xf]
    %v327 = vld [vmem:[%s4 + $0x10] sm:$0xf]
    %v328 = vld [vmem:[%s4 + $0x14] sm:$0xf]
    %v329 = vld [vmem:[%s4 + $0x18] sm:$0xf]
    %v330 = vld [vmem:[%s4 + $0x1c] sm:$0xf]
    %v339 = vunpack.c.l.b16 %v323
    %v340 = vunpack.c.l.b16 %v324
    %v341 = vunpack.c.l.b16 %v325
    %v342 = vunpack.c.l.b16 %v326
    %v343 = vunpack.c.l.b16 %v327
    %v344 = vunpack.c.l.b16 %v328
    %v345 = vunpack.c.l.b16 %v329
    %v346 = vunpack.c.l.b16 %v330
    %v347 = vpack.c.b16 %v340, %v339
    %v348 = vpack.c.b16 %v342, %v341
    %v349 = vpack.c.b16 %v344, %v343
    %v350 = vpack.c.b16 %v346, %v345
    %vm355 = vcmask 523264
    %v357 = vsel %vm355, %v315, 0
    %v360 = vsel %vm355, %v316, 0
    %v363 = vsel %vm355, %v317, 0
    %v366 = vsel %vm355, %v318, 0
    %v369 = vsel %vm355, %v319, 0
    %v372 = vsel %vm355, %v320, 0
    %v375 = vsel %vm355, %v321, 0
    %v378 = vsel %vm355, %v322, 0
    %380 = vmatprep.subr.bf16.mxu0 0
    %381 = vmatpush1.bf16.msra.mxu0 %v347
    %382 = vmatprep.subr.bf16.mxu0 0
    %383 = vmatpush1.bf16.msra.mxu0 %v348
    %384 = vmatprep.subr.bf16.mxu0 0
    %385 = vmatpush1.bf16.msra.mxu0 %v349
    %386 = vmatprep.subr.bf16.mxu0 0
    %387 = vmatpush1.bf16.msra.mxu0 %v350
    %388 = vmatprep.subr.bf16.mxu0 0
    %389 = vmatpush1.bf16.msra.mxu0 0
    %390 = vmatprep.subr.bf16.mxu0 0
    %391 = vmatpush1.bf16.msra.mxu0 0
    %392 = vmatprep.subr.bf16.mxu0 0
    %393 = vmatpush1.bf16.msra.mxu0 0
    %394 = vmatprep.subr.bf16.mxu0 0
    %395 = vmatpush1.bf16.msra.mxu0 0
    %396 = vmatprep.subr.bf16.mxu0 0
    %397 = vmatpush1.bf16.msra.mxu0 0
    %398 = vmatprep.subr.bf16.mxu0 0
    %399 = vmatpush1.bf16.msra.mxu0 0
    %400 = vmatprep.subr.bf16.mxu0 0
    %401 = vmatpush1.bf16.msra.mxu0 0
    %402 = vmatprep.subr.bf16.mxu0 0
    %403 = vmatpush1.bf16.msra.mxu0 0
    %404 = vmatprep.subr.bf16.mxu0 0
    %405 = vmatpush1.bf16.msra.mxu0 0
    %406 = vmatprep.subr.bf16.mxu0 0
    %407 = vmatpush1.bf16.msra.mxu0 0
    %408 = vmatprep.subr.bf16.mxu0 0
    %409 = vmatpush1.bf16.msra.mxu0 0
    %410 = vmatprep.subr.bf16.mxu0 0
    %411 = vmatpush1.bf16.msra.mxu0 0
    %412 = vmatprep.mubr.bf16.mxu0 0
    %413 = vmatmul.mubr.bf16.gmra.mrb[0].mxu0 %v357
    %v414 = vpop.f32.mrb[0].mxu0
    %v415 = vadd.f32 0.0, %v414
    %v416 = vpop.f32.mrb[0].mxu0
    %v417 = vpop.f32.mrb[0].mxu0
    %v418 = vadd.f32 0.0, %v417
    %v419 = vpop.f32.mrb[0].mxu0
    %420 = vmatprep.mubr.bf16.mxu0 0
    %421 = vmatmul.mubr.bf16.gmra.mrb[0].mxu0 %v360
    %v422 = vpop.f32.mrb[0].mxu0
    %v423 = vadd.f32 0.0, %v422
    %v424 = vpop.f32.mrb[0].mxu0
    %v425 = vpop.f32.mrb[0].mxu0
    %v426 = vadd.f32 0.0, %v425
    %v427 = vpop.f32.mrb[0].mxu0
    %428 = vmatprep.mubr.bf16.mxu0 0
    %429 = vmatmul.mubr.bf16.gmra.mrb[0].mxu0 %v363
    %v430 = vpop.f32.mrb[0].mxu0
    %v431 = vadd.f32 0.0, %v430
    %v432 = vpop.f32.mrb[0].mxu0
    %v433 = vpop.f32.mrb[0].mxu0
    %v434 = vadd.f32 0.0, %v433
    %v435 = vpop.f32.mrb[0].mxu0
    %436 = vmatprep.mubr.bf16.mxu0 0
    %437 = vmatmul.mubr.bf16.gmra.mrb[0].mxu0 %v366
    %v438 = vpop.f32.mrb[0].mxu0
    %v439 = vadd.f32 0.0, %v438
    %v440 = vpop.f32.mrb[0].mxu0
    %v441 = vpop.f32.mrb[0].mxu0
    %v442 = vadd.f32 0.0, %v441
    %v443 = vpop.f32.mrb[0].mxu0
    %444 = vmatprep.mubr.bf16.mxu0 0
    %445 = vmatmul.mubr.bf16.gmra.mrb[0].mxu0 %v369
    %v446 = vpop.f32.mrb[0].mxu0
    %v447 = vadd.f32 0.0, %v446
    %v448 = vpop.f32.mrb[0].mxu0
    %v449 = vpop.f32.mrb[0].mxu0
    %v450 = vadd.f32 0.0, %v449
    %v451 = vpop.f32.mrb[0].mxu0
    %452 = vmatprep.mubr.bf16.mxu0 0
    %453 = vmatmul.mubr.bf16.gmra.mrb[0].mxu0 %v372
    %v454 = vpop.f32.mrb[0].mxu0
    %v455 = vadd.f32 0.0, %v454
    %v456 = vpop.f32.mrb[0].mxu0
    %v457 = vpop.f32.mrb[0].mxu0
    %v458 = vadd.f32 0.0, %v457
    %v459 = vpop.f32.mrb[0].mxu0
    %460 = vmatprep.mubr.bf16.mxu0 0
    %461 = vmatmul.mubr.bf16.gmra.mrb[0].mxu0 %v375
    %v462 = vpop.f32.mrb[0].mxu0
    %v463 = vadd.f32 0.0, %v462
    %v464 = vpop.f32.mrb[0].mxu0
    %v465 = vpop.f32.mrb[0].mxu0
    %v466 = vadd.f32 0.0, %v465
    %v467 = vpop.f32.mrb[0].mxu0
    %468 = vmatprep.mubr.bf16.mxu0 0
    %469 = vmatmul.mubr.bf16.gmra.mrb[0].mxu0 %v378
    %v470 = vpop.f32.mrb[0].mxu0
    %v471 = vadd.f32 0.0, %v470
    %v472 = vpop.f32.mrb[0].mxu0
    %v473 = vpop.f32.mrb[0].mxu0
    %v474 = vadd.f32 0.0, %v473
    %v475 = vpop.f32.mrb[0].mxu0
    %476 = vdwg.mxu0
    %v477 = vpack.c.bf16 %v418, %v415
    %v478 = vpack.c.bf16 %v426, %v423
    %v479 = vpack.c.bf16 %v434, %v431
    %v480 = vpack.c.bf16 %v442, %v439
    %v481 = vpack.c.bf16 %v450, %v447
    %v482 = vpack.c.bf16 %v458, %v455
    %v483 = vpack.c.bf16 %v466, %v463
    %v484 = vpack.c.bf16 %v474, %v471
    %v493 = vunpack.c.l.b16 %v477
    %v494 = vunpack.c.h.b16 %v477
    %v495 = vunpack.c.l.b16 %v478
    %v496 = vunpack.c.h.b16 %v478
    %v497 = vunpack.c.l.b16 %v479
    %v498 = vunpack.c.h.b16 %v479
    %v499 = vunpack.c.l.b16 %v480
    %v500 = vunpack.c.h.b16 %v480
    %v501 = vunpack.c.l.b16 %v481
    %v502 = vunpack.c.h.b16 %v481
    %v503 = vunpack.c.l.b16 %v482
    %v504 = vunpack.c.h.b16 %v482
    %v505 = vunpack.c.l.b16 %v483
    %v506 = vunpack.c.h.b16 %v483
    %v507 = vunpack.c.l.b16 %v484
    %v508 = vunpack.c.h.b16 %v484
    %v509 = vpack.c.b16 %v493, %v493
    %v510 = vpack.c.b16 %v494, %v494
    %v511 = vpack.c.b16 %v495, %v495
    %v512 = vpack.c.b16 %v496, %v496
    %v513 = vpack.c.b16 %v497, %v497
    %v514 = vpack.c.b16 %v498, %v498
    %v515 = vpack.c.b16 %v499, %v499
    %v516 = vpack.c.b16 %v500, %v500
    %v517 = vpack.c.b16 %v501, %v501
    %v518 = vpack.c.b16 %v502, %v502
    %v519 = vpack.c.b16 %v503, %v503
    %v520 = vpack.c.b16 %v504, %v504
    %v521 = vpack.c.b16 %v505, %v505
    %v522 = vpack.c.b16 %v506, %v506
    %v523 = vpack.c.b16 %v507, %v507
    %v524 = vpack.c.b16 %v508, %v508
    %541 = vst [vmem:[%s5] sm:$0xf] %v509
    %542 = vst [vmem:[%s5 + $0x4] sm:$0xf] %v510
    %543 = vst [vmem:[%s5 + $0x8] sm:$0xf] %v511
    %544 = vst [vmem:[%s5 + $0xc] sm:$0xf] %v512
    %545 = vst [vmem:[%s5 + $0x10] sm:$0xf] %v513
    %546 = vst [vmem:[%s5 + $0x14] sm:$0xf] %v514
    %547 = vst [vmem:[%s5 + $0x18] sm:$0xf] %v515
    %548 = vst [vmem:[%s5 + $0x1c] sm:$0xf] %v516
    %549 = vst [vmem:[%s5 + $0x20] sm:$0xf] %v517
    %550 = vst [vmem:[%s5 + $0x24] sm:$0xf] %v518
    %551 = vst [vmem:[%s5 + $0x28] sm:$0xf] %v519
    %552 = vst [vmem:[%s5 + $0x2c] sm:$0xf] %v520
    %553 = vst [vmem:[%s5 + $0x30] sm:$0xf] %v521
    %554 = vst [vmem:[%s5 + $0x34] sm:$0xf] %v522
    %555 = vst [vmem:[%s5 + $0x38] sm:$0xf] %v523
    %556 = vst [vmem:[%s5 + $0x3c] sm:$0xf] %v524
    %557 = vmatprep.subr.mxu0 0.0
    %558 = vmatpush1.msra.mxu0 %v415
    %559 = vmatprep.subr.mxu0 0.0
    %560 = vmatpush1.msra.mxu0 %v418
    %561 = vmatprep.subr.mxu0 0.0
    %562 = vmatpush1.msra.mxu0 %v423
    %563 = vmatprep.subr.mxu0 0.0
    %564 = vmatpush1.msra.mxu0 %v426
    %565 = vmatprep.subr.mxu0 0.0
    %566 = vmatpush1.msra.mxu0 %v431
    %567 = vmatprep.subr.mxu0 0.0
    %568 = vmatpush1.msra.mxu0 %v434
    %569 = vmatprep.subr.mxu0 0.0
    %570 = vmatpush1.msra.mxu0 %v439
    %571 = vmatprep.subr.mxu0 0.0
    %572 = vmatpush1.msra.mxu0 %v442
    %573 = vmatprep.subr.mxu0 0.0
    %574 = vmatpush1.msra.mxu0 %v447
    %575 = vmatprep.subr.mxu0 0.0
    %576 = vmatpush1.msra.mxu0 %v450
    %577 = vmatprep.subr.mxu0 0.0
    %578 = vmatpush1.msra.mxu0 %v455
    %579 = vmatprep.subr.mxu0 0.0
    %580 = vmatpush1.msra.mxu0 %v458
    %581 = vmatprep.subr.mxu0 0.0
    %582 = vmatpush1.msra.mxu0 %v463
    %583 = vmatprep.subr.mxu0 0.0
    %584 = vmatpush1.msra.mxu0 %v466
    %585 = vmatprep.subr.mxu0 0.0
    %586 = vmatpush1.msra.mxu0 %v471
    %587 = vmatprep.subr.mxu0 0.0
    %588 = vmatpush1.msra.mxu0 %v474
    %589 = vmatprep.subr.mxu0 0.0
    %590 = vmatpush1.msra.mxu0 0.0
    %591 = vmatprep.subr.mxu0 0.0
    %592 = vmatpush1.msra.mxu0 0.0
    %593 = vmatprep.subr.mxu0 0.0
    %594 = vmatpush1.msra.mxu0 0.0
    %595 = vmatprep.subr.mxu0 0.0
    %596 = vmatpush1.msra.mxu0 0.0
    %597 = vmatprep.subr.mxu0 0.0
    %598 = vmatpush1.msra.mxu0 0.0
    %599 = vmatprep.subr.mxu0 0.0
    %600 = vmatpush1.msra.mxu0 0.0
    %601 = vmatprep.subr.mxu0 0.0
    %602 = vmatpush1.msra.mxu0 0.0
    %603 = vmatprep.subr.mxu0 0.0
    %604 = vmatpush1.msra.mxu0 0.0
    %605 = vmatprep.subr.mxu0 0.0
    %606 = vmatpush1.msra.mxu0 0.0
    %607 = vmatprep.subr.mxu0 0.0
    %608 = vmatpush1.msra.mxu0 0.0
    %609 = vmatprep.subr.mxu0 0.0
    %610 = vmatpush1.msra.mxu0 0.0
    %611 = vmatprep.subr.mxu0 0.0
    %612 = vmatpush1.msra.mxu0 0.0
    %613 = vmatprep.subr.mxu0 0.0
    %614 = vmatpush1.msra.mxu0 0.0
    %615 = vmatprep.subr.mxu0 0.0
    %616 = vmatpush1.msra.mxu0 0.0
    %617 = vmatprep.subr.mxu0 0.0
    %618 = vmatpush1.msra.mxu0 0.0
    %619 = vmatprep.subr.mxu0 0.0
    %620 = vmatpush1.msra.mxu0 0.0
    %621 = vmatprep.mubr.f32.mxu0 0.0
    %622 = vmatmul.mubr.f32.gmra.mrb[0].mxu0 1.0
    %v623 = vpop.f32.mrb[0].mxu0
    %v624 = vadd.f32 0.0, %v623
    %v625 = vpop.f32.mrb[0].mxu0
    %626 = vdwg.mxu0
    %v627 = vmul.f32 %v415, %v415
    %v628 = vmul.f32 %v418, %v418
    %v629 = vmul.f32 %v423, %v423
    %v630 = vmul.f32 %v426, %v426
    %v631 = vmul.f32 %v431, %v431
    %v632 = vmul.f32 %v434, %v434
    %v633 = vmul.f32 %v439, %v439
    %v634 = vmul.f32 %v442, %v442
    %v635 = vmul.f32 %v447, %v447
    %v636 = vmul.f32 %v450, %v450
    %v637 = vmul.f32 %v455, %v455
    %v638 = vmul.f32 %v458, %v458
    %v639 = vmul.f32 %v463, %v463
    %v640 = vmul.f32 %v466, %v466
    %v641 = vmul.f32 %v471, %v471
    %v642 = vmul.f32 %v474, %v474
    %643 = vmatprep.subr.mxu0 0.0
    %644 = vmatpush1.msra.mxu0 %v627
    %645 = vmatprep.subr.mxu0 0.0
    %646 = vmatpush1.msra.mxu0 %v628
    %647 = vmatprep.subr.mxu0 0.0
    %648 = vmatpush1.msra.mxu0 %v629
    %649 = vmatprep.subr.mxu0 0.0
    %650 = vmatpush1.msra.mxu0 %v630
    %651 = vmatprep.subr.mxu0 0.0
    %652 = vmatpush1.msra.mxu0 %v631
    %653 = vmatprep.subr.mxu0 0.0
    %654 = vmatpush1.msra.mxu0 %v632
    %655 = vmatprep.subr.mxu0 0.0
    %656 = vmatpush1.msra.mxu0 %v633
    %657 = vmatprep.subr.mxu0 0.0
    %658 = vmatpush1.msra.mxu0 %v634
    %659 = vmatprep.subr.mxu0 0.0
    %660 = vmatpush1.msra.mxu0 %v635
    %661 = vmatprep.subr.mxu0 0.0
    %662 = vmatpush1.msra.mxu0 %v636
    %663 = vmatprep.subr.mxu0 0.0
    %664 = vmatpush1.msra.mxu0 %v637
    %665 = vmatprep.subr.mxu0 0.0
    %666 = vmatpush1.msra.mxu0 %v638
    %667 = vmatprep.subr.mxu0 0.0
    %668 = vmatpush1.msra.mxu0 %v639
    %669 = vmatprep.subr.mxu0 0.0
    %670 = vmatpush1.msra.mxu0 %v640
    %671 = vmatprep.subr.mxu0 0.0
    %672 = vmatpush1.msra.mxu0 %v641
    %673 = vmatprep.subr.mxu0 0.0
    %674 = vmatpush1.msra.mxu0 %v642
    %675 = vmatprep.subr.mxu0 0.0
    %676 = vmatpush1.msra.mxu0 0.0
    %677 = vmatprep.subr.mxu0 0.0
    %678 = vmatpush1.msra.mxu0 0.0
    %679 = vmatprep.subr.mxu0 0.0
    %680 = vmatpush1.msra.mxu0 0.0
    %681 = vmatprep.subr.mxu0 0.0
    %682 = vmatpush1.msra.mxu0 0.0
    %683 = vmatprep.subr.mxu0 0.0
    %684 = vmatpush1.msra.mxu0 0.0
    %685 = vmatprep.subr.mxu0 0.0
    %686 = vmatpush1.msra.mxu0 0.0
    %687 = vmatprep.subr.mxu0 0.0
    %688 = vmatpush1.msra.mxu0 0.0
    %689 = vmatprep.subr.mxu0 0.0
    %690 = vmatpush1.msra.mxu0 0.0
    %691 = vmatprep.subr.mxu0 0.0
    %692 = vmatpush1.msra.mxu0 0.0
    %693 = vmatprep.subr.mxu0 0.0
    %694 = vmatpush1.msra.mxu0 0.0
    %695 = vmatprep.subr.mxu0 0.0
    %696 = vmatpush1.msra.mxu0 0.0
    %697 = vmatprep.subr.mxu0 0.0
    %698 = vmatpush1.msra.mxu0 0.0
    %699 = vmatprep.subr.mxu0 0.0
    %700 = vmatpush1.msra.mxu0 0.0
    %701 = vmatprep.subr.mxu0 0.0
    %702 = vmatpush1.msra.mxu0 0.0
    %703 = vmatprep.subr.mxu0 0.0
    %704 = vmatpush1.msra.mxu0 0.0
    %705 = vmatprep.subr.mxu0 0.0
    %706 = vmatpush1.msra.mxu0 0.0
    %707 = vmatprep.mubr.f32.mxu0 0.0
    %708 = vmatmul.mubr.f32.gmra.mrb[0].mxu0 1.0
    %v709 = vpop.f32.mrb[0].mxu0
    %v710 = vadd.f32 0.0, %v709
    %v711 = vpop.f32.mrb[0].mxu0
    %712 = vdwg.mxu0
    %713 = vst [vmem:[%s6] sm:$0x1] %v624
    %714 = vst [vmem:[%s7] sm:$0x1] %v710
    // Predicated region
    $region26: #{stn3d_forward.4} parent=1 // pred_check
      _
    $region27: #{stn3d_forward.4} parent=1 // pred_check_branch
      %716 = sbr.rel (0) target = $region29
    $region28: #{stn3d_forward.4} parent=1 // pred_region
      _
    $region29: #{stn3d_forward.4} parent=1 // pred_fallthru
      _
    // Predicated region
    $region30: #{stn3d_forward.4} parent=1 // pred_check
      _
    $region31: #{stn3d_forward.4} parent=1 // pred_check_branch
      %718 = sbr.rel (0) target = $region33
    $region32: #{stn3d_forward.4} parent=1 // pred_region
      _
    $region33: #{stn3d_forward.4} parent=1 // pred_fallthru
      _
    // Predicated region
    $region34: #{stn3d_forward.4} parent=1 // pred_check
      _
    $region35: #{stn3d_forward.4} parent=1 // pred_check_branch
      %720 = sbr.rel (0) target = $region37
    $region36: #{stn3d_forward.4} parent=1 // pred_region
      _
    $region37: #{stn3d_forward.4} parent=1 // pred_fallthru
      _
    // Predicated region
    $region38: #{stn3d_forward.4} parent=1 // pred_check
      _
    $region39: #{stn3d_forward.4} parent=1 // pred_check_branch
      %722 = sbr.rel (0) target = $region41
    $region40: #{stn3d_forward.4} parent=1 // pred_region
      _
    $region41: #{stn3d_forward.4} parent=1 // pred_fallthru
      _
    // Predicated region
    $region42: #{stn3d_forward.4} parent=1 // pred_check
      _
    $region43: #{stn3d_forward.4} parent=1 // pred_check_branch
      %724 = sbr.rel (0) target = $region45
    $region44: #{stn3d_forward.4} parent=1 // pred_region
      _
    $region45: #{stn3d_forward.4} parent=1 // pred_fallthru
      _
    // Predicated region
    $region46: #{stn3d_forward.4} parent=1 // pred_check
      _
    $region47: #{stn3d_forward.4} parent=1 // pred_check_branch
      %726 = sbr.rel (0) target = $region49
    $region48: #{stn3d_forward.4} parent=1 // pred_region
      _
    $region49: #{stn3d_forward.4} parent=1 // pred_fallthru
      _
    %727 = vsyncpa [#allocation3], 1

// kernel: stn3d_forward.5
$region0: #{stn3d_forward.5}
  #allocation0 [shape = 'u32[]', space=smem, size = 0x4, offset = 0x4, fixed_abs, tag = 'smem constant byte address 0x4 - core index']
  #allocation1 [shape = 'u32[144,128]{1,0:T(1,128)}', space=vmem, size = 0x12000, scoped, tag = 'internal scratch']
  %s0 = inlined_call_operand.vmem [shape: bf16[128,128], index: 0, kind: input, shape index: {}]
  %s1 = inlined_call_operand.vmem [shape: f32[1,128], index: 1, kind: input, shape index: {}]
  %s2 = inlined_call_operand.vmem [shape: f32[1,128], index: 2, kind: input, shape index: {}]
  %s3 = inlined_call_operand.vmem [shape: bf16[128,1024], index: 3, kind: input, shape index: {}]
  %s4 = inlined_call_operand.vmem [shape: bf16[16,1024], index: 4, kind: output, shape index: {0}]
  %s5 = inlined_call_operand.vmem [shape: f32[1,1,1024], index: 5, kind: output, shape index: {1}]
  %s6 = inlined_call_operand.vmem [shape: f32[1,1,1024], index: 6, kind: output, shape index: {2}]
  %7 = xla_tuple %s4, %s5, %s6
  %s8 = sld [smem:[#allocation0]]
  $region42: #{stn3d_forward.5} parent=0
    _
  %s10 = ssub.s32 1, %s8
  %s11 = scalar_select 0, %s10, %s8
  // Predicated region
  $region2: #{stn3d_forward.5} parent=0 // pred_check
    _
  $region3: #{stn3d_forward.5} parent=0 // pred_check_branch
    %13 = sbr.rel (0) target = $region5
  $region4: #{stn3d_forward.5} parent=0 // pred_region
    _
  $region5: #{stn3d_forward.5} parent=0 // pred_fallthru
    _
  // Predicated region
  $region6: #{stn3d_forward.5} parent=0 // pred_check
    _
  $region7: #{stn3d_forward.5} parent=0 // pred_check_branch
    %15 = sbr.rel (0) target = $region9
  $region8: #{stn3d_forward.5} parent=0 // pred_region
    _
  $region9: #{stn3d_forward.5} parent=0 // pred_fallthru
    _
  // Predicated region
  $region10: #{stn3d_forward.5} parent=0 // pred_check
    _
  $region11: #{stn3d_forward.5} parent=0 // pred_check_branch
    %17 = sbr.rel (0) target = $region13
  $region12: #{stn3d_forward.5} parent=0 // pred_region
    _
  $region13: #{stn3d_forward.5} parent=0 // pred_fallthru
    _
  // Predicated region
  $region14: #{stn3d_forward.5} parent=0 // pred_check
    _
  $region15: #{stn3d_forward.5} parent=0 // pred_check_branch
    %19 = sbr.rel (0) target = $region17
  $region16: #{stn3d_forward.5} parent=0 // pred_region
    _
  $region17: #{stn3d_forward.5} parent=0 // pred_fallthru
    _
  %v21 = vld [vmem:[%s0] sm:$0xf]
  %v22 = vld [vmem:[%s0 + $0x4] sm:$0xf]
  %v23 = vld [vmem:[%s0 + $0x8] sm:$0xf]
  %v24 = vld [vmem:[%s0 + $0xc] sm:$0xf]
  %v25 = vld [vmem:[%s0 + $0x10] sm:$0xf]
  %v26 = vld [vmem:[%s0 + $0x14] sm:$0xf]
  %v27 = vld [vmem:[%s0 + $0x18] sm:$0xf]
  %v28 = vld [vmem:[%s0 + $0x1c] sm:$0xf]
  %v29 = vld [vmem:[%s0 + $0x20] sm:$0xf]
  %v30 = vld [vmem:[%s0 + $0x24] sm:$0xf]
  %v31 = vld [vmem:[%s0 + $0x28] sm:$0xf]
  %v32 = vld [vmem:[%s0 + $0x2c] sm:$0xf]
  %v33 = vld [vmem:[%s0 + $0x30] sm:$0xf]
  %v34 = vld [vmem:[%s0 + $0x34] sm:$0xf]
  %v35 = vld [vmem:[%s0 + $0x38] sm:$0xf]
  %v36 = vld [vmem:[%s0 + $0x3c] sm:$0xf]
  %v37 = vunpack.c.l.bf16 %v21
  %v38 = vunpack.c.l.bf16 %v22
  %v39 = vunpack.c.l.bf16 %v23
  %v40 = vunpack.c.l.bf16 %v24
  %v41 = vunpack.c.l.bf16 %v25
  %v42 = vunpack.c.l.bf16 %v26
  %v43 = vunpack.c.l.bf16 %v27
  %v44 = vunpack.c.l.bf16 %v28
  %v45 = vunpack.c.l.bf16 %v29
  %v46 = vunpack.c.l.bf16 %v30
  %v47 = vunpack.c.l.bf16 %v31
  %v48 = vunpack.c.l.bf16 %v32
  %v49 = vunpack.c.l.bf16 %v33
  %v50 = vunpack.c.l.bf16 %v34
  %v51 = vunpack.c.l.bf16 %v35
  %v52 = vunpack.c.l.bf16 %v36
  %v53 = vld [vmem:[%s1] sm:$0x1]
  %v55 = vlaneseq
  %v56 = vshrl.u32 %v55, 7
  %v57 = vsub.s32 0, %v56
  %v58 = vrot.slane %v53, %v57
  %v60 = vmul.f32 %v37, %v58
  %v61 = vmul.f32 %v38, %v58
  %v62 = vmul.f32 %v39, %v58
  %v63 = vmul.f32 %v40, %v58
  %v64 = vmul.f32 %v41, %v58
  %v65 = vmul.f32 %v42, %v58
  %v66 = vmul.f32 %v43, %v58
  %v67 = vmul.f32 %v44, %v58
  %v68 = vmul.f32 %v45, %v58
  %v69 = vmul.f32 %v46, %v58
  %v70 = vmul.f32 %v47, %v58
  %v71 = vmul.f32 %v48, %v58
  %v72 = vmul.f32 %v49, %v58
  %v73 = vmul.f32 %v50, %v58
  %v74 = vmul.f32 %v51, %v58
  %v75 = vmul.f32 %v52, %v58
  %v76 = vld [vmem:[%s2] sm:$0x1]
  %v78 = vlaneseq
  %v79 = vshrl.u32 %v78, 7
  %v80 = vsub.s32 0, %v79
  %v81 = vrot.slane %v76, %v80
  %v83 = vadd.f32 %v60, %v81
  %v84 = vadd.f32 %v61, %v81
  %v85 = vadd.f32 %v62, %v81
  %v86 = vadd.f32 %v63, %v81
  %v87 = vadd.f32 %v64, %v81
  %v88 = vadd.f32 %v65, %v81
  %v89 = vadd.f32 %v66, %v81
  %v90 = vadd.f32 %v67, %v81
  %v91 = vadd.f32 %v68, %v81
  %v92 = vadd.f32 %v69, %v81
  %v93 = vadd.f32 %v70, %v81
  %v94 = vadd.f32 %v71, %v81
  %v95 = vadd.f32 %v72, %v81
  %v96 = vadd.f32 %v73, %v81
  %v97 = vadd.f32 %v74, %v81
  %v98 = vadd.f32 %v75, %v81
  %v99 = vmax.f32 %v83, 0.0
  %v100 = vmax.f32 %v84, 0.0
  %v101 = vmax.f32 %v85, 0.0
  %v102 = vmax.f32 %v86, 0.0
  %v103 = vmax.f32 %v87, 0.0
  %v104 = vmax.f32 %v88, 0.0
  %v105 = vmax.f32 %v89, 0.0
  %v106 = vmax.f32 %v90, 0.0
  %v107 = vmax.f32 %v91, 0.0
  %v108 = vmax.f32 %v92, 0.0
  %v109 = vmax.f32 %v93, 0.0
  %v110 = vmax.f32 %v94, 0.0
  %v111 = vmax.f32 %v95, 0.0
  %v112 = vmax.f32 %v96, 0.0
  %v113 = vmax.f32 %v97, 0.0
  %v114 = vmax.f32 %v98, 0.0
  %v115 = vpack.c.bf16 %v100, %v99
  %v116 = vpack.c.bf16 %v102, %v101
  %v117 = vpack.c.bf16 %v104, %v103
  %v118 = vpack.c.bf16 %v106, %v105
  %v119 = vpack.c.bf16 %v108, %v107
  %v120 = vpack.c.bf16 %v110, %v109
  %v121 = vpack.c.bf16 %v112, %v111
  %v122 = vpack.c.bf16 %v114, %v113
  %v123 = vld [vmem:[%s3] sm:$0xff]
  %v124 = vld [vmem:[%s3 + $0x8] sm:$0xff]
  %v125 = vld [vmem:[%s3 + $0x10] sm:$0xff]
  %v126 = vld [vmem:[%s3 + $0x18] sm:$0xff]
  %v127 = vld [vmem:[%s3 + $0x20] sm:$0xff]
  %v128 = vld [vmem:[%s3 + $0x28] sm:$0xff]
  %v129 = vld [vmem:[%s3 + $0x30] sm:$0xff]
  %v130 = vld [vmem:[%s3 + $0x38] sm:$0xff]
  %v131 = vld [vmem:[%s3 + $0x40] sm:$0xff]
  %v132 = vld [vmem:[%s3 + $0x48] sm:$0xff]
  %v133 = vld [vmem:[%s3 + $0x50] sm:$0xff]
  %v134 = vld [vmem:[%s3 + $0x58] sm:$0xff]
  %v135 = vld [vmem:[%s3 + $0x60] sm:$0xff]
  %v136 = vld [vmem:[%s3 + $0x68] sm:$0xff]
  %v137 = vld [vmem:[%s3 + $0x70] sm:$0xff]
  %v138 = vld [vmem:[%s3 + $0x78] sm:$0xff]
  %v139 = vld [vmem:[%s3 + $0x80] sm:$0xff]
  %v140 = vld [vmem:[%s3 + $0x88] sm:$0xff]
  %v141 = vld [vmem:[%s3 + $0x90] sm:$0xff]
  %v142 = vld [vmem:[%s3 + $0x98] sm:$0xff]
  %v143 = vld [vmem:[%s3 + $0xa0] sm:$0xff]
  %v144 = vld [vmem:[%s3 + $0xa8] sm:$0xff]
  %v145 = vld [vmem:[%s3 + $0xb0] sm:$0xff]
  %v146 = vld [vmem:[%s3 + $0xb8] sm:$0xff]
  %v147 = vld [vmem:[%s3 + $0xc0] sm:$0xff]
  %v148 = vld [vmem:[%s3 + $0xc8] sm:$0xff]
  %v149 = vld [vmem:[%s3 + $0xd0] sm:$0xff]
  %v150 = vld [vmem:[%s3 + $0xd8] sm:$0xff]
  %v151 = vld [vmem:[%s3 + $0xe0] sm:$0xff]
  %v152 = vld [vmem:[%s3 + $0xe8] sm:$0xff]
  %v153 = vld [vmem:[%s3 + $0xf0] sm:$0xff]
  %v154 = vld [vmem:[%s3 + $0xf8] sm:$0xff]
  %v155 = vld [vmem:[%s3 + $0x100] sm:$0xff]
  %v156 = vld [vmem:[%s3 + $0x108] sm:$0xff]
  %v157 = vld [vmem:[%s3 + $0x110] sm:$0xff]
  %v158 = vld [vmem:[%s3 + $0x118] sm:$0xff]
  %v159 = vld [vmem:[%s3 + $0x120] sm:$0xff]
  %v160 = vld [vmem:[%s3 + $0x128] sm:$0xff]
  %v161 = vld [vmem:[%s3 + $0x130] sm:$0xff]
  %v162 = vld [vmem:[%s3 + $0x138] sm:$0xff]
  %v163 = vld [vmem:[%s3 + $0x140] sm:$0xff]
  %v164 = vld [vmem:[%s3 + $0x148] sm:$0xff]
  %v165 = vld [vmem:[%s3 + $0x150] sm:$0xff]
  %v166 = vld [vmem:[%s3 + $0x158] sm:$0xff]
  %v167 = vld [vmem:[%s3 + $0x160] sm:$0xff]
  %v168 = vld [vmem:[%s3 + $0x168] sm:$0xff]
  %v169 = vld [vmem:[%s3 + $0x170] sm:$0xff]
  %v170 = vld [vmem:[%s3 + $0x178] sm:$0xff]
  %v171 = vld [vmem:[%s3 + $0x180] sm:$0xff]
  %v172 = vld [vmem:[%s3 + $0x188] sm:$0xff]
  %v173 = vld [vmem:[%s3 + $0x190] sm:$0xff]
  %v174 = vld [vmem:[%s3 + $0x198] sm:$0xff]
  %v175 = vld [vmem:[%s3 + $0x1a0] sm:$0xff]
  %v176 = vld [vmem:[%s3 + $0x1a8] sm:$0xff]
  %v177 = vld [vmem:[%s3 + $0x1b0] sm:$0xff]
  %v178 = vld [vmem:[%s3 + $0x1b8] sm:$0xff]
  %v179 = vld [vmem:[%s3 + $0x1c0] sm:$0xff]
  %v180 = vld [vmem:[%s3 + $0x1c8] sm:$0xff]
  %v181 = vld [vmem:[%s3 + $0x1d0] sm:$0xff]
  %v182 = vld [vmem:[%s3 + $0x1d8] sm:$0xff]
  %v183 = vld [vmem:[%s3 + $0x1e0] sm:$0xff]
  %v184 = vld [vmem:[%s3 + $0x1e8] sm:$0xff]
  %v185 = vld [vmem:[%s3 + $0x1f0] sm:$0xff]
  %v186 = vld [vmem:[%s3 + $0x1f8] sm:$0xff]
  %v251 = vunpack.c.l.b16 %v123
  %v252 = vunpack.c.h.b16 %v123
  %v253 = vunpack.c.l.b16 %v124
  %v254 = vunpack.c.h.b16 %v124
  %v255 = vunpack.c.l.b16 %v125
  %v256 = vunpack.c.h.b16 %v125
  %v257 = vunpack.c.l.b16 %v126
  %v258 = vunpack.c.h.b16 %v126
  %v259 = vunpack.c.l.b16 %v127
  %v260 = vunpack.c.h.b16 %v127
  %v261 = vunpack.c.l.b16 %v128
  %v262 = vunpack.c.h.b16 %v128
  %v263 = vunpack.c.l.b16 %v129
  %v264 = vunpack.c.h.b16 %v129
  %v265 = vunpack.c.l.b16 %v130
  %v266 = vunpack.c.h.b16 %v130
  %v267 = vunpack.c.l.b16 %v131
  %v268 = vunpack.c.h.b16 %v131
  %v269 = vunpack.c.l.b16 %v132
  %v270 = vunpack.c.h.b16 %v132
  %v271 = vunpack.c.l.b16 %v133
  %v272 = vunpack.c.h.b16 %v133
  %v273 = vunpack.c.l.b16 %v134
  %v274 = vunpack.c.h.b16 %v134
  %v275 = vunpack.c.l.b16 %v135
  %v276 = vunpack.c.h.b16 %v135
  %v277 = vunpack.c.l.b16 %v136
  %v278 = vunpack.c.h.b16 %v136
  %v279 = vunpack.c.l.b16 %v137
  %v280 = vunpack.c.h.b16 %v137
  %v281 = vunpack.c.l.b16 %v138
  %v282 = vunpack.c.h.b16 %v138
  %v283 = vunpack.c.l.b16 %v139
  %v284 = vunpack.c.h.b16 %v139
  %v285 = vunpack.c.l.b16 %v140
  %v286 = vunpack.c.h.b16 %v140
  %v287 = vunpack.c.l.b16 %v141
  %v288 = vunpack.c.h.b16 %v141
  %v289 = vunpack.c.l.b16 %v142
  %v290 = vunpack.c.h.b16 %v142
  %v291 = vunpack.c.l.b16 %v143
  %v292 = vunpack.c.h.b16 %v143
  %v293 = vunpack.c.l.b16 %v144
  %v294 = vunpack.c.h.b16 %v144
  %v295 = vunpack.c.l.b16 %v145
  %v296 = vunpack.c.h.b16 %v145
  %v297 = vunpack.c.l.b16 %v146
  %v298 = vunpack.c.h.b16 %v146
  %v299 = vunpack.c.l.b16 %v147
  %v300 = vunpack.c.h.b16 %v147
  %v301 = vunpack.c.l.b16 %v148
  %v302 = vunpack.c.h.b16 %v148
  %v303 = vunpack.c.l.b16 %v149
  %v304 = vunpack.c.h.b16 %v149
  %v305 = vunpack.c.l.b16 %v150
  %v306 = vunpack.c.h.b16 %v150
  %v307 = vunpack.c.l.b16 %v151
  %v308 = vunpack.c.h.b16 %v151
  %v309 = vunpack.c.l.b16 %v152
  %v310 = vunpack.c.h.b16 %v152
  %v311 = vunpack.c.l.b16 %v153
  %v312 = vunpack.c.h.b16 %v153
  %v313 = vunpack.c.l.b16 %v154
  %v314 = vunpack.c.h.b16 %v154
  %v315 = vunpack.c.l.b16 %v155
  %v316 = vunpack.c.h.b16 %v155
  %v317 = vunpack.c.l.b16 %v156
  %v318 = vunpack.c.h.b16 %v156
  %v319 = vunpack.c.l.b16 %v157
  %v320 = vunpack.c.h.b16 %v157
  %v321 = vunpack.c.l.b16 %v158
  %v322 = vunpack.c.h.b16 %v158
  %v323 = vunpack.c.l.b16 %v159
  %v324 = vunpack.c.h.b16 %v159
  %v325 = vunpack.c.l.b16 %v160
  %v326 = vunpack.c.h.b16 %v160
  %v327 = vunpack.c.l.b16 %v161
  %v328 = vunpack.c.h.b16 %v161
  %v329 = vunpack.c.l.b16 %v162
  %v330 = vunpack.c.h.b16 %v162
  %v331 = vunpack.c.l.b16 %v163
  %v332 = vunpack.c.h.b16 %v163
  %v333 = vunpack.c.l.b16 %v164
  %v334 = vunpack.c.h.b16 %v164
  %v335 = vunpack.c.l.b16 %v165
  %v336 = vunpack.c.h.b16 %v165
  %v337 = vunpack.c.l.b16 %v166
  %v338 = vunpack.c.h.b16 %v166
  %v339 = vunpack.c.l.b16 %v167
  %v340 = vunpack.c.h.b16 %v167
  %v341 = vunpack.c.l.b16 %v168
  %v342 = vunpack.c.h.b16 %v168
  %v343 = vunpack.c.l.b16 %v169
  %v344 = vunpack.c.h.b16 %v169
  %v345 = vunpack.c.l.b16 %v170
  %v346 = vunpack.c.h.b16 %v170
  %v347 = vunpack.c.l.b16 %v171
  %v348 = vunpack.c.h.b16 %v171
  %v349 = vunpack.c.l.b16 %v172
  %v350 = vunpack.c.h.b16 %v172
  %v351 = vunpack.c.l.b16 %v173
  %v352 = vunpack.c.h.b16 %v173
  %v353 = vunpack.c.l.b16 %v174
  %v354 = vunpack.c.h.b16 %v174
  %v355 = vunpack.c.l.b16 %v175
  %v356 = vunpack.c.h.b16 %v175
  %v357 = vunpack.c.l.b16 %v176
  %v358 = vunpack.c.h.b16 %v176
  %v359 = vunpack.c.l.b16 %v177
  %v360 = vunpack.c.h.b16 %v177
  %v361 = vunpack.c.l.b16 %v178
  %v362 = vunpack.c.h.b16 %v178
  %v363 = vunpack.c.l.b16 %v179
  %v364 = vunpack.c.h.b16 %v179
  %v365 = vunpack.c.l.b16 %v180
  %v366 = vunpack.c.h.b16 %v180
  %v367 = vunpack.c.l.b16 %v181
  %v368 = vunpack.c.h.b16 %v181
  %v369 = vunpack.c.l.b16 %v182
  %v370 = vunpack.c.h.b16 %v182
  %v371 = vunpack.c.l.b16 %v183
  %v372 = vunpack.c.h.b16 %v183
  %v373 = vunpack.c.l.b16 %v184
  %v374 = vunpack.c.h.b16 %v184
  %v375 = vunpack.c.l.b16 %v185
  %v376 = vunpack.c.h.b16 %v185
  %v377 = vunpack.c.l.b16 %v186
  %v378 = vunpack.c.h.b16 %v186
  %v379 = vpack.c.b16 %v259, %v251
  %v380 = vpack.c.b16 %v260, %v252
  %v381 = vpack.c.b16 %v261, %v253
  %v382 = vpack.c.b16 %v262, %v254
  %v383 = vpack.c.b16 %v263, %v255
  %v384 = vpack.c.b16 %v264, %v256
  %v385 = vpack.c.b16 %v265, %v257
  %v386 = vpack.c.b16 %v266, %v258
  %v387 = vpack.c.b16 %v275, %v267
  %v388 = vpack.c.b16 %v276, %v268
  %v389 = vpack.c.b16 %v277, %v269
  %v390 = vpack.c.b16 %v278, %v270
  %v391 = vpack.c.b16 %v279, %v271
  %v392 = vpack.c.b16 %v280, %v272
  %v393 = vpack.c.b16 %v281, %v273
  %v394 = vpack.c.b16 %v282, %v274
  %v395 = vpack.c.b16 %v291, %v283
  %v396 = vpack.c.b16 %v292, %v284
  %v397 = vpack.c.b16 %v293, %v285
  %v398 = vpack.c.b16 %v294, %v286
  %v399 = vpack.c.b16 %v295, %v287
  %v400 = vpack.c.b16 %v296, %v288
  %v401 = vpack.c.b16 %v297, %v289
  %v402 = vpack.c.b16 %v298, %v290
  %v403 = vpack.c.b16 %v307, %v299
  %v404 = vpack.c.b16 %v308, %v300
  %v405 = vpack.c.b16 %v309, %v301
  %v406 = vpack.c.b16 %v310, %v302
  %v407 = vpack.c.b16 %v311, %v303
  %v408 = vpack.c.b16 %v312, %v304
  %v409 = vpack.c.b16 %v313, %v305
  %v410 = vpack.c.b16 %v314, %v306
  %v411 = vpack.c.b16 %v323, %v315
  %v412 = vpack.c.b16 %v324, %v316
  %v413 = vpack.c.b16 %v325, %v317
  %v414 = vpack.c.b16 %v326, %v318
  %v415 = vpack.c.b16 %v327, %v319
  %v416 = vpack.c.b16 %v328, %v320
  %v417 = vpack.c.b16 %v329, %v321
  %v418 = vpack.c.b16 %v330, %v322
  %v419 = vpack.c.b16 %v339, %v331
  %v420 = vpack.c.b16 %v340, %v332
  %v421 = vpack.c.b16 %v341, %v333
  %v422 = vpack.c.b16 %v342, %v334
  %v423 = vpack.c.b16 %v343, %v335
  %v424 = vpack.c.b16 %v344, %v336
  %v425 = vpack.c.b16 %v345, %v337
  %v426 = vpack.c.b16 %v346, %v338
  %v427 = vpack.c.b16 %v355, %v347
  %v428 = vpack.c.b16 %v356, %v348
  %v429 = vpack.c.b16 %v357, %v349
  %v430 = vpack.c.b16 %v358, %v350
  %v431 = vpack.c.b16 %v359, %v351
  %v432 = vpack.c.b16 %v360, %v352
  %v433 = vpack.c.b16 %v361, %v353
  %v434 = vpack.c.b16 %v362, %v354
  %v435 = vpack.c.b16 %v371, %v363
  %v436 = vpack.c.b16 %v372, %v364
  %v437 = vpack.c.b16 %v373, %v365
  %v438 = vpack.c.b16 %v374, %v366
  %v439 = vpack.c.b16 %v375, %v367
  %v440 = vpack.c.b16 %v376, %v368
  %v441 = vpack.c.b16 %v377, %v369
  %v442 = vpack.c.b16 %v378, %v370
  %507 = vmatprep.subr.bf16.mxu0 %v380
  %508 = vmatpush1.bf16.msra.mxu0 %v379
  %509 = vmatprep.subr.bf16.mxu0 %v388
  %510 = vmatpush1.bf16.msra.mxu0 %v387
  %511 = vmatprep.subr.bf16.mxu0 %v396
  %512 = vmatpush1.bf16.msra.mxu0 %v395
  %513 = vmatprep.subr.bf16.mxu0 %v404
  %514 = vmatpush1.bf16.msra.mxu0 %v403
  %515 = vmatprep.subr.bf16.mxu0 %v412
  %516 = vmatpush1.bf16.msra.mxu0 %v411
  %517 = vmatprep.subr.bf16.mxu0 %v420
  %518 = vmatpush1.bf16.msra.mxu0 %v419
  %519 = vmatprep.subr.bf16.mxu0 %v428
  %520 = vmatpush1.bf16.msra.mxu0 %v427
  %521 = vmatprep.subr.bf16.mxu0 %v436
  %522 = vmatpush1.bf16.msra.mxu0 %v435
  %523 = vmatprep.subr.bf16.mxu0 0
  %524 = vmatpush1.bf16.msra.mxu0 0
  %525 = vmatprep.subr.bf16.mxu0 0
  %526 = vmatpush1.bf16.msra.mxu0 0
  %527 = vmatprep.subr.bf16.mxu0 0
  %528 = vmatpush1.bf16.msra.mxu0 0
  %529 = vmatprep.subr.bf16.mxu0 0
  %530 = vmatpush1.bf16.msra.mxu0 0
  %531 = vmatprep.subr.bf16.mxu0 0
  %532 = vmatpush1.bf16.msra.mxu0 0
  %533 = vmatprep.subr.bf16.mxu0 0
  %534 = vmatpush1.bf16.msra.mxu0 0
  %535 = vmatprep.subr.bf16.mxu0 0
  %536 = vmatpush1.bf16.msra.mxu0 0
  %537 = vmatprep.subr.bf16.mxu0 0
  %538 = vmatpush1.bf16.msra.mxu0 0
  %539 = vmatprep.mubr.bf16.mxu0 0
  %540 = vmatmul.mubr.bf16.gmra.mrb[0].mxu0 %v115
  %v541 = vpop.f32.mrb[0].mxu0
  %v542 = vadd.f32 0.0, %v541
  %v543 = vpop.f32.mrb[0].mxu0
  %v544 = vadd.f32 0.0, %v543
  %v545 = vpop.f32.mrb[0].mxu0
  %v546 = vadd.f32 0.0, %v545
  %v547 = vpop.f32.mrb[0].mxu0
  %v548 = vadd.f32 0.0, %v547
  %549 = vmatprep.mubr.bf16.mxu0 0
  %550 = vmatmul.mubr.bf16.gmra.mrb[0].mxu0 %v116
  %v551 = vpop.f32.mrb[0].mxu0
  %v552 = vadd.f32 0.0, %v551
  %v553 = vpop.f32.mrb[0].mxu0
  %v554 = vadd.f32 0.0, %v553
  %v555 = vpop.f32.mrb[0].mxu0
  %v556 = vadd.f32 0.0, %v555
  %v557 = vpop.f32.mrb[0].mxu0
  %v558 = vadd.f32 0.0, %v557
  %559 = vmatprep.mubr.bf16.mxu0 0
  %560 = vmatmul.mubr.bf16.gmra.mrb[0].mxu0 %v117
  %v561 = vpop.f32.mrb[0].mxu0
  %v562 = vadd.f32 0.0, %v561
  %v563 = vpop.f32.mrb[0].mxu0
  %v564 = vadd.f32 0.0, %v563
  %v565 = vpop.f32.mrb[0].mxu0
  %v566 = vadd.f32 0.0, %v565
  %v567 = vpop.f32.mrb[0].mxu0
  %v568 = vadd.f32 0.0, %v567
  %569 = vmatprep.mubr.bf16.mxu0 0
  %570 = vmatmul.mubr.bf16.gmra.mrb[0].mxu0 %v118
  %v571 = vpop.f32.mrb[0].mxu0
  %v572 = vadd.f32 0.0, %v571
  %v573 = vpop.f32.mrb[0].mxu0
  %v574 = vadd.f32 0.0, %v573
  %v575 = vpop.f32.mrb[0].mxu0
  %v576 = vadd.f32 0.0, %v575
  %v577 = vpop.f32.mrb[0].mxu0
  %v578 = vadd.f32 0.0, %v577
  %579 = vmatprep.mubr.bf16.mxu0 0
  %580 = vmatmul.mubr.bf16.gmra.mrb[0].mxu0 %v119
  %v581 = vpop.f32.mrb[0].mxu0
  %v582 = vadd.f32 0.0, %v581
  %v583 = vpop.f32.mrb[0].mxu0
  %v584 = vadd.f32 0.0, %v583
  %v585 = vpop.f32.mrb[0].mxu0
  %v586 = vadd.f32 0.0, %v585
  %v587 = vpop.f32.mrb[0].mxu0
  %v588 = vadd.f32 0.0, %v587
  %589 = vmatprep.mubr.bf16.mxu0 0
  %590 = vmatmul.mubr.bf16.gmra.mrb[0].mxu0 %v120
  %v591 = vpop.f32.mrb[0].mxu0
  %v592 = vadd.f32 0.0, %v591
  %v593 = vpop.f32.mrb[0].mxu0
  %v594 = vadd.f32 0.0, %v593
  %v595 = vpop.f32.mrb[0].mxu0
  %v596 = vadd.f32 0.0, %v595
  %v597 = vpop.f32.mrb[0].mxu0
  %v598 = vadd.f32 0.0, %v597
  %599 = vmatprep.mubr.bf16.mxu0 0
  %600 = vmatmul.mubr.bf16.gmra.mrb[0].mxu0 %v121
  %v601 = vpop.f32.mrb[0].mxu0
  %v602 = vadd.f32 0.0, %v601
  %v603 = vpop.f32.mrb[0].mxu0
  %v604 = vadd.f32 0.0, %v603
  %v605 = vpop.f32.mrb[0].mxu0
  %v606 = vadd.f32 0.0, %v605
  %v607 = vpop.f32.mrb[0].mxu0
  %v608 = vadd.f32 0.0, %v607
  %609 = vmatprep.mubr.bf16.mxu0 0
  %610 = vmatmul.mubr.bf16.gmra.mrb[0].mxu0 %v122
  %v611 = vpop.f32.mrb[0].mxu0
  %v612 = vadd.f32 0.0, %v611
  %v613 = vpop.f32.mrb[0].mxu0
  %v614 = vadd.f32 0.0, %v613
  %v615 = vpop.f32.mrb[0].mxu0
  %v616 = vadd.f32 0.0, %v615
  %v617 = vpop.f32.mrb[0].mxu0
  %v618 = vadd.f32 0.0, %v617
  %619 = vdwg.mxu0
  %620 = vmatprep.subr.bf16.mxu0 %v382
  %621 = vmatpush1.bf16.msra.mxu0 %v381
  %622 = vmatprep.subr.bf16.mxu0 %v390
  %623 = vmatpush1.bf16.msra.mxu0 %v389
  %624 = vmatprep.subr.bf16.mxu0 %v398
  %625 = vmatpush1.bf16.msra.mxu0 %v397
  %626 = vmatprep.subr.bf16.mxu0 %v406
  %627 = vmatpush1.bf16.msra.mxu0 %v405
  %628 = vmatprep.subr.bf16.mxu0 %v414
  %629 = vmatpush1.bf16.msra.mxu0 %v413
  %630 = vmatprep.subr.bf16.mxu0 %v422
  %631 = vmatpush1.bf16.msra.mxu0 %v421
  %632 = vmatprep.subr.bf16.mxu0 %v430
  %633 = vmatpush1.bf16.msra.mxu0 %v429
  %634 = vmatprep.subr.bf16.mxu0 %v438
  %635 = vmatpush1.bf16.msra.mxu0 %v437
  %636 = vmatprep.subr.bf16.mxu0 0
  %637 = vmatpush1.bf16.msra.mxu0 0
  %638 = vmatprep.subr.bf16.mxu0 0
  %639 = vmatpush1.bf16.msra.mxu0 0
  %640 = vmatprep.subr.bf16.mxu0 0
  %641 = vmatpush1.bf16.msra.mxu0 0
  %642 = vmatprep.subr.bf16.mxu0 0
  %643 = vmatpush1.bf16.msra.mxu0 0
  %644 = vmatprep.subr.bf16.mxu0 0
  %645 = vmatpush1.bf16.msra.mxu0 0
  %646 = vmatprep.subr.bf16.mxu0 0
  %647 = vmatpush1.bf16.msra.mxu0 0
  %648 = vmatprep.subr.bf16.mxu0 0
  %649 = vmatpush1.bf16.msra.mxu0 0
  %650 = vmatprep.subr.bf16.mxu0 0
  %651 = vmatpush1.bf16.msra.mxu0 0
  %652 = vmatprep.mubr.bf16.mxu0 0
  %653 = vmatmul.mubr.bf16.gmra.mrb[0].mxu0 %v115
  %v654 = vpop.f32.mrb[0].mxu0
  %v655 = vadd.f32 0.0, %v654
  %v656 = vpop.f32.mrb[0].mxu0
  %v657 = vadd.f32 0.0, %v656
  %v658 = vpop.f32.mrb[0].mxu0
  %v659 = vadd.f32 0.0, %v658
  %v660 = vpop.f32.mrb[0].mxu0
  %v661 = vadd.f32 0.0, %v660
  %662 = vmatprep.mubr.bf16.mxu0 0
  %663 = vmatmul.mubr.bf16.gmra.mrb[0].mxu0 %v116
  %v664 = vpop.f32.mrb[0].mxu0
  %v665 = vadd.f32 0.0, %v664
  %v666 = vpop.f32.mrb[0].mxu0
  %v667 = vadd.f32 0.0, %v666
  %v668 = vpop.f32.mrb[0].mxu0
  %v669 = vadd.f32 0.0, %v668
  %v670 = vpop.f32.mrb[0].mxu0
  %v671 = vadd.f32 0.0, %v670
  %672 = vmatprep.mubr.bf16.mxu0 0
  %673 = vmatmul.mubr.bf16.gmra.mrb[0].mxu0 %v117
  %v674 = vpop.f32.mrb[0].mxu0
  %v675 = vadd.f32 0.0, %v674
  %v676 = vpop.f32.mrb[0].mxu0
  %v677 = vadd.f32 0.0, %v676
  %v678 = vpop.f32.mrb[0].mxu0
  %v679 = vadd.f32 0.0, %v678
  %v680 = vpop.f32.mrb[0].mxu0
  %v681 = vadd.f32 0.0, %v680
  %682 = vmatprep.mubr.bf16.mxu0 0
  %683 = vmatmul.mubr.bf16.gmra.mrb[0].mxu0 %v118
  %v684 = vpop.f32.mrb[0].mxu0
  %v685 = vadd.f32 0.0, %v684
  %v686 = vpop.f32.mrb[0].mxu0
  %v687 = vadd.f32 0.0, %v686
  %v688 = vpop.f32.mrb[0].mxu0
  %v689 = vadd.f32 0.0, %v688
  %v690 = vpop.f32.mrb[0].mxu0
  %v691 = vadd.f32 0.0, %v690
  %692 = vmatprep.mubr.bf16.mxu0 0
  %693 = vmatmul.mubr.bf16.gmra.mrb[0].mxu0 %v119
  %v694 = vpop.f32.mrb[0].mxu0
  %v695 = vadd.f32 0.0, %v694
  %v696 = vpop.f32.mrb[0].mxu0
  %v697 = vadd.f32 0.0, %v696
  %v698 = vpop.f32.mrb[0].mxu0
  %v699 = vadd.f32 0.0, %v698
  %v700 = vpop.f32.mrb[0].mxu0
  %v701 = vadd.f32 0.0, %v700
  %702 = vmatprep.mubr.bf16.mxu0 0
  %703 = vmatmul.mubr.bf16.gmra.mrb[0].mxu0 %v120
  %v704 = vpop.f32.mrb[0].mxu0
  %v705 = vadd.f32 0.0, %v704
  %v706 = vpop.f32.mrb[0].mxu0
  %v707 = vadd.f32 0.0, %v706
  %v708 = vpop.f32.mrb[0].mxu0
  %v709 = vadd.f32 0.0, %v708
  %v710 = vpop.f32.mrb[0].mxu0
  %v711 = vadd.f32 0.0, %v710
  %712 = vmatprep.mubr.bf16.mxu0 0
  %713 = vmatmul.mubr.bf16.gmra.mrb[0].mxu0 %v121
  %v714 = vpop.f32.mrb[0].mxu0
  %v715 = vadd.f32 0.0, %v714
  %v716 = vpop.f32.mrb[0].mxu0
  %v717 = vadd.f32 0.0, %v716
  %v718 = vpop.f32.mrb[0].mxu0
  %v719 = vadd.f32 0.0, %v718
  %v720 = vpop.f32.mrb[0].mxu0
  %v721 = vadd.f32 0.0, %v720
  %722 = vmatprep.mubr.bf16.mxu0 0
  %723 = vmatmul.mubr.bf16.gmra.mrb[0].mxu0 %v122
  %v724 = vpop.f32.mrb[0].mxu0
  %v725 = vadd.f32 0.0, %v724
  %v726 = vpop.f32.mrb[0].mxu0
  %v727 = vadd.f32 0.0, %v726
  %v728 = vpop.f32.mrb[0].mxu0
  %v729 = vadd.f32 0.0, %v728
  %v730 = vpop.f32.mrb[0].mxu0
  %v731 = vadd.f32 0.0, %v730
  %732 = vdwg.mxu0
  %733 = vmatprep.subr.bf16.mxu0 %v384
  %734 = vmatpush1.bf16.msra.mxu0 %v383
  %735 = vmatprep.subr.bf16.mxu0 %v392
  %736 = vmatpush1.bf16.msra.mxu0 %v391
  %737 = vmatprep.subr.bf16.mxu0 %v400
  %738 = vmatpush1.bf16.msra.mxu0 %v399
  %739 = vmatprep.subr.bf16.mxu0 %v408
  %740 = vmatpush1.bf16.msra.mxu0 %v407
  %741 = vmatprep.subr.bf16.mxu0 %v416
  %742 = vmatpush1.bf16.msra.mxu0 %v415
  %743 = vmatprep.subr.bf16.mxu0 %v424
  %744 = vmatpush1.bf16.msra.mxu0 %v423
  %745 = vmatprep.subr.bf16.mxu0 %v432
  %746 = vmatpush1.bf16.msra.mxu0 %v431
  %747 = vmatprep.subr.bf16.mxu0 %v440
  %748 = vmatpush1.bf16.msra.mxu0 %v439
  %749 = vmatprep.subr.bf16.mxu0 0
  %750 = vmatpush1.bf16.msra.mxu0 0
  %751 = vmatprep.subr.bf16.mxu0 0
  %752 = vmatpush1.bf16.msra.mxu0 0
  %753 = vmatprep.subr.bf16.mxu0 0
  %754 = vmatpush1.bf16.msra.mxu0 0
  %755 = vmatprep.subr.bf16.mxu0 0
  %756 = vmatpush1.bf16.msra.mxu0 0
  %757 = vmatprep.subr.bf16.mxu0 0
  %758 = vmatpush1.bf16.msra.mxu0 0
  %759 = vmatprep.subr.bf16.mxu0 0
  %760 = vmatpush1.bf16.msra.mxu0 0
  %761 = vmatprep.subr.bf16.mxu0 0
  %762 = vmatpush1.bf16.msra.mxu0 0
  %763 = vmatprep.subr.bf16.mxu0 0
  %764 = vmatpush1.bf16.msra.mxu0 0
  %765 = vmatprep.mubr.bf16.mxu0 0
  %766 = vmatmul.mubr.bf16.gmra.mrb[0].mxu0 %v115
  %v767 = vpop.f32.mrb[0].mxu0
  %v768 = vadd.f32 0.0, %v767
  %v769 = vpop.f32.mrb[0].mxu0
  %v770 = vadd.f32 0.0, %v769
  %v771 = vpop.f32.mrb[0].mxu0
  %v772 = vadd.f32 0.0, %v771
  %v773 = vpop.f32.mrb[0].mxu0
  %v774 = vadd.f32 0.0, %v773
  %775 = vmatprep.mubr.bf16.mxu0 0
  %776 = vmatmul.mubr.bf16.gmra.mrb[0].mxu0 %v116
  %v777 = vpop.f32.mrb[0].mxu0
  %v778 = vadd.f32 0.0, %v777
  %v779 = vpop.f32.mrb[0].mxu0
  %v780 = vadd.f32 0.0, %v779
  %v781 = vpop.f32.mrb[0].mxu0
  %v782 = vadd.f32 0.0, %v781
  %v783 = vpop.f32.mrb[0].mxu0
  %v784 = vadd.f32 0.0, %v783
  %785 = vmatprep.mubr.bf16.mxu0 0
  %786 = vmatmul.mubr.bf16.gmra.mrb[0].mxu0 %v117
  %v787 = vpop.f32.mrb[0].mxu0
  %v788 = vadd.f32 0.0, %v787
  %v789 = vpop.f32.mrb[0].mxu0
  %v790 = vadd.f32 0.0, %v789
  %v791 = vpop.f32.mrb[0].mxu0
  %v792 = vadd.f32 0.0, %v791
  %v793 = vpop.f32.mrb[0].mxu0
  %v794 = vadd.f32 0.0, %v793
  %795 = vmatprep.mubr.bf16.mxu0 0
  %796 = vmatmul.mubr.bf16.gmra.mrb[0].mxu0 %v118
  %v797 = vpop.f32.mrb[0].mxu0
  %v798 = vadd.f32 0.0, %v797
  %v799 = vpop.f32.mrb[0].mxu0
  %v800 = vadd.f32 0.0, %v799
  %v801 = vpop.f32.mrb[0].mxu0
  %v802 = vadd.f32 0.0, %v801
  %v803 = vpop.f32.mrb[0].mxu0
  %v804 = vadd.f32 0.0, %v803
  %805 = vmatprep.mubr.bf16.mxu0 0
  %806 = vmatmul.mubr.bf16.gmra.mrb[0].mxu0 %v119
  %v807 = vpop.f32.mrb[0].mxu0
  %v808 = vadd.f32 0.0, %v807
  %v809 = vpop.f32.mrb[0].mxu0
  %v810 = vadd.f32 0.0, %v809
  %v811 = vpop.f32.mrb[0].mxu0
  %v812 = vadd.f32 0.0, %v811
  %v813 = vpop.f32.mrb[0].mxu0
  %v814 = vadd.f32 0.0, %v813
  %815 = vmatprep.mubr.bf16.mxu0 0
  %816 = vmatmul.mubr.bf16.gmra.mrb[0].mxu0 %v120
  %v817 = vpop.f32.mrb[0].mxu0
  %v818 = vadd.f32 0.0, %v817
  %v819 = vpop.f32.mrb[0].mxu0
  %v820 = vadd.f32 0.0, %v819
  %v821 = vpop.f32.mrb[0].mxu0
  %v822 = vadd.f32 0.0, %v821
  %v823 = vpop.f32.mrb[0].mxu0
  %v824 = vadd.f32 0.0, %v823
  %825 = vmatprep.mubr.bf16.mxu0 0
  %826 = vmatmul.mubr.bf16.gmra.mrb[0].mxu0 %v121
  %v827 = vpop.f32.mrb[0].mxu0
  %v828 = vadd.f32 0.0, %v827
  %v829 = vpop.f32.mrb[0].mxu0
  %v830 = vadd.f32 0.0, %v829
  %v831 = vpop.f32.mrb[0].mxu0
  %v832 = vadd.f32 0.0, %v831
  %v833 = vpop.f32.mrb[0].mxu0
  %v834 = vadd.f32 0.0, %v833
  %835 = vmatprep.mubr.bf16.mxu0 0
  %836 = vmatmul.mubr.bf16.gmra.mrb[0].mxu0 %v122
  %v837 = vpop.f32.mrb[0].mxu0
  %v838 = vadd.f32 0.0, %v837
  %v839 = vpop.f32.mrb[0].mxu0
  %v840 = vadd.f32 0.0, %v839
  %v841 = vpop.f32.mrb[0].mxu0
  %v842 = vadd.f32 0.0, %v841
  %v843 = vpop.f32.mrb[0].mxu0
  %v844 = vadd.f32 0.0, %v843
  %845 = vdwg.mxu0
  %846 = vmatprep.subr.bf16.mxu0 %v386
  %847 = vmatpush1.bf16.msra.mxu0 %v385
  %848 = vmatprep.subr.bf16.mxu0 %v394
  %849 = vmatpush1.bf16.msra.mxu0 %v393
  %850 = vmatprep.subr.bf16.mxu0 %v402
  %851 = vmatpush1.bf16.msra.mxu0 %v401
  %852 = vmatprep.subr.bf16.mxu0 %v410
  %853 = vmatpush1.bf16.msra.mxu0 %v409
  %854 = vmatprep.subr.bf16.mxu0 %v418
  %855 = vmatpush1.bf16.msra.mxu0 %v417
  %856 = vmatprep.subr.bf16.mxu0 %v426
  %857 = vmatpush1.bf16.msra.mxu0 %v425
  %858 = vmatprep.subr.bf16.mxu0 %v434
  %859 = vmatpush1.bf16.msra.mxu0 %v433
  %860 = vmatprep.subr.bf16.mxu0 %v442
  %861 = vmatpush1.bf16.msra.mxu0 %v441
  %862 = vmatprep.subr.bf16.mxu0 0
  %863 = vmatpush1.bf16.msra.mxu0 0
  %864 = vmatprep.subr.bf16.mxu0 0
  %865 = vmatpush1.bf16.msra.mxu0 0
  %866 = vmatprep.subr.bf16.mxu0 0
  %867 = vmatpush1.bf16.msra.mxu0 0
  %868 = vmatprep.subr.bf16.mxu0 0
  %869 = vmatpush1.bf16.msra.mxu0 0
  %870 = vmatprep.subr.bf16.mxu0 0
  %871 = vmatpush1.bf16.msra.mxu0 0
  %872 = vmatprep.subr.bf16.mxu0 0
  %873 = vmatpush1.bf16.msra.mxu0 0
  %874 = vmatprep.subr.bf16.mxu0 0
  %875 = vmatpush1.bf16.msra.mxu0 0
  %876 = vmatprep.subr.bf16.mxu0 0
  %877 = vmatpush1.bf16.msra.mxu0 0
  %878 = vmatprep.mubr.bf16.mxu0 0
  %879 = vmatmul.mubr.bf16.gmra.mrb[0].mxu0 %v115
  %v880 = vpop.f32.mrb[0].mxu0
  %v881 = vadd.f32 0.0, %v880
  %v882 = vpop.f32.mrb[0].mxu0
  %v883 = vadd.f32 0.0, %v882
  %v884 = vpop.f32.mrb[0].mxu0
  %v885 = vadd.f32 0.0, %v884
  %v886 = vpop.f32.mrb[0].mxu0
  %v887 = vadd.f32 0.0, %v886
  %888 = vmatprep.mubr.bf16.mxu0 0
  %889 = vmatmul.mubr.bf16.gmra.mrb[0].mxu0 %v116
  %v890 = vpop.f32.mrb[0].mxu0
  %v891 = vadd.f32 0.0, %v890
  %v892 = vpop.f32.mrb[0].mxu0
  %v893 = vadd.f32 0.0, %v892
  %v894 = vpop.f32.mrb[0].mxu0
  %v895 = vadd.f32 0.0, %v894
  %v896 = vpop.f32.mrb[0].mxu0
  %v897 = vadd.f32 0.0, %v896
  %898 = vmatprep.mubr.bf16.mxu0 0
  %899 = vmatmul.mubr.bf16.gmra.mrb[0].mxu0 %v117
  %v900 = vpop.f32.mrb[0].mxu0
  %v901 = vadd.f32 0.0, %v900
  %v902 = vpop.f32.mrb[0].mxu0
  %v903 = vadd.f32 0.0, %v902
  %v904 = vpop.f32.mrb[0].mxu0
  %v905 = vadd.f32 0.0, %v904
  %v906 = vpop.f32.mrb[0].mxu0
  %v907 = vadd.f32 0.0, %v906
  %908 = vmatprep.mubr.bf16.mxu0 0
  %909 = vmatmul.mubr.bf16.gmra.mrb[0].mxu0 %v118
  %v910 = vpop.f32.mrb[0].mxu0
  %v911 = vadd.f32 0.0, %v910
  %v912 = vpop.f32.mrb[0].mxu0
  %v913 = vadd.f32 0.0, %v912
  %v914 = vpop.f32.mrb[0].mxu0
  %v915 = vadd.f32 0.0, %v914
  %v916 = vpop.f32.mrb[0].mxu0
  %v917 = vadd.f32 0.0, %v916
  %918 = vmatprep.mubr.bf16.mxu0 0
  %919 = vmatmul.mubr.bf16.gmra.mrb[0].mxu0 %v119
  %v920 = vpop.f32.mrb[0].mxu0
  %v921 = vadd.f32 0.0, %v920
  %v922 = vpop.f32.mrb[0].mxu0
  %v923 = vadd.f32 0.0, %v922
  %v924 = vpop.f32.mrb[0].mxu0
  %v925 = vadd.f32 0.0, %v924
  %v926 = vpop.f32.mrb[0].mxu0
  %v927 = vadd.f32 0.0, %v926
  %928 = vmatprep.mubr.bf16.mxu0 0
  %929 = vmatmul.mubr.bf16.gmra.mrb[0].mxu0 %v120
  %v930 = vpop.f32.mrb[0].mxu0
  %v931 = vadd.f32 0.0, %v930
  %v932 = vpop.f32.mrb[0].mxu0
  %v933 = vadd.f32 0.0, %v932
  %v934 = vpop.f32.mrb[0].mxu0
  %v935 = vadd.f32 0.0, %v934
  %v936 = vpop.f32.mrb[0].mxu0
  %v937 = vadd.f32 0.0, %v936
  %938 = vmatprep.mubr.bf16.mxu0 0
  %939 = vmatmul.mubr.bf16.gmra.mrb[0].mxu0 %v121
  %v940 = vpop.f32.mrb[0].mxu0
  %v941 = vadd.f32 0.0, %v940
  %v942 = vpop.f32.mrb[0].mxu0
  %v943 = vadd.f32 0.0, %v942
  %v944 = vpop.f32.mrb[0].mxu0
  %v945 = vadd.f32 0.0, %v944
  %v946 = vpop.f32.mrb[0].mxu0
  %v947 = vadd.f32 0.0, %v946
  %948 = vmatprep.mubr.bf16.mxu0 0
  %949 = vmatmul.mubr.bf16.gmra.mrb[0].mxu0 %v122
  %v950 = vpop.f32.mrb[0].mxu0
  %v951 = vadd.f32 0.0, %v950
  %v952 = vpop.f32.mrb[0].mxu0
  %v953 = vadd.f32 0.0, %v952
  %v954 = vpop.f32.mrb[0].mxu0
  %v955 = vadd.f32 0.0, %v954
  %v956 = vpop.f32.mrb[0].mxu0
  %v957 = vadd.f32 0.0, %v956
  %958 = vdwg.mxu0
  %959 = vmatprep.subr.mxu0 %v544
  %960 = vmatpush1.msra.mxu0 %v542
  %961 = vmatprep.subr.mxu0 %v548
  %962 = vmatpush1.msra.mxu0 %v546
  %963 = vmatprep.subr.mxu0 %v554
  %964 = vmatpush1.msra.mxu0 %v552
  %965 = vmatprep.subr.mxu0 %v558
  %966 = vmatpush1.msra.mxu0 %v556
  %967 = vmatprep.subr.mxu0 %v564
  %968 = vmatpush1.msra.mxu0 %v562
  %969 = vmatprep.subr.mxu0 %v568
  %970 = vmatpush1.msra.mxu0 %v566
  %971 = vmatprep.subr.mxu0 %v574
  %972 = vmatpush1.msra.mxu0 %v572
  %973 = vmatprep.subr.mxu0 %v578
  %974 = vmatpush1.msra.mxu0 %v576
  %975 = vmatprep.subr.mxu0 %v584
  %976 = vmatpush1.msra.mxu0 %v582
  %977 = vmatprep.subr.mxu0 %v588
  %978 = vmatpush1.msra.mxu0 %v586
  %979 = vmatprep.subr.mxu0 %v594
  %980 = vmatpush1.msra.mxu0 %v592
  %981 = vmatprep.subr.mxu0 %v598
  %982 = vmatpush1.msra.mxu0 %v596
  %983 = vmatprep.subr.mxu0 %v604
  %984 = vmatpush1.msra.mxu0 %v602
  %985 = vmatprep.subr.mxu0 %v608
  %986 = vmatpush1.msra.mxu0 %v606
  %987 = vmatprep.subr.mxu0 %v614
  %988 = vmatpush1.msra.mxu0 %v612
  %989 = vmatprep.subr.mxu0 %v618
  %990 = vmatpush1.msra.mxu0 %v616
  %991 = vmatprep.subr.mxu0 0.0
  %992 = vmatpush1.msra.mxu0 0.0
  %993 = vmatprep.subr.mxu0 0.0
  %994 = vmatpush1.msra.mxu0 0.0
  %995 = vmatprep.subr.mxu0 0.0
  %996 = vmatpush1.msra.mxu0 0.0
  %997 = vmatprep.subr.mxu0 0.0
  %998 = vmatpush1.msra.mxu0 0.0
  %999 = vmatprep.subr.mxu0 0.0
  %1000 = vmatpush1.msra.mxu0 0.0
  %1001 = vmatprep.subr.mxu0 0.0
  %1002 = vmatpush1.msra.mxu0 0.0
  %1003 = vmatprep.subr.mxu0 0.0
  %1004 = vmatpush1.msra.mxu0 0.0
  %1005 = vmatprep.subr.mxu0 0.0
  %1006 = vmatpush1.msra.mxu0 0.0
  %1007 = vmatprep.subr.mxu0 0.0
  %1008 = vmatpush1.msra.mxu0 0.0
  %1009 = vmatprep.subr.mxu0 0.0
  %1010 = vmatpush1.msra.mxu0 0.0
  %1011 = vmatprep.subr.mxu0 0.0
  %1012 = vmatpush1.msra.mxu0 0.0
  %1013 = vmatprep.subr.mxu0 0.0
  %1014 = vmatpush1.msra.mxu0 0.0
  %1015 = vmatprep.subr.mxu0 0.0
  %1016 = vmatpush1.msra.mxu0 0.0
  %1017 = vmatprep.subr.mxu0 0.0
  %1018 = vmatpush1.msra.mxu0 0.0
  %1019 = vmatprep.subr.mxu0 0.0
  %1020 = vmatpush1.msra.mxu0 0.0
  %1021 = vmatprep.subr.mxu0 0.0
  %1022 = vmatpush1.msra.mxu0 0.0
  %1023 = vmatprep.mubr.f32.mxu0 0.0
  %1024 = vmatmul.mubr.f32.gmra.mrb[0].mxu0 1.0
  %v1025 = vpop.f32.mrb[0].mxu0
  %v1026 = vadd.f32 0.0, %v1025
  %v1027 = vpop.f32.mrb[0].mxu0
  %v1028 = vadd.f32 0.0, %v1027
  %1029 = vdwg.mxu0
  %1030 = vmatprep.subr.mxu0 %v657
  %1031 = vmatpush1.msra.mxu0 %v655
  %1032 = vmatprep.subr.mxu0 %v661
  %1033 = vmatpush1.msra.mxu0 %v659
  %1034 = vmatprep.subr.mxu0 %v667
  %1035 = vmatpush1.msra.mxu0 %v665
  %1036 = vmatprep.subr.mxu0 %v671
  %1037 = vmatpush1.msra.mxu0 %v669
  %1038 = vmatprep.subr.mxu0 %v677
  %1039 = vmatpush1.msra.mxu0 %v675
  %1040 = vmatprep.subr.mxu0 %v681
  %1041 = vmatpush1.msra.mxu0 %v679
  %1042 = vmatprep.subr.mxu0 %v687
  %1043 = vmatpush1.msra.mxu0 %v685
  %1044 = vmatprep.subr.mxu0 %v691
  %1045 = vmatpush1.msra.mxu0 %v689
  %1046 = vmatprep.subr.mxu0 %v697
  %1047 = vmatpush1.msra.mxu0 %v695
  %1048 = vmatprep.subr.mxu0 %v701
  %1049 = vmatpush1.msra.mxu0 %v699
  %1050 = vmatprep.subr.mxu0 %v707
  %1051 = vmatpush1.msra.mxu0 %v705
  %1052 = vmatprep.subr.mxu0 %v711
  %1053 = vmatpush1.msra.mxu0 %v709
  %1054 = vmatprep.subr.mxu0 %v717
  %1055 = vmatpush1.msra.mxu0 %v715
  %1056 = vmatprep.subr.mxu0 %v721
  %1057 = vmatpush1.msra.mxu0 %v719
  %1058 = vmatprep.subr.mxu0 %v727
  %1059 = vmatpush1.msra.mxu0 %v725
  %1060 = vmatprep.subr.mxu0 %v731
  %1061 = vmatpush1.msra.mxu0 %v729
  %1062 = vmatprep.subr.mxu0 0.0
  %1063 = vmatpush1.msra.mxu0 0.0
  %1064 = vmatprep.subr.mxu0 0.0
  %1065 = vmatpush1.msra.mxu0 0.0
  %1066 = vmatprep.subr.mxu0 0.0
  %1067 = vmatpush1.msra.mxu0 0.0
  %1068 = vmatprep.subr.mxu0 0.0
  %1069 = vmatpush1.msra.mxu0 0.0
  %1070 = vmatprep.subr.mxu0 0.0
  %1071 = vmatpush1.msra.mxu0 0.0
  %1072 = vmatprep.subr.mxu0 0.0
  %1073 = vmatpush1.msra.mxu0 0.0
  %1074 = vmatprep.subr.mxu0 0.0
  %1075 = vmatpush1.msra.mxu0 0.0
  %1076 = vmatprep.subr.mxu0 0.0
  %1077 = vmatpush1.msra.mxu0 0.0
  %1078 = vmatprep.subr.mxu0 0.0
  %1079 = vmatpush1.msra.mxu0 0.0
  %1080 = vmatprep.subr.mxu0 0.0
  %1081 = vmatpush1.msra.mxu0 0.0
  %1082 = vmatprep.subr.mxu0 0.0
  %1083 = vmatpush1.msra.mxu0 0.0
  %1084 = vmatprep.subr.mxu0 0.0
  %1085 = vmatpush1.msra.mxu0 0.0
  %1086 = vmatprep.subr.mxu0 0.0
  %1087 = vmatpush1.msra.mxu0 0.0
  %1088 = vmatprep.subr.mxu0 0.0
  %1089 = vmatpush1.msra.mxu0 0.0
  %1090 = vmatprep.subr.mxu0 0.0
  %1091 = vmatpush1.msra.mxu0 0.0
  %1092 = vmatprep.subr.mxu0 0.0
  %1093 = vmatpush1.msra.mxu0 0.0
  %1094 = vmatprep.mubr.f32.mxu0 0.0
  %1095 = vmatmul.mubr.f32.gmra.mrb[0].mxu0 1.0
  %v1096 = vpop.f32.mrb[0].mxu0
  %v1097 = vadd.f32 0.0, %v1096
  %v1098 = vpop.f32.mrb[0].mxu0
  %v1099 = vadd.f32 0.0, %v1098
  %1100 = vdwg.mxu0
  %1101 = vmatprep.subr.mxu0 %v770
  %1102 = vmatpush1.msra.mxu0 %v768
  %1103 = vmatprep.subr.mxu0 %v774
  %1104 = vmatpush1.msra.mxu0 %v772
  %1105 = vmatprep.subr.mxu0 %v780
  %1106 = vmatpush1.msra.mxu0 %v778
  %1107 = vmatprep.subr.mxu0 %v784
  %1108 = vmatpush1.msra.mxu0 %v782
  %1109 = vmatprep.subr.mxu0 %v790
  %1110 = vmatpush1.msra.mxu0 %v788
  %1111 = vmatprep.subr.mxu0 %v794
  %1112 = vmatpush1.msra.mxu0 %v792
  %1113 = vmatprep.subr.mxu0 %v800
  %1114 = vmatpush1.msra.mxu0 %v798
  %1115 = vmatprep.subr.mxu0 %v804
  %1116 = vmatpush1.msra.mxu0 %v802
  %1117 = vmatprep.subr.mxu0 %v810
  %1118 = vmatpush1.msra.mxu0 %v808
  %1119 = vmatprep.subr.mxu0 %v814
  %1120 = vmatpush1.msra.mxu0 %v812
  %1121 = vmatprep.subr.mxu0 %v820
  %1122 = vmatpush1.msra.mxu0 %v818
  %1123 = vmatprep.subr.mxu0 %v824
  %1124 = vmatpush1.msra.mxu0 %v822
  %1125 = vmatprep.subr.mxu0 %v830
  %1126 = vmatpush1.msra.mxu0 %v828
  %1127 = vmatprep.subr.mxu0 %v834
  %1128 = vmatpush1.msra.mxu0 %v832
  %1129 = vmatprep.subr.mxu0 %v840
  %1130 = vmatpush1.msra.mxu0 %v838
  %1131 = vmatprep.subr.mxu0 %v844
  %1132 = vmatpush1.msra.mxu0 %v842
  %1133 = vmatprep.subr.mxu0 0.0
  %1134 = vmatpush1.msra.mxu0 0.0
  %1135 = vmatprep.subr.mxu0 0.0
  %1136 = vmatpush1.msra.mxu0 0.0
  %1137 = vmatprep.subr.mxu0 0.0
  %1138 = vmatpush1.msra.mxu0 0.0
  %1139 = vmatprep.subr.mxu0 0.0
  %1140 = vmatpush1.msra.mxu0 0.0
  %1141 = vmatprep.subr.mxu0 0.0
  %1142 = vmatpush1.msra.mxu0 0.0
  %1143 = vmatprep.subr.mxu0 0.0
  %1144 = vmatpush1.msra.mxu0 0.0
  %1145 = vmatprep.subr.mxu0 0.0
  %1146 = vmatpush1.msra.mxu0 0.0
  %1147 = vmatprep.subr.mxu0 0.0
  %1148 = vmatpush1.msra.mxu0 0.0
  %1149 = vmatprep.subr.mxu0 0.0
  %1150 = vmatpush1.msra.mxu0 0.0
  %1151 = vmatprep.subr.mxu0 0.0
  %1152 = vmatpush1.msra.mxu0 0.0
  %1153 = vmatprep.subr.mxu0 0.0
  %1154 = vmatpush1.msra.mxu0 0.0
  %1155 = vmatprep.subr.mxu0 0.0
  %1156 = vmatpush1.msra.mxu0 0.0
  %1157 = vmatprep.subr.mxu0 0.0
  %1158 = vmatpush1.msra.mxu0 0.0
  %1159 = vmatprep.subr.mxu0 0.0
  %1160 = vmatpush1.msra.mxu0 0.0
  %1161 = vmatprep.subr.mxu0 0.0
  %1162 = vmatpush1.msra.mxu0 0.0
  %1163 = vmatprep.subr.mxu0 0.0
  %1164 = vmatpush1.msra.mxu0 0.0
  %1165 = vmatprep.mubr.f32.mxu0 0.0
  %1166 = vmatmul.mubr.f32.gmra.mrb[0].mxu0 1.0
  %v1167 = vpop.f32.mrb[0].mxu0
  %v1168 = vadd.f32 0.0, %v1167
  %v1169 = vpop.f32.mrb[0].mxu0
  %v1170 = vadd.f32 0.0, %v1169
  %1171 = vdwg.mxu0
  %1172 = vmatprep.subr.mxu0 %v883
  %1173 = vmatpush1.msra.mxu0 %v881
  %1174 = vmatprep.subr.mxu0 %v887
  %1175 = vmatpush1.msra.mxu0 %v885
  %1176 = vmatprep.subr.mxu0 %v893
  %1177 = vmatpush1.msra.mxu0 %v891
  %1178 = vmatprep.subr.mxu0 %v897
  %1179 = vmatpush1.msra.mxu0 %v895
  %1180 = vmatprep.subr.mxu0 %v903
  %1181 = vmatpush1.msra.mxu0 %v901
  %1182 = vmatprep.subr.mxu0 %v907
  %1183 = vmatpush1.msra.mxu0 %v905
  %1184 = vmatprep.subr.mxu0 %v913
  %1185 = vmatpush1.msra.mxu0 %v911
  %1186 = vmatprep.subr.mxu0 %v917
  %1187 = vmatpush1.msra.mxu0 %v915
  %1188 = vmatprep.subr.mxu0 %v923
  %1189 = vmatpush1.msra.mxu0 %v921
  %1190 = vmatprep.subr.mxu0 %v927
  %1191 = vmatpush1.msra.mxu0 %v925
  %1192 = vmatprep.subr.mxu0 %v933
  %1193 = vmatpush1.msra.mxu0 %v931
  %1194 = vmatprep.subr.mxu0 %v937
  %1195 = vmatpush1.msra.mxu0 %v935
  %1196 = vmatprep.subr.mxu0 %v943
  %1197 = vmatpush1.msra.mxu0 %v941
  %1198 = vmatprep.subr.mxu0 %v947
  %1199 = vmatpush1.msra.mxu0 %v945
  %1200 = vmatprep.subr.mxu0 %v953
  %1201 = vmatpush1.msra.mxu0 %v951
  %1202 = vmatprep.subr.mxu0 %v957
  %1203 = vmatpush1.msra.mxu0 %v955
  %1204 = vmatprep.subr.mxu0 0.0
  %1205 = vmatpush1.msra.mxu0 0.0
  %1206 = vmatprep.subr.mxu0 0.0
  %1207 = vmatpush1.msra.mxu0 0.0
  %1208 = vmatprep.subr.mxu0 0.0
  %1209 = vmatpush1.msra.mxu0 0.0
  %1210 = vmatprep.subr.mxu0 0.0
  %1211 = vmatpush1.msra.mxu0 0.0
  %1212 = vmatprep.subr.mxu0 0.0
  %1213 = vmatpush1.msra.mxu0 0.0
  %1214 = vmatprep.subr.mxu0 0.0
  %1215 = vmatpush1.msra.mxu0 0.0
  %1216 = vmatprep.subr.mxu0 0.0
  %1217 = vmatpush1.msra.mxu0 0.0
  %1218 = vmatprep.subr.mxu0 0.0
  %1219 = vmatpush1.msra.mxu0 0.0
  %1220 = vmatprep.subr.mxu0 0.0
  %1221 = vmatpush1.msra.mxu0 0.0
  %1222 = vmatprep.subr.mxu0 0.0
  %1223 = vmatpush1.msra.mxu0 0.0
  %1224 = vmatprep.subr.mxu0 0.0
  %1225 = vmatpush1.msra.mxu0 0.0
  %1226 = vmatprep.subr.mxu0 0.0
  %1227 = vmatpush1.msra.mxu0 0.0
  %1228 = vmatprep.subr.mxu0 0.0
  %1229 = vmatpush1.msra.mxu0 0.0
  %1230 = vmatprep.subr.mxu0 0.0
  %1231 = vmatpush1.msra.mxu0 0.0
  %1232 = vmatprep.subr.mxu0 0.0
  %1233 = vmatpush1.msra.mxu0 0.0
  %1234 = vmatprep.subr.mxu0 0.0
  %1235 = vmatpush1.msra.mxu0 0.0
  %1236 = vmatprep.mubr.f32.mxu0 0.0
  %1237 = vmatmul.mubr.f32.gmra.mrb[0].mxu0 1.0
  %v1238 = vpop.f32.mrb[0].mxu0
  %v1239 = vadd.f32 0.0, %v1238
  %v1240 = vpop.f32.mrb[0].mxu0
  %v1241 = vadd.f32 0.0, %v1240
  %1242 = vdwg.mxu0
  %v1243 = vmul.f32 %v542, %v542
  %v1244 = vmul.f32 %v544, %v544
  %v1245 = vmul.f32 %v655, %v655
  %v1246 = vmul.f32 %v657, %v657
  %v1247 = vmul.f32 %v768, %v768
  %v1248 = vmul.f32 %v770, %v770
  %v1249 = vmul.f32 %v881, %v881
  %v1250 = vmul.f32 %v883, %v883
  %v1251 = vmul.f32 %v546, %v546
  %v1252 = vmul.f32 %v548, %v548
  %v1253 = vmul.f32 %v659, %v659
  %v1254 = vmul.f32 %v661, %v661
  %v1255 = vmul.f32 %v772, %v772
  %v1256 = vmul.f32 %v774, %v774
  %v1257 = vmul.f32 %v885, %v885
  %v1258 = vmul.f32 %v887, %v887
  %v1259 = vmul.f32 %v552, %v552
  %v1260 = vmul.f32 %v554, %v554
  %v1261 = vmul.f32 %v665, %v665
  %v1262 = vmul.f32 %v667, %v667
  %v1263 = vmul.f32 %v778, %v778
  %v1264 = vmul.f32 %v780, %v780
  %v1265 = vmul.f32 %v891, %v891
  %v1266 = vmul.f32 %v893, %v893
  %v1267 = vmul.f32 %v556, %v556
  %v1268 = vmul.f32 %v558, %v558
  %v1269 = vmul.f32 %v669, %v669
  %v1270 = vmul.f32 %v671, %v671
  %v1271 = vmul.f32 %v782, %v782
  %v1272 = vmul.f32 %v784, %v784
  %v1273 = vmul.f32 %v895, %v895
  %v1274 = vmul.f32 %v897, %v897
  %v1275 = vmul.f32 %v562, %v562
  %v1276 = vmul.f32 %v564, %v564
  %v1277 = vmul.f32 %v675, %v675
  %v1278 = vmul.f32 %v677, %v677
  %v1279 = vmul.f32 %v788, %v788
  %v1280 = vmul.f32 %v790, %v790
  %v1281 = vmul.f32 %v901, %v901
  %v1282 = vmul.f32 %v903, %v903
  %v1283 = vmul.f32 %v566, %v566
  %v1284 = vmul.f32 %v568, %v568
  %v1285 = vmul.f32 %v679, %v679
  %v1286 = vmul.f32 %v681, %v681
  %v1287 = vmul.f32 %v792, %v792
  %v1288 = vmul.f32 %v794, %v794
  %v1289 = vmul.f32 %v905, %v905
  %v1290 = vmul.f32 %v907, %v907
  %v1291 = vmul.f32 %v572, %v572
  %v1292 = vmul.f32 %v574, %v574
  %v1293 = vmul.f32 %v685, %v685
  %v1294 = vmul.f32 %v687, %v687
  %v1295 = vmul.f32 %v798, %v798
  %v1296 = vmul.f32 %v800, %v800
  %v1297 = vmul.f32 %v911, %v911
  %v1298 = vmul.f32 %v913, %v913
  %v1299 = vmul.f32 %v576, %v576
  %v1300 = vmul.f32 %v578, %v578
  %v1301 = vmul.f32 %v689, %v689
  %v1302 = vmul.f32 %v691, %v691
  %v1303 = vmul.f32 %v802, %v802
  %v1304 = vmul.f32 %v804, %v804
  %v1305 = vmul.f32 %v915, %v915
  %v1306 = vmul.f32 %v917, %v917
  %v1307 = vmul.f32 %v582, %v582
  %v1308 = vmul.f32 %v584, %v584
  %v1309 = vmul.f32 %v695, %v695
  %v1310 = vmul.f32 %v697, %v697
  %v1311 = vmul.f32 %v808, %v808
  %v1312 = vmul.f32 %v810, %v810
  %v1313 = vmul.f32 %v921, %v921
  %v1314 = vmul.f32 %v923, %v923
  %v1315 = vmul.f32 %v586, %v586
  %v1316 = vmul.f32 %v588, %v588
  %v1317 = vmul.f32 %v699, %v699
  %v1318 = vmul.f32 %v701, %v701
  %v1319 = vmul.f32 %v812, %v812
  %v1320 = vmul.f32 %v814, %v814
  %v1321 = vmul.f32 %v925, %v925
  %v1322 = vmul.f32 %v927, %v927
  %v1323 = vmul.f32 %v592, %v592
  %v1324 = vmul.f32 %v594, %v594
  %v1325 = vmul.f32 %v705, %v705
  %v1326 = vmul.f32 %v707, %v707
  %v1327 = vmul.f32 %v818, %v818
  %v1328 = vmul.f32 %v820, %v820
  %v1329 = vmul.f32 %v931, %v931
  %v1330 = vmul.f32 %v933, %v933
  %v1331 = vmul.f32 %v596, %v596
  %v1332 = vmul.f32 %v598, %v598
  %v1333 = vmul.f32 %v709, %v709
  %v1334 = vmul.f32 %v711, %v711
  %v1335 = vmul.f32 %v822, %v822
  %v1336 = vmul.f32 %v824, %v824
  %v1337 = vmul.f32 %v935, %v935
  %v1338 = vmul.f32 %v937, %v937
  %v1339 = vmul.f32 %v602, %v602
  %v1340 = vmul.f32 %v604, %v604
  %v1341 = vmul.f32 %v715, %v715
  %v1342 = vmul.f32 %v717, %v717
  %v1343 = vmul.f32 %v828, %v828
  %v1344 = vmul.f32 %v830, %v830
  %v1345 = vmul.f32 %v941, %v941
  %v1346 = vmul.f32 %v943, %v943
  %v1347 = vmul.f32 %v606, %v606
  %v1348 = vmul.f32 %v608, %v608
  %v1349 = vmul.f32 %v719, %v719
  %v1350 = vmul.f32 %v721, %v721
  %v1351 = vmul.f32 %v832, %v832
  %v1352 = vmul.f32 %v834, %v834
  %v1353 = vmul.f32 %v945, %v945
  %v1354 = vmul.f32 %v947, %v947
  %v1355 = vmul.f32 %v612, %v612
  %v1356 = vmul.f32 %v614, %v614
  %v1357 = vmul.f32 %v725, %v725
  %v1358 = vmul.f32 %v727, %v727
  %v1359 = vmul.f32 %v838, %v838
  %v1360 = vmul.f32 %v840, %v840
  %v1361 = vmul.f32 %v951, %v951
  %v1362 = vmul.f32 %v953, %v953
  %v1363 = vmul.f32 %v616, %v616
  %v1364 = vmul.f32 %v618, %v618
  %v1365 = vmul.f32 %v729, %v729
  %v1366 = vmul.f32 %v731, %v731
  %v1367 = vmul.f32 %v842, %v842
  %v1368 = vmul.f32 %v844, %v844
  %v1369 = vmul.f32 %v955, %v955
  %v1370 = vmul.f32 %v957, %v957
  %1371 = vmatprep.subr.mxu0 %v1244
  %1372 = vmatpush1.msra.mxu0 %v1243
  %1373 = vmatprep.subr.mxu0 %v1252
  %1374 = vmatpush1.msra.mxu0 %v1251
  %1375 = vmatprep.subr.mxu0 %v1260
  %1376 = vmatpush1.msra.mxu0 %v1259
  %1377 = vmatprep.subr.mxu0 %v1268
  %1378 = vmatpush1.msra.mxu0 %v1267
  %1379 = vmatprep.subr.mxu0 %v1276
  %1380 = vmatpush1.msra.mxu0 %v1275
  %1381 = vmatprep.subr.mxu0 %v1284
  %1382 = vmatpush1.msra.mxu0 %v1283
  %1383 = vmatprep.subr.mxu0 %v1292
  %1384 = vmatpush1.msra.mxu0 %v1291
  %1385 = vmatprep.subr.mxu0 %v1300
  %1386 = vmatpush1.msra.mxu0 %v1299
  %1387 = vmatprep.subr.mxu0 %v1308
  %1388 = vmatpush1.msra.mxu0 %v1307
  %1389 = vmatprep.subr.mxu0 %v1316
  %1390 = vmatpush1.msra.mxu0 %v1315
  %1391 = vmatprep.subr.mxu0 %v1324
  %1392 = vmatpush1.msra.mxu0 %v1323
  %1393 = vmatprep.subr.mxu0 %v1332
  %1394 = vmatpush1.msra.mxu0 %v1331
  %1395 = vmatprep.subr.mxu0 %v1340
  %1396 = vmatpush1.msra.mxu0 %v1339
  %1397 = vmatprep.subr.mxu0 %v1348
  %1398 = vmatpush1.msra.mxu0 %v1347
  %1399 = vmatprep.subr.mxu0 %v1356
  %1400 = vmatpush1.msra.mxu0 %v1355
  %1401 = vmatprep.subr.mxu0 %v1364
  %1402 = vmatpush1.msra.mxu0 %v1363
  %1403 = vmatprep.subr.mxu0 0.0
  %1404 = vmatpush1.msra.mxu0 0.0
  %1405 = vmatprep.subr.mxu0 0.0
  %1406 = vmatpush1.msra.mxu0 0.0
  %1407 = vmatprep.subr.mxu0 0.0
  %1408 = vmatpush1.msra.mxu0 0.0
  %1409 = vmatprep.subr.mxu0 0.0
  %1410 = vmatpush1.msra.mxu0 0.0
  %1411 = vmatprep.subr.mxu0 0.0
  %1412 = vmatpush1.msra.mxu0 0.0
  %1413 = vmatprep.subr.mxu0 0.0
  %1414 = vmatpush1.msra.mxu0 0.0
  %1415 = vmatprep.subr.mxu0 0.0
  %1416 = vmatpush1.msra.mxu0 0.0
  %1417 = vmatprep.subr.mxu0 0.0
  %1418 = vmatpush1.msra.mxu0 0.0
  %1419 = vmatprep.subr.mxu0 0.0
  %1420 = vmatpush1.msra.mxu0 0.0
  %1421 = vmatprep.subr.mxu0 0.0
  %1422 = vmatpush1.msra.mxu0 0.0
  %1423 = vmatprep.subr.mxu0 0.0
  %1424 = vmatpush1.msra.mxu0 0.0
  %1425 = vmatprep.subr.mxu0 0.0
  %1426 = vmatpush1.msra.mxu0 0.0
  %1427 = vmatprep.subr.mxu0 0.0
  %1428 = vmatpush1.msra.mxu0 0.0
  %1429 = vmatprep.subr.mxu0 0.0
  %1430 = vmatpush1.msra.mxu0 0.0
  %1431 = vmatprep.subr.mxu0 0.0
  %1432 = vmatpush1.msra.mxu0 0.0
  %1433 = vmatprep.subr.mxu0 0.0
  %1434 = vmatpush1.msra.mxu0 0.0
  %1435 = vmatprep.mubr.f32.mxu0 0.0
  %1436 = vmatmul.mubr.f32.gmra.mrb[0].mxu0 1.0
  %v1437 = vpop.f32.mrb[0].mxu0
  %v1438 = vadd.f32 0.0, %v1437
  %v1439 = vpop.f32.mrb[0].mxu0
  %v1440 = vadd.f32 0.0, %v1439
  %1441 = vdwg.mxu0
  %1442 = vmatprep.subr.mxu0 %v1246
  %1443 = vmatpush1.msra.mxu0 %v1245
  %1444 = vmatprep.subr.mxu0 %v1254
  %1445 = vmatpush1.msra.mxu0 %v1253
  %1446 = vmatprep.subr.mxu0 %v1262
  %1447 = vmatpush1.msra.mxu0 %v1261
  %1448 = vmatprep.subr.mxu0 %v1270
  %1449 = vmatpush1.msra.mxu0 %v1269
  %1450 = vmatprep.subr.mxu0 %v1278
  %1451 = vmatpush1.msra.mxu0 %v1277
  %1452 = vmatprep.subr.mxu0 %v1286
  %1453 = vmatpush1.msra.mxu0 %v1285
  %1454 = vmatprep.subr.mxu0 %v1294
  %1455 = vmatpush1.msra.mxu0 %v1293
  %1456 = vmatprep.subr.mxu0 %v1302
  %1457 = vmatpush1.msra.mxu0 %v1301
  %1458 = vmatprep.subr.mxu0 %v1310
  %1459 = vmatpush1.msra.mxu0 %v1309
  %1460 = vmatprep.subr.mxu0 %v1318
  %1461 = vmatpush1.msra.mxu0 %v1317
  %1462 = vmatprep.subr.mxu0 %v1326
  %1463 = vmatpush1.msra.mxu0 %v1325
  %1464 = vmatprep.subr.mxu0 %v1334
  %1465 = vmatpush1.msra.mxu0 %v1333
  %1466 = vmatprep.subr.mxu0 %v1342
  %1467 = vmatpush1.msra.mxu0 %v1341
  %1468 = vmatprep.subr.mxu0 %v1350
  %1469 = vmatpush1.msra.mxu0 %v1349
  %1470 = vmatprep.subr.mxu0 %v1358
  %1471 = vmatpush1.msra.mxu0 %v1357
  %1472 = vmatprep.subr.mxu0 %v1366
  %1473 = vmatpush1.msra.mxu0 %v1365
  %1474 = vmatprep.subr.mxu0 0.0
  %1475 = vmatpush1.msra.mxu0 0.0
  %1476 = vmatprep.subr.mxu0 0.0
  %1477 = vmatpush1.msra.mxu0 0.0
  %1478 = vmatprep.subr.mxu0 0.0
  %1479 = vmatpush1.msra.mxu0 0.0
  %1480 = vmatprep.subr.mxu0 0.0
  %1481 = vmatpush1.msra.mxu0 0.0
  %1482 = vmatprep.subr.mxu0 0.0
  %1483 = vmatpush1.msra.mxu0 0.0
  %1484 = vmatprep.subr.mxu0 0.0
  %1485 = vmatpush1.msra.mxu0 0.0
  %1486 = vmatprep.subr.mxu0 0.0
  %1487 = vmatpush1.msra.mxu0 0.0
  %1488 = vmatprep.subr.mxu0 0.0
  %1489 = vmatpush1.msra.mxu0 0.0
  %1490 = vmatprep.subr.mxu0 0.0
  %1491 = vmatpush1.msra.mxu0 0.0
  %1492 = vmatprep.subr.mxu0 0.0
  %1493 = vmatpush1.msra.mxu0 0.0
  %1494 = vmatprep.subr.mxu0 0.0
  %1495 = vmatpush1.msra.mxu0 0.0
  %1496 = vmatprep.subr.mxu0 0.0
  %1497 = vmatpush1.msra.mxu0 0.0
  %1498 = vmatprep.subr.mxu0 0.0
  %1499 = vmatpush1.msra.mxu0 0.0
  %1500 = vmatprep.subr.mxu0 0.0
  %1501 = vmatpush1.msra.mxu0 0.0
  %1502 = vmatprep.subr.mxu0 0.0
  %1503 = vmatpush1.msra.mxu0 0.0
  %1504 = vmatprep.subr.mxu0 0.0
  %1505 = vmatpush1.msra.mxu0 0.0
  %1506 = vmatprep.mubr.f32.mxu0 0.0
  %1507 = vmatmul.mubr.f32.gmra.mrb[0].mxu0 1.0
  %v1508 = vpop.f32.mrb[0].mxu0
  %v1509 = vadd.f32 0.0, %v1508
  %v1510 = vpop.f32.mrb[0].mxu0
  %v1511 = vadd.f32 0.0, %v1510
  %1512 = vdwg.mxu0
  %1513 = vmatprep.subr.mxu0 %v1248
  %1514 = vmatpush1.msra.mxu0 %v1247
  %1515 = vmatprep.subr.mxu0 %v1256
  %1516 = vmatpush1.msra.mxu0 %v1255
  %1517 = vmatprep.subr.mxu0 %v1264
  %1518 = vmatpush1.msra.mxu0 %v1263
  %1519 = vmatprep.subr.mxu0 %v1272
  %1520 = vmatpush1.msra.mxu0 %v1271
  %1521 = vmatprep.subr.mxu0 %v1280
  %1522 = vmatpush1.msra.mxu0 %v1279
  %1523 = vmatprep.subr.mxu0 %v1288
  %1524 = vmatpush1.msra.mxu0 %v1287
  %1525 = vmatprep.subr.mxu0 %v1296
  %1526 = vmatpush1.msra.mxu0 %v1295
  %1527 = vmatprep.subr.mxu0 %v1304
  %1528 = vmatpush1.msra.mxu0 %v1303
  %1529 = vmatprep.subr.mxu0 %v1312
  %1530 = vmatpush1.msra.mxu0 %v1311
  %1531 = vmatprep.subr.mxu0 %v1320
  %1532 = vmatpush1.msra.mxu0 %v1319
  %1533 = vmatprep.subr.mxu0 %v1328
  %1534 = vmatpush1.msra.mxu0 %v1327
  %1535 = vmatprep.subr.mxu0 %v1336
  %1536 = vmatpush1.msra.mxu0 %v1335
  %1537 = vmatprep.subr.mxu0 %v1344
  %1538 = vmatpush1.msra.mxu0 %v1343
  %1539 = vmatprep.subr.mxu0 %v1352
  %1540 = vmatpush1.msra.mxu0 %v1351
  %1541 = vmatprep.subr.mxu0 %v1360
  %1542 = vmatpush1.msra.mxu0 %v1359
  %1543 = vmatprep.subr.mxu0 %v1368
  %1544 = vmatpush1.msra.mxu0 %v1367
  %1545 = vmatprep.subr.mxu0 0.0
  %1546 = vmatpush1.msra.mxu0 0.0
  %1547 = vmatprep.subr.mxu0 0.0
  %1548 = vmatpush1.msra.mxu0 0.0
  %1549 = vmatprep.subr.mxu0 0.0
  %1550 = vmatpush1.msra.mxu0 0.0
  %1551 = vmatprep.subr.mxu0 0.0
  %1552 = vmatpush1.msra.mxu0 0.0
  %1553 = vmatprep.subr.mxu0 0.0
  %1554 = vmatpush1.msra.mxu0 0.0
  %1555 = vmatprep.subr.mxu0 0.0
  %1556 = vmatpush1.msra.mxu0 0.0
  %1557 = vmatprep.subr.mxu0 0.0
  %1558 = vmatpush1.msra.mxu0 0.0
  %1559 = vmatprep.subr.mxu0 0.0
  %1560 = vmatpush1.msra.mxu0 0.0
  %1561 = vmatprep.subr.mxu0 0.0
  %1562 = vmatpush1.msra.mxu0 0.0
  %1563 = vmatprep.subr.mxu0 0.0
  %1564 = vmatpush1.msra.mxu0 0.0
  %1565 = vmatprep.subr.mxu0 0.0
  %1566 = vmatpush1.msra.mxu0 0.0
  %1567 = vmatprep.subr.mxu0 0.0
  %1568 = vmatpush1.msra.mxu0 0.0
  %1569 = vmatprep.subr.mxu0 0.0
  %1570 = vmatpush1.msra.mxu0 0.0
  %1571 = vmatprep.subr.mxu0 0.0
  %1572 = vmatpush1.msra.mxu0 0.0
  %1573 = vmatprep.subr.mxu0 0.0
  %1574 = vmatpush1.msra.mxu0 0.0
  %1575 = vmatprep.subr.mxu0 0.0
  %1576 = vmatpush1.msra.mxu0 0.0
  %1577 = vmatprep.mubr.f32.mxu0 0.0
  %1578 = vmatmul.mubr.f32.gmra.mrb[0].mxu0 1.0
  %v1579 = vpop.f32.mrb[0].mxu0
  %v1580 = vadd.f32 0.0, %v1579
  %v1581 = vpop.f32.mrb[0].mxu0
  %v1582 = vadd.f32 0.0, %v1581
  %1583 = vdwg.mxu0
  %1584 = vmatprep.subr.mxu0 %v1250
  %1585 = vmatpush1.msra.mxu0 %v1249
  %1586 = vmatprep.subr.mxu0 %v1258
  %1587 = vmatpush1.msra.mxu0 %v1257
  %1588 = vmatprep.subr.mxu0 %v1266
  %1589 = vmatpush1.msra.mxu0 %v1265
  %1590 = vmatprep.subr.mxu0 %v1274
  %1591 = vmatpush1.msra.mxu0 %v1273
  %1592 = vmatprep.subr.mxu0 %v1282
  %1593 = vmatpush1.msra.mxu0 %v1281
  %1594 = vmatprep.subr.mxu0 %v1290
  %1595 = vmatpush1.msra.mxu0 %v1289
  %1596 = vmatprep.subr.mxu0 %v1298
  %1597 = vmatpush1.msra.mxu0 %v1297
  %1598 = vmatprep.subr.mxu0 %v1306
  %1599 = vmatpush1.msra.mxu0 %v1305
  %1600 = vmatprep.subr.mxu0 %v1314
  %1601 = vmatpush1.msra.mxu0 %v1313
  %1602 = vmatprep.subr.mxu0 %v1322
  %1603 = vmatpush1.msra.mxu0 %v1321
  %1604 = vmatprep.subr.mxu0 %v1330
  %1605 = vmatpush1.msra.mxu0 %v1329
  %1606 = vmatprep.subr.mxu0 %v1338
  %1607 = vmatpush1.msra.mxu0 %v1337
  %1608 = vmatprep.subr.mxu0 %v1346
  %1609 = vmatpush1.msra.mxu0 %v1345
  %1610 = vmatprep.subr.mxu0 %v1354
  %1611 = vmatpush1.msra.mxu0 %v1353
  %1612 = vmatprep.subr.mxu0 %v1362
  %1613 = vmatpush1.msra.mxu0 %v1361
  %1614 = vmatprep.subr.mxu0 %v1370
  %1615 = vmatpush1.msra.mxu0 %v1369
  %1616 = vmatprep.subr.mxu0 0.0
  %1617 = vmatpush1.msra.mxu0 0.0
  %1618 = vmatprep.subr.mxu0 0.0
  %1619 = vmatpush1.msra.mxu0 0.0
  %1620 = vmatprep.subr.mxu0 0.0
  %1621 = vmatpush1.msra.mxu0 0.0
  %1622 = vmatprep.subr.mxu0 0.0
  %1623 = vmatpush1.msra.mxu0 0.0
  %1624 = vmatprep.subr.mxu0 0.0
  %1625 = vmatpush1.msra.mxu0 0.0
  %1626 = vmatprep.subr.mxu0 0.0
  %1627 = vmatpush1.msra.mxu0 0.0
  %1628 = vmatprep.subr.mxu0 0.0
  %1629 = vmatpush1.msra.mxu0 0.0
  %1630 = vmatprep.subr.mxu0 0.0
  %1631 = vmatpush1.msra.mxu0 0.0
  %1632 = vmatprep.subr.mxu0 0.0
  %1633 = vmatpush1.msra.mxu0 0.0
  %1634 = vmatprep.subr.mxu0 0.0
  %1635 = vmatpush1.msra.mxu0 0.0
  %1636 = vmatprep.subr.mxu0 0.0
  %1637 = vmatpush1.msra.mxu0 0.0
  %1638 = vmatprep.subr.mxu0 0.0
  %1639 = vmatpush1.msra.mxu0 0.0
  %1640 = vmatprep.subr.mxu0 0.0
  %1641 = vmatpush1.msra.mxu0 0.0
  %1642 = vmatprep.subr.mxu0 0.0
  %1643 = vmatpush1.msra.mxu0 0.0
  %1644 = vmatprep.subr.mxu0 0.0
  %1645 = vmatpush1.msra.mxu0 0.0
  %1646 = vmatprep.subr.mxu0 0.0
  %1647 = vmatpush1.msra.mxu0 0.0
  %1648 = vmatprep.mubr.f32.mxu0 0.0
  %1649 = vmatmul.mubr.f32.gmra.mrb[0].mxu0 1.0
  %v1650 = vpop.f32.mrb[0].mxu0
  %v1651 = vadd.f32 0.0, %v1650
  %v1652 = vpop.f32.mrb[0].mxu0
  %v1653 = vadd.f32 0.0, %v1652
  %1654 = vdwg.mxu0
  %v1663 = vcombine.low %v1026, %v1028
  %v1664 = vcombine.low %v1097, %v1099
  %v1665 = vcombine.low %v1168, %v1170
  %v1666 = vcombine.low %v1239, %v1241
  %v1668 = vunpack.c.l.s4 1966171168
  %v1669 = vunpack.c.0.s8 %v1668
  %v1670 = vlaneseq
  %v1671 = vshrl.u32 %v1670, 7
  %v1672 = vsub.s32 %v1669, %v1671
  %v1673 = vrot.slane %v1663, %v1672
  %v1675 = vunpack.c.l.s4 1966171168
  %v1676 = vunpack.c.0.s8 %v1675
  %v1677 = vlaneseq
  %v1678 = vshrl.u32 %v1677, 7
  %v1679 = vsub.s32 %v1676, %v1678
  %v1680 = vrot.slane %v1664, %v1679
  %v1682 = vunpack.c.l.s4 1966171168
  %v1683 = vunpack.c.0.s8 %v1682
  %v1684 = vlaneseq
  %v1685 = vshrl.u32 %v1684, 7
  %v1686 = vsub.s32 %v1683, %v1685
  %v1687 = vrot.slane %v1665, %v1686
  %v1689 = vunpack.c.l.s4 1966171168
  %v1690 = vunpack.c.0.s8 %v1689
  %v1691 = vlaneseq
  %v1692 = vshrl.u32 %v1691, 7
  %v1693 = vsub.s32 %v1690, %v1692
  %v1694 = vrot.slane %v1666, %v1693
  %v1695 = vcombine.low %v1673, %v1680
  %v1696 = vcombine.low %v1687, %v1694
  %v1698 = vunpack.c.l.s4 1966171168
  %v1699 = vunpack.c.0.s8 %v1698
  %v1700 = vlaneseq
  %v1701 = vshrl.u32 %v1700, 7
  %v1702 = vsub.s32 %v1699, %v1701
  %v1703 = vrot.slane %v1695, %v1702
  %v1705 = vunpack.c.l.s4 1966171168
  %v1706 = vunpack.c.0.s8 %v1705
  %v1707 = vlaneseq
  %v1708 = vshrl.u32 %v1707, 7
  %v1709 = vsub.s32 %v1706, %v1708
  %v1710 = vrot.slane %v1696, %v1709
  %v1711 = vcombine.low %v1703, %v1710
  %1713 = vst [vmem:[%s5] sm:$0xff] %v1711
  %v1722 = vcombine.low %v1438, %v1440
  %v1723 = vcombine.low %v1509, %v1511
  %v1724 = vcombine.low %v1580, %v1582
  %v1725 = vcombine.low %v1651, %v1653
  %v1727 = vunpack.c.l.s4 1966171168
  %v1728 = vunpack.c.0.s8 %v1727
  %v1729 = vlaneseq
  %v1730 = vshrl.u32 %v1729, 7
  %v1731 = vsub.s32 %v1728, %v1730
  %v1732 = vrot.slane %v1722, %v1731
  %v1734 = vunpack.c.l.s4 1966171168
  %v1735 = vunpack.c.0.s8 %v1734
  %v1736 = vlaneseq
  %v1737 = vshrl.u32 %v1736, 7
  %v1738 = vsub.s32 %v1735, %v1737
  %v1739 = vrot.slane %v1723, %v1738
  %v1741 = vunpack.c.l.s4 1966171168
  %v1742 = vunpack.c.0.s8 %v1741
  %v1743 = vlaneseq
  %v1744 = vshrl.u32 %v1743, 7
  %v1745 = vsub.s32 %v1742, %v1744
  %v1746 = vrot.slane %v1724, %v1745
  %v1748 = vunpack.c.l.s4 1966171168
  %v1749 = vunpack.c.0.s8 %v1748
  %v1750 = vlaneseq
  %v1751 = vshrl.u32 %v1750, 7
  %v1752 = vsub.s32 %v1749, %v1751
  %v1753 = vrot.slane %v1725, %v1752
  %v1754 = vcombine.low %v1732, %v1739
  %v1755 = vcombine.low %v1746, %v1753
  %v1757 = vunpack.c.l.s4 1966171168
  %v1758 = vunpack.c.0.s8 %v1757
  %v1759 = vlaneseq
  %v1760 = vshrl.u32 %v1759, 7
  %v1761 = vsub.s32 %v1758, %v1760
  %v1762 = vrot.slane %v1754, %v1761
  %v1764 = vunpack.c.l.s4 1966171168
  %v1765 = vunpack.c.0.s8 %v1764
  %v1766 = vlaneseq
  %v1767 = vshrl.u32 %v1766, 7
  %v1768 = vsub.s32 %v1765, %v1767
  %v1769 = vrot.slane %v1755, %v1768
  %v1770 = vcombine.low %v1762, %v1769
  %1772 = vst [vmem:[%s6] sm:$0xff] %v1770
  %v1773 = vrot.slane %v542, 4
  %v1774 = vmax.f32 %v542, %v1773
  %v1775 = vrot.slane %v1774, 2
  %v1776 = vmax.f32 %v1774, %v1775
  %v1777 = vrot.slane %v1776, 1
  %v1778 = vmax.f32 %v1776, %v1777
  %v1779 = vrot.slane %v544, 4
  %v1780 = vmax.f32 %v544, %v1779
  %v1781 = vrot.slane %v1780, 2
  %v1782 = vmax.f32 %v1780, %v1781
  %v1783 = vrot.slane %v1782, 1
  %v1784 = vmax.f32 %v1782, %v1783
  %v1785 = vrot.slane %v655, 4
  %v1786 = vmax.f32 %v655, %v1785
  %v1787 = vrot.slane %v1786, 2
  %v1788 = vmax.f32 %v1786, %v1787
  %v1789 = vrot.slane %v1788, 1
  %v1790 = vmax.f32 %v1788, %v1789
  %v1791 = vrot.slane %v657, 4
  %v1792 = vmax.f32 %v657, %v1791
  %v1793 = vrot.slane %v1792, 2
  %v1794 = vmax.f32 %v1792, %v1793
  %v1795 = vrot.slane %v1794, 1
  %v1796 = vmax.f32 %v1794, %v1795
  %v1797 = vrot.slane %v768, 4
  %v1798 = vmax.f32 %v768, %v1797
  %v1799 = vrot.slane %v1798, 2
  %v1800 = vmax.f32 %v1798, %v1799
  %v1801 = vrot.slane %v1800, 1
  %v1802 = vmax.f32 %v1800, %v1801
  %v1803 = vrot.slane %v770, 4
  %v1804 = vmax.f32 %v770, %v1803
  %v1805 = vrot.slane %v1804, 2
  %v1806 = vmax.f32 %v1804, %v1805
  %v1807 = vrot.slane %v1806, 1
  %v1808 = vmax.f32 %v1806, %v1807
  %v1809 = vrot.slane %v881, 4
  %v1810 = vmax.f32 %v881, %v1809
  %v1811 = vrot.slane %v1810, 2
  %v1812 = vmax.f32 %v1810, %v1811
  %v1813 = vrot.slane %v1812, 1
  %v1814 = vmax.f32 %v1812, %v1813
  %v1815 = vrot.slane %v883, 4
  %v1816 = vmax.f32 %v883, %v1815
  %v1817 = vrot.slane %v1816, 2
  %v1818 = vmax.f32 %v1816, %v1817
  %v1819 = vrot.slane %v1818, 1
  %v1820 = vmax.f32 %v1818, %v1819
  %v1821 = vrot.slane %v546, 4
  %v1822 = vmax.f32 %v546, %v1821
  %v1823 = vrot.slane %v1822, 2
  %v1824 = vmax.f32 %v1822, %v1823
  %v1825 = vrot.slane %v1824, 1
  %v1826 = vmax.f32 %v1824, %v1825
  %v1827 = vrot.slane %v548, 4
  %v1828 = vmax.f32 %v548, %v1827
  %v1829 = vrot.slane %v1828, 2
  %v1830 = vmax.f32 %v1828, %v1829
  %v1831 = vrot.slane %v1830, 1
  %v1832 = vmax.f32 %v1830, %v1831
  %v1833 = vrot.slane %v659, 4
  %v1834 = vmax.f32 %v659, %v1833
  %v1835 = vrot.slane %v1834, 2
  %v1836 = vmax.f32 %v1834, %v1835
  %v1837 = vrot.slane %v1836, 1
  %v1838 = vmax.f32 %v1836, %v1837
  %v1839 = vrot.slane %v661, 4
  %v1840 = vmax.f32 %v661, %v1839
  %v1841 = vrot.slane %v1840, 2
  %v1842 = vmax.f32 %v1840, %v1841
  %v1843 = vrot.slane %v1842, 1
  %v1844 = vmax.f32 %v1842, %v1843
  %v1845 = vrot.slane %v772, 4
  %v1846 = vmax.f32 %v772, %v1845
  %v1847 = vrot.slane %v1846, 2
  %v1848 = vmax.f32 %v1846, %v1847
  %v1849 = vrot.slane %v1848, 1
  %v1850 = vmax.f32 %v1848, %v1849
  %v1851 = vrot.slane %v774, 4
  %v1852 = vmax.f32 %v774, %v1851
  %v1853 = vrot.slane %v1852, 2
  %v1854 = vmax.f32 %v1852, %v1853
  %v1855 = vrot.slane %v1854, 1
  %v1856 = vmax.f32 %v1854, %v1855
  %v1857 = vrot.slane %v885, 4
  %v1858 = vmax.f32 %v885, %v1857
  %v1859 = vrot.slane %v1858, 2
  %v1860 = vmax.f32 %v1858, %v1859
  %v1861 = vrot.slane %v1860, 1
  %v1862 = vmax.f32 %v1860, %v1861
  %v1863 = vrot.slane %v887, 4
  %v1864 = vmax.f32 %v887, %v1863
  %v1865 = vrot.slane %v1864, 2
  %v1866 = vmax.f32 %v1864, %v1865
  %v1867 = vrot.slane %v1866, 1
  %v1868 = vmax.f32 %v1866, %v1867
  %v1869 = vrot.slane %v552, 4
  %v1870 = vmax.f32 %v552, %v1869
  %v1871 = vrot.slane %v1870, 2
  %v1872 = vmax.f32 %v1870, %v1871
  %v1873 = vrot.slane %v1872, 1
  %v1874 = vmax.f32 %v1872, %v1873
  %v1875 = vrot.slane %v554, 4
  %v1876 = vmax.f32 %v554, %v1875
  %v1877 = vrot.slane %v1876, 2
  %v1878 = vmax.f32 %v1876, %v1877
  %v1879 = vrot.slane %v1878, 1
  %v1880 = vmax.f32 %v1878, %v1879
  %v1881 = vrot.slane %v665, 4
  %v1882 = vmax.f32 %v665, %v1881
  %v1883 = vrot.slane %v1882, 2
  %v1884 = vmax.f32 %v1882, %v1883
  %v1885 = vrot.slane %v1884, 1
  %v1886 = vmax.f32 %v1884, %v1885
  %v1887 = vrot.slane %v667, 4
  %v1888 = vmax.f32 %v667, %v1887
  %v1889 = vrot.slane %v1888, 2
  %v1890 = vmax.f32 %v1888, %v1889
  %v1891 = vrot.slane %v1890, 1
  %v1892 = vmax.f32 %v1890, %v1891
  %v1893 = vrot.slane %v778, 4
  %v1894 = vmax.f32 %v778, %v1893
  %v1895 = vrot.slane %v1894, 2
  %v1896 = vmax.f32 %v1894, %v1895
  %v1897 = vrot.slane %v1896, 1
  %v1898 = vmax.f32 %v1896, %v1897
  %v1899 = vrot.slane %v780, 4
  %v1900 = vmax.f32 %v780, %v1899
  %v1901 = vrot.slane %v1900, 2
  %v1902 = vmax.f32 %v1900, %v1901
  %v1903 = vrot.slane %v1902, 1
  %v1904 = vmax.f32 %v1902, %v1903
  %v1905 = vrot.slane %v891, 4
  %v1906 = vmax.f32 %v891, %v1905
  %v1907 = vrot.slane %v1906, 2
  %v1908 = vmax.f32 %v1906, %v1907
  %v1909 = vrot.slane %v1908, 1
  %v1910 = vmax.f32 %v1908, %v1909
  %v1911 = vrot.slane %v893, 4
  %v1912 = vmax.f32 %v893, %v1911
  %v1913 = vrot.slane %v1912, 2
  %v1914 = vmax.f32 %v1912, %v1913
  %v1915 = vrot.slane %v1914, 1
  %v1916 = vmax.f32 %v1914, %v1915
  %v1917 = vrot.slane %v556, 4
  %v1918 = vmax.f32 %v556, %v1917
  %v1919 = vrot.slane %v1918, 2
  %v1920 = vmax.f32 %v1918, %v1919
  %v1921 = vrot.slane %v1920, 1
  %v1922 = vmax.f32 %v1920, %v1921
  %v1923 = vrot.slane %v558, 4
  %v1924 = vmax.f32 %v558, %v1923
  %v1925 = vrot.slane %v1924, 2
  %v1926 = vmax.f32 %v1924, %v1925
  %v1927 = vrot.slane %v1926, 1
  %v1928 = vmax.f32 %v1926, %v1927
  %v1929 = vrot.slane %v669, 4
  %v1930 = vmax.f32 %v669, %v1929
  %v1931 = vrot.slane %v1930, 2
  %v1932 = vmax.f32 %v1930, %v1931
  %v1933 = vrot.slane %v1932, 1
  %v1934 = vmax.f32 %v1932, %v1933
  %v1935 = vrot.slane %v671, 4
  %v1936 = vmax.f32 %v671, %v1935
  %v1937 = vrot.slane %v1936, 2
  %v1938 = vmax.f32 %v1936, %v1937
  %v1939 = vrot.slane %v1938, 1
  %v1940 = vmax.f32 %v1938, %v1939
  %v1941 = vrot.slane %v782, 4
  %v1942 = vmax.f32 %v782, %v1941
  %v1943 = vrot.slane %v1942, 2
  %v1944 = vmax.f32 %v1942, %v1943
  %v1945 = vrot.slane %v1944, 1
  %v1946 = vmax.f32 %v1944, %v1945
  %v1947 = vrot.slane %v784, 4
  %v1948 = vmax.f32 %v784, %v1947
  %v1949 = vrot.slane %v1948, 2
  %v1950 = vmax.f32 %v1948, %v1949
  %v1951 = vrot.slane %v1950, 1
  %v1952 = vmax.f32 %v1950, %v1951
  %v1953 = vrot.slane %v895, 4
  %v1954 = vmax.f32 %v895, %v1953
  %v1955 = vrot.slane %v1954, 2
  %v1956 = vmax.f32 %v1954, %v1955
  %v1957 = vrot.slane %v1956, 1
  %v1958 = vmax.f32 %v1956, %v1957
  %v1959 = vrot.slane %v897, 4
  %v1960 = vmax.f32 %v897, %v1959
  %v1961 = vrot.slane %v1960, 2
  %v1962 = vmax.f32 %v1960, %v1961
  %v1963 = vrot.slane %v1962, 1
  %v1964 = vmax.f32 %v1962, %v1963
  %v1965 = vrot.slane %v562, 4
  %v1966 = vmax.f32 %v562, %v1965
  %v1967 = vrot.slane %v1966, 2
  %v1968 = vmax.f32 %v1966, %v1967
  %v1969 = vrot.slane %v1968, 1
  %v1970 = vmax.f32 %v1968, %v1969
  %v1971 = vrot.slane %v564, 4
  %v1972 = vmax.f32 %v564, %v1971
  %v1973 = vrot.slane %v1972, 2
  %v1974 = vmax.f32 %v1972, %v1973
  %v1975 = vrot.slane %v1974, 1
  %v1976 = vmax.f32 %v1974, %v1975
  %v1977 = vrot.slane %v675, 4
  %v1978 = vmax.f32 %v675, %v1977
  %v1979 = vrot.slane %v1978, 2
  %v1980 = vmax.f32 %v1978, %v1979
  %v1981 = vrot.slane %v1980, 1
  %v1982 = vmax.f32 %v1980, %v1981
  %v1983 = vrot.slane %v677, 4
  %v1984 = vmax.f32 %v677, %v1983
  %v1985 = vrot.slane %v1984, 2
  %v1986 = vmax.f32 %v1984, %v1985
  %v1987 = vrot.slane %v1986, 1
  %v1988 = vmax.f32 %v1986, %v1987
  %v1989 = vrot.slane %v788, 4
  %v1990 = vmax.f32 %v788, %v1989
  %v1991 = vrot.slane %v1990, 2
  %v1992 = vmax.f32 %v1990, %v1991
  %v1993 = vrot.slane %v1992, 1
  %v1994 = vmax.f32 %v1992, %v1993
  %v1995 = vrot.slane %v790, 4
  %v1996 = vmax.f32 %v790, %v1995
  %v1997 = vrot.slane %v1996, 2
  %v1998 = vmax.f32 %v1996, %v1997
  %v1999 = vrot.slane %v1998, 1
  %v2000 = vmax.f32 %v1998, %v1999
  %v2001 = vrot.slane %v901, 4
  %v2002 = vmax.f32 %v901, %v2001
  %v2003 = vrot.slane %v2002, 2
  %v2004 = vmax.f32 %v2002, %v2003
  %v2005 = vrot.slane %v2004, 1
  %v2006 = vmax.f32 %v2004, %v2005
  %v2007 = vrot.slane %v903, 4
  %v2008 = vmax.f32 %v903, %v2007
  %v2009 = vrot.slane %v2008, 2
  %v2010 = vmax.f32 %v2008, %v2009
  %v2011 = vrot.slane %v2010, 1
  %v2012 = vmax.f32 %v2010, %v2011
  %v2013 = vrot.slane %v566, 4
  %v2014 = vmax.f32 %v566, %v2013
  %v2015 = vrot.slane %v2014, 2
  %v2016 = vmax.f32 %v2014, %v2015
  %v2017 = vrot.slane %v2016, 1
  %v2018 = vmax.f32 %v2016, %v2017
  %v2019 = vrot.slane %v568, 4
  %v2020 = vmax.f32 %v568, %v2019
  %v2021 = vrot.slane %v2020, 2
  %v2022 = vmax.f32 %v2020, %v2021
  %v2023 = vrot.slane %v2022, 1
  %v2024 = vmax.f32 %v2022, %v2023
  %v2025 = vrot.slane %v679, 4
  %v2026 = vmax.f32 %v679, %v2025
  %v2027 = vrot.slane %v2026, 2
  %v2028 = vmax.f32 %v2026, %v2027
  %v2029 = vrot.slane %v2028, 1
  %v2030 = vmax.f32 %v2028, %v2029
  %v2031 = vrot.slane %v681, 4
  %v2032 = vmax.f32 %v681, %v2031
  %v2033 = vrot.slane %v2032, 2
  %v2034 = vmax.f32 %v2032, %v2033
  %v2035 = vrot.slane %v2034, 1
  %v2036 = vmax.f32 %v2034, %v2035
  %v2037 = vrot.slane %v792, 4
  %v2038 = vmax.f32 %v792, %v2037
  %v2039 = vrot.slane %v2038, 2
  %v2040 = vmax.f32 %v2038, %v2039
  %v2041 = vrot.slane %v2040, 1
  %v2042 = vmax.f32 %v2040, %v2041
  %v2043 = vrot.slane %v794, 4
  %v2044 = vmax.f32 %v794, %v2043
  %v2045 = vrot.slane %v2044, 2
  %v2046 = vmax.f32 %v2044, %v2045
  %v2047 = vrot.slane %v2046, 1
  %v2048 = vmax.f32 %v2046, %v2047
  %v2049 = vrot.slane %v905, 4
  %v2050 = vmax.f32 %v905, %v2049
  %v2051 = vrot.slane %v2050, 2
  %v2052 = vmax.f32 %v2050, %v2051
  %v2053 = vrot.slane %v2052, 1
  %v2054 = vmax.f32 %v2052, %v2053
  %v2055 = vrot.slane %v907, 4
  %v2056 = vmax.f32 %v907, %v2055
  %v2057 = vrot.slane %v2056, 2
  %v2058 = vmax.f32 %v2056, %v2057
  %v2059 = vrot.slane %v2058, 1
  %v2060 = vmax.f32 %v2058, %v2059
  %v2061 = vrot.slane %v572, 4
  %v2062 = vmax.f32 %v572, %v2061
  %v2063 = vrot.slane %v2062, 2
  %v2064 = vmax.f32 %v2062, %v2063
  %v2065 = vrot.slane %v2064, 1
  %v2066 = vmax.f32 %v2064, %v2065
  %v2067 = vrot.slane %v574, 4
  %v2068 = vmax.f32 %v574, %v2067
  %v2069 = vrot.slane %v2068, 2
  %v2070 = vmax.f32 %v2068, %v2069
  %v2071 = vrot.slane %v2070, 1
  %v2072 = vmax.f32 %v2070, %v2071
  %v2073 = vrot.slane %v685, 4
  %v2074 = vmax.f32 %v685, %v2073
  %v2075 = vrot.slane %v2074, 2
  %v2076 = vmax.f32 %v2074, %v2075
  %v2077 = vrot.slane %v2076, 1
  %v2078 = vmax.f32 %v2076, %v2077
  %v2079 = vrot.slane %v687, 4
  %v2080 = vmax.f32 %v687, %v2079
  %v2081 = vrot.slane %v2080, 2
  %v2082 = vmax.f32 %v2080, %v2081
  %v2083 = vrot.slane %v2082, 1
  %v2084 = vmax.f32 %v2082, %v2083
  %v2085 = vrot.slane %v798, 4
  %v2086 = vmax.f32 %v798, %v2085
  %v2087 = vrot.slane %v2086, 2
  %v2088 = vmax.f32 %v2086, %v2087
  %v2089 = vrot.slane %v2088, 1
  %v2090 = vmax.f32 %v2088, %v2089
  %v2091 = vrot.slane %v800, 4
  %v2092 = vmax.f32 %v800, %v2091
  %v2093 = vrot.slane %v2092, 2
  %v2094 = vmax.f32 %v2092, %v2093
  %v2095 = vrot.slane %v2094, 1
  %v2096 = vmax.f32 %v2094, %v2095
  %v2097 = vrot.slane %v911, 4
  %v2098 = vmax.f32 %v911, %v2097
  %v2099 = vrot.slane %v2098, 2
  %v2100 = vmax.f32 %v2098, %v2099
  %v2101 = vrot.slane %v2100, 1
  %v2102 = vmax.f32 %v2100, %v2101
  %v2103 = vrot.slane %v913, 4
  %v2104 = vmax.f32 %v913, %v2103
  %v2105 = vrot.slane %v2104, 2
  %v2106 = vmax.f32 %v2104, %v2105
  %v2107 = vrot.slane %v2106, 1
  %v2108 = vmax.f32 %v2106, %v2107
  %v2109 = vrot.slane %v576, 4
  %v2110 = vmax.f32 %v576, %v2109
  %v2111 = vrot.slane %v2110, 2
  %v2112 = vmax.f32 %v2110, %v2111
  %v2113 = vrot.slane %v2112, 1
  %v2114 = vmax.f32 %v2112, %v2113
  %v2115 = vrot.slane %v578, 4
  %v2116 = vmax.f32 %v578, %v2115
  %v2117 = vrot.slane %v2116, 2
  %v2118 = vmax.f32 %v2116, %v2117
  %v2119 = vrot.slane %v2118, 1
  %v2120 = vmax.f32 %v2118, %v2119
  %v2121 = vrot.slane %v689, 4
  %v2122 = vmax.f32 %v689, %v2121
  %v2123 = vrot.slane %v2122, 2
  %v2124 = vmax.f32 %v2122, %v2123
  %v2125 = vrot.slane %v2124, 1
  %v2126 = vmax.f32 %v2124, %v2125
  %v2127 = vrot.slane %v691, 4
  %v2128 = vmax.f32 %v691, %v2127
  %v2129 = vrot.slane %v2128, 2
  %v2130 = vmax.f32 %v2128, %v2129
  %v2131 = vrot.slane %v2130, 1
  %v2132 = vmax.f32 %v2130, %v2131
  %v2133 = vrot.slane %v802, 4
  %v2134 = vmax.f32 %v802, %v2133
  %v2135 = vrot.slane %v2134, 2
  %v2136 = vmax.f32 %v2134, %v2135
  %v2137 = vrot.slane %v2136, 1
  %v2138 = vmax.f32 %v2136, %v2137
  %v2139 = vrot.slane %v804, 4
  %v2140 = vmax.f32 %v804, %v2139
  %v2141 = vrot.slane %v2140, 2
  %v2142 = vmax.f32 %v2140, %v2141
  %v2143 = vrot.slane %v2142, 1
  %v2144 = vmax.f32 %v2142, %v2143
  %v2145 = vrot.slane %v915, 4
  %v2146 = vmax.f32 %v915, %v2145
  %v2147 = vrot.slane %v2146, 2
  %v2148 = vmax.f32 %v2146, %v2147
  %v2149 = vrot.slane %v2148, 1
  %v2150 = vmax.f32 %v2148, %v2149
  %v2151 = vrot.slane %v917, 4
  %v2152 = vmax.f32 %v917, %v2151
  %v2153 = vrot.slane %v2152, 2
  %v2154 = vmax.f32 %v2152, %v2153
  %v2155 = vrot.slane %v2154, 1
  %v2156 = vmax.f32 %v2154, %v2155
  %v2157 = vrot.slane %v582, 4
  %v2158 = vmax.f32 %v582, %v2157
  %v2159 = vrot.slane %v2158, 2
  %v2160 = vmax.f32 %v2158, %v2159
  %v2161 = vrot.slane %v2160, 1
  %v2162 = vmax.f32 %v2160, %v2161
  %v2163 = vrot.slane %v584, 4
  %v2164 = vmax.f32 %v584, %v2163
  %v2165 = vrot.slane %v2164, 2
  %v2166 = vmax.f32 %v2164, %v2165
  %v2167 = vrot.slane %v2166, 1
  %v2168 = vmax.f32 %v2166, %v2167
  %v2169 = vrot.slane %v695, 4
  %v2170 = vmax.f32 %v695, %v2169
  %v2171 = vrot.slane %v2170, 2
  %v2172 = vmax.f32 %v2170, %v2171
  %v2173 = vrot.slane %v2172, 1
  %v2174 = vmax.f32 %v2172, %v2173
  %v2175 = vrot.slane %v697, 4
  %v2176 = vmax.f32 %v697, %v2175
  %v2177 = vrot.slane %v2176, 2
  %v2178 = vmax.f32 %v2176, %v2177
  %v2179 = vrot.slane %v2178, 1
  %v2180 = vmax.f32 %v2178, %v2179
  %v2181 = vrot.slane %v808, 4
  %v2182 = vmax.f32 %v808, %v2181
  %v2183 = vrot.slane %v2182, 2
  %v2184 = vmax.f32 %v2182, %v2183
  %v2185 = vrot.slane %v2184, 1
  %v2186 = vmax.f32 %v2184, %v2185
  %v2187 = vrot.slane %v810, 4
  %v2188 = vmax.f32 %v810, %v2187
  %v2189 = vrot.slane %v2188, 2
  %v2190 = vmax.f32 %v2188, %v2189
  %v2191 = vrot.slane %v2190, 1
  %v2192 = vmax.f32 %v2190, %v2191
  %v2193 = vrot.slane %v921, 4
  %v2194 = vmax.f32 %v921, %v2193
  %v2195 = vrot.slane %v2194, 2
  %v2196 = vmax.f32 %v2194, %v2195
  %v2197 = vrot.slane %v2196, 1
  %v2198 = vmax.f32 %v2196, %v2197
  %v2199 = vrot.slane %v923, 4
  %v2200 = vmax.f32 %v923, %v2199
  %v2201 = vrot.slane %v2200, 2
  %v2202 = vmax.f32 %v2200, %v2201
  %v2203 = vrot.slane %v2202, 1
  %v2204 = vmax.f32 %v2202, %v2203
  %v2205 = vrot.slane %v586, 4
  %v2206 = vmax.f32 %v586, %v2205
  %v2207 = vrot.slane %v2206, 2
  %v2208 = vmax.f32 %v2206, %v2207
  %v2209 = vrot.slane %v2208, 1
  %v2210 = vmax.f32 %v2208, %v2209
  %v2211 = vrot.slane %v588, 4
  %v2212 = vmax.f32 %v588, %v2211
  %v2213 = vrot.slane %v2212, 2
  %v2214 = vmax.f32 %v2212, %v2213
  %v2215 = vrot.slane %v2214, 1
  %v2216 = vmax.f32 %v2214, %v2215
  %v2217 = vrot.slane %v699, 4
  %v2218 = vmax.f32 %v699, %v2217
  %v2219 = vrot.slane %v2218, 2
  %v2220 = vmax.f32 %v2218, %v2219
  %v2221 = vrot.slane %v2220, 1
  %v2222 = vmax.f32 %v2220, %v2221
  %v2223 = vrot.slane %v701, 4
  %v2224 = vmax.f32 %v701, %v2223
  %v2225 = vrot.slane %v2224, 2
  %v2226 = vmax.f32 %v2224, %v2225
  %v2227 = vrot.slane %v2226, 1
  %v2228 = vmax.f32 %v2226, %v2227
  %v2229 = vrot.slane %v812, 4
  %v2230 = vmax.f32 %v812, %v2229
  %v2231 = vrot.slane %v2230, 2
  %v2232 = vmax.f32 %v2230, %v2231
  %v2233 = vrot.slane %v2232, 1
  %v2234 = vmax.f32 %v2232, %v2233
  %v2235 = vrot.slane %v814, 4
  %v2236 = vmax.f32 %v814, %v2235
  %v2237 = vrot.slane %v2236, 2
  %v2238 = vmax.f32 %v2236, %v2237
  %v2239 = vrot.slane %v2238, 1
  %v2240 = vmax.f32 %v2238, %v2239
  %v2241 = vrot.slane %v925, 4
  %v2242 = vmax.f32 %v925, %v2241
  %v2243 = vrot.slane %v2242, 2
  %v2244 = vmax.f32 %v2242, %v2243
  %v2245 = vrot.slane %v2244, 1
  %v2246 = vmax.f32 %v2244, %v2245
  %v2247 = vrot.slane %v927, 4
  %v2248 = vmax.f32 %v927, %v2247
  %v2249 = vrot.slane %v2248, 2
  %v2250 = vmax.f32 %v2248, %v2249
  %v2251 = vrot.slane %v2250, 1
  %v2252 = vmax.f32 %v2250, %v2251
  %v2253 = vrot.slane %v592, 4
  %v2254 = vmax.f32 %v592, %v2253
  %v2255 = vrot.slane %v2254, 2
  %v2256 = vmax.f32 %v2254, %v2255
  %v2257 = vrot.slane %v2256, 1
  %v2258 = vmax.f32 %v2256, %v2257
  %v2259 = vrot.slane %v594, 4
  %v2260 = vmax.f32 %v594, %v2259
  %v2261 = vrot.slane %v2260, 2
  %v2262 = vmax.f32 %v2260, %v2261
  %v2263 = vrot.slane %v2262, 1
  %v2264 = vmax.f32 %v2262, %v2263
  %v2265 = vrot.slane %v705, 4
  %v2266 = vmax.f32 %v705, %v2265
  %v2267 = vrot.slane %v2266, 2
  %v2268 = vmax.f32 %v2266, %v2267
  %v2269 = vrot.slane %v2268, 1
  %v2270 = vmax.f32 %v2268, %v2269
  %v2271 = vrot.slane %v707, 4
  %v2272 = vmax.f32 %v707, %v2271
  %v2273 = vrot.slane %v2272, 2
  %v2274 = vmax.f32 %v2272, %v2273
  %v2275 = vrot.slane %v2274, 1
  %v2276 = vmax.f32 %v2274, %v2275
  %v2277 = vrot.slane %v818, 4
  %v2278 = vmax.f32 %v818, %v2277
  %v2279 = vrot.slane %v2278, 2
  %v2280 = vmax.f32 %v2278, %v2279
  %v2281 = vrot.slane %v2280, 1
  %v2282 = vmax.f32 %v2280, %v2281
  %v2283 = vrot.slane %v820, 4
  %v2284 = vmax.f32 %v820, %v2283
  %v2285 = vrot.slane %v2284, 2
  %v2286 = vmax.f32 %v2284, %v2285
  %v2287 = vrot.slane %v2286, 1
  %v2288 = vmax.f32 %v2286, %v2287
  %v2289 = vrot.slane %v931, 4
  %v2290 = vmax.f32 %v931, %v2289
  %v2291 = vrot.slane %v2290, 2
  %v2292 = vmax.f32 %v2290, %v2291
  %v2293 = vrot.slane %v2292, 1
  %v2294 = vmax.f32 %v2292, %v2293
  %v2295 = vrot.slane %v933, 4
  %v2296 = vmax.f32 %v933, %v2295
  %v2297 = vrot.slane %v2296, 2
  %v2298 = vmax.f32 %v2296, %v2297
  %v2299 = vrot.slane %v2298, 1
  %v2300 = vmax.f32 %v2298, %v2299
  %v2301 = vrot.slane %v596, 4
  %v2302 = vmax.f32 %v596, %v2301
  %v2303 = vrot.slane %v2302, 2
  %v2304 = vmax.f32 %v2302, %v2303
  %v2305 = vrot.slane %v2304, 1
  %v2306 = vmax.f32 %v2304, %v2305
  %v2307 = vrot.slane %v598, 4
  %v2308 = vmax.f32 %v598, %v2307
  %v2309 = vrot.slane %v2308, 2
  %v2310 = vmax.f32 %v2308, %v2309
  %v2311 = vrot.slane %v2310, 1
  %v2312 = vmax.f32 %v2310, %v2311
  %v2313 = vrot.slane %v709, 4
  %v2314 = vmax.f32 %v709, %v2313
  %v2315 = vrot.slane %v2314, 2
  %v2316 = vmax.f32 %v2314, %v2315
  %v2317 = vrot.slane %v2316, 1
  %v2318 = vmax.f32 %v2316, %v2317
  %v2319 = vrot.slane %v711, 4
  %v2320 = vmax.f32 %v711, %v2319
  %v2321 = vrot.slane %v2320, 2
  %v2322 = vmax.f32 %v2320, %v2321
  %v2323 = vrot.slane %v2322, 1
  %v2324 = vmax.f32 %v2322, %v2323
  %v2325 = vrot.slane %v822, 4
  %v2326 = vmax.f32 %v822, %v2325
  %v2327 = vrot.slane %v2326, 2
  %v2328 = vmax.f32 %v2326, %v2327
  %v2329 = vrot.slane %v2328, 1
  %v2330 = vmax.f32 %v2328, %v2329
  %v2331 = vrot.slane %v824, 4
  %v2332 = vmax.f32 %v824, %v2331
  %v2333 = vrot.slane %v2332, 2
  %v2334 = vmax.f32 %v2332, %v2333
  %v2335 = vrot.slane %v2334, 1
  %v2336 = vmax.f32 %v2334, %v2335
  %v2337 = vrot.slane %v935, 4
  %v2338 = vmax.f32 %v935, %v2337
  %v2339 = vrot.slane %v2338, 2
  %v2340 = vmax.f32 %v2338, %v2339
  %v2341 = vrot.slane %v2340, 1
  %v2342 = vmax.f32 %v2340, %v2341
  %v2343 = vrot.slane %v937, 4
  %v2344 = vmax.f32 %v937, %v2343
  %v2345 = vrot.slane %v2344, 2
  %v2346 = vmax.f32 %v2344, %v2345
  %v2347 = vrot.slane %v2346, 1
  %v2348 = vmax.f32 %v2346, %v2347
  %v2349 = vrot.slane %v602, 4
  %v2350 = vmax.f32 %v602, %v2349
  %v2351 = vrot.slane %v2350, 2
  %v2352 = vmax.f32 %v2350, %v2351
  %v2353 = vrot.slane %v2352, 1
  %v2354 = vmax.f32 %v2352, %v2353
  %v2355 = vrot.slane %v604, 4
  %v2356 = vmax.f32 %v604, %v2355
  %v2357 = vrot.slane %v2356, 2
  %v2358 = vmax.f32 %v2356, %v2357
  %v2359 = vrot.slane %v2358, 1
  %v2360 = vmax.f32 %v2358, %v2359
  %v2361 = vrot.slane %v715, 4
  %v2362 = vmax.f32 %v715, %v2361
  %v2363 = vrot.slane %v2362, 2
  %v2364 = vmax.f32 %v2362, %v2363
  %v2365 = vrot.slane %v2364, 1
  %v2366 = vmax.f32 %v2364, %v2365
  %v2367 = vrot.slane %v717, 4
  %v2368 = vmax.f32 %v717, %v2367
  %v2369 = vrot.slane %v2368, 2
  %v2370 = vmax.f32 %v2368, %v2369
  %v2371 = vrot.slane %v2370, 1
  %v2372 = vmax.f32 %v2370, %v2371
  %v2373 = vrot.slane %v828, 4
  %v2374 = vmax.f32 %v828, %v2373
  %v2375 = vrot.slane %v2374, 2
  %v2376 = vmax.f32 %v2374, %v2375
  %v2377 = vrot.slane %v2376, 1
  %v2378 = vmax.f32 %v2376, %v2377
  %v2379 = vrot.slane %v830, 4
  %v2380 = vmax.f32 %v830, %v2379
  %v2381 = vrot.slane %v2380, 2
  %v2382 = vmax.f32 %v2380, %v2381
  %v2383 = vrot.slane %v2382, 1
  %v2384 = vmax.f32 %v2382, %v2383
  %v2385 = vrot.slane %v941, 4
  %v2386 = vmax.f32 %v941, %v2385
  %v2387 = vrot.slane %v2386, 2
  %v2388 = vmax.f32 %v2386, %v2387
  %v2389 = vrot.slane %v2388, 1
  %v2390 = vmax.f32 %v2388, %v2389
  %v2391 = vrot.slane %v943, 4
  %v2392 = vmax.f32 %v943, %v2391
  %v2393 = vrot.slane %v2392, 2
  %v2394 = vmax.f32 %v2392, %v2393
  %v2395 = vrot.slane %v2394, 1
  %v2396 = vmax.f32 %v2394, %v2395
  %v2397 = vrot.slane %v606, 4
  %v2398 = vmax.f32 %v606, %v2397
  %v2399 = vrot.slane %v2398, 2
  %v2400 = vmax.f32 %v2398, %v2399
  %v2401 = vrot.slane %v2400, 1
  %v2402 = vmax.f32 %v2400, %v2401
  %v2403 = vrot.slane %v608, 4
  %v2404 = vmax.f32 %v608, %v2403
  %v2405 = vrot.slane %v2404, 2
  %v2406 = vmax.f32 %v2404, %v2405
  %v2407 = vrot.slane %v2406, 1
  %v2408 = vmax.f32 %v2406, %v2407
  %v2409 = vrot.slane %v719, 4
  %v2410 = vmax.f32 %v719, %v2409
  %v2411 = vrot.slane %v2410, 2
  %v2412 = vmax.f32 %v2410, %v2411
  %v2413 = vrot.slane %v2412, 1
  %v2414 = vmax.f32 %v2412, %v2413
  %v2415 = vrot.slane %v721, 4
  %v2416 = vmax.f32 %v721, %v2415
  %v2417 = vrot.slane %v2416, 2
  %v2418 = vmax.f32 %v2416, %v2417
  %v2419 = vrot.slane %v2418, 1
  %v2420 = vmax.f32 %v2418, %v2419
  %v2421 = vrot.slane %v832, 4
  %v2422 = vmax.f32 %v832, %v2421
  %v2423 = vrot.slane %v2422, 2
  %v2424 = vmax.f32 %v2422, %v2423
  %v2425 = vrot.slane %v2424, 1
  %v2426 = vmax.f32 %v2424, %v2425
  %v2427 = vrot.slane %v834, 4
  %v2428 = vmax.f32 %v834, %v2427
  %v2429 = vrot.slane %v2428, 2
  %v2430 = vmax.f32 %v2428, %v2429
  %v2431 = vrot.slane %v2430, 1
  %v2432 = vmax.f32 %v2430, %v2431
  %v2433 = vrot.slane %v945, 4
  %v2434 = vmax.f32 %v945, %v2433
  %v2435 = vrot.slane %v2434, 2
  %v2436 = vmax.f32 %v2434, %v2435
  %v2437 = vrot.slane %v2436, 1
  %v2438 = vmax.f32 %v2436, %v2437
  %v2439 = vrot.slane %v947, 4
  %v2440 = vmax.f32 %v947, %v2439
  %v2441 = vrot.slane %v2440, 2
  %v2442 = vmax.f32 %v2440, %v2441
  %v2443 = vrot.slane %v2442, 1
  %v2444 = vmax.f32 %v2442, %v2443
  %v2445 = vrot.slane %v612, 4
  %v2446 = vmax.f32 %v612, %v2445
  %v2447 = vrot.slane %v2446, 2
  %v2448 = vmax.f32 %v2446, %v2447
  %v2449 = vrot.slane %v2448, 1
  %v2450 = vmax.f32 %v2448, %v2449
  %v2451 = vrot.slane %v614, 4
  %v2452 = vmax.f32 %v614, %v2451
  %v2453 = vrot.slane %v2452, 2
  %v2454 = vmax.f32 %v2452, %v2453
  %v2455 = vrot.slane %v2454, 1
  %v2456 = vmax.f32 %v2454, %v2455
  %v2457 = vrot.slane %v725, 4
  %v2458 = vmax.f32 %v725, %v2457
  %v2459 = vrot.slane %v2458, 2
  %v2460 = vmax.f32 %v2458, %v2459
  %v2461 = vrot.slane %v2460, 1
  %v2462 = vmax.f32 %v2460, %v2461
  %v2463 = vrot.slane %v727, 4
  %v2464 = vmax.f32 %v727, %v2463
  %v2465 = vrot.slane %v2464, 2
  %v2466 = vmax.f32 %v2464, %v2465
  %v2467 = vrot.slane %v2466, 1
  %v2468 = vmax.f32 %v2466, %v2467
  %v2469 = vrot.slane %v838, 4
  %v2470 = vmax.f32 %v838, %v2469
  %v2471 = vrot.slane %v2470, 2
  %v2472 = vmax.f32 %v2470, %v2471
  %v2473 = vrot.slane %v2472, 1
  %v2474 = vmax.f32 %v2472, %v2473
  %v2475 = vrot.slane %v840, 4
  %v2476 = vmax.f32 %v840, %v2475
  %v2477 = vrot.slane %v2476, 2
  %v2478 = vmax.f32 %v2476, %v2477
  %v2479 = vrot.slane %v2478, 1
  %v2480 = vmax.f32 %v2478, %v2479
  %v2481 = vrot.slane %v951, 4
  %v2482 = vmax.f32 %v951, %v2481
  %v2483 = vrot.slane %v2482, 2
  %v2484 = vmax.f32 %v2482, %v2483
  %v2485 = vrot.slane %v2484, 1
  %v2486 = vmax.f32 %v2484, %v2485
  %v2487 = vrot.slane %v953, 4
  %v2488 = vmax.f32 %v953, %v2487
  %v2489 = vrot.slane %v2488, 2
  %v2490 = vmax.f32 %v2488, %v2489
  %v2491 = vrot.slane %v2490, 1
  %v2492 = vmax.f32 %v2490, %v2491
  %v2493 = vrot.slane %v616, 4
  %v2494 = vmax.f32 %v616, %v2493
  %v2495 = vrot.slane %v2494, 2
  %v2496 = vmax.f32 %v2494, %v2495
  %v2497 = vrot.slane %v2496, 1
  %v2498 = vmax.f32 %v2496, %v2497
  %v2499 = vrot.slane %v618, 4
  %v2500 = vmax.f32 %v618, %v2499
  %v2501 = vrot.slane %v2500, 2
  %v2502 = vmax.f32 %v2500, %v2501
  %v2503 = vrot.slane %v2502, 1
  %v2504 = vmax.f32 %v2502, %v2503
  %v2505 = vrot.slane %v729, 4
  %v2506 = vmax.f32 %v729, %v2505
  %v2507 = vrot.slane %v2506, 2
  %v2508 = vmax.f32 %v2506, %v2507
  %v2509 = vrot.slane %v2508, 1
  %v2510 = vmax.f32 %v2508, %v2509
  %v2511 = vrot.slane %v731, 4
  %v2512 = vmax.f32 %v731, %v2511
  %v2513 = vrot.slane %v2512, 2
  %v2514 = vmax.f32 %v2512, %v2513
  %v2515 = vrot.slane %v2514, 1
  %v2516 = vmax.f32 %v2514, %v2515
  %v2517 = vrot.slane %v842, 4
  %v2518 = vmax.f32 %v842, %v2517
  %v2519 = vrot.slane %v2518, 2
  %v2520 = vmax.f32 %v2518, %v2519
  %v2521 = vrot.slane %v2520, 1
  %v2522 = vmax.f32 %v2520, %v2521
  %v2523 = vrot.slane %v844, 4
  %v2524 = vmax.f32 %v844, %v2523
  %v2525 = vrot.slane %v2524, 2
  %v2526 = vmax.f32 %v2524, %v2525
  %v2527 = vrot.slane %v2526, 1
  %v2528 = vmax.f32 %v2526, %v2527
  %v2529 = vrot.slane %v955, 4
  %v2530 = vmax.f32 %v955, %v2529
  %v2531 = vrot.slane %v2530, 2
  %v2532 = vmax.f32 %v2530, %v2531
  %v2533 = vrot.slane %v2532, 1
  %v2534 = vmax.f32 %v2532, %v2533
  %v2535 = vrot.slane %v957, 4
  %v2536 = vmax.f32 %v957, %v2535
  %v2537 = vrot.slane %v2536, 2
  %v2538 = vmax.f32 %v2536, %v2537
  %v2539 = vrot.slane %v2538, 1
  %v2540 = vmax.f32 %v2538, %v2539
  %v2541 = vpack.c.bf16 %v1778, %v1778
  %v2542 = vpack.c.bf16 %v1784, %v1784
  %v2543 = vpack.c.bf16 %v1790, %v1790
  %v2544 = vpack.c.bf16 %v1796, %v1796
  %v2545 = vpack.c.bf16 %v1802, %v1802
  %v2546 = vpack.c.bf16 %v1808, %v1808
  %v2547 = vpack.c.bf16 %v1814, %v1814
  %v2548 = vpack.c.bf16 %v1820, %v1820
  %v2549 = vpack.c.bf16 %v1826, %v1826
  %v2550 = vpack.c.bf16 %v1832, %v1832
  %v2551 = vpack.c.bf16 %v1838, %v1838
  %v2552 = vpack.c.bf16 %v1844, %v1844
  %v2553 = vpack.c.bf16 %v1850, %v1850
  %v2554 = vpack.c.bf16 %v1856, %v1856
  %v2555 = vpack.c.bf16 %v1862, %v1862
  %v2556 = vpack.c.bf16 %v1868, %v1868
  %v2557 = vpack.c.bf16 %v1874, %v1874
  %v2558 = vpack.c.bf16 %v1880, %v1880
  %v2559 = vpack.c.bf16 %v1886, %v1886
  %v2560 = vpack.c.bf16 %v1892, %v1892
  %v2561 = vpack.c.bf16 %v1898, %v1898
  %v2562 = vpack.c.bf16 %v1904, %v1904
  %v2563 = vpack.c.bf16 %v1910, %v1910
  %v2564 = vpack.c.bf16 %v1916, %v1916
  %v2565 = vpack.c.bf16 %v1922, %v1922
  %v2566 = vpack.c.bf16 %v1928, %v1928
  %v2567 = vpack.c.bf16 %v1934, %v1934
  %v2568 = vpack.c.bf16 %v1940, %v1940
  %v2569 = vpack.c.bf16 %v1946, %v1946
  %v2570 = vpack.c.bf16 %v1952, %v1952
  %v2571 = vpack.c.bf16 %v1958, %v1958
  %v2572 = vpack.c.bf16 %v1964, %v1964
  %v2573 = vpack.c.bf16 %v1970, %v1970
  %v2574 = vpack.c.bf16 %v1976, %v1976
  %v2575 = vpack.c.bf16 %v1982, %v1982
  %v2576 = vpack.c.bf16 %v1988, %v1988
  %v2577 = vpack.c.bf16 %v1994, %v1994
  %v2578 = vpack.c.bf16 %v2000, %v2000
  %v2579 = vpack.c.bf16 %v2006, %v2006
  %v2580 = vpack.c.bf16 %v2012, %v2012
  %v2581 = vpack.c.bf16 %v2018, %v2018
  %v2582 = vpack.c.bf16 %v2024, %v2024
  %v2583 = vpack.c.bf16 %v2030, %v2030
  %v2584 = vpack.c.bf16 %v2036, %v2036
  %v2585 = vpack.c.bf16 %v2042, %v2042
  %v2586 = vpack.c.bf16 %v2048, %v2048
  %v2587 = vpack.c.bf16 %v2054, %v2054
  %v2588 = vpack.c.bf16 %v2060, %v2060
  %v2589 = vpack.c.bf16 %v2066, %v2066
  %v2590 = vpack.c.bf16 %v2072, %v2072
  %v2591 = vpack.c.bf16 %v2078, %v2078
  %v2592 = vpack.c.bf16 %v2084, %v2084
  %v2593 = vpack.c.bf16 %v2090, %v2090
  %v2594 = vpack.c.bf16 %v2096, %v2096
  %v2595 = vpack.c.bf16 %v2102, %v2102
  %v2596 = vpack.c.bf16 %v2108, %v2108
  %v2597 = vpack.c.bf16 %v2114, %v2114
  %v2598 = vpack.c.bf16 %v2120, %v2120
  %v2599 = vpack.c.bf16 %v2126, %v2126
  %v2600 = vpack.c.bf16 %v2132, %v2132
  %v2601 = vpack.c.bf16 %v2138, %v2138
  %v2602 = vpack.c.bf16 %v2144, %v2144
  %v2603 = vpack.c.bf16 %v2150, %v2150
  %v2604 = vpack.c.bf16 %v2156, %v2156
  %v2605 = vpack.c.bf16 %v2162, %v2162
  %v2606 = vpack.c.bf16 %v2168, %v2168
  %v2607 = vpack.c.bf16 %v2174, %v2174
  %v2608 = vpack.c.bf16 %v2180, %v2180
  %v2609 = vpack.c.bf16 %v2186, %v2186
  %v2610 = vpack.c.bf16 %v2192, %v2192
  %v2611 = vpack.c.bf16 %v2198, %v2198
  %v2612 = vpack.c.bf16 %v2204, %v2204
  %v2613 = vpack.c.bf16 %v2210, %v2210
  %v2614 = vpack.c.bf16 %v2216, %v2216
  %v2615 = vpack.c.bf16 %v2222, %v2222
  %v2616 = vpack.c.bf16 %v2228, %v2228
  %v2617 = vpack.c.bf16 %v2234, %v2234
  %v2618 = vpack.c.bf16 %v2240, %v2240
  %v2619 = vpack.c.bf16 %v2246, %v2246
  %v2620 = vpack.c.bf16 %v2252, %v2252
  %v2621 = vpack.c.bf16 %v2258, %v2258
  %v2622 = vpack.c.bf16 %v2264, %v2264
  %v2623 = vpack.c.bf16 %v2270, %v2270
  %v2624 = vpack.c.bf16 %v2276, %v2276
  %v2625 = vpack.c.bf16 %v2282, %v2282
  %v2626 = vpack.c.bf16 %v2288, %v2288
  %v2627 = vpack.c.bf16 %v2294, %v2294
  %v2628 = vpack.c.bf16 %v2300, %v2300
  %v2629 = vpack.c.bf16 %v2306, %v2306
  %v2630 = vpack.c.bf16 %v2312, %v2312
  %v2631 = vpack.c.bf16 %v2318, %v2318
  %v2632 = vpack.c.bf16 %v2324, %v2324
  %v2633 = vpack.c.bf16 %v2330, %v2330
  %v2634 = vpack.c.bf16 %v2336, %v2336
  %v2635 = vpack.c.bf16 %v2342, %v2342
  %v2636 = vpack.c.bf16 %v2348, %v2348
  %v2637 = vpack.c.bf16 %v2354, %v2354
  %v2638 = vpack.c.bf16 %v2360, %v2360
  %v2639 = vpack.c.bf16 %v2366, %v2366
  %v2640 = vpack.c.bf16 %v2372, %v2372
  %v2641 = vpack.c.bf16 %v2378, %v2378
  %v2642 = vpack.c.bf16 %v2384, %v2384
  %v2643 = vpack.c.bf16 %v2390, %v2390
  %v2644 = vpack.c.bf16 %v2396, %v2396
  %v2645 = vpack.c.bf16 %v2402, %v2402
  %v2646 = vpack.c.bf16 %v2408, %v2408
  %v2647 = vpack.c.bf16 %v2414, %v2414
  %v2648 = vpack.c.bf16 %v2420, %v2420
  %v2649 = vpack.c.bf16 %v2426, %v2426
  %v2650 = vpack.c.bf16 %v2432, %v2432
  %v2651 = vpack.c.bf16 %v2438, %v2438
  %v2652 = vpack.c.bf16 %v2444, %v2444
  %v2653 = vpack.c.bf16 %v2450, %v2450
  %v2654 = vpack.c.bf16 %v2456, %v2456
  %v2655 = vpack.c.bf16 %v2462, %v2462
  %v2656 = vpack.c.bf16 %v2468, %v2468
  %v2657 = vpack.c.bf16 %v2474, %v2474
  %v2658 = vpack.c.bf16 %v2480, %v2480
  %v2659 = vpack.c.bf16 %v2486, %v2486
  %v2660 = vpack.c.bf16 %v2492, %v2492
  %v2661 = vpack.c.bf16 %v2498, %v2498
  %v2662 = vpack.c.bf16 %v2504, %v2504
  %v2663 = vpack.c.bf16 %v2510, %v2510
  %v2664 = vpack.c.bf16 %v2516, %v2516
  %v2665 = vpack.c.bf16 %v2522, %v2522
  %v2666 = vpack.c.bf16 %v2528, %v2528
  %v2667 = vpack.c.bf16 %v2534, %v2534
  %v2668 = vpack.c.bf16 %v2540, %v2540
  %v2797 = vunpack.c.l.b16 %v2541
  %v2798 = vunpack.c.l.b16 %v2542
  %v2799 = vunpack.c.l.b16 %v2543
  %v2800 = vunpack.c.l.b16 %v2544
  %v2801 = vunpack.c.l.b16 %v2545
  %v2802 = vunpack.c.l.b16 %v2546
  %v2803 = vunpack.c.l.b16 %v2547
  %v2804 = vunpack.c.l.b16 %v2548
  %v2805 = vunpack.c.l.b16 %v2549
  %v2806 = vunpack.c.l.b16 %v2550
  %v2807 = vunpack.c.l.b16 %v2551
  %v2808 = vunpack.c.l.b16 %v2552
  %v2809 = vunpack.c.l.b16 %v2553
  %v2810 = vunpack.c.l.b16 %v2554
  %v2811 = vunpack.c.l.b16 %v2555
  %v2812 = vunpack.c.l.b16 %v2556
  %v2813 = vunpack.c.l.b16 %v2557
  %v2814 = vunpack.c.l.b16 %v2558
  %v2815 = vunpack.c.l.b16 %v2559
  %v2816 = vunpack.c.l.b16 %v2560
  %v2817 = vunpack.c.l.b16 %v2561
  %v2818 = vunpack.c.l.b16 %v2562
  %v2819 = vunpack.c.l.b16 %v2563
  %v2820 = vunpack.c.l.b16 %v2564
  %v2821 = vunpack.c.l.b16 %v2565
  %v2822 = vunpack.c.l.b16 %v2566
  %v2823 = vunpack.c.l.b16 %v2567
  %v2824 = vunpack.c.l.b16 %v2568
  %v2825 = vunpack.c.l.b16 %v2569
  %v2826 = vunpack.c.l.b16 %v2570
  %v2827 = vunpack.c.l.b16 %v2571
  %v2828 = vunpack.c.l.b16 %v2572
  %v2829 = vunpack.c.l.b16 %v2573
  %v2830 = vunpack.c.l.b16 %v2574
  %v2831 = vunpack.c.l.b16 %v2575
  %v2832 = vunpack.c.l.b16 %v2576
  %v2833 = vunpack.c.l.b16 %v2577
  %v2834 = vunpack.c.l.b16 %v2578
  %v2835 = vunpack.c.l.b16 %v2579
  %v2836 = vunpack.c.l.b16 %v2580
  %v2837 = vunpack.c.l.b16 %v2581
  %v2838 = vunpack.c.l.b16 %v2582
  %v2839 = vunpack.c.l.b16 %v2583
  %v2840 = vunpack.c.l.b16 %v2584
  %v2841 = vunpack.c.l.b16 %v2585
  %v2842 = vunpack.c.l.b16 %v2586
  %v2843 = vunpack.c.l.b16 %v2587
  %v2844 = vunpack.c.l.b16 %v2588
  %v2845 = vunpack.c.l.b16 %v2589
  %v2846 = vunpack.c.l.b16 %v2590
  %v2847 = vunpack.c.l.b16 %v2591
  %v2848 = vunpack.c.l.b16 %v2592
  %v2849 = vunpack.c.l.b16 %v2593
  %v2850 = vunpack.c.l.b16 %v2594
  %v2851 = vunpack.c.l.b16 %v2595
  %v2852 = vunpack.c.l.b16 %v2596
  %v2853 = vunpack.c.l.b16 %v2597
  %v2854 = vunpack.c.l.b16 %v2598
  %v2855 = vunpack.c.l.b16 %v2599
  %v2856 = vunpack.c.l.b16 %v2600
  %v2857 = vunpack.c.l.b16 %v2601
  %v2858 = vunpack.c.l.b16 %v2602
  %v2859 = vunpack.c.l.b16 %v2603
  %v2860 = vunpack.c.l.b16 %v2604
  %v2861 = vunpack.c.l.b16 %v2605
  %v2862 = vunpack.c.l.b16 %v2606
  %v2863 = vunpack.c.l.b16 %v2607
  %v2864 = vunpack.c.l.b16 %v2608
  %v2865 = vunpack.c.l.b16 %v2609
  %v2866 = vunpack.c.l.b16 %v2610
  %v2867 = vunpack.c.l.b16 %v2611
  %v2868 = vunpack.c.l.b16 %v2612
  %v2869 = vunpack.c.l.b16 %v2613
  %v2870 = vunpack.c.l.b16 %v2614
  %v2871 = vunpack.c.l.b16 %v2615
  %v2872 = vunpack.c.l.b16 %v2616
  %v2873 = vunpack.c.l.b16 %v2617
  %v2874 = vunpack.c.l.b16 %v2618
  %v2875 = vunpack.c.l.b16 %v2619
  %v2876 = vunpack.c.l.b16 %v2620
  %v2877 = vunpack.c.l.b16 %v2621
  %v2878 = vunpack.c.l.b16 %v2622
  %v2879 = vunpack.c.l.b16 %v2623
  %v2880 = vunpack.c.l.b16 %v2624
  %v2881 = vunpack.c.l.b16 %v2625
  %v2882 = vunpack.c.l.b16 %v2626
  %v2883 = vunpack.c.l.b16 %v2627
  %v2884 = vunpack.c.l.b16 %v2628
  %v2885 = vunpack.c.l.b16 %v2629
  %v2886 = vunpack.c.l.b16 %v2630
  %v2887 = vunpack.c.l.b16 %v2631
  %v2888 = vunpack.c.l.b16 %v2632
  %v2889 = vunpack.c.l.b16 %v2633
  %v2890 = vunpack.c.l.b16 %v2634
  %v2891 = vunpack.c.l.b16 %v2635
  %v2892 = vunpack.c.l.b16 %v2636
  %v2893 = vunpack.c.l.b16 %v2637
  %v2894 = vunpack.c.l.b16 %v2638
  %v2895 = vunpack.c.l.b16 %v2639
  %v2896 = vunpack.c.l.b16 %v2640
  %v2897 = vunpack.c.l.b16 %v2641
  %v2898 = vunpack.c.l.b16 %v2642
  %v2899 = vunpack.c.l.b16 %v2643
  %v2900 = vunpack.c.l.b16 %v2644
  %v2901 = vunpack.c.l.b16 %v2645
  %v2902 = vunpack.c.l.b16 %v2646
  %v2903 = vunpack.c.l.b16 %v2647
  %v2904 = vunpack.c.l.b16 %v2648
  %v2905 = vunpack.c.l.b16 %v2649
  %v2906 = vunpack.c.l.b16 %v2650
  %v2907 = vunpack.c.l.b16 %v2651
  %v2908 = vunpack.c.l.b16 %v2652
  %v2909 = vunpack.c.l.b16 %v2653
  %v2910 = vunpack.c.l.b16 %v2654
  %v2911 = vunpack.c.l.b16 %v2655
  %v2912 = vunpack.c.l.b16 %v2656
  %v2913 = vunpack.c.l.b16 %v2657
  %v2914 = vunpack.c.l.b16 %v2658
  %v2915 = vunpack.c.l.b16 %v2659
  %v2916 = vunpack.c.l.b16 %v2660
  %v2917 = vunpack.c.l.b16 %v2661
  %v2918 = vunpack.c.l.b16 %v2662
  %v2919 = vunpack.c.l.b16 %v2663
  %v2920 = vunpack.c.l.b16 %v2664
  %v2921 = vunpack.c.l.b16 %v2665
  %v2922 = vunpack.c.l.b16 %v2666
  %v2923 = vunpack.c.l.b16 %v2667
  %v2924 = vunpack.c.l.b16 %v2668
  %v2925 = vpack.c.b16 %v2798, %v2797
  %v2926 = vpack.c.b16 %v2800, %v2799
  %v2927 = vpack.c.b16 %v2802, %v2801
  %v2928 = vpack.c.b16 %v2804, %v2803
  %v2929 = vpack.c.b16 %v2806, %v2805
  %v2930 = vpack.c.b16 %v2808, %v2807
  %v2931 = vpack.c.b16 %v2810, %v2809
  %v2932 = vpack.c.b16 %v2812, %v2811
  %v2933 = vpack.c.b16 %v2814, %v2813
  %v2934 = vpack.c.b16 %v2816, %v2815
  %v2935 = vpack.c.b16 %v2818, %v2817
  %v2936 = vpack.c.b16 %v2820, %v2819
  %v2937 = vpack.c.b16 %v2822, %v2821
  %v2938 = vpack.c.b16 %v2824, %v2823
  %v2939 = vpack.c.b16 %v2826, %v2825
  %v2940 = vpack.c.b16 %v2828, %v2827
  %v2941 = vpack.c.b16 %v2830, %v2829
  %v2942 = vpack.c.b16 %v2832, %v2831
  %v2943 = vpack.c.b16 %v2834, %v2833
  %v2944 = vpack.c.b16 %v2836, %v2835
  %v2945 = vpack.c.b16 %v2838, %v2837
  %v2946 = vpack.c.b16 %v2840, %v2839
  %v2947 = vpack.c.b16 %v2842, %v2841
  %v2948 = vpack.c.b16 %v2844, %v2843
  %v2949 = vpack.c.b16 %v2846, %v2845
  %v2950 = vpack.c.b16 %v2848, %v2847
  %v2951 = vpack.c.b16 %v2850, %v2849
  %v2952 = vpack.c.b16 %v2852, %v2851
  %v2953 = vpack.c.b16 %v2854, %v2853
  %v2954 = vpack.c.b16 %v2856, %v2855
  %v2955 = vpack.c.b16 %v2858, %v2857
  %v2956 = vpack.c.b16 %v2860, %v2859
  %v2957 = vpack.c.b16 %v2862, %v2861
  %v2958 = vpack.c.b16 %v2864, %v2863
  %v2959 = vpack.c.b16 %v2866, %v2865
  %v2960 = vpack.c.b16 %v2868, %v2867
  %v2961 = vpack.c.b16 %v2870, %v2869
  %v2962 = vpack.c.b16 %v2872, %v2871
  %v2963 = vpack.c.b16 %v2874, %v2873
  %v2964 = vpack.c.b16 %v2876, %v2875
  %v2965 = vpack.c.b16 %v2878, %v2877
  %v2966 = vpack.c.b16 %v2880, %v2879
  %v2967 = vpack.c.b16 %v2882, %v2881
  %v2968 = vpack.c.b16 %v2884, %v2883
  %v2969 = vpack.c.b16 %v2886, %v2885
  %v2970 = vpack.c.b16 %v2888, %v2887
  %v2971 = vpack.c.b16 %v2890, %v2889
  %v2972 = vpack.c.b16 %v2892, %v2891
  %v2973 = vpack.c.b16 %v2894, %v2893
  %v2974 = vpack.c.b16 %v2896, %v2895
  %v2975 = vpack.c.b16 %v2898, %v2897
  %v2976 = vpack.c.b16 %v2900, %v2899
  %v2977 = vpack.c.b16 %v2902, %v2901
  %v2978 = vpack.c.b16 %v2904, %v2903
  %v2979 = vpack.c.b16 %v2906, %v2905
  %v2980 = vpack.c.b16 %v2908, %v2907
  %v2981 = vpack.c.b16 %v2910, %v2909
  %v2982 = vpack.c.b16 %v2912, %v2911
  %v2983 = vpack.c.b16 %v2914, %v2913
  %v2984 = vpack.c.b16 %v2916, %v2915
  %v2985 = vpack.c.b16 %v2918, %v2917
  %v2986 = vpack.c.b16 %v2920, %v2919
  %v2987 = vpack.c.b16 %v2922, %v2921
  %v2988 = vpack.c.b16 %v2924, %v2923
  %v2989 = vunpack.c.l.b16 %v2925
  %v2990 = vunpack.c.h.b16 %v2925
  %v2991 = vunpack.c.l.b16 %v2926
  %v2992 = vunpack.c.h.b16 %v2926
  %v2993 = vunpack.c.l.b16 %v2927
  %v2994 = vunpack.c.h.b16 %v2927
  %v2995 = vunpack.c.l.b16 %v2928
  %v2996 = vunpack.c.h.b16 %v2928
  %v2997 = vunpack.c.l.b16 %v2929
  %v2998 = vunpack.c.h.b16 %v2929
  %v2999 = vunpack.c.l.b16 %v2930
  %v3000 = vunpack.c.h.b16 %v2930
  %v3001 = vunpack.c.l.b16 %v2931
  %v3002 = vunpack.c.h.b16 %v2931
  %v3003 = vunpack.c.l.b16 %v2932
  %v3004 = vunpack.c.h.b16 %v2932
  %v3005 = vunpack.c.l.b16 %v2933
  %v3006 = vunpack.c.h.b16 %v2933
  %v3007 = vunpack.c.l.b16 %v2934
  %v3008 = vunpack.c.h.b16 %v2934
  %v3009 = vunpack.c.l.b16 %v2935
  %v3010 = vunpack.c.h.b16 %v2935
  %v3011 = vunpack.c.l.b16 %v2936
  %v3012 = vunpack.c.h.b16 %v2936
  %v3013 = vunpack.c.l.b16 %v2937
  %v3014 = vunpack.c.h.b16 %v2937
  %v3015 = vunpack.c.l.b16 %v2938
  %v3016 = vunpack.c.h.b16 %v2938
  %v3017 = vunpack.c.l.b16 %v2939
  %v3018 = vunpack.c.h.b16 %v2939
  %v3019 = vunpack.c.l.b16 %v2940
  %v3020 = vunpack.c.h.b16 %v2940
  %v3021 = vunpack.c.l.b16 %v2941
  %v3022 = vunpack.c.h.b16 %v2941
  %v3023 = vunpack.c.l.b16 %v2942
  %v3024 = vunpack.c.h.b16 %v2942
  %v3025 = vunpack.c.l.b16 %v2943
  %v3026 = vunpack.c.h.b16 %v2943
  %v3027 = vunpack.c.l.b16 %v2944
  %v3028 = vunpack.c.h.b16 %v2944
  %v3029 = vunpack.c.l.b16 %v2945
  %v3030 = vunpack.c.h.b16 %v2945
  %v3031 = vunpack.c.l.b16 %v2946
  %v3032 = vunpack.c.h.b16 %v2946
  %v3033 = vunpack.c.l.b16 %v2947
  %v3034 = vunpack.c.h.b16 %v2947
  %v3035 = vunpack.c.l.b16 %v2948
  %v3036 = vunpack.c.h.b16 %v2948
  %v3037 = vunpack.c.l.b16 %v2949
  %v3038 = vunpack.c.h.b16 %v2949
  %v3039 = vunpack.c.l.b16 %v2950
  %v3040 = vunpack.c.h.b16 %v2950
  %v3041 = vunpack.c.l.b16 %v2951
  %v3042 = vunpack.c.h.b16 %v2951
  %v3043 = vunpack.c.l.b16 %v2952
  %v3044 = vunpack.c.h.b16 %v2952
  %v3045 = vunpack.c.l.b16 %v2953
  %v3046 = vunpack.c.h.b16 %v2953
  %v3047 = vunpack.c.l.b16 %v2954
  %v3048 = vunpack.c.h.b16 %v2954
  %v3049 = vunpack.c.l.b16 %v2955
  %v3050 = vunpack.c.h.b16 %v2955
  %v3051 = vunpack.c.l.b16 %v2956
  %v3052 = vunpack.c.h.b16 %v2956
  %v3053 = vunpack.c.l.b16 %v2957
  %v3054 = vunpack.c.h.b16 %v2957
  %v3055 = vunpack.c.l.b16 %v2958
  %v3056 = vunpack.c.h.b16 %v2958
  %v3057 = vunpack.c.l.b16 %v2959
  %v3058 = vunpack.c.h.b16 %v2959
  %v3059 = vunpack.c.l.b16 %v2960
  %v3060 = vunpack.c.h.b16 %v2960
  %v3061 = vunpack.c.l.b16 %v2961
  %v3062 = vunpack.c.h.b16 %v2961
  %v3063 = vunpack.c.l.b16 %v2962
  %v3064 = vunpack.c.h.b16 %v2962
  %v3065 = vunpack.c.l.b16 %v2963
  %v3066 = vunpack.c.h.b16 %v2963
  %v3067 = vunpack.c.l.b16 %v2964
  %v3068 = vunpack.c.h.b16 %v2964
  %v3069 = vunpack.c.l.b16 %v2965
  %v3070 = vunpack.c.h.b16 %v2965
  %v3071 = vunpack.c.l.b16 %v2966
  %v3072 = vunpack.c.h.b16 %v2966
  %v3073 = vunpack.c.l.b16 %v2967
  %v3074 = vunpack.c.h.b16 %v2967
  %v3075 = vunpack.c.l.b16 %v2968
  %v3076 = vunpack.c.h.b16 %v2968
  %v3077 = vunpack.c.l.b16 %v2969
  %v3078 = vunpack.c.h.b16 %v2969
  %v3079 = vunpack.c.l.b16 %v2970
  %v3080 = vunpack.c.h.b16 %v2970
  %v3081 = vunpack.c.l.b16 %v2971
  %v3082 = vunpack.c.h.b16 %v2971
  %v3083 = vunpack.c.l.b16 %v2972
  %v3084 = vunpack.c.h.b16 %v2972
  %v3085 = vunpack.c.l.b16 %v2973
  %v3086 = vunpack.c.h.b16 %v2973
  %v3087 = vunpack.c.l.b16 %v2974
  %v3088 = vunpack.c.h.b16 %v2974
  %v3089 = vunpack.c.l.b16 %v2975
  %v3090 = vunpack.c.h.b16 %v2975
  %v3091 = vunpack.c.l.b16 %v2976
  %v3092 = vunpack.c.h.b16 %v2976
  %v3093 = vunpack.c.l.b16 %v2977
  %v3094 = vunpack.c.h.b16 %v2977
  %v3095 = vunpack.c.l.b16 %v2978
  %v3096 = vunpack.c.h.b16 %v2978
  %v3097 = vunpack.c.l.b16 %v2979
  %v3098 = vunpack.c.h.b16 %v2979
  %v3099 = vunpack.c.l.b16 %v2980
  %v3100 = vunpack.c.h.b16 %v2980
  %v3101 = vunpack.c.l.b16 %v2981
  %v3102 = vunpack.c.h.b16 %v2981
  %v3103 = vunpack.c.l.b16 %v2982
  %v3104 = vunpack.c.h.b16 %v2982
  %v3105 = vunpack.c.l.b16 %v2983
  %v3106 = vunpack.c.h.b16 %v2983
  %v3107 = vunpack.c.l.b16 %v2984
  %v3108 = vunpack.c.h.b16 %v2984
  %v3109 = vunpack.c.l.b16 %v2985
  %v3110 = vunpack.c.h.b16 %v2985
  %v3111 = vunpack.c.l.b16 %v2986
  %v3112 = vunpack.c.h.b16 %v2986
  %v3113 = vunpack.c.l.b16 %v2987
  %v3114 = vunpack.c.h.b16 %v2987
  %v3115 = vunpack.c.l.b16 %v2988
  %v3116 = vunpack.c.h.b16 %v2988
  %vm3117 = vcmask 1041409
  %v3118 = vsel %vm3117, %v2997, %v2989
  %vm3119 = vcmask 1042434
  %v3120 = vsel %vm3119, %v3005, %v3118
  %vm3121 = vcmask 1043459
  %v3122 = vsel %vm3121, %v3013, %v3120
  %vm3123 = vcmask 1044484
  %v3124 = vsel %vm3123, %v3021, %v3122
  %vm3125 = vcmask 1045509
  %v3126 = vsel %vm3125, %v3029, %v3124
  %vm3127 = vcmask 1046534
  %v3128 = vsel %vm3127, %v3037, %v3126
  %vm3129 = vcmask 1047559
  %v3130 = vsel %vm3129, %v3045, %v3128
  %v3131 = vsel %vm3117, %v2998, %v2990
  %v3132 = vsel %vm3119, %v3006, %v3131
  %v3133 = vsel %vm3121, %v3014, %v3132
  %v3134 = vsel %vm3123, %v3022, %v3133
  %v3135 = vsel %vm3125, %v3030, %v3134
  %v3136 = vsel %vm3127, %v3038, %v3135
  %v3137 = vsel %vm3129, %v3046, %v3136
  %v3138 = vsel %vm3117, %v2999, %v2991
  %v3139 = vsel %vm3119, %v3007, %v3138
  %v3140 = vsel %vm3121, %v3015, %v3139
  %v3141 = vsel %vm3123, %v3023, %v3140
  %v3142 = vsel %vm3125, %v3031, %v3141
  %v3143 = vsel %vm3127, %v3039, %v3142
  %v3144 = vsel %vm3129, %v3047, %v3143
  %v3145 = vsel %vm3117, %v3000, %v2992
  %v3146 = vsel %vm3119, %v3008, %v3145
  %v3147 = vsel %vm3121, %v3016, %v3146
  %v3148 = vsel %vm3123, %v3024, %v3147
  %v3149 = vsel %vm3125, %v3032, %v3148
  %v3150 = vsel %vm3127, %v3040, %v3149
  %v3151 = vsel %vm3129, %v3048, %v3150
  %v3152 = vsel %vm3117, %v3001, %v2993
  %v3153 = vsel %vm3119, %v3009, %v3152
  %v3154 = vsel %vm3121, %v3017, %v3153
  %v3155 = vsel %vm3123, %v3025, %v3154
  %v3156 = vsel %vm3125, %v3033, %v3155
  %v3157 = vsel %vm3127, %v3041, %v3156
  %v3158 = vsel %vm3129, %v3049, %v3157
  %v3159 = vsel %vm3117, %v3002, %v2994
  %v3160 = vsel %vm3119, %v3010, %v3159
  %v3161 = vsel %vm3121, %v3018, %v3160
  %v3162 = vsel %vm3123, %v3026, %v3161
  %v3163 = vsel %vm3125, %v3034, %v3162
  %v3164 = vsel %vm3127, %v3042, %v3163
  %v3165 = vsel %vm3129, %v3050, %v3164
  %v3166 = vsel %vm3117, %v3003, %v2995
  %v3167 = vsel %vm3119, %v3011, %v3166
  %v3168 = vsel %vm3121, %v3019, %v3167
  %v3169 = vsel %vm3123, %v3027, %v3168
  %v3170 = vsel %vm3125, %v3035, %v3169
  %v3171 = vsel %vm3127, %v3043, %v3170
  %v3172 = vsel %vm3129, %v3051, %v3171
  %v3173 = vsel %vm3117, %v3004, %v2996
  %v3174 = vsel %vm3119, %v3012, %v3173
  %v3175 = vsel %vm3121, %v3020, %v3174
  %v3176 = vsel %vm3123, %v3028, %v3175
  %v3177 = vsel %vm3125, %v3036, %v3176
  %v3178 = vsel %vm3127, %v3044, %v3177
  %v3179 = vsel %vm3129, %v3052, %v3178
  %v3180 = vsel %vm3117, %v3061, %v3053
  %v3181 = vsel %vm3119, %v3069, %v3180
  %v3182 = vsel %vm3121, %v3077, %v3181
  %v3183 = vsel %vm3123, %v3085, %v3182
  %v3184 = vsel %vm3125, %v3093, %v3183
  %v3185 = vsel %vm3127, %v3101, %v3184
  %v3186 = vsel %vm3129, %v3109, %v3185
  %v3187 = vsel %vm3117, %v3062, %v3054
  %v3188 = vsel %vm3119, %v3070, %v3187
  %v3189 = vsel %vm3121, %v3078, %v3188
  %v3190 = vsel %vm3123, %v3086, %v3189
  %v3191 = vsel %vm3125, %v3094, %v3190
  %v3192 = vsel %vm3127, %v3102, %v3191
  %v3193 = vsel %vm3129, %v3110, %v3192
  %v3194 = vsel %vm3117, %v3063, %v3055
  %v3195 = vsel %vm3119, %v3071, %v3194
  %v3196 = vsel %vm3121, %v3079, %v3195
  %v3197 = vsel %vm3123, %v3087, %v3196
  %v3198 = vsel %vm3125, %v3095, %v3197
  %v3199 = vsel %vm3127, %v3103, %v3198
  %v3200 = vsel %vm3129, %v3111, %v3199
  %v3201 = vsel %vm3117, %v3064, %v3056
  %v3202 = vsel %vm3119, %v3072, %v3201
  %v3203 = vsel %vm3121, %v3080, %v3202
  %v3204 = vsel %vm3123, %v3088, %v3203
  %v3205 = vsel %vm3125, %v3096, %v3204
  %v3206 = vsel %vm3127, %v3104, %v3205
  %v3207 = vsel %vm3129, %v3112, %v3206
  %v3208 = vsel %vm3117, %v3065, %v3057
  %v3209 = vsel %vm3119, %v3073, %v3208
  %v3210 = vsel %vm3121, %v3081, %v3209
  %v3211 = vsel %vm3123, %v3089, %v3210
  %v3212 = vsel %vm3125, %v3097, %v3211
  %v3213 = vsel %vm3127, %v3105, %v3212
  %v3214 = vsel %vm3129, %v3113, %v3213
  %v3215 = vsel %vm3117, %v3066, %v3058
  %v3216 = vsel %vm3119, %v3074, %v3215
  %v3217 = vsel %vm3121, %v3082, %v3216
  %v3218 = vsel %vm3123, %v3090, %v3217
  %v3219 = vsel %vm3125, %v3098, %v3218
  %v3220 = vsel %vm3127, %v3106, %v3219
  %v3221 = vsel %vm3129, %v3114, %v3220
  %v3222 = vsel %vm3117, %v3067, %v3059
  %v3223 = vsel %vm3119, %v3075, %v3222
  %v3224 = vsel %vm3121, %v3083, %v3223
  %v3225 = vsel %vm3123, %v3091, %v3224
  %v3226 = vsel %vm3125, %v3099, %v3225
  %v3227 = vsel %vm3127, %v3107, %v3226
  %v3228 = vsel %vm3129, %v3115, %v3227
  %v3229 = vsel %vm3117, %v3068, %v3060
  %v3230 = vsel %vm3119, %v3076, %v3229
  %v3231 = vsel %vm3121, %v3084, %v3230
  %v3232 = vsel %vm3123, %v3092, %v3231
  %v3233 = vsel %vm3125, %v3100, %v3232
  %v3234 = vsel %vm3127, %v3108, %v3233
  %v3235 = vsel %vm3129, %v3116, %v3234
  %v3236 = vpack.c.b16 %v3137, %v3130
  %v3237 = vpack.c.b16 %v3151, %v3144
  %v3238 = vpack.c.b16 %v3165, %v3158
  %v3239 = vpack.c.b16 %v3179, %v3172
  %v3240 = vpack.c.b16 %v3193, %v3186
  %v3241 = vpack.c.b16 %v3207, %v3200
  %v3242 = vpack.c.b16 %v3221, %v3214
  %v3243 = vpack.c.b16 %v3235, %v3228
  %3252 = vst [vmem:[%s4] sm:$0xff] %v3236
  %3253 = vst [vmem:[%s4 + $0x8] sm:$0xff] %v3237
  %3254 = vst [vmem:[%s4 + $0x10] sm:$0xff] %v3238
  %3255 = vst [vmem:[%s4 + $0x18] sm:$0xff] %v3239
  %3256 = vst [vmem:[%s4 + $0x20] sm:$0xff] %v3240
  %3257 = vst [vmem:[%s4 + $0x28] sm:$0xff] %v3241
  %3258 = vst [vmem:[%s4 + $0x30] sm:$0xff] %v3242
  %3259 = vst [vmem:[%s4 + $0x38] sm:$0xff] %v3243
  // Predicated region
  $region18: #{stn3d_forward.5} parent=0 // pred_check
    _
  $region19: #{stn3d_forward.5} parent=0 // pred_check_branch
    %3261 = sbr.rel (0) target = $region21
  $region20: #{stn3d_forward.5} parent=0 // pred_region
    _
  $region21: #{stn3d_forward.5} parent=0 // pred_fallthru
    _
  // Predicated region
  $region22: #{stn3d_forward.5} parent=0 // pred_check
    _
  $region23: #{stn3d_forward.5} parent=0 // pred_check_branch
    %3263 = sbr.rel (0) target = $region25
  $region24: #{stn3d_forward.5} parent=0 // pred_region
    _
  $region25: #{stn3d_forward.5} parent=0 // pred_fallthru
    _
  // Predicated region
  $region26: #{stn3d_forward.5} parent=0 // pred_check
    _
  $region27: #{stn3d_forward.5} parent=0 // pred_check_branch
    %3265 = sbr.rel (0) target = $region29
  $region28: #{stn3d_forward.5} parent=0 // pred_region
    _
  $region29: #{stn3d_forward.5} parent=0 // pred_fallthru
    _
  // Predicated region
  $region30: #{stn3d_forward.5} parent=0 // pred_check
    _
  $region31: #{stn3d_forward.5} parent=0 // pred_check_branch
    %3267 = sbr.rel (0) target = $region33
  $region32: #{stn3d_forward.5} parent=0 // pred_region
    _
  $region33: #{stn3d_forward.5} parent=0 // pred_fallthru
    _
  // Predicated region
  $region34: #{stn3d_forward.5} parent=0 // pred_check
    _
  $region35: #{stn3d_forward.5} parent=0 // pred_check_branch
    %3269 = sbr.rel (0) target = $region37
  $region36: #{stn3d_forward.5} parent=0 // pred_region
    _
  $region37: #{stn3d_forward.5} parent=0 // pred_fallthru
    _
  // Predicated region
  $region38: #{stn3d_forward.5} parent=0 // pred_check
    _
  $region39: #{stn3d_forward.5} parent=0 // pred_check_branch
    %3271 = sbr.rel (0) target = $region41
  $region40: #{stn3d_forward.5} parent=0 // pred_region
    _
  $region41: #{stn3d_forward.5} parent=0 // pred_fallthru
    _

// kernel: stn3d_forward.6
$region0: #{stn3d_forward.6}
  #allocation0 [shape = 'u32[]', space=smem, size = 0x4, offset = 0x4, fixed_abs, tag = 'smem constant byte address 0x4 - core index']
  #allocation1 [shape = 'u32[144,128]{1,0:T(1,128)}', space=vmem, size = 0x12000, scoped, tag = 'internal scratch']
  %s0 = inlined_call_operand.vmem [shape: bf16[16,1024], index: 0, kind: input, shape index: {}]
  %s1 = inlined_call_operand.vmem [shape: bf16[1024,512], index: 1, kind: input, shape index: {}]
  %s2 = inlined_call_operand.vmem [shape: bf16[16,512], index: 2, kind: output, shape index: {0}]
  %s3 = inlined_call_operand.vmem [shape: f32[1,1,512], index: 3, kind: output, shape index: {1}]
  %s4 = inlined_call_operand.vmem [shape: f32[1,1,512], index: 4, kind: output, shape index: {2}]
  %5 = xla_tuple %s2, %s3, %s4
  %s6 = sld [smem:[#allocation0]]
  $region34: #{stn3d_forward.6} parent=0
    _
  %s8 = ssub.s32 1, %s6
  %s9 = scalar_select 0, %s8, %s6
  // Predicated region
  $region2: #{stn3d_forward.6} parent=0 // pred_check
    _
  $region3: #{stn3d_forward.6} parent=0 // pred_check_branch
    %11 = sbr.rel (0) target = $region5
  $region4: #{stn3d_forward.6} parent=0 // pred_region
    _
  $region5: #{stn3d_forward.6} parent=0 // pred_fallthru
    _
  // Predicated region
  $region6: #{stn3d_forward.6} parent=0 // pred_check
    _
  $region7: #{stn3d_forward.6} parent=0 // pred_check_branch
    %13 = sbr.rel (0) target = $region9
  $region8: #{stn3d_forward.6} parent=0 // pred_region
    _
  $region9: #{stn3d_forward.6} parent=0 // pred_fallthru
    _
  %v14 = vld [vmem:[%s0] sm:$0xff]
  %v15 = vld [vmem:[%s0 + $0x8] sm:$0xff]
  %v16 = vld [vmem:[%s0 + $0x10] sm:$0xff]
  %v17 = vld [vmem:[%s0 + $0x18] sm:$0xff]
  %v18 = vld [vmem:[%s0 + $0x20] sm:$0xff]
  %v19 = vld [vmem:[%s0 + $0x28] sm:$0xff]
  %v20 = vld [vmem:[%s0 + $0x30] sm:$0xff]
  %v21 = vld [vmem:[%s0 + $0x38] sm:$0xff]
  %v22 = vld [vmem:[%s1] sm:$0xff]
  %v23 = vld [vmem:[%s1 + $0x8] sm:$0xff]
  %v24 = vld [vmem:[%s1 + $0x10] sm:$0xff]
  %v25 = vld [vmem:[%s1 + $0x18] sm:$0xff]
  %v26 = vld [vmem:[%s1 + $0x20] sm:$0xff]
  %v27 = vld [vmem:[%s1 + $0x28] sm:$0xff]
  %v28 = vld [vmem:[%s1 + $0x30] sm:$0xff]
  %v29 = vld [vmem:[%s1 + $0x38] sm:$0xff]
  %v30 = vld [vmem:[%s1 + $0x40] sm:$0xff]
  %v31 = vld [vmem:[%s1 + $0x48] sm:$0xff]
  %v32 = vld [vmem:[%s1 + $0x50] sm:$0xff]
  %v33 = vld [vmem:[%s1 + $0x58] sm:$0xff]
  %v34 = vld [vmem:[%s1 + $0x60] sm:$0xff]
  %v35 = vld [vmem:[%s1 + $0x68] sm:$0xff]
  %v36 = vld [vmem:[%s1 + $0x70] sm:$0xff]
  %v37 = vld [vmem:[%s1 + $0x78] sm:$0xff]
  %v38 = vld [vmem:[%s1 + $0x80] sm:$0xff]
  %v39 = vld [vmem:[%s1 + $0x88] sm:$0xff]
  %v40 = vld [vmem:[%s1 + $0x90] sm:$0xff]
  %v41 = vld [vmem:[%s1 + $0x98] sm:$0xff]
  %v42 = vld [vmem:[%s1 + $0xa0] sm:$0xff]
  %v43 = vld [vmem:[%s1 + $0xa8] sm:$0xff]
  %v44 = vld [vmem:[%s1 + $0xb0] sm:$0xff]
  %v45 = vld [vmem:[%s1 + $0xb8] sm:$0xff]
  %v46 = vld [vmem:[%s1 + $0xc0] sm:$0xff]
  %v47 = vld [vmem:[%s1 + $0xc8] sm:$0xff]
  %v48 = vld [vmem:[%s1 + $0xd0] sm:$0xff]
  %v49 = vld [vmem:[%s1 + $0xd8] sm:$0xff]
  %v50 = vld [vmem:[%s1 + $0xe0] sm:$0xff]
  %v51 = vld [vmem:[%s1 + $0xe8] sm:$0xff]
  %v52 = vld [vmem:[%s1 + $0xf0] sm:$0xff]
  %v53 = vld [vmem:[%s1 + $0xf8] sm:$0xff]
  %v54 = vld [vmem:[%s1 + $0x100] sm:$0xff]
  %v55 = vld [vmem:[%s1 + $0x108] sm:$0xff]
  %v56 = vld [vmem:[%s1 + $0x110] sm:$0xff]
  %v57 = vld [vmem:[%s1 + $0x118] sm:$0xff]
  %v58 = vld [vmem:[%s1 + $0x120] sm:$0xff]
  %v59 = vld [vmem:[%s1 + $0x128] sm:$0xff]
  %v60 = vld [vmem:[%s1 + $0x130] sm:$0xff]
  %v61 = vld [vmem:[%s1 + $0x138] sm:$0xff]
  %v62 = vld [vmem:[%s1 + $0x140] sm:$0xff]
  %v63 = vld [vmem:[%s1 + $0x148] sm:$0xff]
  %v64 = vld [vmem:[%s1 + $0x150] sm:$0xff]
  %v65 = vld [vmem:[%s1 + $0x158] sm:$0xff]
  %v66 = vld [vmem:[%s1 + $0x160] sm:$0xff]
  %v67 = vld [vmem:[%s1 + $0x168] sm:$0xff]
  %v68 = vld [vmem:[%s1 + $0x170] sm:$0xff]
  %v69 = vld [vmem:[%s1 + $0x178] sm:$0xff]
  %v70 = vld [vmem:[%s1 + $0x180] sm:$0xff]
  %v71 = vld [vmem:[%s1 + $0x188] sm:$0xff]
  %v72 = vld [vmem:[%s1 + $0x190] sm:$0xff]
  %v73 = vld [vmem:[%s1 + $0x198] sm:$0xff]
  %v74 = vld [vmem:[%s1 + $0x1a0] sm:$0xff]
  %v75 = vld [vmem:[%s1 + $0x1a8] sm:$0xff]
  %v76 = vld [vmem:[%s1 + $0x1b0] sm:$0xff]
  %v77 = vld [vmem:[%s1 + $0x1b8] sm:$0xff]
  %v78 = vld [vmem:[%s1 + $0x1c0] sm:$0xff]
  %v79 = vld [vmem:[%s1 + $0x1c8] sm:$0xff]
  %v80 = vld [vmem:[%s1 + $0x1d0] sm:$0xff]
  %v81 = vld [vmem:[%s1 + $0x1d8] sm:$0xff]
  %v82 = vld [vmem:[%s1 + $0x1e0] sm:$0xff]
  %v83 = vld [vmem:[%s1 + $0x1e8] sm:$0xff]
  %v84 = vld [vmem:[%s1 + $0x1f0] sm:$0xff]
  %v85 = vld [vmem:[%s1 + $0x1f8] sm:$0xff]
  %v86 = vld [vmem:[%s1 + $0x200] sm:$0xff]
  %v87 = vld [vmem:[%s1 + $0x208] sm:$0xff]
  %v88 = vld [vmem:[%s1 + $0x210] sm:$0xff]
  %v89 = vld [vmem:[%s1 + $0x218] sm:$0xff]
  %v90 = vld [vmem:[%s1 + $0x220] sm:$0xff]
  %v91 = vld [vmem:[%s1 + $0x228] sm:$0xff]
  %v92 = vld [vmem:[%s1 + $0x230] sm:$0xff]
  %v93 = vld [vmem:[%s1 + $0x238] sm:$0xff]
  %v94 = vld [vmem:[%s1 + $0x240] sm:$0xff]
  %v95 = vld [vmem:[%s1 + $0x248] sm:$0xff]
  %v96 = vld [vmem:[%s1 + $0x250] sm:$0xff]
  %v97 = vld [vmem:[%s1 + $0x258] sm:$0xff]
  %v98 = vld [vmem:[%s1 + $0x260] sm:$0xff]
  %v99 = vld [vmem:[%s1 + $0x268] sm:$0xff]
  %v100 = vld [vmem:[%s1 + $0x270] sm:$0xff]
  %v101 = vld [vmem:[%s1 + $0x278] sm:$0xff]
  %v102 = vld [vmem:[%s1 + $0x280] sm:$0xff]
  %v103 = vld [vmem:[%s1 + $0x288] sm:$0xff]
  %v104 = vld [vmem:[%s1 + $0x290] sm:$0xff]
  %v105 = vld [vmem:[%s1 + $0x298] sm:$0xff]
  %v106 = vld [vmem:[%s1 + $0x2a0] sm:$0xff]
  %v107 = vld [vmem:[%s1 + $0x2a8] sm:$0xff]
  %v108 = vld [vmem:[%s1 + $0x2b0] sm:$0xff]
  %v109 = vld [vmem:[%s1 + $0x2b8] sm:$0xff]
  %v110 = vld [vmem:[%s1 + $0x2c0] sm:$0xff]
  %v111 = vld [vmem:[%s1 + $0x2c8] sm:$0xff]
  %v112 = vld [vmem:[%s1 + $0x2d0] sm:$0xff]
  %v113 = vld [vmem:[%s1 + $0x2d8] sm:$0xff]
  %v114 = vld [vmem:[%s1 + $0x2e0] sm:$0xff]
  %v115 = vld [vmem:[%s1 + $0x2e8] sm:$0xff]
  %v116 = vld [vmem:[%s1 + $0x2f0] sm:$0xff]
  %v117 = vld [vmem:[%s1 + $0x2f8] sm:$0xff]
  %v118 = vld [vmem:[%s1 + $0x300] sm:$0xff]
  %v119 = vld [vmem:[%s1 + $0x308] sm:$0xff]
  %v120 = vld [vmem:[%s1 + $0x310] sm:$0xff]
  %v121 = vld [vmem:[%s1 + $0x318] sm:$0xff]
  %v122 = vld [vmem:[%s1 + $0x320] sm:$0xff]
  %v123 = vld [vmem:[%s1 + $0x328] sm:$0xff]
  %v124 = vld [vmem:[%s1 + $0x330] sm:$0xff]
  %v125 = vld [vmem:[%s1 + $0x338] sm:$0xff]
  %v126 = vld [vmem:[%s1 + $0x340] sm:$0xff]
  %v127 = vld [vmem:[%s1 + $0x348] sm:$0xff]
  %v128 = vld [vmem:[%s1 + $0x350] sm:$0xff]
  %v129 = vld [vmem:[%s1 + $0x358] sm:$0xff]
  %v130 = vld [vmem:[%s1 + $0x360] sm:$0xff]
  %v131 = vld [vmem:[%s1 + $0x368] sm:$0xff]
  %v132 = vld [vmem:[%s1 + $0x370] sm:$0xff]
  %v133 = vld [vmem:[%s1 + $0x378] sm:$0xff]
  %v134 = vld [vmem:[%s1 + $0x380] sm:$0xff]
  %v135 = vld [vmem:[%s1 + $0x388] sm:$0xff]
  %v136 = vld [vmem:[%s1 + $0x390] sm:$0xff]
  %v137 = vld [vmem:[%s1 + $0x398] sm:$0xff]
  %v138 = vld [vmem:[%s1 + $0x3a0] sm:$0xff]
  %v139 = vld [vmem:[%s1 + $0x3a8] sm:$0xff]
  %v140 = vld [vmem:[%s1 + $0x3b0] sm:$0xff]
  %v141 = vld [vmem:[%s1 + $0x3b8] sm:$0xff]
  %v142 = vld [vmem:[%s1 + $0x3c0] sm:$0xff]
  %v143 = vld [vmem:[%s1 + $0x3c8] sm:$0xff]
  %v144 = vld [vmem:[%s1 + $0x3d0] sm:$0xff]
  %v145 = vld [vmem:[%s1 + $0x3d8] sm:$0xff]
  %v146 = vld [vmem:[%s1 + $0x3e0] sm:$0xff]
  %v147 = vld [vmem:[%s1 + $0x3e8] sm:$0xff]
  %v148 = vld [vmem:[%s1 + $0x3f0] sm:$0xff]
  %v149 = vld [vmem:[%s1 + $0x3f8] sm:$0xff]
  %v150 = vld [vmem:[%s1 + $0x400] sm:$0xff]
  %v151 = vld [vmem:[%s1 + $0x408] sm:$0xff]
  %v152 = vld [vmem:[%s1 + $0x410] sm:$0xff]
  %v153 = vld [vmem:[%s1 + $0x418] sm:$0xff]
  %v154 = vld [vmem:[%s1 + $0x420] sm:$0xff]
  %v155 = vld [vmem:[%s1 + $0x428] sm:$0xff]
  %v156 = vld [vmem:[%s1 + $0x430] sm:$0xff]
  %v157 = vld [vmem:[%s1 + $0x438] sm:$0xff]
  %v158 = vld [vmem:[%s1 + $0x440] sm:$0xff]
  %v159 = vld [vmem:[%s1 + $0x448] sm:$0xff]
  %v160 = vld [vmem:[%s1 + $0x450] sm:$0xff]
  %v161 = vld [vmem:[%s1 + $0x458] sm:$0xff]
  %v162 = vld [vmem:[%s1 + $0x460] sm:$0xff]
  %v163 = vld [vmem:[%s1 + $0x468] sm:$0xff]
  %v164 = vld [vmem:[%s1 + $0x470] sm:$0xff]
  %v165 = vld [vmem:[%s1 + $0x478] sm:$0xff]
  %v166 = vld [vmem:[%s1 + $0x480] sm:$0xff]
  %v167 = vld [vmem:[%s1 + $0x488] sm:$0xff]
  %v168 = vld [vmem:[%s1 + $0x490] sm:$0xff]
  %v169 = vld [vmem:[%s1 + $0x498] sm:$0xff]
  %v170 = vld [vmem:[%s1 + $0x4a0] sm:$0xff]
  %v171 = vld [vmem:[%s1 + $0x4a8] sm:$0xff]
  %v172 = vld [vmem:[%s1 + $0x4b0] sm:$0xff]
  %v173 = vld [vmem:[%s1 + $0x4b8] sm:$0xff]
  %v174 = vld [vmem:[%s1 + $0x4c0] sm:$0xff]
  %v175 = vld [vmem:[%s1 + $0x4c8] sm:$0xff]
  %v176 = vld [vmem:[%s1 + $0x4d0] sm:$0xff]
  %v177 = vld [vmem:[%s1 + $0x4d8] sm:$0xff]
  %v178 = vld [vmem:[%s1 + $0x4e0] sm:$0xff]
  %v179 = vld [vmem:[%s1 + $0x4e8] sm:$0xff]
  %v180 = vld [vmem:[%s1 + $0x4f0] sm:$0xff]
  %v181 = vld [vmem:[%s1 + $0x4f8] sm:$0xff]
  %v182 = vld [vmem:[%s1 + $0x500] sm:$0xff]
  %v183 = vld [vmem:[%s1 + $0x508] sm:$0xff]
  %v184 = vld [vmem:[%s1 + $0x510] sm:$0xff]
  %v185 = vld [vmem:[%s1 + $0x518] sm:$0xff]
  %v186 = vld [vmem:[%s1 + $0x520] sm:$0xff]
  %v187 = vld [vmem:[%s1 + $0x528] sm:$0xff]
  %v188 = vld [vmem:[%s1 + $0x530] sm:$0xff]
  %v189 = vld [vmem:[%s1 + $0x538] sm:$0xff]
  %v190 = vld [vmem:[%s1 + $0x540] sm:$0xff]
  %v191 = vld [vmem:[%s1 + $0x548] sm:$0xff]
  %v192 = vld [vmem:[%s1 + $0x550] sm:$0xff]
  %v193 = vld [vmem:[%s1 + $0x558] sm:$0xff]
  %v194 = vld [vmem:[%s1 + $0x560] sm:$0xff]
  %v195 = vld [vmem:[%s1 + $0x568] sm:$0xff]
  %v196 = vld [vmem:[%s1 + $0x570] sm:$0xff]
  %v197 = vld [vmem:[%s1 + $0x578] sm:$0xff]
  %v198 = vld [vmem:[%s1 + $0x580] sm:$0xff]
  %v199 = vld [vmem:[%s1 + $0x588] sm:$0xff]
  %v200 = vld [vmem:[%s1 + $0x590] sm:$0xff]
  %v201 = vld [vmem:[%s1 + $0x598] sm:$0xff]
  %v202 = vld [vmem:[%s1 + $0x5a0] sm:$0xff]
  %v203 = vld [vmem:[%s1 + $0x5a8] sm:$0xff]
  %v204 = vld [vmem:[%s1 + $0x5b0] sm:$0xff]
  %v205 = vld [vmem:[%s1 + $0x5b8] sm:$0xff]
  %v206 = vld [vmem:[%s1 + $0x5c0] sm:$0xff]
  %v207 = vld [vmem:[%s1 + $0x5c8] sm:$0xff]
  %v208 = vld [vmem:[%s1 + $0x5d0] sm:$0xff]
  %v209 = vld [vmem:[%s1 + $0x5d8] sm:$0xff]
  %v210 = vld [vmem:[%s1 + $0x5e0] sm:$0xff]
  %v211 = vld [vmem:[%s1 + $0x5e8] sm:$0xff]
  %v212 = vld [vmem:[%s1 + $0x5f0] sm:$0xff]
  %v213 = vld [vmem:[%s1 + $0x5f8] sm:$0xff]
  %v214 = vld [vmem:[%s1 + $0x600] sm:$0xff]
  %v215 = vld [vmem:[%s1 + $0x608] sm:$0xff]
  %v216 = vld [vmem:[%s1 + $0x610] sm:$0xff]
  %v217 = vld [vmem:[%s1 + $0x618] sm:$0xff]
  %v218 = vld [vmem:[%s1 + $0x620] sm:$0xff]
  %v219 = vld [vmem:[%s1 + $0x628] sm:$0xff]
  %v220 = vld [vmem:[%s1 + $0x630] sm:$0xff]
  %v221 = vld [vmem:[%s1 + $0x638] sm:$0xff]
  %v222 = vld [vmem:[%s1 + $0x640] sm:$0xff]
  %v223 = vld [vmem:[%s1 + $0x648] sm:$0xff]
  %v224 = vld [vmem:[%s1 + $0x650] sm:$0xff]
  %v225 = vld [vmem:[%s1 + $0x658] sm:$0xff]
  %v226 = vld [vmem:[%s1 + $0x660] sm:$0xff]
  %v227 = vld [vmem:[%s1 + $0x668] sm:$0xff]
  %v228 = vld [vmem:[%s1 + $0x670] sm:$0xff]
  %v229 = vld [vmem:[%s1 + $0x678] sm:$0xff]
  %v230 = vld [vmem:[%s1 + $0x680] sm:$0xff]
  %v231 = vld [vmem:[%s1 + $0x688] sm:$0xff]
  %v232 = vld [vmem:[%s1 + $0x690] sm:$0xff]
  %v233 = vld [vmem:[%s1 + $0x698] sm:$0xff]
  %v234 = vld [vmem:[%s1 + $0x6a0] sm:$0xff]
  %v235 = vld [vmem:[%s1 + $0x6a8] sm:$0xff]
  %v236 = vld [vmem:[%s1 + $0x6b0] sm:$0xff]
  %v237 = vld [vmem:[%s1 + $0x6b8] sm:$0xff]
  %v238 = vld [vmem:[%s1 + $0x6c0] sm:$0xff]
  %v239 = vld [vmem:[%s1 + $0x6c8] sm:$0xff]
  %v240 = vld [vmem:[%s1 + $0x6d0] sm:$0xff]
  %v241 = vld [vmem:[%s1 + $0x6d8] sm:$0xff]
  %v242 = vld [vmem:[%s1 + $0x6e0] sm:$0xff]
  %v243 = vld [vmem:[%s1 + $0x6e8] sm:$0xff]
  %v244 = vld [vmem:[%s1 + $0x6f0] sm:$0xff]
  %v245 = vld [vmem:[%s1 + $0x6f8] sm:$0xff]
  %v246 = vld [vmem:[%s1 + $0x700] sm:$0xff]
  %v247 = vld [vmem:[%s1 + $0x708] sm:$0xff]
  %v248 = vld [vmem:[%s1 + $0x710] sm:$0xff]
  %v249 = vld [vmem:[%s1 + $0x718] sm:$0xff]
  %v250 = vld [vmem:[%s1 + $0x720] sm:$0xff]
  %v251 = vld [vmem:[%s1 + $0x728] sm:$0xff]
  %v252 = vld [vmem:[%s1 + $0x730] sm:$0xff]
  %v253 = vld [vmem:[%s1 + $0x738] sm:$0xff]
  %v254 = vld [vmem:[%s1 + $0x740] sm:$0xff]
  %v255 = vld [vmem:[%s1 + $0x748] sm:$0xff]
  %v256 = vld [vmem:[%s1 + $0x750] sm:$0xff]
  %v257 = vld [vmem:[%s1 + $0x758] sm:$0xff]
  %v258 = vld [vmem:[%s1 + $0x760] sm:$0xff]
  %v259 = vld [vmem:[%s1 + $0x768] sm:$0xff]
  %v260 = vld [vmem:[%s1 + $0x770] sm:$0xff]
  %v261 = vld [vmem:[%s1 + $0x778] sm:$0xff]
  %v262 = vld [vmem:[%s1 + $0x780] sm:$0xff]
  %v263 = vld [vmem:[%s1 + $0x788] sm:$0xff]
  %v264 = vld [vmem:[%s1 + $0x790] sm:$0xff]
  %v265 = vld [vmem:[%s1 + $0x798] sm:$0xff]
  %v266 = vld [vmem:[%s1 + $0x7a0] sm:$0xff]
  %v267 = vld [vmem:[%s1 + $0x7a8] sm:$0xff]
  %v268 = vld [vmem:[%s1 + $0x7b0] sm:$0xff]
  %v269 = vld [vmem:[%s1 + $0x7b8] sm:$0xff]
  %v270 = vld [vmem:[%s1 + $0x7c0] sm:$0xff]
  %v271 = vld [vmem:[%s1 + $0x7c8] sm:$0xff]
  %v272 = vld [vmem:[%s1 + $0x7d0] sm:$0xff]
  %v273 = vld [vmem:[%s1 + $0x7d8] sm:$0xff]
  %v274 = vld [vmem:[%s1 + $0x7e0] sm:$0xff]
  %v275 = vld [vmem:[%s1 + $0x7e8] sm:$0xff]
  %v276 = vld [vmem:[%s1 + $0x7f0] sm:$0xff]
  %v277 = vld [vmem:[%s1 + $0x7f8] sm:$0xff]
  %v286 = vunpack.c.l.b16 %v14
  %v287 = vunpack.c.h.b16 %v14
  %v288 = vunpack.c.l.b16 %v15
  %v289 = vunpack.c.h.b16 %v15
  %v290 = vunpack.c.l.b16 %v16
  %v291 = vunpack.c.h.b16 %v16
  %v292 = vunpack.c.l.b16 %v17
  %v293 = vunpack.c.h.b16 %v17
  %v294 = vunpack.c.l.b16 %v18
  %v295 = vunpack.c.h.b16 %v18
  %v296 = vunpack.c.l.b16 %v19
  %v297 = vunpack.c.h.b16 %v19
  %v298 = vunpack.c.l.b16 %v20
  %v299 = vunpack.c.h.b16 %v20
  %v300 = vunpack.c.l.b16 %v21
  %v301 = vunpack.c.h.b16 %v21
  %v302 = vpack.c.b16 %v294, %v286
  %v303 = vpack.c.b16 %v295, %v287
  %v304 = vpack.c.b16 %v296, %v288
  %v305 = vpack.c.b16 %v297, %v289
  %v306 = vpack.c.b16 %v298, %v290
  %v307 = vpack.c.b16 %v299, %v291
  %v308 = vpack.c.b16 %v300, %v292
  %v309 = vpack.c.b16 %v301, %v293
  %v574 = vunpack.c.l.b16 %v22
  %v575 = vunpack.c.h.b16 %v22
  %v576 = vunpack.c.l.b16 %v23
  %v577 = vunpack.c.h.b16 %v23
  %v578 = vunpack.c.l.b16 %v24
  %v579 = vunpack.c.h.b16 %v24
  %v580 = vunpack.c.l.b16 %v25
  %v581 = vunpack.c.h.b16 %v25
  %v582 = vunpack.c.l.b16 %v26
  %v583 = vunpack.c.h.b16 %v26
  %v584 = vunpack.c.l.b16 %v27
  %v585 = vunpack.c.h.b16 %v27
  %v586 = vunpack.c.l.b16 %v28
  %v587 = vunpack.c.h.b16 %v28
  %v588 = vunpack.c.l.b16 %v29
  %v589 = vunpack.c.h.b16 %v29
  %v590 = vunpack.c.l.b16 %v30
  %v591 = vunpack.c.h.b16 %v30
  %v592 = vunpack.c.l.b16 %v31
  %v593 = vunpack.c.h.b16 %v31
  %v594 = vunpack.c.l.b16 %v32
  %v595 = vunpack.c.h.b16 %v32
  %v596 = vunpack.c.l.b16 %v33
  %v597 = vunpack.c.h.b16 %v33
  %v598 = vunpack.c.l.b16 %v34
  %v599 = vunpack.c.h.b16 %v34
  %v600 = vunpack.c.l.b16 %v35
  %v601 = vunpack.c.h.b16 %v35
  %v602 = vunpack.c.l.b16 %v36
  %v603 = vunpack.c.h.b16 %v36
  %v604 = vunpack.c.l.b16 %v37
  %v605 = vunpack.c.h.b16 %v37
  %v606 = vunpack.c.l.b16 %v38
  %v607 = vunpack.c.h.b16 %v38
  %v608 = vunpack.c.l.b16 %v39
  %v609 = vunpack.c.h.b16 %v39
  %v610 = vunpack.c.l.b16 %v40
  %v611 = vunpack.c.h.b16 %v40
  %v612 = vunpack.c.l.b16 %v41
  %v613 = vunpack.c.h.b16 %v41
  %v614 = vunpack.c.l.b16 %v42
  %v615 = vunpack.c.h.b16 %v42
  %v616 = vunpack.c.l.b16 %v43
  %v617 = vunpack.c.h.b16 %v43
  %v618 = vunpack.c.l.b16 %v44
  %v619 = vunpack.c.h.b16 %v44
  %v620 = vunpack.c.l.b16 %v45
  %v621 = vunpack.c.h.b16 %v45
  %v622 = vunpack.c.l.b16 %v46
  %v623 = vunpack.c.h.b16 %v46
  %v624 = vunpack.c.l.b16 %v47
  %v625 = vunpack.c.h.b16 %v47
  %v626 = vunpack.c.l.b16 %v48
  %v627 = vunpack.c.h.b16 %v48
  %v628 = vunpack.c.l.b16 %v49
  %v629 = vunpack.c.h.b16 %v49
  %v630 = vunpack.c.l.b16 %v50
  %v631 = vunpack.c.h.b16 %v50
  %v632 = vunpack.c.l.b16 %v51
  %v633 = vunpack.c.h.b16 %v51
  %v634 = vunpack.c.l.b16 %v52
  %v635 = vunpack.c.h.b16 %v52
  %v636 = vunpack.c.l.b16 %v53
  %v637 = vunpack.c.h.b16 %v53
  %v638 = vunpack.c.l.b16 %v54
  %v639 = vunpack.c.h.b16 %v54
  %v640 = vunpack.c.l.b16 %v55
  %v641 = vunpack.c.h.b16 %v55
  %v642 = vunpack.c.l.b16 %v56
  %v643 = vunpack.c.h.b16 %v56
  %v644 = vunpack.c.l.b16 %v57
  %v645 = vunpack.c.h.b16 %v57
  %v646 = vunpack.c.l.b16 %v58
  %v647 = vunpack.c.h.b16 %v58
  %v648 = vunpack.c.l.b16 %v59
  %v649 = vunpack.c.h.b16 %v59
  %v650 = vunpack.c.l.b16 %v60
  %v651 = vunpack.c.h.b16 %v60
  %v652 = vunpack.c.l.b16 %v61
  %v653 = vunpack.c.h.b16 %v61
  %v654 = vunpack.c.l.b16 %v62
  %v655 = vunpack.c.h.b16 %v62
  %v656 = vunpack.c.l.b16 %v63
  %v657 = vunpack.c.h.b16 %v63
  %v658 = vunpack.c.l.b16 %v64
  %v659 = vunpack.c.h.b16 %v64
  %v660 = vunpack.c.l.b16 %v65
  %v661 = vunpack.c.h.b16 %v65
  %v662 = vunpack.c.l.b16 %v66
  %v663 = vunpack.c.h.b16 %v66
  %v664 = vunpack.c.l.b16 %v67
  %v665 = vunpack.c.h.b16 %v67
  %v666 = vunpack.c.l.b16 %v68
  %v667 = vunpack.c.h.b16 %v68
  %v668 = vunpack.c.l.b16 %v69
  %v669 = vunpack.c.h.b16 %v69
  %v670 = vunpack.c.l.b16 %v70
  %v671 = vunpack.c.h.b16 %v70
  %v672 = vunpack.c.l.b16 %v71
  %v673 = vunpack.c.h.b16 %v71
  %v674 = vunpack.c.l.b16 %v72
  %v675 = vunpack.c.h.b16 %v72
  %v676 = vunpack.c.l.b16 %v73
  %v677 = vunpack.c.h.b16 %v73
  %v678 = vunpack.c.l.b16 %v74
  %v679 = vunpack.c.h.b16 %v74
  %v680 = vunpack.c.l.b16 %v75
  %v681 = vunpack.c.h.b16 %v75
  %v682 = vunpack.c.l.b16 %v76
  %v683 = vunpack.c.h.b16 %v76
  %v684 = vunpack.c.l.b16 %v77
  %v685 = vunpack.c.h.b16 %v77
  %v686 = vunpack.c.l.b16 %v78
  %v687 = vunpack.c.h.b16 %v78
  %v688 = vunpack.c.l.b16 %v79
  %v689 = vunpack.c.h.b16 %v79
  %v690 = vunpack.c.l.b16 %v80
  %v691 = vunpack.c.h.b16 %v80
  %v692 = vunpack.c.l.b16 %v81
  %v693 = vunpack.c.h.b16 %v81
  %v694 = vunpack.c.l.b16 %v82
  %v695 = vunpack.c.h.b16 %v82
  %v696 = vunpack.c.l.b16 %v83
  %v697 = vunpack.c.h.b16 %v83
  %v698 = vunpack.c.l.b16 %v84
  %v699 = vunpack.c.h.b16 %v84
  %v700 = vunpack.c.l.b16 %v85
  %v701 = vunpack.c.h.b16 %v85
  %v702 = vunpack.c.l.b16 %v86
  %v703 = vunpack.c.h.b16 %v86
  %v704 = vunpack.c.l.b16 %v87
  %v705 = vunpack.c.h.b16 %v87
  %v706 = vunpack.c.l.b16 %v88
  %v707 = vunpack.c.h.b16 %v88
  %v708 = vunpack.c.l.b16 %v89
  %v709 = vunpack.c.h.b16 %v89
  %v710 = vunpack.c.l.b16 %v90
  %v711 = vunpack.c.h.b16 %v90
  %v712 = vunpack.c.l.b16 %v91
  %v713 = vunpack.c.h.b16 %v91
  %v714 = vunpack.c.l.b16 %v92
  %v715 = vunpack.c.h.b16 %v92
  %v716 = vunpack.c.l.b16 %v93
  %v717 = vunpack.c.h.b16 %v93
  %v718 = vunpack.c.l.b16 %v94
  %v719 = vunpack.c.h.b16 %v94
  %v720 = vunpack.c.l.b16 %v95
  %v721 = vunpack.c.h.b16 %v95
  %v722 = vunpack.c.l.b16 %v96
  %v723 = vunpack.c.h.b16 %v96
  %v724 = vunpack.c.l.b16 %v97
  %v725 = vunpack.c.h.b16 %v97
  %v726 = vunpack.c.l.b16 %v98
  %v727 = vunpack.c.h.b16 %v98
  %v728 = vunpack.c.l.b16 %v99
  %v729 = vunpack.c.h.b16 %v99
  %v730 = vunpack.c.l.b16 %v100
  %v731 = vunpack.c.h.b16 %v100
  %v732 = vunpack.c.l.b16 %v101
  %v733 = vunpack.c.h.b16 %v101
  %v734 = vunpack.c.l.b16 %v102
  %v735 = vunpack.c.h.b16 %v102
  %v736 = vunpack.c.l.b16 %v103
  %v737 = vunpack.c.h.b16 %v103
  %v738 = vunpack.c.l.b16 %v104
  %v739 = vunpack.c.h.b16 %v104
  %v740 = vunpack.c.l.b16 %v105
  %v741 = vunpack.c.h.b16 %v105
  %v742 = vunpack.c.l.b16 %v106
  %v743 = vunpack.c.h.b16 %v106
  %v744 = vunpack.c.l.b16 %v107
  %v745 = vunpack.c.h.b16 %v107
  %v746 = vunpack.c.l.b16 %v108
  %v747 = vunpack.c.h.b16 %v108
  %v748 = vunpack.c.l.b16 %v109
  %v749 = vunpack.c.h.b16 %v109
  %v750 = vunpack.c.l.b16 %v110
  %v751 = vunpack.c.h.b16 %v110
  %v752 = vunpack.c.l.b16 %v111
  %v753 = vunpack.c.h.b16 %v111
  %v754 = vunpack.c.l.b16 %v112
  %v755 = vunpack.c.h.b16 %v112
  %v756 = vunpack.c.l.b16 %v113
  %v757 = vunpack.c.h.b16 %v113
  %v758 = vunpack.c.l.b16 %v114
  %v759 = vunpack.c.h.b16 %v114
  %v760 = vunpack.c.l.b16 %v115
  %v761 = vunpack.c.h.b16 %v115
  %v762 = vunpack.c.l.b16 %v116
  %v763 = vunpack.c.h.b16 %v116
  %v764 = vunpack.c.l.b16 %v117
  %v765 = vunpack.c.h.b16 %v117
  %v766 = vunpack.c.l.b16 %v118
  %v767 = vunpack.c.h.b16 %v118
  %v768 = vunpack.c.l.b16 %v119
  %v769 = vunpack.c.h.b16 %v119
  %v770 = vunpack.c.l.b16 %v120
  %v771 = vunpack.c.h.b16 %v120
  %v772 = vunpack.c.l.b16 %v121
  %v773 = vunpack.c.h.b16 %v121
  %v774 = vunpack.c.l.b16 %v122
  %v775 = vunpack.c.h.b16 %v122
  %v776 = vunpack.c.l.b16 %v123
  %v777 = vunpack.c.h.b16 %v123
  %v778 = vunpack.c.l.b16 %v124
  %v779 = vunpack.c.h.b16 %v124
  %v780 = vunpack.c.l.b16 %v125
  %v781 = vunpack.c.h.b16 %v125
  %v782 = vunpack.c.l.b16 %v126
  %v783 = vunpack.c.h.b16 %v126
  %v784 = vunpack.c.l.b16 %v127
  %v785 = vunpack.c.h.b16 %v127
  %v786 = vunpack.c.l.b16 %v128
  %v787 = vunpack.c.h.b16 %v128
  %v788 = vunpack.c.l.b16 %v129
  %v789 = vunpack.c.h.b16 %v129
  %v790 = vunpack.c.l.b16 %v130
  %v791 = vunpack.c.h.b16 %v130
  %v792 = vunpack.c.l.b16 %v131
  %v793 = vunpack.c.h.b16 %v131
  %v794 = vunpack.c.l.b16 %v132
  %v795 = vunpack.c.h.b16 %v132
  %v796 = vunpack.c.l.b16 %v133
  %v797 = vunpack.c.h.b16 %v133
  %v798 = vunpack.c.l.b16 %v134
  %v799 = vunpack.c.h.b16 %v134
  %v800 = vunpack.c.l.b16 %v135
  %v801 = vunpack.c.h.b16 %v135
  %v802 = vunpack.c.l.b16 %v136
  %v803 = vunpack.c.h.b16 %v136
  %v804 = vunpack.c.l.b16 %v137
  %v805 = vunpack.c.h.b16 %v137
  %v806 = vunpack.c.l.b16 %v138
  %v807 = vunpack.c.h.b16 %v138
  %v808 = vunpack.c.l.b16 %v139
  %v809 = vunpack.c.h.b16 %v139
  %v810 = vunpack.c.l.b16 %v140
  %v811 = vunpack.c.h.b16 %v140
  %v812 = vunpack.c.l.b16 %v141
  %v813 = vunpack.c.h.b16 %v141
  %v814 = vunpack.c.l.b16 %v142
  %v815 = vunpack.c.h.b16 %v142
  %v816 = vunpack.c.l.b16 %v143
  %v817 = vunpack.c.h.b16 %v143
  %v818 = vunpack.c.l.b16 %v144
  %v819 = vunpack.c.h.b16 %v144
  %v820 = vunpack.c.l.b16 %v145
  %v821 = vunpack.c.h.b16 %v145
  %v822 = vunpack.c.l.b16 %v146
  %v823 = vunpack.c.h.b16 %v146
  %v824 = vunpack.c.l.b16 %v147
  %v825 = vunpack.c.h.b16 %v147
  %v826 = vunpack.c.l.b16 %v148
  %v827 = vunpack.c.h.b16 %v148
  %v828 = vunpack.c.l.b16 %v149
  %v829 = vunpack.c.h.b16 %v149
  %v830 = vunpack.c.l.b16 %v150
  %v831 = vunpack.c.h.b16 %v150
  %v832 = vunpack.c.l.b16 %v151
  %v833 = vunpack.c.h.b16 %v151
  %v834 = vunpack.c.l.b16 %v152
  %v835 = vunpack.c.h.b16 %v152
  %v836 = vunpack.c.l.b16 %v153
  %v837 = vunpack.c.h.b16 %v153
  %v838 = vunpack.c.l.b16 %v154
  %v839 = vunpack.c.h.b16 %v154
  %v840 = vunpack.c.l.b16 %v155
  %v841 = vunpack.c.h.b16 %v155
  %v842 = vunpack.c.l.b16 %v156
  %v843 = vunpack.c.h.b16 %v156
  %v844 = vunpack.c.l.b16 %v157
  %v845 = vunpack.c.h.b16 %v157
  %v846 = vunpack.c.l.b16 %v158
  %v847 = vunpack.c.h.b16 %v158
  %v848 = vunpack.c.l.b16 %v159
  %v849 = vunpack.c.h.b16 %v159
  %v850 = vunpack.c.l.b16 %v160
  %v851 = vunpack.c.h.b16 %v160
  %v852 = vunpack.c.l.b16 %v161
  %v853 = vunpack.c.h.b16 %v161
  %v854 = vunpack.c.l.b16 %v162
  %v855 = vunpack.c.h.b16 %v162
  %v856 = vunpack.c.l.b16 %v163
  %v857 = vunpack.c.h.b16 %v163
  %v858 = vunpack.c.l.b16 %v164
  %v859 = vunpack.c.h.b16 %v164
  %v860 = vunpack.c.l.b16 %v165
  %v861 = vunpack.c.h.b16 %v165
  %v862 = vunpack.c.l.b16 %v166
  %v863 = vunpack.c.h.b16 %v166
  %v864 = vunpack.c.l.b16 %v167
  %v865 = vunpack.c.h.b16 %v167
  %v866 = vunpack.c.l.b16 %v168
  %v867 = vunpack.c.h.b16 %v168
  %v868 = vunpack.c.l.b16 %v169
  %v869 = vunpack.c.h.b16 %v169
  %v870 = vunpack.c.l.b16 %v170
  %v871 = vunpack.c.h.b16 %v170
  %v872 = vunpack.c.l.b16 %v171
  %v873 = vunpack.c.h.b16 %v171
  %v874 = vunpack.c.l.b16 %v172
  %v875 = vunpack.c.h.b16 %v172
  %v876 = vunpack.c.l.b16 %v173
  %v877 = vunpack.c.h.b16 %v173
  %v878 = vunpack.c.l.b16 %v174
  %v879 = vunpack.c.h.b16 %v174
  %v880 = vunpack.c.l.b16 %v175
  %v881 = vunpack.c.h.b16 %v175
  %v882 = vunpack.c.l.b16 %v176
  %v883 = vunpack.c.h.b16 %v176
  %v884 = vunpack.c.l.b16 %v177
  %v885 = vunpack.c.h.b16 %v177
  %v886 = vunpack.c.l.b16 %v178
  %v887 = vunpack.c.h.b16 %v178
  %v888 = vunpack.c.l.b16 %v179
  %v889 = vunpack.c.h.b16 %v179
  %v890 = vunpack.c.l.b16 %v180
  %v891 = vunpack.c.h.b16 %v180
  %v892 = vunpack.c.l.b16 %v181
  %v893 = vunpack.c.h.b16 %v181
  %v894 = vunpack.c.l.b16 %v182
  %v895 = vunpack.c.h.b16 %v182
  %v896 = vunpack.c.l.b16 %v183
  %v897 = vunpack.c.h.b16 %v183
  %v898 = vunpack.c.l.b16 %v184
  %v899 = vunpack.c.h.b16 %v184
  %v900 = vunpack.c.l.b16 %v185
  %v901 = vunpack.c.h.b16 %v185
  %v902 = vunpack.c.l.b16 %v186
  %v903 = vunpack.c.h.b16 %v186
  %v904 = vunpack.c.l.b16 %v187
  %v905 = vunpack.c.h.b16 %v187
  %v906 = vunpack.c.l.b16 %v188
  %v907 = vunpack.c.h.b16 %v188
  %v908 = vunpack.c.l.b16 %v189
  %v909 = vunpack.c.h.b16 %v189
  %v910 = vunpack.c.l.b16 %v190
  %v911 = vunpack.c.h.b16 %v190
  %v912 = vunpack.c.l.b16 %v191
  %v913 = vunpack.c.h.b16 %v191
  %v914 = vunpack.c.l.b16 %v192
  %v915 = vunpack.c.h.b16 %v192
  %v916 = vunpack.c.l.b16 %v193
  %v917 = vunpack.c.h.b16 %v193
  %v918 = vunpack.c.l.b16 %v194
  %v919 = vunpack.c.h.b16 %v194
  %v920 = vunpack.c.l.b16 %v195
  %v921 = vunpack.c.h.b16 %v195
  %v922 = vunpack.c.l.b16 %v196
  %v923 = vunpack.c.h.b16 %v196
  %v924 = vunpack.c.l.b16 %v197
  %v925 = vunpack.c.h.b16 %v197
  %v926 = vunpack.c.l.b16 %v198
  %v927 = vunpack.c.h.b16 %v198
  %v928 = vunpack.c.l.b16 %v199
  %v929 = vunpack.c.h.b16 %v199
  %v930 = vunpack.c.l.b16 %v200
  %v931 = vunpack.c.h.b16 %v200
  %v932 = vunpack.c.l.b16 %v201
  %v933 = vunpack.c.h.b16 %v201
  %v934 = vunpack.c.l.b16 %v202
  %v935 = vunpack.c.h.b16 %v202
  %v936 = vunpack.c.l.b16 %v203
  %v937 = vunpack.c.h.b16 %v203
  %v938 = vunpack.c.l.b16 %v204
  %v939 = vunpack.c.h.b16 %v204
  %v940 = vunpack.c.l.b16 %v205
  %v941 = vunpack.c.h.b16 %v205
  %v942 = vunpack.c.l.b16 %v206
  %v943 = vunpack.c.h.b16 %v206
  %v944 = vunpack.c.l.b16 %v207
  %v945 = vunpack.c.h.b16 %v207
  %v946 = vunpack.c.l.b16 %v208
  %v947 = vunpack.c.h.b16 %v208
  %v948 = vunpack.c.l.b16 %v209
  %v949 = vunpack.c.h.b16 %v209
  %v950 = vunpack.c.l.b16 %v210
  %v951 = vunpack.c.h.b16 %v210
  %v952 = vunpack.c.l.b16 %v211
  %v953 = vunpack.c.h.b16 %v211
  %v954 = vunpack.c.l.b16 %v212
  %v955 = vunpack.c.h.b16 %v212
  %v956 = vunpack.c.l.b16 %v213
  %v957 = vunpack.c.h.b16 %v213
  %v958 = vunpack.c.l.b16 %v214
  %v959 = vunpack.c.h.b16 %v214
  %v960 = vunpack.c.l.b16 %v215
  %v961 = vunpack.c.h.b16 %v215
  %v962 = vunpack.c.l.b16 %v216
  %v963 = vunpack.c.h.b16 %v216
  %v964 = vunpack.c.l.b16 %v217
  %v965 = vunpack.c.h.b16 %v217
  %v966 = vunpack.c.l.b16 %v218
  %v967 = vunpack.c.h.b16 %v218
  %v968 = vunpack.c.l.b16 %v219
  %v969 = vunpack.c.h.b16 %v219
  %v970 = vunpack.c.l.b16 %v220
  %v971 = vunpack.c.h.b16 %v220
  %v972 = vunpack.c.l.b16 %v221
  %v973 = vunpack.c.h.b16 %v221
  %v974 = vunpack.c.l.b16 %v222
  %v975 = vunpack.c.h.b16 %v222
  %v976 = vunpack.c.l.b16 %v223
  %v977 = vunpack.c.h.b16 %v223
  %v978 = vunpack.c.l.b16 %v224
  %v979 = vunpack.c.h.b16 %v224
  %v980 = vunpack.c.l.b16 %v225
  %v981 = vunpack.c.h.b16 %v225
  %v982 = vunpack.c.l.b16 %v226
  %v983 = vunpack.c.h.b16 %v226
  %v984 = vunpack.c.l.b16 %v227
  %v985 = vunpack.c.h.b16 %v227
  %v986 = vunpack.c.l.b16 %v228
  %v987 = vunpack.c.h.b16 %v228
  %v988 = vunpack.c.l.b16 %v229
  %v989 = vunpack.c.h.b16 %v229
  %v990 = vunpack.c.l.b16 %v230
  %v991 = vunpack.c.h.b16 %v230
  %v992 = vunpack.c.l.b16 %v231
  %v993 = vunpack.c.h.b16 %v231
  %v994 = vunpack.c.l.b16 %v232
  %v995 = vunpack.c.h.b16 %v232
  %v996 = vunpack.c.l.b16 %v233
  %v997 = vunpack.c.h.b16 %v233
  %v998 = vunpack.c.l.b16 %v234
  %v999 = vunpack.c.h.b16 %v234
  %v1000 = vunpack.c.l.b16 %v235
  %v1001 = vunpack.c.h.b16 %v235
  %v1002 = vunpack.c.l.b16 %v236
  %v1003 = vunpack.c.h.b16 %v236
  %v1004 = vunpack.c.l.b16 %v237
  %v1005 = vunpack.c.h.b16 %v237
  %v1006 = vunpack.c.l.b16 %v238
  %v1007 = vunpack.c.h.b16 %v238
  %v1008 = vunpack.c.l.b16 %v239
  %v1009 = vunpack.c.h.b16 %v239
  %v1010 = vunpack.c.l.b16 %v240
  %v1011 = vunpack.c.h.b16 %v240
  %v1012 = vunpack.c.l.b16 %v241
  %v1013 = vunpack.c.h.b16 %v241
  %v1014 = vunpack.c.l.b16 %v242
  %v1015 = vunpack.c.h.b16 %v242
  %v1016 = vunpack.c.l.b16 %v243
  %v1017 = vunpack.c.h.b16 %v243
  %v1018 = vunpack.c.l.b16 %v244
  %v1019 = vunpack.c.h.b16 %v244
  %v1020 = vunpack.c.l.b16 %v245
  %v1021 = vunpack.c.h.b16 %v245
  %v1022 = vunpack.c.l.b16 %v246
  %v1023 = vunpack.c.h.b16 %v246
  %v1024 = vunpack.c.l.b16 %v247
  %v1025 = vunpack.c.h.b16 %v247
  %v1026 = vunpack.c.l.b16 %v248
  %v1027 = vunpack.c.h.b16 %v248
  %v1028 = vunpack.c.l.b16 %v249
  %v1029 = vunpack.c.h.b16 %v249
  %v1030 = vunpack.c.l.b16 %v250
  %v1031 = vunpack.c.h.b16 %v250
  %v1032 = vunpack.c.l.b16 %v251
  %v1033 = vunpack.c.h.b16 %v251
  %v1034 = vunpack.c.l.b16 %v252
  %v1035 = vunpack.c.h.b16 %v252
  %v1036 = vunpack.c.l.b16 %v253
  %v1037 = vunpack.c.h.b16 %v253
  %v1038 = vunpack.c.l.b16 %v254
  %v1039 = vunpack.c.h.b16 %v254
  %v1040 = vunpack.c.l.b16 %v255
  %v1041 = vunpack.c.h.b16 %v255
  %v1042 = vunpack.c.l.b16 %v256
  %v1043 = vunpack.c.h.b16 %v256
  %v1044 = vunpack.c.l.b16 %v257
  %v1045 = vunpack.c.h.b16 %v257
  %v1046 = vunpack.c.l.b16 %v258
  %v1047 = vunpack.c.h.b16 %v258
  %v1048 = vunpack.c.l.b16 %v259
  %v1049 = vunpack.c.h.b16 %v259
  %v1050 = vunpack.c.l.b16 %v260
  %v1051 = vunpack.c.h.b16 %v260
  %v1052 = vunpack.c.l.b16 %v261
  %v1053 = vunpack.c.h.b16 %v261
  %v1054 = vunpack.c.l.b16 %v262
  %v1055 = vunpack.c.h.b16 %v262
  %v1056 = vunpack.c.l.b16 %v263
  %v1057 = vunpack.c.h.b16 %v263
  %v1058 = vunpack.c.l.b16 %v264
  %v1059 = vunpack.c.h.b16 %v264
  %v1060 = vunpack.c.l.b16 %v265
  %v1061 = vunpack.c.h.b16 %v265
  %v1062 = vunpack.c.l.b16 %v266
  %v1063 = vunpack.c.h.b16 %v266
  %v1064 = vunpack.c.l.b16 %v267
  %v1065 = vunpack.c.h.b16 %v267
  %v1066 = vunpack.c.l.b16 %v268
  %v1067 = vunpack.c.h.b16 %v268
  %v1068 = vunpack.c.l.b16 %v269
  %v1069 = vunpack.c.h.b16 %v269
  %v1070 = vunpack.c.l.b16 %v270
  %v1071 = vunpack.c.h.b16 %v270
  %v1072 = vunpack.c.l.b16 %v271
  %v1073 = vunpack.c.h.b16 %v271
  %v1074 = vunpack.c.l.b16 %v272
  %v1075 = vunpack.c.h.b16 %v272
  %v1076 = vunpack.c.l.b16 %v273
  %v1077 = vunpack.c.h.b16 %v273
  %v1078 = vunpack.c.l.b16 %v274
  %v1079 = vunpack.c.h.b16 %v274
  %v1080 = vunpack.c.l.b16 %v275
  %v1081 = vunpack.c.h.b16 %v275
  %v1082 = vunpack.c.l.b16 %v276
  %v1083 = vunpack.c.h.b16 %v276
  %v1084 = vunpack.c.l.b16 %v277
  %v1085 = vunpack.c.h.b16 %v277
  %v1086 = vpack.c.b16 %v578, %v574
  %v1087 = vpack.c.b16 %v579, %v575
  %v1088 = vpack.c.b16 %v580, %v576
  %v1089 = vpack.c.b16 %v581, %v577
  %v1090 = vpack.c.b16 %v586, %v582
  %v1091 = vpack.c.b16 %v587, %v583
  %v1092 = vpack.c.b16 %v588, %v584
  %v1093 = vpack.c.b16 %v589, %v585
  %v1094 = vpack.c.b16 %v594, %v590
  %v1095 = vpack.c.b16 %v595, %v591
  %v1096 = vpack.c.b16 %v596, %v592
  %v1097 = vpack.c.b16 %v597, %v593
  %v1098 = vpack.c.b16 %v602, %v598
  %v1099 = vpack.c.b16 %v603, %v599
  %v1100 = vpack.c.b16 %v604, %v600
  %v1101 = vpack.c.b16 %v605, %v601
  %v1102 = vpack.c.b16 %v610, %v606
  %v1103 = vpack.c.b16 %v611, %v607
  %v1104 = vpack.c.b16 %v612, %v608
  %v1105 = vpack.c.b16 %v613, %v609
  %v1106 = vpack.c.b16 %v618, %v614
  %v1107 = vpack.c.b16 %v619, %v615
  %v1108 = vpack.c.b16 %v620, %v616
  %v1109 = vpack.c.b16 %v621, %v617
  %v1110 = vpack.c.b16 %v626, %v622
  %v1111 = vpack.c.b16 %v627, %v623
  %v1112 = vpack.c.b16 %v628, %v624
  %v1113 = vpack.c.b16 %v629, %v625
  %v1114 = vpack.c.b16 %v634, %v630
  %v1115 = vpack.c.b16 %v635, %v631
  %v1116 = vpack.c.b16 %v636, %v632
  %v1117 = vpack.c.b16 %v637, %v633
  %v1118 = vpack.c.b16 %v642, %v638
  %v1119 = vpack.c.b16 %v643, %v639
  %v1120 = vpack.c.b16 %v644, %v640
  %v1121 = vpack.c.b16 %v645, %v641
  %v1122 = vpack.c.b16 %v650, %v646
  %v1123 = vpack.c.b16 %v651, %v647
  %v1124 = vpack.c.b16 %v652, %v648
  %v1125 = vpack.c.b16 %v653, %v649
  %v1126 = vpack.c.b16 %v658, %v654
  %v1127 = vpack.c.b16 %v659, %v655
  %v1128 = vpack.c.b16 %v660, %v656
  %v1129 = vpack.c.b16 %v661, %v657
  %v1130 = vpack.c.b16 %v666, %v662
  %v1131 = vpack.c.b16 %v667, %v663
  %v1132 = vpack.c.b16 %v668, %v664
  %v1133 = vpack.c.b16 %v669, %v665
  %v1134 = vpack.c.b16 %v674, %v670
  %v1135 = vpack.c.b16 %v675, %v671
  %v1136 = vpack.c.b16 %v676, %v672
  %v1137 = vpack.c.b16 %v677, %v673
  %v1138 = vpack.c.b16 %v682, %v678
  %v1139 = vpack.c.b16 %v683, %v679
  %v1140 = vpack.c.b16 %v684, %v680
  %v1141 = vpack.c.b16 %v685, %v681
  %v1142 = vpack.c.b16 %v690, %v686
  %v1143 = vpack.c.b16 %v691, %v687
  %v1144 = vpack.c.b16 %v692, %v688
  %v1145 = vpack.c.b16 %v693, %v689
  %v1146 = vpack.c.b16 %v698, %v694
  %v1147 = vpack.c.b16 %v699, %v695
  %v1148 = vpack.c.b16 %v700, %v696
  %v1149 = vpack.c.b16 %v701, %v697
  %v1150 = vpack.c.b16 %v706, %v702
  %v1151 = vpack.c.b16 %v707, %v703
  %v1152 = vpack.c.b16 %v708, %v704
  %v1153 = vpack.c.b16 %v709, %v705
  %v1154 = vpack.c.b16 %v714, %v710
  %v1155 = vpack.c.b16 %v715, %v711
  %v1156 = vpack.c.b16 %v716, %v712
  %v1157 = vpack.c.b16 %v717, %v713
  %v1158 = vpack.c.b16 %v722, %v718
  %v1159 = vpack.c.b16 %v723, %v719
  %v1160 = vpack.c.b16 %v724, %v720
  %v1161 = vpack.c.b16 %v725, %v721
  %v1162 = vpack.c.b16 %v730, %v726
  %v1163 = vpack.c.b16 %v731, %v727
  %v1164 = vpack.c.b16 %v732, %v728
  %v1165 = vpack.c.b16 %v733, %v729
  %v1166 = vpack.c.b16 %v738, %v734
  %v1167 = vpack.c.b16 %v739, %v735
  %v1168 = vpack.c.b16 %v740, %v736
  %v1169 = vpack.c.b16 %v741, %v737
  %v1170 = vpack.c.b16 %v746, %v742
  %v1171 = vpack.c.b16 %v747, %v743
  %v1172 = vpack.c.b16 %v748, %v744
  %v1173 = vpack.c.b16 %v749, %v745
  %v1174 = vpack.c.b16 %v754, %v750
  %v1175 = vpack.c.b16 %v755, %v751
  %v1176 = vpack.c.b16 %v756, %v752
  %v1177 = vpack.c.b16 %v757, %v753
  %v1178 = vpack.c.b16 %v762, %v758
  %v1179 = vpack.c.b16 %v763, %v759
  %v1180 = vpack.c.b16 %v764, %v760
  %v1181 = vpack.c.b16 %v765, %v761
  %v1182 = vpack.c.b16 %v770, %v766
  %v1183 = vpack.c.b16 %v771, %v767
  %v1184 = vpack.c.b16 %v772, %v768
  %v1185 = vpack.c.b16 %v773, %v769
  %v1186 = vpack.c.b16 %v778, %v774
  %v1187 = vpack.c.b16 %v779, %v775
  %v1188 = vpack.c.b16 %v780, %v776
  %v1189 = vpack.c.b16 %v781, %v777
  %v1190 = vpack.c.b16 %v786, %v782
  %v1191 = vpack.c.b16 %v787, %v783
  %v1192 = vpack.c.b16 %v788, %v784
  %v1193 = vpack.c.b16 %v789, %v785
  %v1194 = vpack.c.b16 %v794, %v790
  %v1195 = vpack.c.b16 %v795, %v791
  %v1196 = vpack.c.b16 %v796, %v792
  %v1197 = vpack.c.b16 %v797, %v793
  %v1198 = vpack.c.b16 %v802, %v798
  %v1199 = vpack.c.b16 %v803, %v799
  %v1200 = vpack.c.b16 %v804, %v800
  %v1201 = vpack.c.b16 %v805, %v801
  %v1202 = vpack.c.b16 %v810, %v806
  %v1203 = vpack.c.b16 %v811, %v807
  %v1204 = vpack.c.b16 %v812, %v808
  %v1205 = vpack.c.b16 %v813, %v809
  %v1206 = vpack.c.b16 %v818, %v814
  %v1207 = vpack.c.b16 %v819, %v815
  %v1208 = vpack.c.b16 %v820, %v816
  %v1209 = vpack.c.b16 %v821, %v817
  %v1210 = vpack.c.b16 %v826, %v822
  %v1211 = vpack.c.b16 %v827, %v823
  %v1212 = vpack.c.b16 %v828, %v824
  %v1213 = vpack.c.b16 %v829, %v825
  %v1214 = vpack.c.b16 %v834, %v830
  %v1215 = vpack.c.b16 %v835, %v831
  %v1216 = vpack.c.b16 %v836, %v832
  %v1217 = vpack.c.b16 %v837, %v833
  %v1218 = vpack.c.b16 %v842, %v838
  %v1219 = vpack.c.b16 %v843, %v839
  %v1220 = vpack.c.b16 %v844, %v840
  %v1221 = vpack.c.b16 %v845, %v841
  %v1222 = vpack.c.b16 %v850, %v846
  %v1223 = vpack.c.b16 %v851, %v847
  %v1224 = vpack.c.b16 %v852, %v848
  %v1225 = vpack.c.b16 %v853, %v849
  %v1226 = vpack.c.b16 %v858, %v854
  %v1227 = vpack.c.b16 %v859, %v855
  %v1228 = vpack.c.b16 %v860, %v856
  %v1229 = vpack.c.b16 %v861, %v857
  %v1230 = vpack.c.b16 %v866, %v862
  %v1231 = vpack.c.b16 %v867, %v863
  %v1232 = vpack.c.b16 %v868, %v864
  %v1233 = vpack.c.b16 %v869, %v865
  %v1234 = vpack.c.b16 %v874, %v870
  %v1235 = vpack.c.b16 %v875, %v871
  %v1236 = vpack.c.b16 %v876, %v872
  %v1237 = vpack.c.b16 %v877, %v873
  %v1238 = vpack.c.b16 %v882, %v878
  %v1239 = vpack.c.b16 %v883, %v879
  %v1240 = vpack.c.b16 %v884, %v880
  %v1241 = vpack.c.b16 %v885, %v881
  %v1242 = vpack.c.b16 %v890, %v886
  %v1243 = vpack.c.b16 %v891, %v887
  %v1244 = vpack.c.b16 %v892, %v888
  %v1245 = vpack.c.b16 %v893, %v889
  %v1246 = vpack.c.b16 %v898, %v894
  %v1247 = vpack.c.b16 %v899, %v895
  %v1248 = vpack.c.b16 %v900, %v896
  %v1249 = vpack.c.b16 %v901, %v897
  %v1250 = vpack.c.b16 %v906, %v902
  %v1251 = vpack.c.b16 %v907, %v903
  %v1252 = vpack.c.b16 %v908, %v904
  %v1253 = vpack.c.b16 %v909, %v905
  %v1254 = vpack.c.b16 %v914, %v910
  %v1255 = vpack.c.b16 %v915, %v911
  %v1256 = vpack.c.b16 %v916, %v912
  %v1257 = vpack.c.b16 %v917, %v913
  %v1258 = vpack.c.b16 %v922, %v918
  %v1259 = vpack.c.b16 %v923, %v919
  %v1260 = vpack.c.b16 %v924, %v920
  %v1261 = vpack.c.b16 %v925, %v921
  %v1262 = vpack.c.b16 %v930, %v926
  %v1263 = vpack.c.b16 %v931, %v927
  %v1264 = vpack.c.b16 %v932, %v928
  %v1265 = vpack.c.b16 %v933, %v929
  %v1266 = vpack.c.b16 %v938, %v934
  %v1267 = vpack.c.b16 %v939, %v935
  %v1268 = vpack.c.b16 %v940, %v936
  %v1269 = vpack.c.b16 %v941, %v937
  %v1270 = vpack.c.b16 %v946, %v942
  %v1271 = vpack.c.b16 %v947, %v943
  %v1272 = vpack.c.b16 %v948, %v944
  %v1273 = vpack.c.b16 %v949, %v945
  %v1274 = vpack.c.b16 %v954, %v950
  %v1275 = vpack.c.b16 %v955, %v951
  %v1276 = vpack.c.b16 %v956, %v952
  %v1277 = vpack.c.b16 %v957, %v953
  %v1278 = vpack.c.b16 %v962, %v958
  %v1279 = vpack.c.b16 %v963, %v959
  %v1280 = vpack.c.b16 %v964, %v960
  %v1281 = vpack.c.b16 %v965, %v961
  %v1282 = vpack.c.b16 %v970, %v966
  %v1283 = vpack.c.b16 %v971, %v967
  %v1284 = vpack.c.b16 %v972, %v968
  %v1285 = vpack.c.b16 %v973, %v969
  %v1286 = vpack.c.b16 %v978, %v974
  %v1287 = vpack.c.b16 %v979, %v975
  %v1288 = vpack.c.b16 %v980, %v976
  %v1289 = vpack.c.b16 %v981, %v977
  %v1290 = vpack.c.b16 %v986, %v982
  %v1291 = vpack.c.b16 %v987, %v983
  %v1292 = vpack.c.b16 %v988, %v984
  %v1293 = vpack.c.b16 %v989, %v985
  %v1294 = vpack.c.b16 %v994, %v990
  %v1295 = vpack.c.b16 %v995, %v991
  %v1296 = vpack.c.b16 %v996, %v992
  %v1297 = vpack.c.b16 %v997, %v993
  %v1298 = vpack.c.b16 %v1002, %v998
  %v1299 = vpack.c.b16 %v1003, %v999
  %v1300 = vpack.c.b16 %v1004, %v1000
  %v1301 = vpack.c.b16 %v1005, %v1001
  %v1302 = vpack.c.b16 %v1010, %v1006
  %v1303 = vpack.c.b16 %v1011, %v1007
  %v1304 = vpack.c.b16 %v1012, %v1008
  %v1305 = vpack.c.b16 %v1013, %v1009
  %v1306 = vpack.c.b16 %v1018, %v1014
  %v1307 = vpack.c.b16 %v1019, %v1015
  %v1308 = vpack.c.b16 %v1020, %v1016
  %v1309 = vpack.c.b16 %v1021, %v1017
  %v1310 = vpack.c.b16 %v1026, %v1022
  %v1311 = vpack.c.b16 %v1027, %v1023
  %v1312 = vpack.c.b16 %v1028, %v1024
  %v1313 = vpack.c.b16 %v1029, %v1025
  %v1314 = vpack.c.b16 %v1034, %v1030
  %v1315 = vpack.c.b16 %v1035, %v1031
  %v1316 = vpack.c.b16 %v1036, %v1032
  %v1317 = vpack.c.b16 %v1037, %v1033
  %v1318 = vpack.c.b16 %v1042, %v1038
  %v1319 = vpack.c.b16 %v1043, %v1039
  %v1320 = vpack.c.b16 %v1044, %v1040
  %v1321 = vpack.c.b16 %v1045, %v1041
  %v1322 = vpack.c.b16 %v1050, %v1046
  %v1323 = vpack.c.b16 %v1051, %v1047
  %v1324 = vpack.c.b16 %v1052, %v1048
  %v1325 = vpack.c.b16 %v1053, %v1049
  %v1326 = vpack.c.b16 %v1058, %v1054
  %v1327 = vpack.c.b16 %v1059, %v1055
  %v1328 = vpack.c.b16 %v1060, %v1056
  %v1329 = vpack.c.b16 %v1061, %v1057
  %v1330 = vpack.c.b16 %v1066, %v1062
  %v1331 = vpack.c.b16 %v1067, %v1063
  %v1332 = vpack.c.b16 %v1068, %v1064
  %v1333 = vpack.c.b16 %v1069, %v1065
  %v1334 = vpack.c.b16 %v1074, %v1070
  %v1335 = vpack.c.b16 %v1075, %v1071
  %v1336 = vpack.c.b16 %v1076, %v1072
  %v1337 = vpack.c.b16 %v1077, %v1073
  %v1338 = vpack.c.b16 %v1082, %v1078
  %v1339 = vpack.c.b16 %v1083, %v1079
  %v1340 = vpack.c.b16 %v1084, %v1080
  %v1341 = vpack.c.b16 %v1085, %v1081
  %1598 = vmatprep.subr.bf16.mxu0 %v1087
  %1599 = vmatpush1.bf16.msra.mxu0 %v1086
  %1600 = vmatprep.subr.bf16.mxu0 %v1091
  %1601 = vmatpush1.bf16.msra.mxu0 %v1090
  %1602 = vmatprep.subr.bf16.mxu0 %v1095
  %1603 = vmatpush1.bf16.msra.mxu0 %v1094
  %1604 = vmatprep.subr.bf16.mxu0 %v1099
  %1605 = vmatpush1.bf16.msra.mxu0 %v1098
  %1606 = vmatprep.subr.bf16.mxu0 %v1103
  %1607 = vmatpush1.bf16.msra.mxu0 %v1102
  %1608 = vmatprep.subr.bf16.mxu0 %v1107
  %1609 = vmatpush1.bf16.msra.mxu0 %v1106
  %1610 = vmatprep.subr.bf16.mxu0 %v1111
  %1611 = vmatpush1.bf16.msra.mxu0 %v1110
  %1612 = vmatprep.subr.bf16.mxu0 %v1115
  %1613 = vmatpush1.bf16.msra.mxu0 %v1114
  %1614 = vmatprep.subr.bf16.mxu0 %v1119
  %1615 = vmatpush1.bf16.msra.mxu0 %v1118
  %1616 = vmatprep.subr.bf16.mxu0 %v1123
  %1617 = vmatpush1.bf16.msra.mxu0 %v1122
  %1618 = vmatprep.subr.bf16.mxu0 %v1127
  %1619 = vmatpush1.bf16.msra.mxu0 %v1126
  %1620 = vmatprep.subr.bf16.mxu0 %v1131
  %1621 = vmatpush1.bf16.msra.mxu0 %v1130
  %1622 = vmatprep.subr.bf16.mxu0 %v1135
  %1623 = vmatpush1.bf16.msra.mxu0 %v1134
  %1624 = vmatprep.subr.bf16.mxu0 %v1139
  %1625 = vmatpush1.bf16.msra.mxu0 %v1138
  %1626 = vmatprep.subr.bf16.mxu0 %v1143
  %1627 = vmatpush1.bf16.msra.mxu0 %v1142
  %1628 = vmatprep.subr.bf16.mxu0 %v1147
  %1629 = vmatpush1.bf16.msra.mxu0 %v1146
  %1630 = vmatprep.mubr.bf16.mxu0 %v303
  %1631 = vmatmul.mubr.bf16.gmra.mrb[0].mxu0 %v302
  %v1632 = vpop.f32.mrb[0].mxu0
  %v1633 = vadd.f32 0.0, %v1632
  %v1634 = vpop.f32.mrb[0].mxu0
  %v1635 = vadd.f32 0.0, %v1634
  %v1636 = vpop.f32.mrb[0].mxu0
  %v1637 = vadd.f32 0.0, %v1636
  %v1638 = vpop.f32.mrb[0].mxu0
  %v1639 = vadd.f32 0.0, %v1638
  %1640 = vdwg.mxu0
  %1641 = vmatprep.subr.bf16.mxu0 %v1151
  %1642 = vmatpush1.bf16.msra.mxu0 %v1150
  %1643 = vmatprep.subr.bf16.mxu0 %v1155
  %1644 = vmatpush1.bf16.msra.mxu0 %v1154
  %1645 = vmatprep.subr.bf16.mxu0 %v1159
  %1646 = vmatpush1.bf16.msra.mxu0 %v1158
  %1647 = vmatprep.subr.bf16.mxu0 %v1163
  %1648 = vmatpush1.bf16.msra.mxu0 %v1162
  %1649 = vmatprep.subr.bf16.mxu0 %v1167
  %1650 = vmatpush1.bf16.msra.mxu0 %v1166
  %1651 = vmatprep.subr.bf16.mxu0 %v1171
  %1652 = vmatpush1.bf16.msra.mxu0 %v1170
  %1653 = vmatprep.subr.bf16.mxu0 %v1175
  %1654 = vmatpush1.bf16.msra.mxu0 %v1174
  %1655 = vmatprep.subr.bf16.mxu0 %v1179
  %1656 = vmatpush1.bf16.msra.mxu0 %v1178
  %1657 = vmatprep.subr.bf16.mxu0 %v1183
  %1658 = vmatpush1.bf16.msra.mxu0 %v1182
  %1659 = vmatprep.subr.bf16.mxu0 %v1187
  %1660 = vmatpush1.bf16.msra.mxu0 %v1186
  %1661 = vmatprep.subr.bf16.mxu0 %v1191
  %1662 = vmatpush1.bf16.msra.mxu0 %v1190
  %1663 = vmatprep.subr.bf16.mxu0 %v1195
  %1664 = vmatpush1.bf16.msra.mxu0 %v1194
  %1665 = vmatprep.subr.bf16.mxu0 %v1199
  %1666 = vmatpush1.bf16.msra.mxu0 %v1198
  %1667 = vmatprep.subr.bf16.mxu0 %v1203
  %1668 = vmatpush1.bf16.msra.mxu0 %v1202
  %1669 = vmatprep.subr.bf16.mxu0 %v1207
  %1670 = vmatpush1.bf16.msra.mxu0 %v1206
  %1671 = vmatprep.subr.bf16.mxu0 %v1211
  %1672 = vmatpush1.bf16.msra.mxu0 %v1210
  %1673 = vmatprep.mubr.bf16.mxu0 %v305
  %1674 = vmatmul.mubr.bf16.gmra.mrb[0].mxu0 %v304
  %v1675 = vpop.f32.mrb[0].mxu0
  %v1676 = vadd.f32 %v1633, %v1675
  %v1677 = vpop.f32.mrb[0].mxu0
  %v1678 = vadd.f32 %v1635, %v1677
  %v1679 = vpop.f32.mrb[0].mxu0
  %v1680 = vadd.f32 %v1637, %v1679
  %v1681 = vpop.f32.mrb[0].mxu0
  %v1682 = vadd.f32 %v1639, %v1681
  %1683 = vdwg.mxu0
  %1684 = vmatprep.subr.bf16.mxu0 %v1215
  %1685 = vmatpush1.bf16.msra.mxu0 %v1214
  %1686 = vmatprep.subr.bf16.mxu0 %v1219
  %1687 = vmatpush1.bf16.msra.mxu0 %v1218
  %1688 = vmatprep.subr.bf16.mxu0 %v1223
  %1689 = vmatpush1.bf16.msra.mxu0 %v1222
  %1690 = vmatprep.subr.bf16.mxu0 %v1227
  %1691 = vmatpush1.bf16.msra.mxu0 %v1226
  %1692 = vmatprep.subr.bf16.mxu0 %v1231
  %1693 = vmatpush1.bf16.msra.mxu0 %v1230
  %1694 = vmatprep.subr.bf16.mxu0 %v1235
  %1695 = vmatpush1.bf16.msra.mxu0 %v1234
  %1696 = vmatprep.subr.bf16.mxu0 %v1239
  %1697 = vmatpush1.bf16.msra.mxu0 %v1238
  %1698 = vmatprep.subr.bf16.mxu0 %v1243
  %1699 = vmatpush1.bf16.msra.mxu0 %v1242
  %1700 = vmatprep.subr.bf16.mxu0 %v1247
  %1701 = vmatpush1.bf16.msra.mxu0 %v1246
  %1702 = vmatprep.subr.bf16.mxu0 %v1251
  %1703 = vmatpush1.bf16.msra.mxu0 %v1250
  %1704 = vmatprep.subr.bf16.mxu0 %v1255
  %1705 = vmatpush1.bf16.msra.mxu0 %v1254
  %1706 = vmatprep.subr.bf16.mxu0 %v1259
  %1707 = vmatpush1.bf16.msra.mxu0 %v1258
  %1708 = vmatprep.subr.bf16.mxu0 %v1263
  %1709 = vmatpush1.bf16.msra.mxu0 %v1262
  %1710 = vmatprep.subr.bf16.mxu0 %v1267
  %1711 = vmatpush1.bf16.msra.mxu0 %v1266
  %1712 = vmatprep.subr.bf16.mxu0 %v1271
  %1713 = vmatpush1.bf16.msra.mxu0 %v1270
  %1714 = vmatprep.subr.bf16.mxu0 %v1275
  %1715 = vmatpush1.bf16.msra.mxu0 %v1274
  %1716 = vmatprep.mubr.bf16.mxu0 %v307
  %1717 = vmatmul.mubr.bf16.gmra.mrb[0].mxu0 %v306
  %v1718 = vpop.f32.mrb[0].mxu0
  %v1719 = vadd.f32 %v1676, %v1718
  %v1720 = vpop.f32.mrb[0].mxu0
  %v1721 = vadd.f32 %v1678, %v1720
  %v1722 = vpop.f32.mrb[0].mxu0
  %v1723 = vadd.f32 %v1680, %v1722
  %v1724 = vpop.f32.mrb[0].mxu0
  %v1725 = vadd.f32 %v1682, %v1724
  %1726 = vdwg.mxu0
  %1727 = vmatprep.subr.bf16.mxu0 %v1279
  %1728 = vmatpush1.bf16.msra.mxu0 %v1278
  %1729 = vmatprep.subr.bf16.mxu0 %v1283
  %1730 = vmatpush1.bf16.msra.mxu0 %v1282
  %1731 = vmatprep.subr.bf16.mxu0 %v1287
  %1732 = vmatpush1.bf16.msra.mxu0 %v1286
  %1733 = vmatprep.subr.bf16.mxu0 %v1291
  %1734 = vmatpush1.bf16.msra.mxu0 %v1290
  %1735 = vmatprep.subr.bf16.mxu0 %v1295
  %1736 = vmatpush1.bf16.msra.mxu0 %v1294
  %1737 = vmatprep.subr.bf16.mxu0 %v1299
  %1738 = vmatpush1.bf16.msra.mxu0 %v1298
  %1739 = vmatprep.subr.bf16.mxu0 %v1303
  %1740 = vmatpush1.bf16.msra.mxu0 %v1302
  %1741 = vmatprep.subr.bf16.mxu0 %v1307
  %1742 = vmatpush1.bf16.msra.mxu0 %v1306
  %1743 = vmatprep.subr.bf16.mxu0 %v1311
  %1744 = vmatpush1.bf16.msra.mxu0 %v1310
  %1745 = vmatprep.subr.bf16.mxu0 %v1315
  %1746 = vmatpush1.bf16.msra.mxu0 %v1314
  %1747 = vmatprep.subr.bf16.mxu0 %v1319
  %1748 = vmatpush1.bf16.msra.mxu0 %v1318
  %1749 = vmatprep.subr.bf16.mxu0 %v1323
  %1750 = vmatpush1.bf16.msra.mxu0 %v1322
  %1751 = vmatprep.subr.bf16.mxu0 %v1327
  %1752 = vmatpush1.bf16.msra.mxu0 %v1326
  %1753 = vmatprep.subr.bf16.mxu0 %v1331
  %1754 = vmatpush1.bf16.msra.mxu0 %v1330
  %1755 = vmatprep.subr.bf16.mxu0 %v1335
  %1756 = vmatpush1.bf16.msra.mxu0 %v1334
  %1757 = vmatprep.subr.bf16.mxu0 %v1339
  %1758 = vmatpush1.bf16.msra.mxu0 %v1338
  %1759 = vmatprep.mubr.bf16.mxu0 %v309
  %1760 = vmatmul.mubr.bf16.gmra.mrb[0].mxu0 %v308
  %v1761 = vpop.f32.mrb[0].mxu0
  %v1762 = vadd.f32 %v1719, %v1761
  %v1763 = vpop.f32.mrb[0].mxu0
  %v1764 = vadd.f32 %v1721, %v1763
  %v1765 = vpop.f32.mrb[0].mxu0
  %v1766 = vadd.f32 %v1723, %v1765
  %v1767 = vpop.f32.mrb[0].mxu0
  %v1768 = vadd.f32 %v1725, %v1767
  %1769 = vdwg.mxu0
  %1770 = vmatprep.subr.bf16.mxu0 %v1089
  %1771 = vmatpush1.bf16.msra.mxu0 %v1088
  %1772 = vmatprep.subr.bf16.mxu0 %v1093
  %1773 = vmatpush1.bf16.msra.mxu0 %v1092
  %1774 = vmatprep.subr.bf16.mxu0 %v1097
  %1775 = vmatpush1.bf16.msra.mxu0 %v1096
  %1776 = vmatprep.subr.bf16.mxu0 %v1101
  %1777 = vmatpush1.bf16.msra.mxu0 %v1100
  %1778 = vmatprep.subr.bf16.mxu0 %v1105
  %1779 = vmatpush1.bf16.msra.mxu0 %v1104
  %1780 = vmatprep.subr.bf16.mxu0 %v1109
  %1781 = vmatpush1.bf16.msra.mxu0 %v1108
  %1782 = vmatprep.subr.bf16.mxu0 %v1113
  %1783 = vmatpush1.bf16.msra.mxu0 %v1112
  %1784 = vmatprep.subr.bf16.mxu0 %v1117
  %1785 = vmatpush1.bf16.msra.mxu0 %v1116
  %1786 = vmatprep.subr.bf16.mxu0 %v1121
  %1787 = vmatpush1.bf16.msra.mxu0 %v1120
  %1788 = vmatprep.subr.bf16.mxu0 %v1125
  %1789 = vmatpush1.bf16.msra.mxu0 %v1124
  %1790 = vmatprep.subr.bf16.mxu0 %v1129
  %1791 = vmatpush1.bf16.msra.mxu0 %v1128
  %1792 = vmatprep.subr.bf16.mxu0 %v1133
  %1793 = vmatpush1.bf16.msra.mxu0 %v1132
  %1794 = vmatprep.subr.bf16.mxu0 %v1137
  %1795 = vmatpush1.bf16.msra.mxu0 %v1136
  %1796 = vmatprep.subr.bf16.mxu0 %v1141
  %1797 = vmatpush1.bf16.msra.mxu0 %v1140
  %1798 = vmatprep.subr.bf16.mxu0 %v1145
  %1799 = vmatpush1.bf16.msra.mxu0 %v1144
  %1800 = vmatprep.subr.bf16.mxu0 %v1149
  %1801 = vmatpush1.bf16.msra.mxu0 %v1148
  %1802 = vmatprep.mubr.bf16.mxu0 %v303
  %1803 = vmatmul.mubr.bf16.gmra.mrb[0].mxu0 %v302
  %v1804 = vpop.f32.mrb[0].mxu0
  %v1805 = vadd.f32 0.0, %v1804
  %v1806 = vpop.f32.mrb[0].mxu0
  %v1807 = vadd.f32 0.0, %v1806
  %v1808 = vpop.f32.mrb[0].mxu0
  %v1809 = vadd.f32 0.0, %v1808
  %v1810 = vpop.f32.mrb[0].mxu0
  %v1811 = vadd.f32 0.0, %v1810
  %1812 = vdwg.mxu0
  %1813 = vmatprep.subr.bf16.mxu0 %v1153
  %1814 = vmatpush1.bf16.msra.mxu0 %v1152
  %1815 = vmatprep.subr.bf16.mxu0 %v1157
  %1816 = vmatpush1.bf16.msra.mxu0 %v1156
  %1817 = vmatprep.subr.bf16.mxu0 %v1161
  %1818 = vmatpush1.bf16.msra.mxu0 %v1160
  %1819 = vmatprep.subr.bf16.mxu0 %v1165
  %1820 = vmatpush1.bf16.msra.mxu0 %v1164
  %1821 = vmatprep.subr.bf16.mxu0 %v1169
  %1822 = vmatpush1.bf16.msra.mxu0 %v1168
  %1823 = vmatprep.subr.bf16.mxu0 %v1173
  %1824 = vmatpush1.bf16.msra.mxu0 %v1172
  %1825 = vmatprep.subr.bf16.mxu0 %v1177
  %1826 = vmatpush1.bf16.msra.mxu0 %v1176
  %1827 = vmatprep.subr.bf16.mxu0 %v1181
  %1828 = vmatpush1.bf16.msra.mxu0 %v1180
  %1829 = vmatprep.subr.bf16.mxu0 %v1185
  %1830 = vmatpush1.bf16.msra.mxu0 %v1184
  %1831 = vmatprep.subr.bf16.mxu0 %v1189
  %1832 = vmatpush1.bf16.msra.mxu0 %v1188
  %1833 = vmatprep.subr.bf16.mxu0 %v1193
  %1834 = vmatpush1.bf16.msra.mxu0 %v1192
  %1835 = vmatprep.subr.bf16.mxu0 %v1197
  %1836 = vmatpush1.bf16.msra.mxu0 %v1196
  %1837 = vmatprep.subr.bf16.mxu0 %v1201
  %1838 = vmatpush1.bf16.msra.mxu0 %v1200
  %1839 = vmatprep.subr.bf16.mxu0 %v1205
  %1840 = vmatpush1.bf16.msra.mxu0 %v1204
  %1841 = vmatprep.subr.bf16.mxu0 %v1209
  %1842 = vmatpush1.bf16.msra.mxu0 %v1208
  %1843 = vmatprep.subr.bf16.mxu0 %v1213
  %1844 = vmatpush1.bf16.msra.mxu0 %v1212
  %1845 = vmatprep.mubr.bf16.mxu0 %v305
  %1846 = vmatmul.mubr.bf16.gmra.mrb[0].mxu0 %v304
  %v1847 = vpop.f32.mrb[0].mxu0
  %v1848 = vadd.f32 %v1805, %v1847
  %v1849 = vpop.f32.mrb[0].mxu0
  %v1850 = vadd.f32 %v1807, %v1849
  %v1851 = vpop.f32.mrb[0].mxu0
  %v1852 = vadd.f32 %v1809, %v1851
  %v1853 = vpop.f32.mrb[0].mxu0
  %v1854 = vadd.f32 %v1811, %v1853
  %1855 = vdwg.mxu0
  %1856 = vmatprep.subr.bf16.mxu0 %v1217
  %1857 = vmatpush1.bf16.msra.mxu0 %v1216
  %1858 = vmatprep.subr.bf16.mxu0 %v1221
  %1859 = vmatpush1.bf16.msra.mxu0 %v1220
  %1860 = vmatprep.subr.bf16.mxu0 %v1225
  %1861 = vmatpush1.bf16.msra.mxu0 %v1224
  %1862 = vmatprep.subr.bf16.mxu0 %v1229
  %1863 = vmatpush1.bf16.msra.mxu0 %v1228
  %1864 = vmatprep.subr.bf16.mxu0 %v1233
  %1865 = vmatpush1.bf16.msra.mxu0 %v1232
  %1866 = vmatprep.subr.bf16.mxu0 %v1237
  %1867 = vmatpush1.bf16.msra.mxu0 %v1236
  %1868 = vmatprep.subr.bf16.mxu0 %v1241
  %1869 = vmatpush1.bf16.msra.mxu0 %v1240
  %1870 = vmatprep.subr.bf16.mxu0 %v1245
  %1871 = vmatpush1.bf16.msra.mxu0 %v1244
  %1872 = vmatprep.subr.bf16.mxu0 %v1249
  %1873 = vmatpush1.bf16.msra.mxu0 %v1248
  %1874 = vmatprep.subr.bf16.mxu0 %v1253
  %1875 = vmatpush1.bf16.msra.mxu0 %v1252
  %1876 = vmatprep.subr.bf16.mxu0 %v1257
  %1877 = vmatpush1.bf16.msra.mxu0 %v1256
  %1878 = vmatprep.subr.bf16.mxu0 %v1261
  %1879 = vmatpush1.bf16.msra.mxu0 %v1260
  %1880 = vmatprep.subr.bf16.mxu0 %v1265
  %1881 = vmatpush1.bf16.msra.mxu0 %v1264
  %1882 = vmatprep.subr.bf16.mxu0 %v1269
  %1883 = vmatpush1.bf16.msra.mxu0 %v1268
  %1884 = vmatprep.subr.bf16.mxu0 %v1273
  %1885 = vmatpush1.bf16.msra.mxu0 %v1272
  %1886 = vmatprep.subr.bf16.mxu0 %v1277
  %1887 = vmatpush1.bf16.msra.mxu0 %v1276
  %1888 = vmatprep.mubr.bf16.mxu0 %v307
  %1889 = vmatmul.mubr.bf16.gmra.mrb[0].mxu0 %v306
  %v1890 = vpop.f32.mrb[0].mxu0
  %v1891 = vadd.f32 %v1848, %v1890
  %v1892 = vpop.f32.mrb[0].mxu0
  %v1893 = vadd.f32 %v1850, %v1892
  %v1894 = vpop.f32.mrb[0].mxu0
  %v1895 = vadd.f32 %v1852, %v1894
  %v1896 = vpop.f32.mrb[0].mxu0
  %v1897 = vadd.f32 %v1854, %v1896
  %1898 = vdwg.mxu0
  %1899 = vmatprep.subr.bf16.mxu0 %v1281
  %1900 = vmatpush1.bf16.msra.mxu0 %v1280
  %1901 = vmatprep.subr.bf16.mxu0 %v1285
  %1902 = vmatpush1.bf16.msra.mxu0 %v1284
  %1903 = vmatprep.subr.bf16.mxu0 %v1289
  %1904 = vmatpush1.bf16.msra.mxu0 %v1288
  %1905 = vmatprep.subr.bf16.mxu0 %v1293
  %1906 = vmatpush1.bf16.msra.mxu0 %v1292
  %1907 = vmatprep.subr.bf16.mxu0 %v1297
  %1908 = vmatpush1.bf16.msra.mxu0 %v1296
  %1909 = vmatprep.subr.bf16.mxu0 %v1301
  %1910 = vmatpush1.bf16.msra.mxu0 %v1300
  %1911 = vmatprep.subr.bf16.mxu0 %v1305
  %1912 = vmatpush1.bf16.msra.mxu0 %v1304
  %1913 = vmatprep.subr.bf16.mxu0 %v1309
  %1914 = vmatpush1.bf16.msra.mxu0 %v1308
  %1915 = vmatprep.subr.bf16.mxu0 %v1313
  %1916 = vmatpush1.bf16.msra.mxu0 %v1312
  %1917 = vmatprep.subr.bf16.mxu0 %v1317
  %1918 = vmatpush1.bf16.msra.mxu0 %v1316
  %1919 = vmatprep.subr.bf16.mxu0 %v1321
  %1920 = vmatpush1.bf16.msra.mxu0 %v1320
  %1921 = vmatprep.subr.bf16.mxu0 %v1325
  %1922 = vmatpush1.bf16.msra.mxu0 %v1324
  %1923 = vmatprep.subr.bf16.mxu0 %v1329
  %1924 = vmatpush1.bf16.msra.mxu0 %v1328
  %1925 = vmatprep.subr.bf16.mxu0 %v1333
  %1926 = vmatpush1.bf16.msra.mxu0 %v1332
  %1927 = vmatprep.subr.bf16.mxu0 %v1337
  %1928 = vmatpush1.bf16.msra.mxu0 %v1336
  %1929 = vmatprep.subr.bf16.mxu0 %v1341
  %1930 = vmatpush1.bf16.msra.mxu0 %v1340
  %1931 = vmatprep.mubr.bf16.mxu0 %v309
  %1932 = vmatmul.mubr.bf16.gmra.mrb[0].mxu0 %v308
  %v1933 = vpop.f32.mrb[0].mxu0
  %v1934 = vadd.f32 %v1891, %v1933
  %v1935 = vpop.f32.mrb[0].mxu0
  %v1936 = vadd.f32 %v1893, %v1935
  %v1937 = vpop.f32.mrb[0].mxu0
  %v1938 = vadd.f32 %v1895, %v1937
  %v1939 = vpop.f32.mrb[0].mxu0
  %v1940 = vadd.f32 %v1897, %v1939
  %1941 = vdwg.mxu0
  %v1942 = vpack.c.bf16 %v1766, %v1762
  %v1943 = vpack.c.bf16 %v1768, %v1764
  %v1944 = vpack.c.bf16 %v1938, %v1934
  %v1945 = vpack.c.bf16 %v1940, %v1936
  %v1950 = vunpack.c.l.b16 %v1942
  %v1951 = vunpack.c.l.b16 %v1943
  %v1952 = vunpack.c.l.b16 %v1944
  %v1953 = vunpack.c.l.b16 %v1945
  %v1954 = vunpack.c.h.b16 %v1942
  %v1955 = vunpack.c.h.b16 %v1943
  %v1956 = vunpack.c.h.b16 %v1944
  %v1957 = vunpack.c.h.b16 %v1945
  %v1958 = vpack.c.b16 %v1951, %v1950
  %v1959 = vpack.c.b16 %v1953, %v1952
  %v1960 = vpack.c.b16 %v1955, %v1954
  %v1961 = vpack.c.b16 %v1957, %v1956
  %1966 = vst [vmem:[%s2] sm:$0xff] %v1958
  %1967 = vst [vmem:[%s2 + $0x8] sm:$0xff] %v1959
  %1968 = vst [vmem:[%s2 + $0x10] sm:$0xff] %v1960
  %1969 = vst [vmem:[%s2 + $0x18] sm:$0xff] %v1961
  %vm1970 = vcmask 130048
  %v1972 = vsel %vm1970, 1.0, 0
  %1974 = vmatprep.subr.mxu0 %v1764
  %1975 = vmatpush1.msra.mxu0 %v1762
  %1976 = vmatprep.subr.mxu0 %v1768
  %1977 = vmatpush1.msra.mxu0 %v1766
  %1978 = vmatprep.subr.mxu0 0.0
  %1979 = vmatpush1.msra.mxu0 0.0
  %1980 = vmatprep.subr.mxu0 0.0
  %1981 = vmatpush1.msra.mxu0 0.0
  %1982 = vmatprep.subr.mxu0 0.0
  %1983 = vmatpush1.msra.mxu0 0.0
  %1984 = vmatprep.subr.mxu0 0.0
  %1985 = vmatpush1.msra.mxu0 0.0
  %1986 = vmatprep.subr.mxu0 0.0
  %1987 = vmatpush1.msra.mxu0 0.0
  %1988 = vmatprep.subr.mxu0 0.0
  %1989 = vmatpush1.msra.mxu0 0.0
  %1990 = vmatprep.subr.mxu0 0.0
  %1991 = vmatpush1.msra.mxu0 0.0
  %1992 = vmatprep.subr.mxu0 0.0
  %1993 = vmatpush1.msra.mxu0 0.0
  %1994 = vmatprep.subr.mxu0 0.0
  %1995 = vmatpush1.msra.mxu0 0.0
  %1996 = vmatprep.subr.mxu0 0.0
  %1997 = vmatpush1.msra.mxu0 0.0
  %1998 = vmatprep.subr.mxu0 0.0
  %1999 = vmatpush1.msra.mxu0 0.0
  %2000 = vmatprep.subr.mxu0 0.0
  %2001 = vmatpush1.msra.mxu0 0.0
  %2002 = vmatprep.subr.mxu0 0.0
  %2003 = vmatpush1.msra.mxu0 0.0
  %2004 = vmatprep.subr.mxu0 0.0
  %2005 = vmatpush1.msra.mxu0 0.0
  %2006 = vmatprep.subr.mxu0 0.0
  %2007 = vmatpush1.msra.mxu0 0.0
  %2008 = vmatprep.subr.mxu0 0.0
  %2009 = vmatpush1.msra.mxu0 0.0
  %2010 = vmatprep.subr.mxu0 0.0
  %2011 = vmatpush1.msra.mxu0 0.0
  %2012 = vmatprep.subr.mxu0 0.0
  %2013 = vmatpush1.msra.mxu0 0.0
  %2014 = vmatprep.subr.mxu0 0.0
  %2015 = vmatpush1.msra.mxu0 0.0
  %2016 = vmatprep.subr.mxu0 0.0
  %2017 = vmatpush1.msra.mxu0 0.0
  %2018 = vmatprep.subr.mxu0 0.0
  %2019 = vmatpush1.msra.mxu0 0.0
  %2020 = vmatprep.subr.mxu0 0.0
  %2021 = vmatpush1.msra.mxu0 0.0
  %2022 = vmatprep.subr.mxu0 0.0
  %2023 = vmatpush1.msra.mxu0 0.0
  %2024 = vmatprep.subr.mxu0 0.0
  %2025 = vmatpush1.msra.mxu0 0.0
  %2026 = vmatprep.subr.mxu0 0.0
  %2027 = vmatpush1.msra.mxu0 0.0
  %2028 = vmatprep.subr.mxu0 0.0
  %2029 = vmatpush1.msra.mxu0 0.0
  %2030 = vmatprep.subr.mxu0 0.0
  %2031 = vmatpush1.msra.mxu0 0.0
  %2032 = vmatprep.subr.mxu0 0.0
  %2033 = vmatpush1.msra.mxu0 0.0
  %2034 = vmatprep.subr.mxu0 0.0
  %2035 = vmatpush1.msra.mxu0 0.0
  %2036 = vmatprep.subr.mxu0 0.0
  %2037 = vmatpush1.msra.mxu0 0.0
  %2038 = vmatprep.mubr.f32.mxu0 0.0
  %2039 = vmatmul.mubr.f32.gmra.mrb[0].mxu0 %v1972
  %v2040 = vpop.f32.mrb[0].mxu0
  %v2041 = vadd.f32 0.0, %v2040
  %v2042 = vpop.f32.mrb[0].mxu0
  %v2043 = vadd.f32 0.0, %v2042
  %2044 = vdwg.mxu0
  %2045 = vmatprep.subr.mxu0 %v1936
  %2046 = vmatpush1.msra.mxu0 %v1934
  %2047 = vmatprep.subr.mxu0 %v1940
  %2048 = vmatpush1.msra.mxu0 %v1938
  %2049 = vmatprep.subr.mxu0 0.0
  %2050 = vmatpush1.msra.mxu0 0.0
  %2051 = vmatprep.subr.mxu0 0.0
  %2052 = vmatpush1.msra.mxu0 0.0
  %2053 = vmatprep.subr.mxu0 0.0
  %2054 = vmatpush1.msra.mxu0 0.0
  %2055 = vmatprep.subr.mxu0 0.0
  %2056 = vmatpush1.msra.mxu0 0.0
  %2057 = vmatprep.subr.mxu0 0.0
  %2058 = vmatpush1.msra.mxu0 0.0
  %2059 = vmatprep.subr.mxu0 0.0
  %2060 = vmatpush1.msra.mxu0 0.0
  %2061 = vmatprep.subr.mxu0 0.0
  %2062 = vmatpush1.msra.mxu0 0.0
  %2063 = vmatprep.subr.mxu0 0.0
  %2064 = vmatpush1.msra.mxu0 0.0
  %2065 = vmatprep.subr.mxu0 0.0
  %2066 = vmatpush1.msra.mxu0 0.0
  %2067 = vmatprep.subr.mxu0 0.0
  %2068 = vmatpush1.msra.mxu0 0.0
  %2069 = vmatprep.subr.mxu0 0.0
  %2070 = vmatpush1.msra.mxu0 0.0
  %2071 = vmatprep.subr.mxu0 0.0
  %2072 = vmatpush1.msra.mxu0 0.0
  %2073 = vmatprep.subr.mxu0 0.0
  %2074 = vmatpush1.msra.mxu0 0.0
  %2075 = vmatprep.subr.mxu0 0.0
  %2076 = vmatpush1.msra.mxu0 0.0
  %2077 = vmatprep.subr.mxu0 0.0
  %2078 = vmatpush1.msra.mxu0 0.0
  %2079 = vmatprep.subr.mxu0 0.0
  %2080 = vmatpush1.msra.mxu0 0.0
  %2081 = vmatprep.subr.mxu0 0.0
  %2082 = vmatpush1.msra.mxu0 0.0
  %2083 = vmatprep.subr.mxu0 0.0
  %2084 = vmatpush1.msra.mxu0 0.0
  %2085 = vmatprep.subr.mxu0 0.0
  %2086 = vmatpush1.msra.mxu0 0.0
  %2087 = vmatprep.subr.mxu0 0.0
  %2088 = vmatpush1.msra.mxu0 0.0
  %2089 = vmatprep.subr.mxu0 0.0
  %2090 = vmatpush1.msra.mxu0 0.0
  %2091 = vmatprep.subr.mxu0 0.0
  %2092 = vmatpush1.msra.mxu0 0.0
  %2093 = vmatprep.subr.mxu0 0.0
  %2094 = vmatpush1.msra.mxu0 0.0
  %2095 = vmatprep.subr.mxu0 0.0
  %2096 = vmatpush1.msra.mxu0 0.0
  %2097 = vmatprep.subr.mxu0 0.0
  %2098 = vmatpush1.msra.mxu0 0.0
  %2099 = vmatprep.subr.mxu0 0.0
  %2100 = vmatpush1.msra.mxu0 0.0
  %2101 = vmatprep.subr.mxu0 0.0
  %2102 = vmatpush1.msra.mxu0 0.0
  %2103 = vmatprep.subr.mxu0 0.0
  %2104 = vmatpush1.msra.mxu0 0.0
  %2105 = vmatprep.subr.mxu0 0.0
  %2106 = vmatpush1.msra.mxu0 0.0
  %2107 = vmatprep.subr.mxu0 0.0
  %2108 = vmatpush1.msra.mxu0 0.0
  %2109 = vmatprep.mubr.f32.mxu0 0.0
  %2110 = vmatmul.mubr.f32.gmra.mrb[0].mxu0 %v1972
  %v2111 = vpop.f32.mrb[0].mxu0
  %v2112 = vadd.f32 0.0, %v2111
  %v2113 = vpop.f32.mrb[0].mxu0
  %v2114 = vadd.f32 0.0, %v2113
  %2115 = vdwg.mxu0
  %v2116 = vmul.f32 %v1762, %v1762
  %v2117 = vmul.f32 %v1764, %v1764
  %v2118 = vmul.f32 %v1934, %v1934
  %v2119 = vmul.f32 %v1936, %v1936
  %v2120 = vmul.f32 %v1766, %v1766
  %v2121 = vmul.f32 %v1768, %v1768
  %v2122 = vmul.f32 %v1938, %v1938
  %v2123 = vmul.f32 %v1940, %v1940
  %2124 = vmatprep.subr.mxu0 %v2117
  %2125 = vmatpush1.msra.mxu0 %v2116
  %2126 = vmatprep.subr.mxu0 %v2121
  %2127 = vmatpush1.msra.mxu0 %v2120
  %2128 = vmatprep.subr.mxu0 0.0
  %2129 = vmatpush1.msra.mxu0 0.0
  %2130 = vmatprep.subr.mxu0 0.0
  %2131 = vmatpush1.msra.mxu0 0.0
  %2132 = vmatprep.subr.mxu0 0.0
  %2133 = vmatpush1.msra.mxu0 0.0
  %2134 = vmatprep.subr.mxu0 0.0
  %2135 = vmatpush1.msra.mxu0 0.0
  %2136 = vmatprep.subr.mxu0 0.0
  %2137 = vmatpush1.msra.mxu0 0.0
  %2138 = vmatprep.subr.mxu0 0.0
  %2139 = vmatpush1.msra.mxu0 0.0
  %2140 = vmatprep.subr.mxu0 0.0
  %2141 = vmatpush1.msra.mxu0 0.0
  %2142 = vmatprep.subr.mxu0 0.0
  %2143 = vmatpush1.msra.mxu0 0.0
  %2144 = vmatprep.subr.mxu0 0.0
  %2145 = vmatpush1.msra.mxu0 0.0
  %2146 = vmatprep.subr.mxu0 0.0
  %2147 = vmatpush1.msra.mxu0 0.0
  %2148 = vmatprep.subr.mxu0 0.0
  %2149 = vmatpush1.msra.mxu0 0.0
  %2150 = vmatprep.subr.mxu0 0.0
  %2151 = vmatpush1.msra.mxu0 0.0
  %2152 = vmatprep.subr.mxu0 0.0
  %2153 = vmatpush1.msra.mxu0 0.0
  %2154 = vmatprep.subr.mxu0 0.0
  %2155 = vmatpush1.msra.mxu0 0.0
  %2156 = vmatprep.subr.mxu0 0.0
  %2157 = vmatpush1.msra.mxu0 0.0
  %2158 = vmatprep.subr.mxu0 0.0
  %2159 = vmatpush1.msra.mxu0 0.0
  %2160 = vmatprep.subr.mxu0 0.0
  %2161 = vmatpush1.msra.mxu0 0.0
  %2162 = vmatprep.subr.mxu0 0.0
  %2163 = vmatpush1.msra.mxu0 0.0
  %2164 = vmatprep.subr.mxu0 0.0
  %2165 = vmatpush1.msra.mxu0 0.0
  %2166 = vmatprep.subr.mxu0 0.0
  %2167 = vmatpush1.msra.mxu0 0.0
  %2168 = vmatprep.subr.mxu0 0.0
  %2169 = vmatpush1.msra.mxu0 0.0
  %2170 = vmatprep.subr.mxu0 0.0
  %2171 = vmatpush1.msra.mxu0 0.0
  %2172 = vmatprep.subr.mxu0 0.0
  %2173 = vmatpush1.msra.mxu0 0.0
  %2174 = vmatprep.subr.mxu0 0.0
  %2175 = vmatpush1.msra.mxu0 0.0
  %2176 = vmatprep.subr.mxu0 0.0
  %2177 = vmatpush1.msra.mxu0 0.0
  %2178 = vmatprep.subr.mxu0 0.0
  %2179 = vmatpush1.msra.mxu0 0.0
  %2180 = vmatprep.subr.mxu0 0.0
  %2181 = vmatpush1.msra.mxu0 0.0
  %2182 = vmatprep.subr.mxu0 0.0
  %2183 = vmatpush1.msra.mxu0 0.0
  %2184 = vmatprep.subr.mxu0 0.0
  %2185 = vmatpush1.msra.mxu0 0.0
  %2186 = vmatprep.subr.mxu0 0.0
  %2187 = vmatpush1.msra.mxu0 0.0
  %2188 = vmatprep.mubr.f32.mxu0 0.0
  %2189 = vmatmul.mubr.f32.gmra.mrb[0].mxu0 %v1972
  %v2190 = vpop.f32.mrb[0].mxu0
  %v2191 = vadd.f32 0.0, %v2190
  %v2192 = vpop.f32.mrb[0].mxu0
  %v2193 = vadd.f32 0.0, %v2192
  %2194 = vdwg.mxu0
  %2195 = vmatprep.subr.mxu0 %v2119
  %2196 = vmatpush1.msra.mxu0 %v2118
  %2197 = vmatprep.subr.mxu0 %v2123
  %2198 = vmatpush1.msra.mxu0 %v2122
  %2199 = vmatprep.subr.mxu0 0.0
  %2200 = vmatpush1.msra.mxu0 0.0
  %2201 = vmatprep.subr.mxu0 0.0
  %2202 = vmatpush1.msra.mxu0 0.0
  %2203 = vmatprep.subr.mxu0 0.0
  %2204 = vmatpush1.msra.mxu0 0.0
  %2205 = vmatprep.subr.mxu0 0.0
  %2206 = vmatpush1.msra.mxu0 0.0
  %2207 = vmatprep.subr.mxu0 0.0
  %2208 = vmatpush1.msra.mxu0 0.0
  %2209 = vmatprep.subr.mxu0 0.0
  %2210 = vmatpush1.msra.mxu0 0.0
  %2211 = vmatprep.subr.mxu0 0.0
  %2212 = vmatpush1.msra.mxu0 0.0
  %2213 = vmatprep.subr.mxu0 0.0
  %2214 = vmatpush1.msra.mxu0 0.0
  %2215 = vmatprep.subr.mxu0 0.0
  %2216 = vmatpush1.msra.mxu0 0.0
  %2217 = vmatprep.subr.mxu0 0.0
  %2218 = vmatpush1.msra.mxu0 0.0
  %2219 = vmatprep.subr.mxu0 0.0
  %2220 = vmatpush1.msra.mxu0 0.0
  %2221 = vmatprep.subr.mxu0 0.0
  %2222 = vmatpush1.msra.mxu0 0.0
  %2223 = vmatprep.subr.mxu0 0.0
  %2224 = vmatpush1.msra.mxu0 0.0
  %2225 = vmatprep.subr.mxu0 0.0
  %2226 = vmatpush1.msra.mxu0 0.0
  %2227 = vmatprep.subr.mxu0 0.0
  %2228 = vmatpush1.msra.mxu0 0.0
  %2229 = vmatprep.subr.mxu0 0.0
  %2230 = vmatpush1.msra.mxu0 0.0
  %2231 = vmatprep.subr.mxu0 0.0
  %2232 = vmatpush1.msra.mxu0 0.0
  %2233 = vmatprep.subr.mxu0 0.0
  %2234 = vmatpush1.msra.mxu0 0.0
  %2235 = vmatprep.subr.mxu0 0.0
  %2236 = vmatpush1.msra.mxu0 0.0
  %2237 = vmatprep.subr.mxu0 0.0
  %2238 = vmatpush1.msra.mxu0 0.0
  %2239 = vmatprep.subr.mxu0 0.0
  %2240 = vmatpush1.msra.mxu0 0.0
  %2241 = vmatprep.subr.mxu0 0.0
  %2242 = vmatpush1.msra.mxu0 0.0
  %2243 = vmatprep.subr.mxu0 0.0
  %2244 = vmatpush1.msra.mxu0 0.0
  %2245 = vmatprep.subr.mxu0 0.0
  %2246 = vmatpush1.msra.mxu0 0.0
  %2247 = vmatprep.subr.mxu0 0.0
  %2248 = vmatpush1.msra.mxu0 0.0
  %2249 = vmatprep.subr.mxu0 0.0
  %2250 = vmatpush1.msra.mxu0 0.0
  %2251 = vmatprep.subr.mxu0 0.0
  %2252 = vmatpush1.msra.mxu0 0.0
  %2253 = vmatprep.subr.mxu0 0.0
  %2254 = vmatpush1.msra.mxu0 0.0
  %2255 = vmatprep.subr.mxu0 0.0
  %2256 = vmatpush1.msra.mxu0 0.0
  %2257 = vmatprep.subr.mxu0 0.0
  %2258 = vmatpush1.msra.mxu0 0.0
  %2259 = vmatprep.mubr.f32.mxu0 0.0
  %2260 = vmatmul.mubr.f32.gmra.mrb[0].mxu0 %v1972
  %v2261 = vpop.f32.mrb[0].mxu0
  %v2262 = vadd.f32 0.0, %v2261
  %v2263 = vpop.f32.mrb[0].mxu0
  %v2264 = vadd.f32 0.0, %v2263
  %2265 = vdwg.mxu0
  %v2270 = vcombine.low %v2041, %v2043
  %v2271 = vcombine.low %v2112, %v2114
  %v2273 = vunpack.c.l.s4 1966171168
  %v2274 = vunpack.c.0.s8 %v2273
  %v2275 = vlaneseq
  %v2276 = vshrl.u32 %v2275, 7
  %v2277 = vsub.s32 %v2274, %v2276
  %v2278 = vrot.slane %v2270, %v2277
  %v2280 = vunpack.c.l.s4 1966171168
  %v2281 = vunpack.c.0.s8 %v2280
  %v2282 = vlaneseq
  %v2283 = vshrl.u32 %v2282, 7
  %v2284 = vsub.s32 %v2281, %v2283
  %v2285 = vrot.slane %v2271, %v2284
  %v2286 = vcombine.low %v2278, %v2285
  %v2288 = vunpack.c.l.s4 1966171168
  %v2289 = vunpack.c.0.s8 %v2288
  %v2290 = vlaneseq
  %v2291 = vshrl.u32 %v2290, 7
  %v2292 = vsub.s32 %v2289, %v2291
  %v2293 = vrot.slane %v2286, %v2292
  %v2295 = vlaneseq
  %vm2296 = vcmp.ge.s32.totalorder %v2295, 0
  %vm2297 = vcmp.lt.s32.totalorder %v2295, 512
  %vm2298 = vmand %vm2296, %vm2297
  %2299 = vst.msk [vmem:[%s3] sm:$0xf] %vm2298, %v2293
  %v2304 = vcombine.low %v2191, %v2193
  %v2305 = vcombine.low %v2262, %v2264
  %v2307 = vunpack.c.l.s4 1966171168
  %v2308 = vunpack.c.0.s8 %v2307
  %v2309 = vlaneseq
  %v2310 = vshrl.u32 %v2309, 7
  %v2311 = vsub.s32 %v2308, %v2310
  %v2312 = vrot.slane %v2304, %v2311
  %v2314 = vunpack.c.l.s4 1966171168
  %v2315 = vunpack.c.0.s8 %v2314
  %v2316 = vlaneseq
  %v2317 = vshrl.u32 %v2316, 7
  %v2318 = vsub.s32 %v2315, %v2317
  %v2319 = vrot.slane %v2305, %v2318
  %v2320 = vcombine.low %v2312, %v2319
  %v2322 = vunpack.c.l.s4 1966171168
  %v2323 = vunpack.c.0.s8 %v2322
  %v2324 = vlaneseq
  %v2325 = vshrl.u32 %v2324, 7
  %v2326 = vsub.s32 %v2323, %v2325
  %v2327 = vrot.slane %v2320, %v2326
  %2329 = vst.msk [vmem:[%s4] sm:$0xf] %vm2298, %v2327
  // Predicated region
  $region10: #{stn3d_forward.6} parent=0 // pred_check
    _
  $region11: #{stn3d_forward.6} parent=0 // pred_check_branch
    %2331 = sbr.rel (0) target = $region13
  $region12: #{stn3d_forward.6} parent=0 // pred_region
    _
  $region13: #{stn3d_forward.6} parent=0 // pred_fallthru
    _
  // Predicated region
  $region14: #{stn3d_forward.6} parent=0 // pred_check
    _
  $region15: #{stn3d_forward.6} parent=0 // pred_check_branch
    %2333 = sbr.rel (0) target = $region17
  $region16: #{stn3d_forward.6} parent=0 // pred_region
    _
  $region17: #{stn3d_forward.6} parent=0 // pred_fallthru
    _
  // Predicated region
  $region18: #{stn3d_forward.6} parent=0 // pred_check
    _
  $region19: #{stn3d_forward.6} parent=0 // pred_check_branch
    %2335 = sbr.rel (0) target = $region21
  $region20: #{stn3d_forward.6} parent=0 // pred_region
    _
  $region21: #{stn3d_forward.6} parent=0 // pred_fallthru
    _
  // Predicated region
  $region22: #{stn3d_forward.6} parent=0 // pred_check
    _
  $region23: #{stn3d_forward.6} parent=0 // pred_check_branch
    %2337 = sbr.rel (0) target = $region25
  $region24: #{stn3d_forward.6} parent=0 // pred_region
    _
  $region25: #{stn3d_forward.6} parent=0 // pred_fallthru
    _
  // Predicated region
  $region26: #{stn3d_forward.6} parent=0 // pred_check
    _
  $region27: #{stn3d_forward.6} parent=0 // pred_check_branch
    %2339 = sbr.rel (0) target = $region29
  $region28: #{stn3d_forward.6} parent=0 // pred_region
    _
  $region29: #{stn3d_forward.6} parent=0 // pred_fallthru
    _
  // Predicated region
  $region30: #{stn3d_forward.6} parent=0 // pred_check
    _
  $region31: #{stn3d_forward.6} parent=0 // pred_check_branch
    %2341 = sbr.rel (0) target = $region33
  $region32: #{stn3d_forward.6} parent=0 // pred_region
    _
  $region33: #{stn3d_forward.6} parent=0 // pred_fallthru
    _

// kernel: stn3d_forward.7
$region0: #{stn3d_forward.7}
  #allocation0 [shape = 'u32[]', space=smem, size = 0x4, offset = 0x4, fixed_abs, tag = 'smem constant byte address 0x4 - core index']
  #allocation1 [shape = 'u32[144,128]{1,0:T(1,128)}', space=vmem, size = 0x12000, scoped, tag = 'internal scratch']
  %s0 = inlined_call_operand.vmem [shape: bf16[16,512], index: 0, kind: input, shape index: {}]
  %s1 = inlined_call_operand.vmem [shape: f32[1,512], index: 1, kind: input, shape index: {}]
  %s2 = inlined_call_operand.vmem [shape: f32[1,512], index: 2, kind: input, shape index: {}]
  %s3 = inlined_call_operand.vmem [shape: bf16[512,256], index: 3, kind: input, shape index: {}]
  %s4 = inlined_call_operand.vmem [shape: f32[16,256], index: 4, kind: output, shape index: {0}]
  %s5 = inlined_call_operand.vmem [shape: f32[1,1,256], index: 5, kind: output, shape index: {1}]
  %s6 = inlined_call_operand.vmem [shape: f32[1,1,256], index: 6, kind: output, shape index: {2}]
  %7 = xla_tuple %s4, %s5, %s6
  %s8 = sld [smem:[#allocation0]]
  $region42: #{stn3d_forward.7} parent=0
    _
  %s10 = ssub.s32 1, %s8
  %s11 = scalar_select 0, %s10, %s8
  // Predicated region
  $region2: #{stn3d_forward.7} parent=0 // pred_check
    _
  $region3: #{stn3d_forward.7} parent=0 // pred_check_branch
    %13 = sbr.rel (0) target = $region5
  $region4: #{stn3d_forward.7} parent=0 // pred_region
    _
  $region5: #{stn3d_forward.7} parent=0 // pred_fallthru
    _
  // Predicated region
  $region6: #{stn3d_forward.7} parent=0 // pred_check
    _
  $region7: #{stn3d_forward.7} parent=0 // pred_check_branch
    %15 = sbr.rel (0) target = $region9
  $region8: #{stn3d_forward.7} parent=0 // pred_region
    _
  $region9: #{stn3d_forward.7} parent=0 // pred_fallthru
    _
  // Predicated region
  $region10: #{stn3d_forward.7} parent=0 // pred_check
    _
  $region11: #{stn3d_forward.7} parent=0 // pred_check_branch
    %17 = sbr.rel (0) target = $region13
  $region12: #{stn3d_forward.7} parent=0 // pred_region
    _
  $region13: #{stn3d_forward.7} parent=0 // pred_fallthru
    _
  // Predicated region
  $region14: #{stn3d_forward.7} parent=0 // pred_check
    _
  $region15: #{stn3d_forward.7} parent=0 // pred_check_branch
    %19 = sbr.rel (0) target = $region17
  $region16: #{stn3d_forward.7} parent=0 // pred_region
    _
  $region17: #{stn3d_forward.7} parent=0 // pred_fallthru
    _
  %v20 = vld [vmem:[%s0] sm:$0xff]
  %v21 = vld [vmem:[%s0 + $0x8] sm:$0xff]
  %v22 = vld [vmem:[%s0 + $0x10] sm:$0xff]
  %v23 = vld [vmem:[%s0 + $0x18] sm:$0xff]
  %v24 = vunpack.c.l.bf16 %v20
  %v25 = vunpack.c.h.bf16 %v20
  %v26 = vunpack.c.l.bf16 %v21
  %v27 = vunpack.c.h.bf16 %v21
  %v28 = vunpack.c.l.bf16 %v22
  %v29 = vunpack.c.h.bf16 %v22
  %v30 = vunpack.c.l.bf16 %v23
  %v31 = vunpack.c.h.bf16 %v23
  %v32 = vld [vmem:[%s1] sm:$0xf]
  %v34 = vlaneseq
  %v35 = vshrl.u32 %v34, 7
  %v36 = vsub.s32 0, %v35
  %v37 = vrot.slane %v32, %v36
  %v38 = vlaneseq
  %v39 = vshrl.u32 %v38, 7
  %v40 = vsub.s32 1, %v39
  %v41 = vrot.slane %v32, %v40
  %v42 = vlaneseq
  %v43 = vshrl.u32 %v42, 7
  %v44 = vsub.s32 2, %v43
  %v45 = vrot.slane %v32, %v44
  %v46 = vlaneseq
  %v47 = vshrl.u32 %v46, 7
  %v48 = vsub.s32 3, %v47
  %v49 = vrot.slane %v32, %v48
  %v54 = vmul.f32 %v24, %v37
  %v55 = vmul.f32 %v25, %v41
  %v56 = vmul.f32 %v26, %v45
  %v57 = vmul.f32 %v27, %v49
  %v58 = vmul.f32 %v28, %v37
  %v59 = vmul.f32 %v29, %v41
  %v60 = vmul.f32 %v30, %v45
  %v61 = vmul.f32 %v31, %v49
  %v62 = vld [vmem:[%s2] sm:$0xf]
  %v64 = vlaneseq
  %v65 = vshrl.u32 %v64, 7
  %v66 = vsub.s32 0, %v65
  %v67 = vrot.slane %v62, %v66
  %v68 = vlaneseq
  %v69 = vshrl.u32 %v68, 7
  %v70 = vsub.s32 1, %v69
  %v71 = vrot.slane %v62, %v70
  %v72 = vlaneseq
  %v73 = vshrl.u32 %v72, 7
  %v74 = vsub.s32 2, %v73
  %v75 = vrot.slane %v62, %v74
  %v76 = vlaneseq
  %v77 = vshrl.u32 %v76, 7
  %v78 = vsub.s32 3, %v77
  %v79 = vrot.slane %v62, %v78
  %v84 = vadd.f32 %v54, %v67
  %v85 = vadd.f32 %v55, %v71
  %v86 = vadd.f32 %v56, %v75
  %v87 = vadd.f32 %v57, %v79
  %v88 = vadd.f32 %v58, %v67
  %v89 = vadd.f32 %v59, %v71
  %v90 = vadd.f32 %v60, %v75
  %v91 = vadd.f32 %v61, %v79
  %v92 = vmax.f32 %v84, 0.0
  %v93 = vmax.f32 %v85, 0.0
  %v94 = vmax.f32 %v86, 0.0
  %v95 = vmax.f32 %v87, 0.0
  %v96 = vmax.f32 %v88, 0.0
  %v97 = vmax.f32 %v89, 0.0
  %v98 = vmax.f32 %v90, 0.0
  %v99 = vmax.f32 %v91, 0.0
  %v100 = vpack.c.bf16 %v96, %v92
  %v101 = vpack.c.bf16 %v97, %v93
  %v102 = vpack.c.bf16 %v98, %v94
  %v103 = vpack.c.bf16 %v99, %v95
  %v104 = vld [vmem:[%s3] sm:$0xff]
  %v105 = vld [vmem:[%s3 + $0x8] sm:$0xff]
  %v106 = vld [vmem:[%s3 + $0x10] sm:$0xff]
  %v107 = vld [vmem:[%s3 + $0x18] sm:$0xff]
  %v108 = vld [vmem:[%s3 + $0x20] sm:$0xff]
  %v109 = vld [vmem:[%s3 + $0x28] sm:$0xff]
  %v110 = vld [vmem:[%s3 + $0x30] sm:$0xff]
  %v111 = vld [vmem:[%s3 + $0x38] sm:$0xff]
  %v112 = vld [vmem:[%s3 + $0x40] sm:$0xff]
  %v113 = vld [vmem:[%s3 + $0x48] sm:$0xff]
  %v114 = vld [vmem:[%s3 + $0x50] sm:$0xff]
  %v115 = vld [vmem:[%s3 + $0x58] sm:$0xff]
  %v116 = vld [vmem:[%s3 + $0x60] sm:$0xff]
  %v117 = vld [vmem:[%s3 + $0x68] sm:$0xff]
  %v118 = vld [vmem:[%s3 + $0x70] sm:$0xff]
  %v119 = vld [vmem:[%s3 + $0x78] sm:$0xff]
  %v120 = vld [vmem:[%s3 + $0x80] sm:$0xff]
  %v121 = vld [vmem:[%s3 + $0x88] sm:$0xff]
  %v122 = vld [vmem:[%s3 + $0x90] sm:$0xff]
  %v123 = vld [vmem:[%s3 + $0x98] sm:$0xff]
  %v124 = vld [vmem:[%s3 + $0xa0] sm:$0xff]
  %v125 = vld [vmem:[%s3 + $0xa8] sm:$0xff]
  %v126 = vld [vmem:[%s3 + $0xb0] sm:$0xff]
  %v127 = vld [vmem:[%s3 + $0xb8] sm:$0xff]
  %v128 = vld [vmem:[%s3 + $0xc0] sm:$0xff]
  %v129 = vld [vmem:[%s3 + $0xc8] sm:$0xff]
  %v130 = vld [vmem:[%s3 + $0xd0] sm:$0xff]
  %v131 = vld [vmem:[%s3 + $0xd8] sm:$0xff]
  %v132 = vld [vmem:[%s3 + $0xe0] sm:$0xff]
  %v133 = vld [vmem:[%s3 + $0xe8] sm:$0xff]
  %v134 = vld [vmem:[%s3 + $0xf0] sm:$0xff]
  %v135 = vld [vmem:[%s3 + $0xf8] sm:$0xff]
  %v136 = vld [vmem:[%s3 + $0x100] sm:$0xff]
  %v137 = vld [vmem:[%s3 + $0x108] sm:$0xff]
  %v138 = vld [vmem:[%s3 + $0x110] sm:$0xff]
  %v139 = vld [vmem:[%s3 + $0x118] sm:$0xff]
  %v140 = vld [vmem:[%s3 + $0x120] sm:$0xff]
  %v141 = vld [vmem:[%s3 + $0x128] sm:$0xff]
  %v142 = vld [vmem:[%s3 + $0x130] sm:$0xff]
  %v143 = vld [vmem:[%s3 + $0x138] sm:$0xff]
  %v144 = vld [vmem:[%s3 + $0x140] sm:$0xff]
  %v145 = vld [vmem:[%s3 + $0x148] sm:$0xff]
  %v146 = vld [vmem:[%s3 + $0x150] sm:$0xff]
  %v147 = vld [vmem:[%s3 + $0x158] sm:$0xff]
  %v148 = vld [vmem:[%s3 + $0x160] sm:$0xff]
  %v149 = vld [vmem:[%s3 + $0x168] sm:$0xff]
  %v150 = vld [vmem:[%s3 + $0x170] sm:$0xff]
  %v151 = vld [vmem:[%s3 + $0x178] sm:$0xff]
  %v152 = vld [vmem:[%s3 + $0x180] sm:$0xff]
  %v153 = vld [vmem:[%s3 + $0x188] sm:$0xff]
  %v154 = vld [vmem:[%s3 + $0x190] sm:$0xff]
  %v155 = vld [vmem:[%s3 + $0x198] sm:$0xff]
  %v156 = vld [vmem:[%s3 + $0x1a0] sm:$0xff]
  %v157 = vld [vmem:[%s3 + $0x1a8] sm:$0xff]
  %v158 = vld [vmem:[%s3 + $0x1b0] sm:$0xff]
  %v159 = vld [vmem:[%s3 + $0x1b8] sm:$0xff]
  %v160 = vld [vmem:[%s3 + $0x1c0] sm:$0xff]
  %v161 = vld [vmem:[%s3 + $0x1c8] sm:$0xff]
  %v162 = vld [vmem:[%s3 + $0x1d0] sm:$0xff]
  %v163 = vld [vmem:[%s3 + $0x1d8] sm:$0xff]
  %v164 = vld [vmem:[%s3 + $0x1e0] sm:$0xff]
  %v165 = vld [vmem:[%s3 + $0x1e8] sm:$0xff]
  %v166 = vld [vmem:[%s3 + $0x1f0] sm:$0xff]
  %v167 = vld [vmem:[%s3 + $0x1f8] sm:$0xff]
  %v232 = vunpack.c.l.b16 %v104
  %v233 = vunpack.c.h.b16 %v104
  %v234 = vunpack.c.l.b16 %v105
  %v235 = vunpack.c.h.b16 %v105
  %v236 = vunpack.c.l.b16 %v106
  %v237 = vunpack.c.h.b16 %v106
  %v238 = vunpack.c.l.b16 %v107
  %v239 = vunpack.c.h.b16 %v107
  %v240 = vunpack.c.l.b16 %v108
  %v241 = vunpack.c.h.b16 %v108
  %v242 = vunpack.c.l.b16 %v109
  %v243 = vunpack.c.h.b16 %v109
  %v244 = vunpack.c.l.b16 %v110
  %v245 = vunpack.c.h.b16 %v110
  %v246 = vunpack.c.l.b16 %v111
  %v247 = vunpack.c.h.b16 %v111
  %v248 = vunpack.c.l.b16 %v112
  %v249 = vunpack.c.h.b16 %v112
  %v250 = vunpack.c.l.b16 %v113
  %v251 = vunpack.c.h.b16 %v113
  %v252 = vunpack.c.l.b16 %v114
  %v253 = vunpack.c.h.b16 %v114
  %v254 = vunpack.c.l.b16 %v115
  %v255 = vunpack.c.h.b16 %v115
  %v256 = vunpack.c.l.b16 %v116
  %v257 = vunpack.c.h.b16 %v116
  %v258 = vunpack.c.l.b16 %v117
  %v259 = vunpack.c.h.b16 %v117
  %v260 = vunpack.c.l.b16 %v118
  %v261 = vunpack.c.h.b16 %v118
  %v262 = vunpack.c.l.b16 %v119
  %v263 = vunpack.c.h.b16 %v119
  %v264 = vunpack.c.l.b16 %v120
  %v265 = vunpack.c.h.b16 %v120
  %v266 = vunpack.c.l.b16 %v121
  %v267 = vunpack.c.h.b16 %v121
  %v268 = vunpack.c.l.b16 %v122
  %v269 = vunpack.c.h.b16 %v122
  %v270 = vunpack.c.l.b16 %v123
  %v271 = vunpack.c.h.b16 %v123
  %v272 = vunpack.c.l.b16 %v124
  %v273 = vunpack.c.h.b16 %v124
  %v274 = vunpack.c.l.b16 %v125
  %v275 = vunpack.c.h.b16 %v125
  %v276 = vunpack.c.l.b16 %v126
  %v277 = vunpack.c.h.b16 %v126
  %v278 = vunpack.c.l.b16 %v127
  %v279 = vunpack.c.h.b16 %v127
  %v280 = vunpack.c.l.b16 %v128
  %v281 = vunpack.c.h.b16 %v128
  %v282 = vunpack.c.l.b16 %v129
  %v283 = vunpack.c.h.b16 %v129
  %v284 = vunpack.c.l.b16 %v130
  %v285 = vunpack.c.h.b16 %v130
  %v286 = vunpack.c.l.b16 %v131
  %v287 = vunpack.c.h.b16 %v131
  %v288 = vunpack.c.l.b16 %v132
  %v289 = vunpack.c.h.b16 %v132
  %v290 = vunpack.c.l.b16 %v133
  %v291 = vunpack.c.h.b16 %v133
  %v292 = vunpack.c.l.b16 %v134
  %v293 = vunpack.c.h.b16 %v134
  %v294 = vunpack.c.l.b16 %v135
  %v295 = vunpack.c.h.b16 %v135
  %v296 = vunpack.c.l.b16 %v136
  %v297 = vunpack.c.h.b16 %v136
  %v298 = vunpack.c.l.b16 %v137
  %v299 = vunpack.c.h.b16 %v137
  %v300 = vunpack.c.l.b16 %v138
  %v301 = vunpack.c.h.b16 %v138
  %v302 = vunpack.c.l.b16 %v139
  %v303 = vunpack.c.h.b16 %v139
  %v304 = vunpack.c.l.b16 %v140
  %v305 = vunpack.c.h.b16 %v140
  %v306 = vunpack.c.l.b16 %v141
  %v307 = vunpack.c.h.b16 %v141
  %v308 = vunpack.c.l.b16 %v142
  %v309 = vunpack.c.h.b16 %v142
  %v310 = vunpack.c.l.b16 %v143
  %v311 = vunpack.c.h.b16 %v143
  %v312 = vunpack.c.l.b16 %v144
  %v313 = vunpack.c.h.b16 %v144
  %v314 = vunpack.c.l.b16 %v145
  %v315 = vunpack.c.h.b16 %v145
  %v316 = vunpack.c.l.b16 %v146
  %v317 = vunpack.c.h.b16 %v146
  %v318 = vunpack.c.l.b16 %v147
  %v319 = vunpack.c.h.b16 %v147
  %v320 = vunpack.c.l.b16 %v148
  %v321 = vunpack.c.h.b16 %v148
  %v322 = vunpack.c.l.b16 %v149
  %v323 = vunpack.c.h.b16 %v149
  %v324 = vunpack.c.l.b16 %v150
  %v325 = vunpack.c.h.b16 %v150
  %v326 = vunpack.c.l.b16 %v151
  %v327 = vunpack.c.h.b16 %v151
  %v328 = vunpack.c.l.b16 %v152
  %v329 = vunpack.c.h.b16 %v152
  %v330 = vunpack.c.l.b16 %v153
  %v331 = vunpack.c.h.b16 %v153
  %v332 = vunpack.c.l.b16 %v154
  %v333 = vunpack.c.h.b16 %v154
  %v334 = vunpack.c.l.b16 %v155
  %v335 = vunpack.c.h.b16 %v155
  %v336 = vunpack.c.l.b16 %v156
  %v337 = vunpack.c.h.b16 %v156
  %v338 = vunpack.c.l.b16 %v157
  %v339 = vunpack.c.h.b16 %v157
  %v340 = vunpack.c.l.b16 %v158
  %v341 = vunpack.c.h.b16 %v158
  %v342 = vunpack.c.l.b16 %v159
  %v343 = vunpack.c.h.b16 %v159
  %v344 = vunpack.c.l.b16 %v160
  %v345 = vunpack.c.h.b16 %v160
  %v346 = vunpack.c.l.b16 %v161
  %v347 = vunpack.c.h.b16 %v161
  %v348 = vunpack.c.l.b16 %v162
  %v349 = vunpack.c.h.b16 %v162
  %v350 = vunpack.c.l.b16 %v163
  %v351 = vunpack.c.h.b16 %v163
  %v352 = vunpack.c.l.b16 %v164
  %v353 = vunpack.c.h.b16 %v164
  %v354 = vunpack.c.l.b16 %v165
  %v355 = vunpack.c.h.b16 %v165
  %v356 = vunpack.c.l.b16 %v166
  %v357 = vunpack.c.h.b16 %v166
  %v358 = vunpack.c.l.b16 %v167
  %v359 = vunpack.c.h.b16 %v167
  %v360 = vpack.c.b16 %v234, %v232
  %v361 = vpack.c.b16 %v235, %v233
  %v362 = vpack.c.b16 %v238, %v236
  %v363 = vpack.c.b16 %v239, %v237
  %v364 = vpack.c.b16 %v242, %v240
  %v365 = vpack.c.b16 %v243, %v241
  %v366 = vpack.c.b16 %v246, %v244
  %v367 = vpack.c.b16 %v247, %v245
  %v368 = vpack.c.b16 %v250, %v248
  %v369 = vpack.c.b16 %v251, %v249
  %v370 = vpack.c.b16 %v254, %v252
  %v371 = vpack.c.b16 %v255, %v253
  %v372 = vpack.c.b16 %v258, %v256
  %v373 = vpack.c.b16 %v259, %v257
  %v374 = vpack.c.b16 %v262, %v260
  %v375 = vpack.c.b16 %v263, %v261
  %v376 = vpack.c.b16 %v266, %v264
  %v377 = vpack.c.b16 %v267, %v265
  %v378 = vpack.c.b16 %v270, %v268
  %v379 = vpack.c.b16 %v271, %v269
  %v380 = vpack.c.b16 %v274, %v272
  %v381 = vpack.c.b16 %v275, %v273
  %v382 = vpack.c.b16 %v278, %v276
  %v383 = vpack.c.b16 %v279, %v277
  %v384 = vpack.c.b16 %v282, %v280
  %v385 = vpack.c.b16 %v283, %v281
  %v386 = vpack.c.b16 %v286, %v284
  %v387 = vpack.c.b16 %v287, %v285
  %v388 = vpack.c.b16 %v290, %v288
  %v389 = vpack.c.b16 %v291, %v289
  %v390 = vpack.c.b16 %v294, %v292
  %v391 = vpack.c.b16 %v295, %v293
  %v392 = vpack.c.b16 %v298, %v296
  %v393 = vpack.c.b16 %v299, %v297
  %v394 = vpack.c.b16 %v302, %v300
  %v395 = vpack.c.b16 %v303, %v301
  %v396 = vpack.c.b16 %v306, %v304
  %v397 = vpack.c.b16 %v307, %v305
  %v398 = vpack.c.b16 %v310, %v308
  %v399 = vpack.c.b16 %v311, %v309
  %v400 = vpack.c.b16 %v314, %v312
  %v401 = vpack.c.b16 %v315, %v313
  %v402 = vpack.c.b16 %v318, %v316
  %v403 = vpack.c.b16 %v319, %v317
  %v404 = vpack.c.b16 %v322, %v320
  %v405 = vpack.c.b16 %v323, %v321
  %v406 = vpack.c.b16 %v326, %v324
  %v407 = vpack.c.b16 %v327, %v325
  %v408 = vpack.c.b16 %v330, %v328
  %v409 = vpack.c.b16 %v331, %v329
  %v410 = vpack.c.b16 %v334, %v332
  %v411 = vpack.c.b16 %v335, %v333
  %v412 = vpack.c.b16 %v338, %v336
  %v413 = vpack.c.b16 %v339, %v337
  %v414 = vpack.c.b16 %v342, %v340
  %v415 = vpack.c.b16 %v343, %v341
  %v416 = vpack.c.b16 %v346, %v344
  %v417 = vpack.c.b16 %v347, %v345
  %v418 = vpack.c.b16 %v350, %v348
  %v419 = vpack.c.b16 %v351, %v349
  %v420 = vpack.c.b16 %v354, %v352
  %v421 = vpack.c.b16 %v355, %v353
  %v422 = vpack.c.b16 %v358, %v356
  %v423 = vpack.c.b16 %v359, %v357
  %488 = vmatprep.subr.bf16.mxu0 %v361
  %489 = vmatpush1.bf16.msra.mxu0 %v360
  %490 = vmatprep.subr.bf16.mxu0 %v363
  %491 = vmatpush1.bf16.msra.mxu0 %v362
  %492 = vmatprep.subr.bf16.mxu0 %v365
  %493 = vmatpush1.bf16.msra.mxu0 %v364
  %494 = vmatprep.subr.bf16.mxu0 %v367
  %495 = vmatpush1.bf16.msra.mxu0 %v366
  %496 = vmatprep.subr.bf16.mxu0 %v369
  %497 = vmatpush1.bf16.msra.mxu0 %v368
  %498 = vmatprep.subr.bf16.mxu0 %v371
  %499 = vmatpush1.bf16.msra.mxu0 %v370
  %500 = vmatprep.subr.bf16.mxu0 %v373
  %501 = vmatpush1.bf16.msra.mxu0 %v372
  %502 = vmatprep.subr.bf16.mxu0 %v375
  %503 = vmatpush1.bf16.msra.mxu0 %v374
  %504 = vmatprep.subr.bf16.mxu0 %v377
  %505 = vmatpush1.bf16.msra.mxu0 %v376
  %506 = vmatprep.subr.bf16.mxu0 %v379
  %507 = vmatpush1.bf16.msra.mxu0 %v378
  %508 = vmatprep.subr.bf16.mxu0 %v381
  %509 = vmatpush1.bf16.msra.mxu0 %v380
  %510 = vmatprep.subr.bf16.mxu0 %v383
  %511 = vmatpush1.bf16.msra.mxu0 %v382
  %512 = vmatprep.subr.bf16.mxu0 %v385
  %513 = vmatpush1.bf16.msra.mxu0 %v384
  %514 = vmatprep.subr.bf16.mxu0 %v387
  %515 = vmatpush1.bf16.msra.mxu0 %v386
  %516 = vmatprep.subr.bf16.mxu0 %v389
  %517 = vmatpush1.bf16.msra.mxu0 %v388
  %518 = vmatprep.subr.bf16.mxu0 %v391
  %519 = vmatpush1.bf16.msra.mxu0 %v390
  %520 = vmatprep.mubr.bf16.mxu0 %v101
  %521 = vmatmul.mubr.bf16.gmra.mrb[0].mxu0 %v100
  %v522 = vpop.f32.mrb[0].mxu0
  %v523 = vadd.f32 0.0, %v522
  %v524 = vpop.f32.mrb[0].mxu0
  %v525 = vadd.f32 0.0, %v524
  %v526 = vpop.f32.mrb[0].mxu0
  %v527 = vadd.f32 0.0, %v526
  %v528 = vpop.f32.mrb[0].mxu0
  %v529 = vadd.f32 0.0, %v528
  %530 = vdwg.mxu0
  %531 = vmatprep.subr.bf16.mxu0 %v393
  %532 = vmatpush1.bf16.msra.mxu0 %v392
  %533 = vmatprep.subr.bf16.mxu0 %v395
  %534 = vmatpush1.bf16.msra.mxu0 %v394
  %535 = vmatprep.subr.bf16.mxu0 %v397
  %536 = vmatpush1.bf16.msra.mxu0 %v396
  %537 = vmatprep.subr.bf16.mxu0 %v399
  %538 = vmatpush1.bf16.msra.mxu0 %v398
  %539 = vmatprep.subr.bf16.mxu0 %v401
  %540 = vmatpush1.bf16.msra.mxu0 %v400
  %541 = vmatprep.subr.bf16.mxu0 %v403
  %542 = vmatpush1.bf16.msra.mxu0 %v402
  %543 = vmatprep.subr.bf16.mxu0 %v405
  %544 = vmatpush1.bf16.msra.mxu0 %v404
  %545 = vmatprep.subr.bf16.mxu0 %v407
  %546 = vmatpush1.bf16.msra.mxu0 %v406
  %547 = vmatprep.subr.bf16.mxu0 %v409
  %548 = vmatpush1.bf16.msra.mxu0 %v408
  %549 = vmatprep.subr.bf16.mxu0 %v411
  %550 = vmatpush1.bf16.msra.mxu0 %v410
  %551 = vmatprep.subr.bf16.mxu0 %v413
  %552 = vmatpush1.bf16.msra.mxu0 %v412
  %553 = vmatprep.subr.bf16.mxu0 %v415
  %554 = vmatpush1.bf16.msra.mxu0 %v414
  %555 = vmatprep.subr.bf16.mxu0 %v417
  %556 = vmatpush1.bf16.msra.mxu0 %v416
  %557 = vmatprep.subr.bf16.mxu0 %v419
  %558 = vmatpush1.bf16.msra.mxu0 %v418
  %559 = vmatprep.subr.bf16.mxu0 %v421
  %560 = vmatpush1.bf16.msra.mxu0 %v420
  %561 = vmatprep.subr.bf16.mxu0 %v423
  %562 = vmatpush1.bf16.msra.mxu0 %v422
  %563 = vmatprep.mubr.bf16.mxu0 %v103
  %564 = vmatmul.mubr.bf16.gmra.mrb[0].mxu0 %v102
  %v565 = vpop.f32.mrb[0].mxu0
  %v566 = vadd.f32 %v523, %v565
  %v567 = vpop.f32.mrb[0].mxu0
  %v568 = vadd.f32 %v525, %v567
  %v569 = vpop.f32.mrb[0].mxu0
  %v570 = vadd.f32 %v527, %v569
  %v571 = vpop.f32.mrb[0].mxu0
  %v572 = vadd.f32 %v529, %v571
  %573 = vdwg.mxu0
  %574 = vst [vmem:[%s4] sm:$0xff] %v566
  %575 = vst [vmem:[%s4 + $0x8] sm:$0xff] %v568
  %576 = vst [vmem:[%s4 + $0x10] sm:$0xff] %v570
  %577 = vst [vmem:[%s4 + $0x18] sm:$0xff] %v572
  %vm578 = vcmask 130048
  %v580 = vsel %vm578, 1.0, 0
  %582 = vmatprep.subr.mxu0 %v568
  %583 = vmatpush1.msra.mxu0 %v566
  %584 = vmatprep.subr.mxu0 %v572
  %585 = vmatpush1.msra.mxu0 %v570
  %586 = vmatprep.subr.mxu0 0.0
  %587 = vmatpush1.msra.mxu0 0.0
  %588 = vmatprep.subr.mxu0 0.0
  %589 = vmatpush1.msra.mxu0 0.0
  %590 = vmatprep.subr.mxu0 0.0
  %591 = vmatpush1.msra.mxu0 0.0
  %592 = vmatprep.subr.mxu0 0.0
  %593 = vmatpush1.msra.mxu0 0.0
  %594 = vmatprep.subr.mxu0 0.0
  %595 = vmatpush1.msra.mxu0 0.0
  %596 = vmatprep.subr.mxu0 0.0
  %597 = vmatpush1.msra.mxu0 0.0
  %598 = vmatprep.subr.mxu0 0.0
  %599 = vmatpush1.msra.mxu0 0.0
  %600 = vmatprep.subr.mxu0 0.0
  %601 = vmatpush1.msra.mxu0 0.0
  %602 = vmatprep.subr.mxu0 0.0
  %603 = vmatpush1.msra.mxu0 0.0
  %604 = vmatprep.subr.mxu0 0.0
  %605 = vmatpush1.msra.mxu0 0.0
  %606 = vmatprep.subr.mxu0 0.0
  %607 = vmatpush1.msra.mxu0 0.0
  %608 = vmatprep.subr.mxu0 0.0
  %609 = vmatpush1.msra.mxu0 0.0
  %610 = vmatprep.subr.mxu0 0.0
  %611 = vmatpush1.msra.mxu0 0.0
  %612 = vmatprep.subr.mxu0 0.0
  %613 = vmatpush1.msra.mxu0 0.0
  %614 = vmatprep.subr.mxu0 0.0
  %615 = vmatpush1.msra.mxu0 0.0
  %616 = vmatprep.subr.mxu0 0.0
  %617 = vmatpush1.msra.mxu0 0.0
  %618 = vmatprep.subr.mxu0 0.0
  %619 = vmatpush1.msra.mxu0 0.0
  %620 = vmatprep.subr.mxu0 0.0
  %621 = vmatpush1.msra.mxu0 0.0
  %622 = vmatprep.subr.mxu0 0.0
  %623 = vmatpush1.msra.mxu0 0.0
  %624 = vmatprep.subr.mxu0 0.0
  %625 = vmatpush1.msra.mxu0 0.0
  %626 = vmatprep.subr.mxu0 0.0
  %627 = vmatpush1.msra.mxu0 0.0
  %628 = vmatprep.subr.mxu0 0.0
  %629 = vmatpush1.msra.mxu0 0.0
  %630 = vmatprep.subr.mxu0 0.0
  %631 = vmatpush1.msra.mxu0 0.0
  %632 = vmatprep.subr.mxu0 0.0
  %633 = vmatpush1.msra.mxu0 0.0
  %634 = vmatprep.subr.mxu0 0.0
  %635 = vmatpush1.msra.mxu0 0.0
  %636 = vmatprep.subr.mxu0 0.0
  %637 = vmatpush1.msra.mxu0 0.0
  %638 = vmatprep.subr.mxu0 0.0
  %639 = vmatpush1.msra.mxu0 0.0
  %640 = vmatprep.subr.mxu0 0.0
  %641 = vmatpush1.msra.mxu0 0.0
  %642 = vmatprep.subr.mxu0 0.0
  %643 = vmatpush1.msra.mxu0 0.0
  %644 = vmatprep.subr.mxu0 0.0
  %645 = vmatpush1.msra.mxu0 0.0
  %646 = vmatprep.mubr.f32.mxu0 0.0
  %647 = vmatmul.mubr.f32.gmra.mrb[0].mxu0 %v580
  %v648 = vpop.f32.mrb[0].mxu0
  %v649 = vadd.f32 0.0, %v648
  %v650 = vpop.f32.mrb[0].mxu0
  %v651 = vadd.f32 0.0, %v650
  %652 = vdwg.mxu0
  %v653 = vmul.f32 %v566, %v566
  %v654 = vmul.f32 %v568, %v568
  %v655 = vmul.f32 %v570, %v570
  %v656 = vmul.f32 %v572, %v572
  %657 = vmatprep.subr.mxu0 %v654
  %658 = vmatpush1.msra.mxu0 %v653
  %659 = vmatprep.subr.mxu0 %v656
  %660 = vmatpush1.msra.mxu0 %v655
  %661 = vmatprep.subr.mxu0 0.0
  %662 = vmatpush1.msra.mxu0 0.0
  %663 = vmatprep.subr.mxu0 0.0
  %664 = vmatpush1.msra.mxu0 0.0
  %665 = vmatprep.subr.mxu0 0.0
  %666 = vmatpush1.msra.mxu0 0.0
  %667 = vmatprep.subr.mxu0 0.0
  %668 = vmatpush1.msra.mxu0 0.0
  %669 = vmatprep.subr.mxu0 0.0
  %670 = vmatpush1.msra.mxu0 0.0
  %671 = vmatprep.subr.mxu0 0.0
  %672 = vmatpush1.msra.mxu0 0.0
  %673 = vmatprep.subr.mxu0 0.0
  %674 = vmatpush1.msra.mxu0 0.0
  %675 = vmatprep.subr.mxu0 0.0
  %676 = vmatpush1.msra.mxu0 0.0
  %677 = vmatprep.subr.mxu0 0.0
  %678 = vmatpush1.msra.mxu0 0.0
  %679 = vmatprep.subr.mxu0 0.0
  %680 = vmatpush1.msra.mxu0 0.0
  %681 = vmatprep.subr.mxu0 0.0
  %682 = vmatpush1.msra.mxu0 0.0
  %683 = vmatprep.subr.mxu0 0.0
  %684 = vmatpush1.msra.mxu0 0.0
  %685 = vmatprep.subr.mxu0 0.0
  %686 = vmatpush1.msra.mxu0 0.0
  %687 = vmatprep.subr.mxu0 0.0
  %688 = vmatpush1.msra.mxu0 0.0
  %689 = vmatprep.subr.mxu0 0.0
  %690 = vmatpush1.msra.mxu0 0.0
  %691 = vmatprep.subr.mxu0 0.0
  %692 = vmatpush1.msra.mxu0 0.0
  %693 = vmatprep.subr.mxu0 0.0
  %694 = vmatpush1.msra.mxu0 0.0
  %695 = vmatprep.subr.mxu0 0.0
  %696 = vmatpush1.msra.mxu0 0.0
  %697 = vmatprep.subr.mxu0 0.0
  %698 = vmatpush1.msra.mxu0 0.0
  %699 = vmatprep.subr.mxu0 0.0
  %700 = vmatpush1.msra.mxu0 0.0
  %701 = vmatprep.subr.mxu0 0.0
  %702 = vmatpush1.msra.mxu0 0.0
  %703 = vmatprep.subr.mxu0 0.0
  %704 = vmatpush1.msra.mxu0 0.0
  %705 = vmatprep.subr.mxu0 0.0
  %706 = vmatpush1.msra.mxu0 0.0
  %707 = vmatprep.subr.mxu0 0.0
  %708 = vmatpush1.msra.mxu0 0.0
  %709 = vmatprep.subr.mxu0 0.0
  %710 = vmatpush1.msra.mxu0 0.0
  %711 = vmatprep.subr.mxu0 0.0
  %712 = vmatpush1.msra.mxu0 0.0
  %713 = vmatprep.subr.mxu0 0.0
  %714 = vmatpush1.msra.mxu0 0.0
  %715 = vmatprep.subr.mxu0 0.0
  %716 = vmatpush1.msra.mxu0 0.0
  %717 = vmatprep.subr.mxu0 0.0
  %718 = vmatpush1.msra.mxu0 0.0
  %719 = vmatprep.subr.mxu0 0.0
  %720 = vmatpush1.msra.mxu0 0.0
  %721 = vmatprep.mubr.f32.mxu0 0.0
  %722 = vmatmul.mubr.f32.gmra.mrb[0].mxu0 %v580
  %v723 = vpop.f32.mrb[0].mxu0
  %v724 = vadd.f32 0.0, %v723
  %v725 = vpop.f32.mrb[0].mxu0
  %v726 = vadd.f32 0.0, %v725
  %727 = vdwg.mxu0
  %v730 = vcombine.low %v649, %v651
  %v732 = vunpack.c.l.s4 1966171168
  %v733 = vunpack.c.0.s8 %v732
  %v734 = vlaneseq
  %v735 = vshrl.u32 %v734, 7
  %v736 = vsub.s32 %v733, %v735
  %v737 = vrot.slane %v730, %v736
  %v739 = vunpack.c.l.s4 1966171168
  %v740 = vunpack.c.0.s8 %v739
  %v741 = vlaneseq
  %v742 = vshrl.u32 %v741, 7
  %v743 = vsub.s32 %v740, %v742
  %v744 = vrot.slane %v737, %v743
  %v746 = vlaneseq
  %vm747 = vcmp.ge.s32.totalorder %v746, 0
  %vm748 = vcmp.lt.s32.totalorder %v746, 256
  %vm749 = vmand %vm747, %vm748
  %750 = vst.msk [vmem:[%s5] sm:$0x3] %vm749, %v744
  %v753 = vcombine.low %v724, %v726
  %v755 = vunpack.c.l.s4 1966171168
  %v756 = vunpack.c.0.s8 %v755
  %v757 = vlaneseq
  %v758 = vshrl.u32 %v757, 7
  %v759 = vsub.s32 %v756, %v758
  %v760 = vrot.slane %v753, %v759
  %v762 = vunpack.c.l.s4 1966171168
  %v763 = vunpack.c.0.s8 %v762
  %v764 = vlaneseq
  %v765 = vshrl.u32 %v764, 7
  %v766 = vsub.s32 %v763, %v765
  %v767 = vrot.slane %v760, %v766
  %769 = vst.msk [vmem:[%s6] sm:$0x3] %vm749, %v767
  // Predicated region
  $region18: #{stn3d_forward.7} parent=0 // pred_check
    _
  $region19: #{stn3d_forward.7} parent=0 // pred_check_branch
    %771 = sbr.rel (0) target = $region21
  $region20: #{stn3d_forward.7} parent=0 // pred_region
    _
  $region21: #{stn3d_forward.7} parent=0 // pred_fallthru
    _
  // Predicated region
  $region22: #{stn3d_forward.7} parent=0 // pred_check
    _
  $region23: #{stn3d_forward.7} parent=0 // pred_check_branch
    %773 = sbr.rel (0) target = $region25
  $region24: #{stn3d_forward.7} parent=0 // pred_region
    _
  $region25: #{stn3d_forward.7} parent=0 // pred_fallthru
    _
  // Predicated region
  $region26: #{stn3d_forward.7} parent=0 // pred_check
    _
  $region27: #{stn3d_forward.7} parent=0 // pred_check_branch
    %775 = sbr.rel (0) target = $region29
  $region28: #{stn3d_forward.7} parent=0 // pred_region
    _
  $region29: #{stn3d_forward.7} parent=0 // pred_fallthru
    _
  // Predicated region
  $region30: #{stn3d_forward.7} parent=0 // pred_check
    _
  $region31: #{stn3d_forward.7} parent=0 // pred_check_branch
    %777 = sbr.rel (0) target = $region33
  $region32: #{stn3d_forward.7} parent=0 // pred_region
    _
  $region33: #{stn3d_forward.7} parent=0 // pred_fallthru
    _
  // Predicated region
  $region34: #{stn3d_forward.7} parent=0 // pred_check
    _
  $region35: #{stn3d_forward.7} parent=0 // pred_check_branch
    %779 = sbr.rel (0) target = $region37
  $region36: #{stn3d_forward.7} parent=0 // pred_region
    _
  $region37: #{stn3d_forward.7} parent=0 // pred_fallthru
    _
  // Predicated region
  $region38: #{stn3d_forward.7} parent=0 // pred_check
    _
  $region39: #{stn3d_forward.7} parent=0 // pred_check_branch
    %781 = sbr.rel (0) target = $region41
  $region40: #{stn3d_forward.7} parent=0 // pred_region
    _
  $region41: #{stn3d_forward.7} parent=0 // pred_fallthru
    _

</llo_original>
